<compile_context>
chip_gen: v6e
topology: v6e:2x2x1
jax: 0.10.0
libtpu: 0.0.40
codegen_flags: <defaults>
</compile_context>

<pallas_src>
import functools

import jax
import jax.numpy as jnp
from jax import lax
from jax.experimental import pallas as pl
from jax.experimental.pallas import tpu as pltpu


# ----------------------------- kernel helpers -----------------------------

def _rmsnorm(x, w, eps):
    # nn.RMSNorm: x * rsqrt(mean(x^2, -1) + eps) * weight   (all f32)
    var = jnp.mean(x * x, axis=-1, keepdims=True)
    return x * lax.rsqrt(var + eps) * w


# ----------------------------- fused kernel -----------------------------

def _fused_kernel(x_ref, pos_ref, mask_ref,
                  wq_ref, wk_ref, wv_ref, wo_ref,
                  anw_ref, mnw_ref, w1_ref, w2_ref, fnw_ref,
                  out_ref, *, num_heads, head_dim, eps, ffn_chunk):
    """Grid = (batch_split, layer).  One program = B_blk batch elems, one layer.

    The residual stream lives in out_ref, whose block index is constant along
    the layer axis -> it stays resident in VMEM across all layers (accumulator
    pattern), and is only flushed to HBM when the batch-split index changes.
    """
    l = pl.program_id(1)
    nl = pl.num_programs(1)
    B_blk, L, D = out_ref.shape
    M = B_blk * L
    scale = head_dim ** -0.5

    # ---- layer 0: initialize the residual stream with x + pos-emb (fused) ----
    @pl.when(l == 0)
    def _init():
        out_ref[...] = x_ref[...] + pos_ref[...]

    x = out_ref[...].reshape(M, D)                    # (M, D) f32, batch folded

    # ---- attention sub-block: x = x + out_proj(SDPA(RMSNorm(x))) ----
    h = _rmsnorm(x, anw_ref[...], eps).astype(jnp.bfloat16)
    q = jnp.dot(h, wq_ref[...], preferred_element_type=jnp.float32)   # (M, H*hd)
    k = jnp.dot(h, wk_ref[...], preferred_element_type=jnp.float32)
    v = jnp.dot(h, wv_ref[...], preferred_element_type=jnp.float32)
    q = (q * scale).astype(jnp.bfloat16)   # fold scale into q before the cast
    k = k.astype(jnp.bfloat16)
    v = v.astype(jnp.bfloat16)
    mask = mask_ref[...]                   # (L, L) additive causal bias (0/-inf)

    # Per-head batched (over B_blk) attention; head slices are 128-lane aligned.
    # TODO(synk): for large head counts switch to a single einshape relayout
    # instead of per-head slices + concat.
    ctx_heads = []
    for hh in range(num_heads):
        lo = hh * head_dim
        qh = q[:, lo:lo + head_dim].reshape(B_blk, L, head_dim)
        kh = k[:, lo:lo + head_dim].reshape(B_blk, L, head_dim)
        vh = v[:, lo:lo + head_dim].reshape(B_blk, L, head_dim)
        s = jnp.einsum('bqd,bkd->bqk', qh, kh,
                       preferred_element_type=jnp.float32) + mask[None]
        m = jnp.max(s, axis=-1, keepdims=True)
        e = jnp.exp(s - m)
        p = e * pl.reciprocal(jnp.sum(e, axis=-1, keepdims=True), approx=True)
        c = jnp.einsum('bqk,bkd->bqd', p.astype(jnp.bfloat16), vh,
                       preferred_element_type=jnp.float32)
        ctx_heads.append(c.reshape(M, head_dim))
    ctx = jnp.concatenate(ctx_heads, axis=-1).astype(jnp.bfloat16)    # (M, H*hd)
    x = x + jnp.dot(ctx, wo_ref[...], preferred_element_type=jnp.float32)

    # ---- MLP sub-block: x = x + linear2(silu(linear1(x)))  (non-gated) ----
    # Chunked over the FFN hidden axis so the f32 intermediate is never the full
    # (M, 4D) array (bounds vreg/VMEM pressure; each chunk keeps full MXU N).
    h2 = _rmsnorm(x, mnw_ref[...], eps).astype(jnp.bfloat16)
    ffn = w1_ref.shape[-1]
    mlp = jnp.zeros((M, D), jnp.float32)
    for co in range(0, ffn, ffn_chunk):
        g = jnp.dot(h2, w1_ref[:, co:co + ffn_chunk],
                    preferred_element_type=jnp.float32)               # (M, chunk)
        a = (g * jax.nn.sigmoid(g)).astype(jnp.bfloat16)              # silu
        mlp = mlp + jnp.dot(a, w2_ref[co:co + ffn_chunk, :],
                            preferred_element_type=jnp.float32)
    x = x + mlp

    y = x.reshape(B_blk, L, D)

    @pl.when(l == nl - 1)
    def _store_final():
        out_ref[...] = _rmsnorm(y, fnw_ref[...], eps)     # fused final RMSNorm

    @pl.when(l != nl - 1)
    def _store_mid():
        out_ref[...] = y


# ----------------------------- pallas wrapper -----------------------------

def transformer_forward(x, params, *, num_heads, head_dim, eps,
                        batch_splits=1, ffn_chunk=256):
    B, L, D = x.shape
    NL = params["wq"].shape[0]
    HD = num_heads * head_dim
    FFN = params["w1"].shape[-1]
    assert B % batch_splits == 0, (B, batch_splits)
    assert FFN % ffn_chunk == 0, (FFN, ffn_chunk)
    B_blk = B // batch_splits

    # Precomputed additive causal mask (replaces per-step iota/compare/select).
    row = lax.broadcasted_iota(jnp.int32, (L, L), 0)
    col = lax.broadcasted_iota(jnp.int32, (L, L), 1)
    mask = jnp.where(col > row, -jnp.inf, 0.0).astype(jnp.float32)

    act_spec = pl.BlockSpec((B_blk, L, D), lambda s, l: (s, 0, 0))

    def layer_spec(shape):
        # Per-layer weight stacked on axis 0, selected by the layer grid axis;
        # BlockSpec double-buffering prefetches layer l+1 while l computes.
        return pl.BlockSpec((None,) + shape,
                            lambda s, l, _nd=len(shape): (l,) + (0,) * _nd)

    in_specs = [
        act_spec,                                          # x
        pl.BlockSpec((1, L, D), lambda s, l: (0, 0, 0)),   # pos_emb (first L rows)
        pl.BlockSpec((L, L), lambda s, l: (0, 0)),         # causal mask bias
        layer_spec((D, HD)),                               # wq
        layer_spec((D, HD)),                               # wk
        layer_spec((D, HD)),                               # wv
        layer_spec((HD, D)),                               # wo
        layer_spec((1, D)),                                # attn_norm weight
        layer_spec((1, D)),                                # mlp_norm weight
        layer_spec((D, FFN)),                              # w1
        layer_spec((FFN, D)),                              # w2
        pl.BlockSpec((1, D), lambda s, l: (0, 0)),         # final norm weight
    ]
    inputs = [x, params["pos_emb"], mask,
              params["wq"], params["wk"], params["wv"], params["wo"],
              params["attn_norm"], params["mlp_norm"],
              params["w1"], params["w2"], params["final_norm"]]

    kernel = functools.partial(_fused_kernel, num_heads=num_heads,
                               head_dim=head_dim, eps=eps, ffn_chunk=ffn_chunk)

    return pl.pallas_call(
        kernel,
        out_shape=jax.ShapeDtypeStruct((B, L, D), jnp.float32),
        grid_spec=pltpu.PrefetchScalarGridSpec(
            num_scalar_prefetch=0,
            grid=(batch_splits, NL),
            in_specs=in_specs,
            out_specs=act_spec,
        ),
        compiler_params=pltpu.CompilerParams(
            dimension_semantics=("parallel", "arbitrary"),
            vmem_limit_bytes=32 * 1024 * 1024,   # safe on v5e/v6e/v7x at demo shapes
        ),
    )(*inputs)


# ----------------------------- params / reference -----------------------------

def init_params(key, *, D, num_heads, head_dim, num_layers, max_pos):
    HD = num_heads * head_dim
    FFN = 4 * D

    def w(k, shape):
        # weights stored bf16 (MXU-native) — f32 accumulation happens in-kernel
        return (0.02 * jax.random.normal(k, shape, jnp.float32)).astype(jnp.bfloat16)

    ks = jax.random.split(key, 6)
    params = {
        "wq": w(ks[0], (num_layers, D, HD)),
        "wk": w(ks[1], (num_layers, D, HD)),
        "wv": w(ks[2], (num_layers, D, HD)),
        "wo": w(ks[3], (num_layers, HD, D)),
        "w1": w(ks[4], (num_layers, D, FFN)),
        "w2": w(ks[5], (num_layers, FFN, D)),
        "attn_norm": jnp.ones((num_layers, 1, D), jnp.float32),  # nn.RMSNorm default
        "mlp_norm": jnp.ones((num_layers, 1, D), jnp.float32),
        "final_norm": jnp.ones((1, D), jnp.float32),
    }

    # _create_rotary_embedding: sinusoidal absolute embedding, concat(sin, cos)
    inv_freq = 1.0 / (10000.0 ** (jnp.arange(0, D, 2, dtype=jnp.float32) / D))
    pos = jnp.arange(max_pos, dtype=jnp.float32)
    sincos = pos[:, None] * inv_freq[None, :]
    params["pos_emb"] = jnp.concatenate(
        [jnp.sin(sincos), jnp.cos(sincos)], axis=-1)[None]        # (1, max_pos, D)
    return params


def ref_forward(x, params, *, num_heads, head_dim, eps):
    """Pure-JAX reference mirroring the PyTorch forward (same bf16 matmul casts)."""
    B, L, D = x.shape
    f32, bf16 = jnp.float32, jnp.bfloat16
    x = x + params["pos_emb"][:, :L, :]
    row = lax.broadcasted_iota(jnp.int32, (L, L), 0)
    col = lax.broadcasted_iota(jnp.int32, (L, L), 1)
    mask = jnp.where(col > row, -jnp.inf, 0.0).astype(f32)
    scale = head_dim ** -0.5
    NL = params["wq"].shape[0]

    def split(t):
        return t.reshape(B, L, num_heads, head_dim).transpose(0, 2, 1, 3).astype(bf16)

    for i in range(NL):
        h = _rmsnorm(x, params["attn_norm"][i], eps).astype(bf16)
        q = split(jnp.einsum("bld,df->blf", h, params["wq"][i],
                             preferred_element_type=f32))
        k = split(jnp.einsum("bld,df->blf", h, params["wk"][i],
                             preferred_element_type=f32))
        v = split(jnp.einsum("bld,df->blf", h, params["wv"][i],
                             preferred_element_type=f32))
        s = jnp.einsum("bhqd,bhkd->bhqk", q, k,
                       preferred_element_type=f32) * scale + mask
        p = jax.nn.softmax(s, axis=-1)
        ctx = jnp.einsum("bhqk,bhkd->bhqd", p.astype(bf16), v,
                         preferred_element_type=f32)
        ctx = ctx.transpose(0, 2, 1, 3).reshape(B, L, num_heads * head_dim).astype(bf16)
        x = x + jnp.einsum("blf,fd->bld", ctx, params["wo"][i],
                           preferred_element_type=f32)

        h2 = _rmsnorm(x, params["mlp_norm"][i], eps).astype(bf16)
        g = jnp.einsum("bld,df->blf", h2, params["w1"][i], preferred_element_type=f32)
        a = g * jax.nn.sigmoid(g)
        x = x + jnp.einsum("blf,fd->bld", a.astype(bf16), params["w2"][i],
                           preferred_element_type=f32)
    return _rmsnorm(x, params["final_norm"], eps)


# ----------------------------- main -----------------------------

if __name__ == "__main__":
    # Small but lane/MXU-friendly shapes: D, head_dim, 4D multiples of 128.
    B, L, D = 4, 64, 256
    NUM_HEADS = 2
    HEAD_DIM = D // NUM_HEADS          # 128 = lane width
    NUM_LAYERS = 2
    MAX_POS = 64                       # matches audio configs' max_position_embeddings
    EPS = 1e-5

    key = jax.random.PRNGKey(0)
    kx, kp = jax.random.split(key)
    x = jax.random.normal(kx, (B, L, D), jnp.float32)
    params = init_params(kp, D=D, num_heads=NUM_HEADS, head_dim=HEAD_DIM,
                         num_layers=NUM_LAYERS, max_pos=MAX_POS)

    # batch_splits=2: M=(B/2)*L=128 per program and a "parallel" axis that keeps
    # both v7x TensorCores busy; use batch_splits=1 on v5e/v6e for the full fold.
    fwd = jax.jit(functools.partial(
        transformer_forward, num_heads=NUM_HEADS, head_dim=HEAD_DIM, eps=EPS,
        batch_splits=2, ffn_chunk=256))
    out = jax.block_until_ready(fwd(x, params))

    ref = jax.block_until_ready(
        ref_forward(x, params, num_heads=NUM_HEADS, head_dim=HEAD_DIM, eps=EPS))

    assert out.shape == (B, L, D), out.shape
    max_err = float(jnp.max(jnp.abs(out - ref)))
    # bf16 matmuls mirrored in the reference; slack covers the approx reciprocal
    # and folding the attention scale into q before the bf16 cast.
    if max_err > 3e-2:
        raise AssertionError(f"mismatch vs reference: max abs err = {max_err}")

    print("KERNEL_OK")
</pallas_src>

<mosaic_0001>
module attributes {stable_mosaic.version = 11 : i64} {
  func.func @_fused_kernel(%arg0: i32, %arg1: i32, %arg2: memref<2x64x256xf32, #tpu.memory_space<vmem>>, %arg3: memref<1x64x256xf32, #tpu.memory_space<vmem>>, %arg4: memref<64x64xf32, #tpu.memory_space<vmem>>, %arg5: memref<1x256x256xbf16, #tpu.memory_space<vmem>>, %arg6: memref<1x256x256xbf16, #tpu.memory_space<vmem>>, %arg7: memref<1x256x256xbf16, #tpu.memory_space<vmem>>, %arg8: memref<1x256x256xbf16, #tpu.memory_space<vmem>>, %arg9: memref<1x1x256xf32, #tpu.memory_space<vmem>>, %arg10: memref<1x1x256xf32, #tpu.memory_space<vmem>>, %arg11: memref<1x256x1024xbf16, #tpu.memory_space<vmem>>, %arg12: memref<1x1024x256xbf16, #tpu.memory_space<vmem>>, %arg13: memref<1x256xf32, #tpu.memory_space<vmem>>, %arg14: memref<2x64x256xf32, #tpu.memory_space<vmem>>) attributes {dimension_semantics = [#tpu.dimension_semantics<parallel>, #tpu.dimension_semantics<arbitrary>], iteration_bounds = array<i64: 2, 2>, scalar_prefetch = 0 : i64, scratch_operands = 0 : i64, tpu.core_type = #tpu.core_type<tc>, window_params = [{transform_indices = @transform_0, window_bounds = array<i64: 2, 64, 256>}, {pipeline_mode = #tpu.pipeline_mode<synchronous>, transform_indices = @transform_1, window_bounds = array<i64: 1, 64, 256>}, {pipeline_mode = #tpu.pipeline_mode<synchronous>, transform_indices = @transform_2, window_bounds = array<i64: 64, 64>}, {transform_indices = @transform_3, window_bounds = array<i64: 1, 256, 256>}, {transform_indices = @transform_4, window_bounds = array<i64: 1, 256, 256>}, {transform_indices = @transform_5, window_bounds = array<i64: 1, 256, 256>}, {transform_indices = @transform_6, window_bounds = array<i64: 1, 256, 256>}, {transform_indices = @transform_7, window_bounds = array<i64: 1, 1, 256>}, {transform_indices = @transform_8, window_bounds = array<i64: 1, 1, 256>}, {transform_indices = @transform_9, window_bounds = array<i64: 1, 256, 1024>}, {transform_indices = @transform_10, window_bounds = array<i64: 1, 1024, 256>}, {pipeline_mode = #tpu.pipeline_mode<synchronous>, transform_indices = @transform_11, window_bounds = array<i64: 1, 256>}, {transform_indices = @transform_12, window_bounds = array<i64: 2, 64, 256>}]} {
    %c0_i32 = arith.constant 0 : i32
    %0 = arith.cmpi eq, %arg1, %c0_i32 : i32
    %1 = arith.extui %0 : i1 to i32
    %c0_i32_0 = arith.constant 0 : i32
    %2 = arith.cmpi ne, %1, %c0_i32_0 : i32
    scf.if %2 {
      %c0_78 = arith.constant 0 : index
      %c0_79 = arith.constant 0 : index
      %c0_80 = arith.constant 0 : index
      %167 = vector.load %arg2[%c0_78, %c0_79, %c0_80] : memref<2x64x256xf32, #tpu.memory_space<vmem>>, vector<2x64x256xf32>
      %c0_81 = arith.constant 0 : index
      %c0_82 = arith.constant 0 : index
      %c0_83 = arith.constant 0 : index
      %168 = vector.load %arg3[%c0_81, %c0_82, %c0_83] : memref<1x64x256xf32, #tpu.memory_space<vmem>>, vector<1x64x256xf32>
      %169 = vector.broadcast %168 : vector<1x64x256xf32> to vector<2x64x256xf32>
      %170 = arith.addf %167, %169 : vector<2x64x256xf32>
      %c0_84 = arith.constant 0 : index
      %c0_85 = arith.constant 0 : index
      %c0_86 = arith.constant 0 : index
      %171 = vector.load %arg14[%c0_84, %c0_85, %c0_86] : memref<2x64x256xf32, #tpu.memory_space<vmem>>, vector<2x64x256xf32>
      tpu.vector_store %arg14[%c0_84, %c0_85, %c0_86], %170 {strides = array<i32>} : memref<2x64x256xf32, #tpu.memory_space<vmem>>, vector<2x64x256xf32>,
    } else {
    }
    %c0 = arith.constant 0 : index
    %c0_1 = arith.constant 0 : index
    %c0_2 = arith.constant 0 : index
    %3 = vector.load %arg14[%c0, %c0_1, %c0_2] : memref<2x64x256xf32, #tpu.memory_space<vmem>>, vector<2x64x256xf32>
    %4 = vector.shape_cast %3 : vector<2x64x256xf32> to vector<128x256xf32>
    %c0_3 = arith.constant 0 : index
    %c0_4 = arith.constant 0 : index
    %c0_5 = arith.constant 0 : index
    %5 = vector.load %arg9[%c0_3, %c0_4, %c0_5] : memref<1x1x256xf32, #tpu.memory_space<vmem>>, vector<1x1x256xf32>
    %6 = vector.shape_cast %5 : vector<1x1x256xf32> to vector<1x256xf32>
    %7 = arith.mulf %4, %4 : vector<128x256xf32>
    %cst = arith.constant dense<0.000000e+00> : vector<128xf32>
    %8 = vector.multi_reduction <add>, %7, %cst [1] : vector<128x256xf32> to vector<128xf32>
    %9 = vector.shape_cast %8 : vector<128xf32> to vector<128x1xf32>
    %cst_6 = arith.constant 2.560000e+02 : f32
    %10 = vector.broadcast %cst_6 : f32 to vector<128x1xf32>
    %11 = arith.divf %9, %10 : vector<128x1xf32>
    %cst_7 = arith.constant 9.99999974E-6 : f32
    %12 = vector.broadcast %cst_7 : f32 to vector<128x1xf32>
    %13 = arith.addf %11, %12 : vector<128x1xf32>
    %14 = math.rsqrt %13 : vector<128x1xf32>
    %15 = vector.broadcast %14 : vector<128x1xf32> to vector<128x256xf32>
    %16 = arith.mulf %4, %15 : vector<128x256xf32>
    %17 = vector.broadcast %6 : vector<1x256xf32> to vector<128x256xf32>
    %18 = arith.mulf %16, %17 : vector<128x256xf32>
    %19 = arith.truncf %18 : vector<128x256xf32> to vector<128x256xbf16>
    %c0_8 = arith.constant 0 : index
    %c0_9 = arith.constant 0 : index
    %c0_10 = arith.constant 0 : index
    %20 = vector.load %arg5[%c0_8, %c0_9, %c0_10] : memref<1x256x256xbf16, #tpu.memory_space<vmem>>, vector<1x256x256xbf16>
    %21 = vector.shape_cast %20 : vector<1x256x256xbf16> to vector<256x256xbf16>
    %cst_11 = arith.constant dense<0.000000e+00> : vector<128x256xf32>
    %22 = tpu.matmul %19, %21, %cst_11 {dimension_numbers = #tpu.dot_dimension_numbers<[1], [0], [0], [1], [0, 0, 1, 1], [], []>} : vector<128x256xbf16>, vector<256x256xbf16>, vector<128x256xf32> -> vector<128x256xf32>
    %c0_12 = arith.constant 0 : index
    %c0_13 = arith.constant 0 : index
    %c0_14 = arith.constant 0 : index
    %23 = vector.load %arg6[%c0_12, %c0_13, %c0_14] : memref<1x256x256xbf16, #tpu.memory_space<vmem>>, vector<1x256x256xbf16>
    %24 = vector.shape_cast %23 : vector<1x256x256xbf16> to vector<256x256xbf16>
    %cst_15 = arith.constant dense<0.000000e+00> : vector<128x256xf32>
    %25 = tpu.matmul %19, %24, %cst_15 {dimension_numbers = #tpu.dot_dimension_numbers<[1], [0], [0], [1], [0, 0, 1, 1], [], []>} : vector<128x256xbf16>, vector<256x256xbf16>, vector<128x256xf32> -> vector<128x256xf32>
    %c0_16 = arith.constant 0 : index
    %c0_17 = arith.constant 0 : index
    %c0_18 = arith.constant 0 : index
    %26 = vector.load %arg7[%c0_16, %c0_17, %c0_18] : memref<1x256x256xbf16, #tpu.memory_space<vmem>>, vector<1x256x256xbf16>
    %27 = vector.shape_cast %26 : vector<1x256x256xbf16> to vector<256x256xbf16>
    %cst_19 = arith.constant dense<0.000000e+00> : vector<128x256xf32>
    %28 = tpu.matmul %19, %27, %cst_19 {dimension_numbers = #tpu.dot_dimension_numbers<[1], [0], [0], [1], [0, 0, 1, 1], [], []>} : vector<128x256xbf16>, vector<256x256xbf16>, vector<128x256xf32> -> vector<128x256xf32>
    %cst_20 = arith.constant 0.0883883461 : f32
    %29 = vector.broadcast %cst_20 : f32 to vector<128x256xf32>
    %30 = arith.mulf %22, %29 : vector<128x256xf32>
    %31 = arith.truncf %30 : vector<128x256xf32> to vector<128x256xbf16>
    %32 = arith.truncf %25 : vector<128x256xf32> to vector<128x256xbf16>
    %33 = arith.truncf %28 : vector<128x256xf32> to vector<128x256xbf16>
    %c0_21 = arith.constant 0 : index
    %c0_22 = arith.constant 0 : index
    %34 = vector.load %arg4[%c0_21, %c0_22] : memref<64x64xf32, #tpu.memory_space<vmem>>, vector<64x64xf32>
    %35 = vector.extract_strided_slice %31 {offsets = [0, 0], sizes = [128, 128], strides = [1, 1]} : vector<128x256xbf16> to vector<128x128xbf16>
    %36 = vector.shape_cast %35 : vector<128x128xbf16> to vector<2x64x128xbf16>
    %37 = vector.extract_strided_slice %32 {offsets = [0, 0], sizes = [128, 128], strides = [1, 1]} : vector<128x256xbf16> to vector<128x128xbf16>
    %38 = vector.shape_cast %37 : vector<128x128xbf16> to vector<2x64x128xbf16>
    %39 = vector.extract_strided_slice %33 {offsets = [0, 0], sizes = [128, 128], strides = [1, 1]} : vector<128x256xbf16> to vector<128x128xbf16>
    %40 = vector.shape_cast %39 : vector<128x128xbf16> to vector<2x64x128xbf16>
    "tpu.trace_start"() <{level = 10 : i32, message = "bqd,bkd->bqk"}> : () -> ()
    %cst_23 = arith.constant dense<0.000000e+00> : vector<2x64x64xf32>
    %41 = tpu.matmul %36, %38, %cst_23 {dimension_numbers = #tpu.dot_dimension_numbers<[2], [2], [1], [1], [0, 0, 0, 1, 1, 1], [0], [0]>} : vector<2x64x128xbf16>, vector<2x64x128xbf16>, vector<2x64x64xf32> -> vector<2x64x64xf32>
    "tpu.trace_stop"() : () -> ()
    %42 = vector.shape_cast %34 : vector<64x64xf32> to vector<1x64x64xf32>
    %43 = vector.broadcast %42 : vector<1x64x64xf32> to vector<2x64x64xf32>
    %44 = arith.addf %41, %43 : vector<2x64x64xf32>
    %cst_24 = arith.constant dense<0xFF800000> : vector<2x64xf32>
    %45 = vector.multi_reduction <maximumf>, %44, %cst_24 [2] : vector<2x64x64xf32> to vector<2x64xf32>
    %46 = vector.shape_cast %45 : vector<2x64xf32> to vector<2x64x1xf32>
    %47 = vector.broadcast %46 : vector<2x64x1xf32> to vector<2x64x64xf32>
    %48 = arith.subf %44, %47 : vector<2x64x64xf32>
    %49 = math.exp %48 : vector<2x64x64xf32>
    %cst_25 = arith.constant dense<0.000000e+00> : vector<2x64xf32>
    %50 = vector.multi_reduction <add>, %49, %cst_25 [2] : vector<2x64x64xf32> to vector<2x64xf32>
    %51 = vector.shape_cast %50 : vector<2x64xf32> to vector<2x64x1xf32>
    %52 = tpu.reciprocal %51 {approx = true} : vector<2x64x1xf32> -> vector<2x64x1xf32>
    %53 = vector.broadcast %52 : vector<2x64x1xf32> to vector<2x64x64xf32>
    %54 = arith.mulf %49, %53 : vector<2x64x64xf32>
    %55 = arith.truncf %54 : vector<2x64x64xf32> to vector<2x64x64xbf16>
    "tpu.trace_start"() <{level = 10 : i32, message = "bqk,bkd->bqd"}> : () -> ()
    %cst_26 = arith.constant dense<0.000000e+00> : vector<2x64x128xf32>
    %56 = tpu.matmul %55, %40, %cst_26 {dimension_numbers = #tpu.dot_dimension_numbers<[2], [1], [1], [2], [0, 0, 0, 1, 1, 2], [0], [0]>} : vector<2x64x64xbf16>, vector<2x64x128xbf16>, vector<2x64x128xf32> -> vector<2x64x128xf32>
    "tpu.trace_stop"() : () -> ()
    %57 = vector.shape_cast %56 : vector<2x64x128xf32> to vector<128x128xf32>
    %58 = vector.extract_strided_slice %31 {offsets = [0, 128], sizes = [128, 128], strides = [1, 1]} : vector<128x256xbf16> to vector<128x128xbf16>
    %59 = vector.shape_cast %58 : vector<128x128xbf16> to vector<2x64x128xbf16>
    %60 = vector.extract_strided_slice %32 {offsets = [0, 128], sizes = [128, 128], strides = [1, 1]} : vector<128x256xbf16> to vector<128x128xbf16>
    %61 = vector.shape_cast %60 : vector<128x128xbf16> to vector<2x64x128xbf16>
    %62 = vector.extract_strided_slice %33 {offsets = [0, 128], sizes = [128, 128], strides = [1, 1]} : vector<128x256xbf16> to vector<128x128xbf16>
    %63 = vector.shape_cast %62 : vector<128x128xbf16> to vector<2x64x128xbf16>
    "tpu.trace_start"() <{level = 10 : i32, message = "bqd,bkd->bqk"}> : () -> ()
    %cst_27 = arith.constant dense<0.000000e+00> : vector<2x64x64xf32>
    %64 = tpu.matmul %59, %61, %cst_27 {dimension_numbers = #tpu.dot_dimension_numbers<[2], [2], [1], [1], [0, 0, 0, 1, 1, 1], [0], [0]>} : vector<2x64x128xbf16>, vector<2x64x128xbf16>, vector<2x64x64xf32> -> vector<2x64x64xf32>
    "tpu.trace_stop"() : () -> ()
    %65 = vector.shape_cast %34 : vector<64x64xf32> to vector<1x64x64xf32>
    %66 = vector.broadcast %65 : vector<1x64x64xf32> to vector<2x64x64xf32>
    %67 = arith.addf %64, %66 : vector<2x64x64xf32>
    %cst_28 = arith.constant dense<0xFF800000> : vector<2x64xf32>
    %68 = vector.multi_reduction <maximumf>, %67, %cst_28 [2] : vector<2x64x64xf32> to vector<2x64xf32>
    %69 = vector.shape_cast %68 : vector<2x64xf32> to vector<2x64x1xf32>
    %70 = vector.broadcast %69 : vector<2x64x1xf32> to vector<2x64x64xf32>
    %71 = arith.subf %67, %70 : vector<2x64x64xf32>
    %72 = math.exp %71 : vector<2x64x64xf32>
    %cst_29 = arith.constant dense<0.000000e+00> : vector<2x64xf32>
    %73 = vector.multi_reduction <add>, %72, %cst_29 [2] : vector<2x64x64xf32> to vector<2x64xf32>
    %74 = vector.shape_cast %73 : vector<2x64xf32> to vector<2x64x1xf32>
    %75 = tpu.reciprocal %74 {approx = true} : vector<2x64x1xf32> -> vector<2x64x1xf32>
    %76 = vector.broadcast %75 : vector<2x64x1xf32> to vector<2x64x64xf32>
    %77 = arith.mulf %72, %76 : vector<2x64x64xf32>
    %78 = arith.truncf %77 : vector<2x64x64xf32> to vector<2x64x64xbf16>
    "tpu.trace_start"() <{level = 10 : i32, message = "bqk,bkd->bqd"}> : () -> ()
    %cst_30 = arith.constant dense<0.000000e+00> : vector<2x64x128xf32>
    %79 = tpu.matmul %78, %63, %cst_30 {dimension_numbers = #tpu.dot_dimension_numbers<[2], [1], [1], [2], [0, 0, 0, 1, 1, 2], [0], [0]>} : vector<2x64x64xbf16>, vector<2x64x128xbf16>, vector<2x64x128xf32> -> vector<2x64x128xf32>
    "tpu.trace_stop"() : () -> ()
    %80 = vector.shape_cast %79 : vector<2x64x128xf32> to vector<128x128xf32>
    %81 = tpu.concatenate %57, %80 in 1 : vector<128x128xf32>, vector<128x128xf32> -> vector<128x256xf32>
    %82 = arith.truncf %81 : vector<128x256xf32> to vector<128x256xbf16>
    %c0_31 = arith.constant 0 : index
    %c0_32 = arith.constant 0 : index
    %c0_33 = arith.constant 0 : index
    %83 = vector.load %arg8[%c0_31, %c0_32, %c0_33] : memref<1x256x256xbf16, #tpu.memory_space<vmem>>, vector<1x256x256xbf16>
    %84 = vector.shape_cast %83 : vector<1x256x256xbf16> to vector<256x256xbf16>
    %cst_34 = arith.constant dense<0.000000e+00> : vector<128x256xf32>
    %85 = tpu.matmul %82, %84, %cst_34 {dimension_numbers = #tpu.dot_dimension_numbers<[1], [0], [0], [1], [0, 0, 1, 1], [], []>} : vector<128x256xbf16>, vector<256x256xbf16>, vector<128x256xf32> -> vector<128x256xf32>
    %86 = arith.addf %4, %85 : vector<128x256xf32>
    %c0_35 = arith.constant 0 : index
    %c0_36 = arith.constant 0 : index
    %c0_37 = arith.constant 0 : index
    %87 = vector.load %arg10[%c0_35, %c0_36, %c0_37] : memref<1x1x256xf32, #tpu.memory_space<vmem>>, vector<1x1x256xf32>
    %88 = vector.shape_cast %87 : vector<1x1x256xf32> to vector<1x256xf32>
    %89 = arith.mulf %86, %86 : vector<128x256xf32>
    %cst_38 = arith.constant dense<0.000000e+00> : vector<128xf32>
    %90 = vector.multi_reduction <add>, %89, %cst_38 [1] : vector<128x256xf32> to vector<128xf32>
    %91 = vector.shape_cast %90 : vector<128xf32> to vector<128x1xf32>
    %cst_39 = arith.constant 2.560000e+02 : f32
    %92 = vector.broadcast %cst_39 : f32 to vector<128x1xf32>
    %93 = arith.divf %91, %92 : vector<128x1xf32>
    %cst_40 = arith.constant 9.99999974E-6 : f32
    %94 = vector.broadcast %cst_40 : f32 to vector<128x1xf32>
    %95 = arith.addf %93, %94 : vector<128x1xf32>
    %96 = math.rsqrt %95 : vector<128x1xf32>
    %97 = vector.broadcast %96 : vector<128x1xf32> to vector<128x256xf32>
    %98 = arith.mulf %86, %97 : vector<128x256xf32>
    %99 = vector.broadcast %88 : vector<1x256xf32> to vector<128x256xf32>
    %100 = arith.mulf %98, %99 : vector<128x256xf32>
    %101 = arith.truncf %100 : vector<128x256xf32> to vector<128x256xbf16>
    %cst_41 = arith.constant 0.000000e+00 : f32
    %102 = vector.broadcast %cst_41 : f32 to vector<128x256xf32>
    %c0_42 = arith.constant 0 : index
    %c0_43 = arith.constant 0 : index
    %c0_44 = arith.constant 0 : index
    %103 = vector.load %arg11[%c0_42, %c0_43, %c0_44] : memref<1x256x1024xbf16, #tpu.memory_space<vmem>>, vector<1x256x256xbf16>
    %104 = vector.shape_cast %103 : vector<1x256x256xbf16> to vector<256x256xbf16>
    %cst_45 = arith.constant dense<0.000000e+00> : vector<128x256xf32>
    %105 = tpu.matmul %101, %104, %cst_45 {dimension_numbers = #tpu.dot_dimension_numbers<[1], [0], [0], [1], [0, 0, 1, 1], [], []>} : vector<128x256xbf16>, vector<256x256xbf16>, vector<128x256xf32> -> vector<128x256xf32>
    %106 = arith.negf %105 : vector<128x256xf32>
    %107 = math.exp %106 : vector<128x256xf32>
    %cst_46 = arith.constant 1.000000e+00 : f32
    %108 = vector.broadcast %cst_46 : f32 to vector<128x256xf32>
    %109 = arith.addf %108, %107 : vector<128x256xf32>
    %110 = arith.divf %108, %109 : vector<128x256xf32>
    %111 = arith.mulf %105, %110 : vector<128x256xf32>
    %112 = arith.truncf %111 : vector<128x256xf32> to vector<128x256xbf16>
    %c0_47 = arith.constant 0 : index
    %c0_48 = arith.constant 0 : index
    %c0_49 = arith.constant 0 : index
    %113 = vector.load %arg12[%c0_47, %c0_48, %c0_49] : memref<1x1024x256xbf16, #tpu.memory_space<vmem>>, vector<1x256x256xbf16>
    %114 = vector.shape_cast %113 : vector<1x256x256xbf16> to vector<256x256xbf16>
    %cst_50 = arith.constant dense<0.000000e+00> : vector<128x256xf32>
    %115 = tpu.matmul %112, %114, %cst_50 {dimension_numbers = #tpu.dot_dimension_numbers<[1], [0], [0], [1], [0, 0, 1, 1], [], []>} : vector<128x256xbf16>, vector<256x256xbf16>, vector<128x256xf32> -> vector<128x256xf32>
    %116 = arith.addf %102, %115 : vector<128x256xf32>
    %c0_51 = arith.constant 0 : index
    %c0_52 = arith.constant 0 : index
    %c256 = arith.constant 256 : index
    %117 = vector.load %arg11[%c0_51, %c0_52, %c256] : memref<1x256x1024xbf16, #tpu.memory_space<vmem>>, vector<1x256x256xbf16>
    %118 = vector.shape_cast %117 : vector<1x256x256xbf16> to vector<256x256xbf16>
    %cst_53 = arith.constant dense<0.000000e+00> : vector<128x256xf32>
    %119 = tpu.matmul %101, %118, %cst_53 {dimension_numbers = #tpu.dot_dimension_numbers<[1], [0], [0], [1], [0, 0, 1, 1], [], []>} : vector<128x256xbf16>, vector<256x256xbf16>, vector<128x256xf32> -> vector<128x256xf32>
    %120 = arith.negf %119 : vector<128x256xf32>
    %121 = math.exp %120 : vector<128x256xf32>
    %cst_54 = arith.constant 1.000000e+00 : f32
    %122 = vector.broadcast %cst_54 : f32 to vector<128x256xf32>
    %123 = arith.addf %122, %121 : vector<128x256xf32>
    %124 = arith.divf %122, %123 : vector<128x256xf32>
    %125 = arith.mulf %119, %124 : vector<128x256xf32>
    %126 = arith.truncf %125 : vector<128x256xf32> to vector<128x256xbf16>
    %c0_55 = arith.constant 0 : index
    %c256_56 = arith.constant 256 : index
    %c0_57 = arith.constant 0 : index
    %127 = vector.load %arg12[%c0_55, %c256_56, %c0_57] : memref<1x1024x256xbf16, #tpu.memory_space<vmem>>, vector<1x256x256xbf16>
    %128 = vector.shape_cast %127 : vector<1x256x256xbf16> to vector<256x256xbf16>
    %cst_58 = arith.constant dense<0.000000e+00> : vector<128x256xf32>
    %129 = tpu.matmul %126, %128, %cst_58 {dimension_numbers = #tpu.dot_dimension_numbers<[1], [0], [0], [1], [0, 0, 1, 1], [], []>} : vector<128x256xbf16>, vector<256x256xbf16>, vector<128x256xf32> -> vector<128x256xf32>
    %130 = arith.addf %116, %129 : vector<128x256xf32>
    %c0_59 = arith.constant 0 : index
    %c0_60 = arith.constant 0 : index
    %c512 = arith.constant 512 : index
    %131 = vector.load %arg11[%c0_59, %c0_60, %c512] : memref<1x256x1024xbf16, #tpu.memory_space<vmem>>, vector<1x256x256xbf16>
    %132 = vector.shape_cast %131 : vector<1x256x256xbf16> to vector<256x256xbf16>
    %cst_61 = arith.constant dense<0.000000e+00> : vector<128x256xf32>
    %133 = tpu.matmul %101, %132, %cst_61 {dimension_numbers = #tpu.dot_dimension_numbers<[1], [0], [0], [1], [0, 0, 1, 1], [], []>} : vector<128x256xbf16>, vector<256x256xbf16>, vector<128x256xf32> -> vector<128x256xf32>
    %134 = arith.negf %133 : vector<128x256xf32>
    %135 = math.exp %134 : vector<128x256xf32>
    %cst_62 = arith.constant 1.000000e+00 : f32
    %136 = vector.broadcast %cst_62 : f32 to vector<128x256xf32>
    %137 = arith.addf %136, %135 : vector<128x256xf32>
    %138 = arith.divf %136, %137 : vector<128x256xf32>
    %139 = arith.mulf %133, %138 : vector<128x256xf32>
    %140 = arith.truncf %139 : vector<128x256xf32> to vector<128x256xbf16>
    %c0_63 = arith.constant 0 : index
    %c512_64 = arith.constant 512 : index
    %c0_65 = arith.constant 0 : index
    %141 = vector.load %arg12[%c0_63, %c512_64, %c0_65] : memref<1x1024x256xbf16, #tpu.memory_space<vmem>>, vector<1x256x256xbf16>
    %142 = vector.shape_cast %141 : vector<1x256x256xbf16> to vector<256x256xbf16>
    %cst_66 = arith.constant dense<0.000000e+00> : vector<128x256xf32>
    %143 = tpu.matmul %140, %142, %cst_66 {dimension_numbers = #tpu.dot_dimension_numbers<[1], [0], [0], [1], [0, 0, 1, 1], [], []>} : vector<128x256xbf16>, vector<256x256xbf16>, vector<128x256xf32> -> vector<128x256xf32>
    %144 = arith.addf %130, %143 : vector<128x256xf32>
    %c0_67 = arith.constant 0 : index
    %c0_68 = arith.constant 0 : index
    %c768 = arith.constant 768 : index
    %145 = vector.load %arg11[%c0_67, %c0_68, %c768] : memref<1x256x1024xbf16, #tpu.memory_space<vmem>>, vector<1x256x256xbf16>
    %146 = vector.shape_cast %145 : vector<1x256x256xbf16> to vector<256x256xbf16>
    %cst_69 = arith.constant dense<0.000000e+00> : vector<128x256xf32>
    %147 = tpu.matmul %101, %146, %cst_69 {dimension_numbers = #tpu.dot_dimension_numbers<[1], [0], [0], [1], [0, 0, 1, 1], [], []>} : vector<128x256xbf16>, vector<256x256xbf16>, vector<128x256xf32> -> vector<128x256xf32>
    %148 = arith.negf %147 : vector<128x256xf32>
    %149 = math.exp %148 : vector<128x256xf32>
    %cst_70 = arith.constant 1.000000e+00 : f32
    %150 = vector.broadcast %cst_70 : f32 to vector<128x256xf32>
    %151 = arith.addf %150, %149 : vector<128x256xf32>
    %152 = arith.divf %150, %151 : vector<128x256xf32>
    %153 = arith.mulf %147, %152 : vector<128x256xf32>
    %154 = arith.truncf %153 : vector<128x256xf32> to vector<128x256xbf16>
    %c0_71 = arith.constant 0 : index
    %c768_72 = arith.constant 768 : index
    %c0_73 = arith.constant 0 : index
    %155 = vector.load %arg12[%c0_71, %c768_72, %c0_73] : memref<1x1024x256xbf16, #tpu.memory_space<vmem>>, vector<1x256x256xbf16>
    %156 = vector.shape_cast %155 : vector<1x256x256xbf16> to vector<256x256xbf16>
    %cst_74 = arith.constant dense<0.000000e+00> : vector<128x256xf32>
    %157 = tpu.matmul %154, %156, %cst_74 {dimension_numbers = #tpu.dot_dimension_numbers<[1], [0], [0], [1], [0, 0, 1, 1], [], []>} : vector<128x256xbf16>, vector<256x256xbf16>, vector<128x256xf32> -> vector<128x256xf32>
    %158 = arith.addf %144, %157 : vector<128x256xf32>
    %159 = arith.addf %86, %158 : vector<128x256xf32>
    %160 = vector.shape_cast %159 : vector<128x256xf32> to vector<2x64x256xf32>
    %c1_i32 = arith.constant 1 : i32
    %161 = arith.cmpi eq, %arg1, %c1_i32 : i32
    %162 = arith.extui %161 : i1 to i32
    %c0_i32_75 = arith.constant 0 : i32
    %163 = arith.cmpi ne, %162, %c0_i32_75 : i32
    scf.if %163 {
      %c0_78 = arith.constant 0 : index
      %c0_79 = arith.constant 0 : index
      %167 = vector.load %arg13[%c0_78, %c0_79] : memref<1x256xf32, #tpu.memory_space<vmem>>, vector<1x256xf32>
      %168 = arith.mulf %160, %160 : vector<2x64x256xf32>
      %cst_80 = arith.constant dense<0.000000e+00> : vector<2x64xf32>
      %169 = vector.multi_reduction <add>, %168, %cst_80 [2] : vector<2x64x256xf32> to vector<2x64xf32>
      %170 = vector.shape_cast %169 : vector<2x64xf32> to vector<2x64x1xf32>
      %cst_81 = arith.constant 2.560000e+02 : f32
      %171 = vector.broadcast %cst_81 : f32 to vector<2x64x1xf32>
      %172 = arith.divf %170, %171 : vector<2x64x1xf32>
      %cst_82 = arith.constant 9.99999974E-6 : f32
      %173 = vector.broadcast %cst_82 : f32 to vector<2x64x1xf32>
      %174 = arith.addf %172, %173 : vector<2x64x1xf32>
      %175 = math.rsqrt %174 : vector<2x64x1xf32>
      %176 = vector.broadcast %175 : vector<2x64x1xf32> to vector<2x64x256xf32>
      %177 = arith.mulf %160, %176 : vector<2x64x256xf32>
      %178 = vector.shape_cast %167 : vector<1x256xf32> to vector<1x1x256xf32>
      %179 = vector.broadcast %178 : vector<1x1x256xf32> to vector<2x64x256xf32>
      %180 = arith.mulf %177, %179 : vector<2x64x256xf32>
      %c0_83 = arith.constant 0 : index
      %c0_84 = arith.constant 0 : index
      %c0_85 = arith.constant 0 : index
      %181 = vector.load %arg14[%c0_83, %c0_84, %c0_85] : memref<2x64x256xf32, #tpu.memory_space<vmem>>, vector<2x64x256xf32>
      tpu.vector_store %arg14[%c0_83, %c0_84, %c0_85], %180 {strides = array<i32>} : memref<2x64x256xf32, #tpu.memory_space<vmem>>, vector<2x64x256xf32>,
    } else {
    }
    %c1_i32_76 = arith.constant 1 : i32
    %164 = arith.cmpi ne, %arg1, %c1_i32_76 : i32
    %165 = arith.extui %164 : i1 to i32
    %c0_i32_77 = arith.constant 0 : i32
    %166 = arith.cmpi ne, %165, %c0_i32_77 : i32
    scf.if %166 {
      %c0_78 = arith.constant 0 : index
      %c0_79 = arith.constant 0 : index
      %c0_80 = arith.constant 0 : index
      %167 = vector.load %arg14[%c0_78, %c0_79, %c0_80] : memref<2x64x256xf32, #tpu.memory_space<vmem>>, vector<2x64x256xf32>
      tpu.vector_store %arg14[%c0_78, %c0_79, %c0_80], %160 {strides = array<i32>} : memref<2x64x256xf32, #tpu.memory_space<vmem>>, vector<2x64x256xf32>,
    } else {
    }
    return
  }
  func.func @transform_0(%arg0: i32, %arg1: i32) -> (i32, i32, i32) {
    %c0_i32 = arith.constant 0 : i32
    %c0_i32_0 = arith.constant 0 : i32
    %c0_i32_1 = arith.constant 0 : i32
    return %arg0, %c0_i32, %c0_i32_0 : i32, i32, i32
  }
  func.func @transform_1(%arg0: i32, %arg1: i32) -> (i32, i32, i32) {
    %c0_i32 = arith.constant 0 : i32
    %c0_i32_0 = arith.constant 0 : i32
    %c0_i32_1 = arith.constant 0 : i32
    %c0_i32_2 = arith.constant 0 : i32
    return %c0_i32, %c0_i32_0, %c0_i32_1 : i32, i32, i32
  }
  func.func @transform_2(%arg0: i32, %arg1: i32) -> (i32, i32) {
    %c0_i32 = arith.constant 0 : i32
    %c0_i32_0 = arith.constant 0 : i32
    %c0_i32_1 = arith.constant 0 : i32
    return %c0_i32, %c0_i32_0 : i32, i32
  }
  func.func @transform_3(%arg0: i32, %arg1: i32) -> (i32, i32, i32) {
    %c0_i32 = arith.constant 0 : i32
    %c0_i32_0 = arith.constant 0 : i32
    %c0_i32_1 = arith.constant 0 : i32
    return %arg1, %c0_i32, %c0_i32_0 : i32, i32, i32
  }
  func.func @transform_4(%arg0: i32, %arg1: i32) -> (i32, i32, i32) {
    %c0_i32 = arith.constant 0 : i32
    %c0_i32_0 = arith.constant 0 : i32
    %c0_i32_1 = arith.constant 0 : i32
    return %arg1, %c0_i32, %c0_i32_0 : i32, i32, i32
  }
  func.func @transform_5(%arg0: i32, %arg1: i32) -> (i32, i32, i32) {
    %c0_i32 = arith.constant 0 : i32
    %c0_i32_0 = arith.constant 0 : i32
    %c0_i32_1 = arith.constant 0 : i32
    return %arg1, %c0_i32, %c0_i32_0 : i32, i32, i32
  }
  func.func @transform_6(%arg0: i32, %arg1: i32) -> (i32, i32, i32) {
    %c0_i32 = arith.constant 0 : i32
    %c0_i32_0 = arith.constant 0 : i32
    %c0_i32_1 = arith.constant 0 : i32
    return %arg1, %c0_i32, %c0_i32_0 : i32, i32, i32
  }
  func.func @transform_7(%arg0: i32, %arg1: i32) -> (i32, i32, i32) {
    %c0_i32 = arith.constant 0 : i32
    %c0_i32_0 = arith.constant 0 : i32
    %c0_i32_1 = arith.constant 0 : i32
    return %arg1, %c0_i32, %c0_i32_0 : i32, i32, i32
  }
  func.func @transform_8(%arg0: i32, %arg1: i32) -> (i32, i32, i32) {
    %c0_i32 = arith.constant 0 : i32
    %c0_i32_0 = arith.constant 0 : i32
    %c0_i32_1 = arith.constant 0 : i32
    return %arg1, %c0_i32, %c0_i32_0 : i32, i32, i32
  }
  func.func @transform_9(%arg0: i32, %arg1: i32) -> (i32, i32, i32) {
    %c0_i32 = arith.constant 0 : i32
    %c0_i32_0 = arith.constant 0 : i32
    %c0_i32_1 = arith.constant 0 : i32
    return %arg1, %c0_i32, %c0_i32_0 : i32, i32, i32
  }
  func.func @transform_10(%arg0: i32, %arg1: i32) -> (i32, i32, i32) {
    %c0_i32 = arith.constant 0 : i32
    %c0_i32_0 = arith.constant 0 : i32
    %c0_i32_1 = arith.constant 0 : i32
    return %arg1, %c0_i32, %c0_i32_0 : i32, i32, i32
  }
  func.func @transform_11(%arg0: i32, %arg1: i32) -> (i32, i32) {
    %c0_i32 = arith.constant 0 : i32
    %c0_i32_0 = arith.constant 0 : i32
    %c0_i32_1 = arith.constant 0 : i32
    return %c0_i32, %c0_i32_0 : i32, i32
  }
  func.func @transform_12(%arg0: i32, %arg1: i32) -> (i32, i32, i32) {
    %c0_i32 = arith.constant 0 : i32
    %c0_i32_0 = arith.constant 0 : i32
    %c0_i32_1 = arith.constant 0 : i32
    return %arg0, %c0_i32, %c0_i32_0 : i32, i32, i32
  }
}

</mosaic_0001>

<llo_original>
// kernel: transformer_forward.1
$region0: #{transformer_forward.1}
  #allocation0 [shape = 'u32[]', space=smem, size = 0x4, offset = 0x4, fixed_abs, tag = 'smem constant byte address 0x4 - core index']
  #allocation1 [shape = 'u32[144,128]{1,0:T(1,128)}', space=vmem, size = 0x12000, scoped, tag = 'internal scratch']
  %s0 = inlined_call_operand.hbm [shape: f32[4,64,256], index: 0, kind: input, shape index: {}]
  %s1 = inlined_call_operand.hbm [shape: f32[1,64,256], index: 1, kind: input, shape index: {}]
  %s2 = inlined_call_operand.vmem [shape: f32[64,64], index: 2, kind: input, shape index: {}]
  %s3 = inlined_call_operand.hbm [shape: bf16[2,256,256], index: 3, kind: input, shape index: {}]
  %s4 = inlined_call_operand.hbm [shape: bf16[2,256,256], index: 4, kind: input, shape index: {}]
  %s5 = inlined_call_operand.hbm [shape: bf16[2,256,256], index: 5, kind: input, shape index: {}]
  %s6 = inlined_call_operand.hbm [shape: bf16[2,256,256], index: 6, kind: input, shape index: {}]
  %s7 = inlined_call_operand.vmem [shape: f32[2,1,256], index: 7, kind: input, shape index: {}]
  %s8 = inlined_call_operand.vmem [shape: f32[2,1,256], index: 8, kind: input, shape index: {}]
  %s9 = inlined_call_operand.hbm [shape: bf16[2,256,1024], index: 9, kind: input, shape index: {}]
  %s10 = inlined_call_operand.hbm [shape: bf16[2,1024,256], index: 10, kind: input, shape index: {}]
  %s11 = inlined_call_operand.vmem [shape: f32[1,256], index: 11, kind: input, shape index: {}]
  %s12 = inlined_call_operand.hbm [shape: f32[4,64,256], index: 12, kind: output, shape index: {}]
  %s13 = sld [smem:[#allocation0]]
  $region125: #{transformer_forward.1} parent=0
    _
  %s15 = ssub.s32 1, %s13
  %s16 = scalar_select 0, %s15, %s13
  $region1: #{transformer_forward.1} parent=0
    #allocation2 [shape = 'u8[262144]{0}', space=vmem, size = 0x40000, scoped, tag = 'input window, operand 0']
    #allocation3 [shape = 's32[2]{0}', space=sflag, size = 0x8, scoped, tag = 'scoped memory for transformer_forward.1']
    #allocation4 [shape = 's32[2]{0}', space=sflag, size = 0x8, scoped, tag = 'scoped memory for transformer_forward.1']
    #allocation5 [shape = 'u8[65536]{0}', space=vmem, size = 0x10000, scoped, tag = 'input window, operand 1, single buffered']
    #allocation6 [shape = 's32[1]{0}', space=sflag, size = 0x4, scoped, tag = 'scoped memory for transformer_forward.1']
    #allocation7 [shape = 'u8[262144]{0}', space=vmem, size = 0x40000, scoped, tag = 'input window, operand 3']
    #allocation8 [shape = 'u8[262144]{0}', space=vmem, size = 0x40000, scoped, tag = 'input window, operand 4']
    #allocation9 [shape = 'u8[262144]{0}', space=vmem, size = 0x40000, scoped, tag = 'input window, operand 5']
    #allocation10 [shape = 'u8[262144]{0}', space=vmem, size = 0x40000, scoped, tag = 'input window, operand 6']
    #allocation11 [shape = 'u8[1048576]{0}', space=vmem, size = 0x100000, scoped, tag = 'input window, operand 9']
    #allocation12 [shape = 'u8[1048576]{0}', space=vmem, size = 0x100000, scoped, tag = 'input window, operand 10']
    #allocation13 [shape = 'u8[262144]{0}', space=vmem, size = 0x40000, scoped, tag = 'output window, operand 0']
    %17 = vsyncpa [#allocation3], 0
    %s18 = scalar_lea.sflag [#allocation3], 1
    %19 = vsyncpa %s18, 0
    %20 = vsyncpa [#allocation6], 0
    %21 = vsyncpa [#allocation4], 0
    %s22 = scalar_lea.sflag [#allocation4], 1
    %23 = vsyncpa %s22, 0
    loop: start=0, step=1, limit=6
    $region2: #{transformer_forward.1} parent=1 // loop_pre_header
      _
    $region3: #{transformer_forward.1} parent=1 // loop_header
      %s25 = sphi 0, %s29
      %p26 = scmp.ge.s32.totalorder %s25, 6
      %s32 = sphi 0, %s44
      %s33 = sphi 0, %s40
      %s34 = sphi 0, %s32
      %s35 = sphi 0, %s33
      %s36 = sphi 0, %s34
      %s37 = sphi 0, %s35
      %s47 = sphi 0, %s49
      %s50 = sphi 0, %s47
      %s51 = sphi 0, %s50
      %s67 = sphi 0, %s51
      %s71 = sphi 0, %s71
      %s73 = sphi 0, %s71
      %s74 = sphi 0, %s73
      %s88 = sphi 0, %s74
      %s92 = sphi 0, %s92
      %s94 = sphi 0, %s92
      %s95 = sphi 0, %s94
      %s109 = sphi 0, %s95
      %s115 = sphi 0, %s117
      %s118 = sphi 0, %s115
      %s119 = sphi 0, %s118
      %s135 = sphi 0, %s119
      %s141 = sphi 0, %s143
      %s144 = sphi 0, %s141
      %s145 = sphi 0, %s144
      %s161 = sphi 0, %s145
      %s167 = sphi 0, %s169
      %s170 = sphi 0, %s167
      %s171 = sphi 0, %s170
      %s187 = sphi 0, %s171
      %s193 = sphi 0, %s195
      %s196 = sphi 0, %s193
      %s197 = sphi 0, %s196
      %s213 = sphi 0, %s197
      %s219 = sphi 0, %s221
      %s222 = sphi 0, %s219
      %s223 = sphi 0, %s222
      %s239 = sphi 0, %s223
      %s245 = sphi 0, %s247
      %s248 = sphi 0, %s245
      %s249 = sphi 0, %s248
      %s265 = sphi 0, %s249
      %s271 = sphi 0, %s273
      %s274 = sphi 0, %s271
      %s275 = sphi 0, %s274
      %s291 = sphi 0, %s275
      %s297 = sphi 0, %s299
      %s300 = sphi 0, %s297
      %s301 = sphi 0, %s300
      %s317 = sphi 0, %s301
      %s321 = sphi 0, %s321
      %s323 = sphi 0, %s321
      %s324 = sphi 0, %s323
      %s338 = sphi 0, %s324
      %s344 = sphi 0, %s346
      %s347 = sphi 0, %s344
      %s348 = sphi 0, %s347
      %s364 = sphi 0, %s348
    $region4: #{transformer_forward.1} parent=1 // loop_header_branch
      %28 = sbr.rel (%p26) target = $region8
    $region5: #{transformer_forward.1} parent=1 // loop_body
      %s30 = ssub.s32 %s25, 1
      %s31 = ssub.s32 %s25, 2
      %s38 = sadd.s32 1, %s33
      %p39 = scmp.ge.s32.totalorder %s38, 2
      %s40 = scalar_select %p39, 0, %s38
      %s41 = sadd.s32 1, %s32
      %s42 = scalar_select %p39, %s41, %s32
      %p43 = scmp.ge.s32.totalorder %s42, 2
      %s44 = scalar_select %p43, 0, %s42
      %s45 = ssub.s32 %s32, %s44
      %p46 = scmp.eq.s32.totalorder %s45, 0
      %s48 = sadd.s32 %s47, 1
      %s49 = scalar_select %p46, %s47, %s48
      %p52 = pneg %p46
      %p53 = scmp.eq.s32.totalorder %s25, 3
      %p54 = por %p52, %p53
      %p55 = scmp.ne.s32.totalorder %s47, %s50
      %p56 = scmp.eq.s32.totalorder %s25, 0
      %p57 = por %p55, %p56
      %p58 = scmp.ne.s32.totalorder %s47, %s50
      %p59 = scmp.eq.s32.totalorder %s30, 3
      %p60 = por %p58, %p59
      %p61 = scmp.ne.s32.totalorder %s50, %s51
      %p62 = scmp.eq.s32.totalorder %s30, 0
      %p63 = por %p61, %p62
      %p64 = scmp.ne.s32.totalorder %s50, %s51
      %p65 = scmp.eq.s32.totalorder %s31, 3
      %p66 = por %p64, %p65
      %p68 = scmp.ne.s32.totalorder %s51, %s67
      %p69 = scmp.eq.s32.totalorder %s31, 0
      %p70 = por %p68, %p69
      %s72 = sadd.s32 %s71, 1
      %p75 = scmp.eq.s32.totalorder %s25, 3
      %p76 = scmp.ne.s32.totalorder %s71, %s73
      %p77 = scmp.eq.s32.totalorder %s25, 0
      %p78 = por %p76, %p77
      %p79 = scmp.ne.s32.totalorder %s71, %s73
      %p80 = scmp.eq.s32.totalorder %s30, 3
      %p81 = por %p79, %p80
      %p82 = scmp.ne.s32.totalorder %s73, %s74
      %p83 = scmp.eq.s32.totalorder %s30, 0
      %p84 = por %p82, %p83
      %p85 = scmp.ne.s32.totalorder %s73, %s74
      %p86 = scmp.eq.s32.totalorder %s31, 3
      %p87 = por %p85, %p86
      %p89 = scmp.ne.s32.totalorder %s74, %s88
      %p90 = scmp.eq.s32.totalorder %s31, 0
      %p91 = por %p89, %p90
      %s93 = sadd.s32 %s92, 1
      %p96 = scmp.eq.s32.totalorder %s25, 3
      %p97 = scmp.ne.s32.totalorder %s92, %s94
      %p98 = scmp.eq.s32.totalorder %s25, 0
      %p99 = por %p97, %p98
      %p100 = scmp.ne.s32.totalorder %s92, %s94
      %p101 = scmp.eq.s32.totalorder %s30, 3
      %p102 = por %p100, %p101
      %p103 = scmp.ne.s32.totalorder %s94, %s95
      %p104 = scmp.eq.s32.totalorder %s30, 0
      %p105 = por %p103, %p104
      %p106 = scmp.ne.s32.totalorder %s94, %s95
      %p107 = scmp.eq.s32.totalorder %s31, 3
      %p108 = por %p106, %p107
      %p110 = scmp.ne.s32.totalorder %s95, %s109
      %p111 = scmp.eq.s32.totalorder %s31, 0
      %p112 = por %p110, %p111
      %s113 = ssub.s32 %s33, %s40
      %p114 = scmp.eq.s32.totalorder %s113, 0
      %s116 = sadd.s32 %s115, 1
      %s117 = scalar_select %p114, %s115, %s116
      %p120 = pneg %p114
      %p121 = scmp.eq.s32.totalorder %s25, 3
      %p122 = por %p120, %p121
      %p123 = scmp.ne.s32.totalorder %s115, %s118
      %p124 = scmp.eq.s32.totalorder %s25, 0
      %p125 = por %p123, %p124
      %p126 = scmp.ne.s32.totalorder %s115, %s118
      %p127 = scmp.eq.s32.totalorder %s30, 3
      %p128 = por %p126, %p127
      %p129 = scmp.ne.s32.totalorder %s118, %s119
      %p130 = scmp.eq.s32.totalorder %s30, 0
      %p131 = por %p129, %p130
      %p132 = scmp.ne.s32.totalorder %s118, %s119
      %p133 = scmp.eq.s32.totalorder %s31, 3
      %p134 = por %p132, %p133
      %p136 = scmp.ne.s32.totalorder %s119, %s135
      %p137 = scmp.eq.s32.totalorder %s31, 0
      %p138 = por %p136, %p137
      %s139 = ssub.s32 %s33, %s40
      %p140 = scmp.eq.s32.totalorder %s139, 0
      %s142 = sadd.s32 %s141, 1
      %s143 = scalar_select %p140, %s141, %s142
      %p146 = pneg %p140
      %p147 = scmp.eq.s32.totalorder %s25, 3
      %p148 = por %p146, %p147
      %p149 = scmp.ne.s32.totalorder %s141, %s144
      %p150 = scmp.eq.s32.totalorder %s25, 0
      %p151 = por %p149, %p150
      %p152 = scmp.ne.s32.totalorder %s141, %s144
      %p153 = scmp.eq.s32.totalorder %s30, 3
      %p154 = por %p152, %p153
      %p155 = scmp.ne.s32.totalorder %s144, %s145
      %p156 = scmp.eq.s32.totalorder %s30, 0
      %p157 = por %p155, %p156
      %p158 = scmp.ne.s32.totalorder %s144, %s145
      %p159 = scmp.eq.s32.totalorder %s31, 3
      %p160 = por %p158, %p159
      %p162 = scmp.ne.s32.totalorder %s145, %s161
      %p163 = scmp.eq.s32.totalorder %s31, 0
      %p164 = por %p162, %p163
      %s165 = ssub.s32 %s33, %s40
      %p166 = scmp.eq.s32.totalorder %s165, 0
      %s168 = sadd.s32 %s167, 1
      %s169 = scalar_select %p166, %s167, %s168
      %p172 = pneg %p166
      %p173 = scmp.eq.s32.totalorder %s25, 3
      %p174 = por %p172, %p173
      %p175 = scmp.ne.s32.totalorder %s167, %s170
      %p176 = scmp.eq.s32.totalorder %s25, 0
      %p177 = por %p175, %p176
      %p178 = scmp.ne.s32.totalorder %s167, %s170
      %p179 = scmp.eq.s32.totalorder %s30, 3
      %p180 = por %p178, %p179
      %p181 = scmp.ne.s32.totalorder %s170, %s171
      %p182 = scmp.eq.s32.totalorder %s30, 0
      %p183 = por %p181, %p182
      %p184 = scmp.ne.s32.totalorder %s170, %s171
      %p185 = scmp.eq.s32.totalorder %s31, 3
      %p186 = por %p184, %p185
      %p188 = scmp.ne.s32.totalorder %s171, %s187
      %p189 = scmp.eq.s32.totalorder %s31, 0
      %p190 = por %p188, %p189
      %s191 = ssub.s32 %s33, %s40
      %p192 = scmp.eq.s32.totalorder %s191, 0
      %s194 = sadd.s32 %s193, 1
      %s195 = scalar_select %p192, %s193, %s194
      %p198 = pneg %p192
      %p199 = scmp.eq.s32.totalorder %s25, 3
      %p200 = por %p198, %p199
      %p201 = scmp.ne.s32.totalorder %s193, %s196
      %p202 = scmp.eq.s32.totalorder %s25, 0
      %p203 = por %p201, %p202
      %p204 = scmp.ne.s32.totalorder %s193, %s196
      %p205 = scmp.eq.s32.totalorder %s30, 3
      %p206 = por %p204, %p205
      %p207 = scmp.ne.s32.totalorder %s196, %s197
      %p208 = scmp.eq.s32.totalorder %s30, 0
      %p209 = por %p207, %p208
      %p210 = scmp.ne.s32.totalorder %s196, %s197
      %p211 = scmp.eq.s32.totalorder %s31, 3
      %p212 = por %p210, %p211
      %p214 = scmp.ne.s32.totalorder %s197, %s213
      %p215 = scmp.eq.s32.totalorder %s31, 0
      %p216 = por %p214, %p215
      %s217 = ssub.s32 %s33, %s40
      %p218 = scmp.eq.s32.totalorder %s217, 0
      %s220 = sadd.s32 %s219, 1
      %s221 = scalar_select %p218, %s219, %s220
      %p224 = pneg %p218
      %p225 = scmp.eq.s32.totalorder %s25, 3
      %p226 = por %p224, %p225
      %p227 = scmp.ne.s32.totalorder %s219, %s222
      %p228 = scmp.eq.s32.totalorder %s25, 0
      %p229 = por %p227, %p228
      %p230 = scmp.ne.s32.totalorder %s219, %s222
      %p231 = scmp.eq.s32.totalorder %s30, 3
      %p232 = por %p230, %p231
      %p233 = scmp.ne.s32.totalorder %s222, %s223
      %p234 = scmp.eq.s32.totalorder %s30, 0
      %p235 = por %p233, %p234
      %p236 = scmp.ne.s32.totalorder %s222, %s223
      %p237 = scmp.eq.s32.totalorder %s31, 3
      %p238 = por %p236, %p237
      %p240 = scmp.ne.s32.totalorder %s223, %s239
      %p241 = scmp.eq.s32.totalorder %s31, 0
      %p242 = por %p240, %p241
      %s243 = ssub.s32 %s33, %s40
      %p244 = scmp.eq.s32.totalorder %s243, 0
      %s246 = sadd.s32 %s245, 1
      %s247 = scalar_select %p244, %s245, %s246
      %p250 = pneg %p244
      %p251 = scmp.eq.s32.totalorder %s25, 3
      %p252 = por %p250, %p251
      %p253 = scmp.ne.s32.totalorder %s245, %s248
      %p254 = scmp.eq.s32.totalorder %s25, 0
      %p255 = por %p253, %p254
      %p256 = scmp.ne.s32.totalorder %s245, %s248
      %p257 = scmp.eq.s32.totalorder %s30, 3
      %p258 = por %p256, %p257
      %p259 = scmp.ne.s32.totalorder %s248, %s249
      %p260 = scmp.eq.s32.totalorder %s30, 0
      %p261 = por %p259, %p260
      %p262 = scmp.ne.s32.totalorder %s248, %s249
      %p263 = scmp.eq.s32.totalorder %s31, 3
      %p264 = por %p262, %p263
      %p266 = scmp.ne.s32.totalorder %s249, %s265
      %p267 = scmp.eq.s32.totalorder %s31, 0
      %p268 = por %p266, %p267
      %s269 = ssub.s32 %s33, %s40
      %p270 = scmp.eq.s32.totalorder %s269, 0
      %s272 = sadd.s32 %s271, 1
      %s273 = scalar_select %p270, %s271, %s272
      %p276 = pneg %p270
      %p277 = scmp.eq.s32.totalorder %s25, 3
      %p278 = por %p276, %p277
      %p279 = scmp.ne.s32.totalorder %s271, %s274
      %p280 = scmp.eq.s32.totalorder %s25, 0
      %p281 = por %p279, %p280
      %p282 = scmp.ne.s32.totalorder %s271, %s274
      %p283 = scmp.eq.s32.totalorder %s30, 3
      %p284 = por %p282, %p283
      %p285 = scmp.ne.s32.totalorder %s274, %s275
      %p286 = scmp.eq.s32.totalorder %s30, 0
      %p287 = por %p285, %p286
      %p288 = scmp.ne.s32.totalorder %s274, %s275
      %p289 = scmp.eq.s32.totalorder %s31, 3
      %p290 = por %p288, %p289
      %p292 = scmp.ne.s32.totalorder %s275, %s291
      %p293 = scmp.eq.s32.totalorder %s31, 0
      %p294 = por %p292, %p293
      %s295 = ssub.s32 %s33, %s40
      %p296 = scmp.eq.s32.totalorder %s295, 0
      %s298 = sadd.s32 %s297, 1
      %s299 = scalar_select %p296, %s297, %s298
      %p302 = pneg %p296
      %p303 = scmp.eq.s32.totalorder %s25, 3
      %p304 = por %p302, %p303
      %p305 = scmp.ne.s32.totalorder %s297, %s300
      %p306 = scmp.eq.s32.totalorder %s25, 0
      %p307 = por %p305, %p306
      %p308 = scmp.ne.s32.totalorder %s297, %s300
      %p309 = scmp.eq.s32.totalorder %s30, 3
      %p310 = por %p308, %p309
      %p311 = scmp.ne.s32.totalorder %s300, %s301
      %p312 = scmp.eq.s32.totalorder %s30, 0
      %p313 = por %p311, %p312
      %p314 = scmp.ne.s32.totalorder %s300, %s301
      %p315 = scmp.eq.s32.totalorder %s31, 3
      %p316 = por %p314, %p315
      %p318 = scmp.ne.s32.totalorder %s301, %s317
      %p319 = scmp.eq.s32.totalorder %s31, 0
      %p320 = por %p318, %p319
      %s322 = sadd.s32 %s321, 1
      %p325 = scmp.eq.s32.totalorder %s25, 3
      %p326 = scmp.ne.s32.totalorder %s321, %s323
      %p327 = scmp.eq.s32.totalorder %s25, 0
      %p328 = por %p326, %p327
      %p329 = scmp.ne.s32.totalorder %s321, %s323
      %p330 = scmp.eq.s32.totalorder %s30, 3
      %p331 = por %p329, %p330
      %p332 = scmp.ne.s32.totalorder %s323, %s324
      %p333 = scmp.eq.s32.totalorder %s30, 0
      %p334 = por %p332, %p333
      %p335 = scmp.ne.s32.totalorder %s323, %s324
      %p336 = scmp.eq.s32.totalorder %s31, 3
      %p337 = por %p335, %p336
      %p339 = scmp.ne.s32.totalorder %s324, %s338
      %p340 = scmp.eq.s32.totalorder %s31, 0
      %p341 = por %p339, %p340
      %s342 = ssub.s32 %s32, %s44
      %p343 = scmp.eq.s32.totalorder %s342, 0
      %s345 = sadd.s32 %s344, 1
      %s346 = scalar_select %p343, %s344, %s345
      %p349 = pneg %p343
      %p350 = scmp.eq.s32.totalorder %s25, 3
      %p351 = por %p349, %p350
      %p352 = scmp.ne.s32.totalorder %s344, %s347
      %p353 = scmp.eq.s32.totalorder %s25, 0
      %p354 = por %p352, %p353
      %p355 = scmp.ne.s32.totalorder %s344, %s347
      %p356 = scmp.eq.s32.totalorder %s30, 3
      %p357 = por %p355, %p356
      %p358 = scmp.ne.s32.totalorder %s347, %s348
      %p359 = scmp.eq.s32.totalorder %s30, 0
      %p360 = por %p358, %p359
      %p361 = scmp.ne.s32.totalorder %s347, %s348
      %p362 = scmp.eq.s32.totalorder %s31, 3
      %p363 = por %p361, %p362
      %p365 = scmp.ne.s32.totalorder %s348, %s364
      %p366 = scmp.eq.s32.totalorder %s31, 0
      %p367 = por %p365, %p366
      %p368 = scmp.le.s32.totalorder 1, %s25
      %p369 = scmp.lt.s32.totalorder %s25, 5
      %p370 = pnand %p368, %p369
      %p371 = pneg %p370
      // Predicated region
      $region9: #{transformer_forward.1} parent=5 // pred_check
        _
      $region10: #{transformer_forward.1} parent=5 // pred_check_branch
        %373 = sbr.rel (%p370) target = $region12
      $region11: #{transformer_forward.1} parent=5 // pred_region
        %s374 = ssub.s32 %s25, 1
        // Predicated region
        $region13: #{transformer_forward.1} parent=11 // pred_check
          %p375 = pneg %p84
        $region14: #{transformer_forward.1} parent=11 // pred_check_branch
          %377 = sbr.rel (%p375) target = $region16
        $region15: #{transformer_forward.1} parent=11 // pred_region
          %s379 = ssub.s32 2048, 2048
          %380 = vsyncadd [#allocation6], %s379
          %s381 = sshll.u32 [#allocation5], 4
          %s382 = int_to_ptr.vmem [resolvable:$true] %s381
          %387 = dma.hbm_to_vmem [thread:$0]  %s1, 2048, %s382, [#allocation6], 256, 256, 16
        $region16: #{transformer_forward.1} parent=11 // pred_fallthru
          _
        // Predicated region
        $region17: #{transformer_forward.1} parent=11 // pred_check
          %p388 = pneg %p105
        $region18: #{transformer_forward.1} parent=11 // pred_check_branch
          %390 = sbr.rel (%p388) target = $region20
        $region19: #{transformer_forward.1} parent=11 // pred_region
          _
        $region20: #{transformer_forward.1} parent=11 // pred_fallthru
          _
        // Predicated region
        $region21: #{transformer_forward.1} parent=11 // pred_check
          %p391 = pneg %p334
        $region22: #{transformer_forward.1} parent=11 // pred_check_branch
          %393 = sbr.rel (%p391) target = $region24
        $region23: #{transformer_forward.1} parent=11 // pred_region
          _
        $region24: #{transformer_forward.1} parent=11 // pred_fallthru
          _
      $region12: #{transformer_forward.1} parent=5 // pred_fallthru
        _
      %p394 = scmp.lt.s32.totalorder %s25, 4
      // Predicated region
      $region25: #{transformer_forward.1} parent=5 // pred_check
        %p395 = pneg %p394
      $region26: #{transformer_forward.1} parent=5 // pred_check_branch
        %397 = sbr.rel (%p395) target = $region28
      $region27: #{transformer_forward.1} parent=5 // pred_region
        // Predicated region
        $region29: #{transformer_forward.1} parent=27 // pred_check
          %p398 = pneg %p57
        $region30: #{transformer_forward.1} parent=27 // pred_check_branch
          %400 = sbr.rel (%p398) target = $region32
        $region31: #{transformer_forward.1} parent=27 // pred_region
          %s401 = sand.u32 %s25, 1
          %s402 = scalar_lea.sflag [#allocation3], %s401
          %s403 = sand.u32 %s47, 1
          %s404 = smul.addr %s403, 256
          %s405 = scalar_lea.vmem [#allocation2], %s404
          %s406 = smul.u32 2, %s32
          %s408 = ssub.s32 4096, 4096
          %409 = vsyncadd %s402, %s408
          %s410 = smul.addr %s406, 16
          %s411 = smul.addr %s410, 128
          %s412 = scalar_lea.hbm %s0, %s411
          %s413 = sshll.u32 %s405, 4
          %s414 = int_to_ptr.vmem [resolvable:$true] %s413
          %419 = dma.hbm_to_vmem [thread:$0]  %s412, 4096, %s414, %s402, 256, 256, 16
        $region32: #{transformer_forward.1} parent=27 // pred_fallthru
          _
        // Predicated region
        $region33: #{transformer_forward.1} parent=27 // pred_check
          %p420 = pneg %p125
        $region34: #{transformer_forward.1} parent=27 // pred_check_branch
          %422 = sbr.rel (%p420) target = $region36
        $region35: #{transformer_forward.1} parent=27 // pred_region
          %s423 = sand.u32 %s25, 1
          %s424 = scalar_lea.sflag [#allocation3], %s423
          %s425 = sand.u32 %s115, 1
          %s426 = smul.addr %s425, 256
          %s427 = scalar_lea.vmem [#allocation7], %s426
          %s429 = ssub.s32 4096, 4096
          %430 = vsyncadd %s424, %s429
          %s431 = smul.addr %s33, 64
          %s432 = smul.addr %s431, 64
          %s433 = scalar_lea.hbm %s3, %s432
          %s434 = sshll.u32 %s427, 4
          %s435 = int_to_ptr.vmem [resolvable:$true] %s434
          %440 = dma.hbm_to_vmem [thread:$0]  %s433, 4096, %s435, %s424, 128, 128, 8
        $region36: #{transformer_forward.1} parent=27 // pred_fallthru
          _
        // Predicated region
        $region37: #{transformer_forward.1} parent=27 // pred_check
          %p441 = pneg %p151
        $region38: #{transformer_forward.1} parent=27 // pred_check_branch
          %443 = sbr.rel (%p441) target = $region40
        $region39: #{transformer_forward.1} parent=27 // pred_region
          %s444 = sand.u32 %s25, 1
          %s445 = scalar_lea.sflag [#allocation3], %s444
          %s446 = sand.u32 %s141, 1
          %s447 = smul.addr %s446, 256
          %s448 = scalar_lea.vmem [#allocation8], %s447
          %s450 = ssub.s32 4096, 4096
          %451 = vsyncadd %s445, %s450
          %s452 = smul.addr %s33, 64
          %s453 = smul.addr %s452, 64
          %s454 = scalar_lea.hbm %s4, %s453
          %s455 = sshll.u32 %s448, 4
          %s456 = int_to_ptr.vmem [resolvable:$true] %s455
          %461 = dma.hbm_to_vmem [thread:$0]  %s454, 4096, %s456, %s445, 128, 128, 8
        $region40: #{transformer_forward.1} parent=27 // pred_fallthru
          _
        // Predicated region
        $region41: #{transformer_forward.1} parent=27 // pred_check
          %p462 = pneg %p177
        $region42: #{transformer_forward.1} parent=27 // pred_check_branch
          %464 = sbr.rel (%p462) target = $region44
        $region43: #{transformer_forward.1} parent=27 // pred_region
          %s465 = sand.u32 %s25, 1
          %s466 = scalar_lea.sflag [#allocation3], %s465
          %s467 = sand.u32 %s167, 1
          %s468 = smul.addr %s467, 256
          %s469 = scalar_lea.vmem [#allocation9], %s468
          %s471 = ssub.s32 4096, 4096
          %472 = vsyncadd %s466, %s471
          %s473 = smul.addr %s33, 64
          %s474 = smul.addr %s473, 64
          %s475 = scalar_lea.hbm %s5, %s474
          %s476 = sshll.u32 %s469, 4
          %s477 = int_to_ptr.vmem [resolvable:$true] %s476
          %482 = dma.hbm_to_vmem [thread:$0]  %s475, 4096, %s477, %s466, 128, 128, 8
        $region44: #{transformer_forward.1} parent=27 // pred_fallthru
          _
        // Predicated region
        $region45: #{transformer_forward.1} parent=27 // pred_check
          %p483 = pneg %p203
        $region46: #{transformer_forward.1} parent=27 // pred_check_branch
          %485 = sbr.rel (%p483) target = $region48
        $region47: #{transformer_forward.1} parent=27 // pred_region
          %s486 = sand.u32 %s25, 1
          %s487 = scalar_lea.sflag [#allocation3], %s486
          %s488 = sand.u32 %s193, 1
          %s489 = smul.addr %s488, 256
          %s490 = scalar_lea.vmem [#allocation10], %s489
          %s492 = ssub.s32 4096, 4096
          %493 = vsyncadd %s487, %s492
          %s494 = smul.addr %s33, 64
          %s495 = smul.addr %s494, 64
          %s496 = scalar_lea.hbm %s6, %s495
          %s497 = sshll.u32 %s490, 4
          %s498 = int_to_ptr.vmem [resolvable:$true] %s497
          %503 = dma.hbm_to_vmem [thread:$0]  %s496, 4096, %s498, %s487, 128, 128, 8
        $region48: #{transformer_forward.1} parent=27 // pred_fallthru
          _
        // Predicated region
        $region49: #{transformer_forward.1} parent=27 // pred_check
          %p504 = pneg %p229
        $region50: #{transformer_forward.1} parent=27 // pred_check_branch
          %506 = sbr.rel (%p504) target = $region52
        $region51: #{transformer_forward.1} parent=27 // pred_region
          %p507 = scmp.lt.s32.totalorder %s33, 1
          %s508 = scalar_select %p507, %s33, 1
          %s509 = smul.addr %s508, 2
          %s510 = scalar_lea.vmem %s7, %s509
        $region52: #{transformer_forward.1} parent=27 // pred_fallthru
          _
        // Predicated region
        $region53: #{transformer_forward.1} parent=27 // pred_check
          %p511 = pneg %p255
        $region54: #{transformer_forward.1} parent=27 // pred_check_branch
          %513 = sbr.rel (%p511) target = $region56
        $region55: #{transformer_forward.1} parent=27 // pred_region
          %p514 = scmp.lt.s32.totalorder %s33, 1
          %s515 = scalar_select %p514, %s33, 1
          %s516 = smul.addr %s515, 2
          %s517 = scalar_lea.vmem %s8, %s516
        $region56: #{transformer_forward.1} parent=27 // pred_fallthru
          _
        // Predicated region
        $region57: #{transformer_forward.1} parent=27 // pred_check
          %p518 = pneg %p281
        $region58: #{transformer_forward.1} parent=27 // pred_check_branch
          %520 = sbr.rel (%p518) target = $region60
        $region59: #{transformer_forward.1} parent=27 // pred_region
          %s521 = sand.u32 %s25, 1
          %s522 = scalar_lea.sflag [#allocation3], %s521
          %s523 = sand.u32 %s271, 1
          %s524 = smul.addr %s523, 1024
          %s525 = scalar_lea.vmem [#allocation11], %s524
          %s527 = ssub.s32 16384, 16384
          %528 = vsyncadd %s522, %s527
          %s529 = smul.addr %s33, 256
          %s530 = smul.addr %s529, 64
          %s531 = scalar_lea.hbm %s9, %s530
          %s532 = sshll.u32 %s525, 4
          %s533 = int_to_ptr.vmem [resolvable:$true] %s532
          %538 = dma.hbm_to_vmem [thread:$0]  %s531, 16384, %s533, %s522, 512, 512, 32
        $region60: #{transformer_forward.1} parent=27 // pred_fallthru
          _
        // Predicated region
        $region61: #{transformer_forward.1} parent=27 // pred_check
          %p539 = pneg %p307
        $region62: #{transformer_forward.1} parent=27 // pred_check_branch
          %541 = sbr.rel (%p539) target = $region64
        $region63: #{transformer_forward.1} parent=27 // pred_region
          %s542 = sand.u32 %s25, 1
          %s543 = scalar_lea.sflag [#allocation3], %s542
          %s544 = sand.u32 %s297, 1
          %s545 = smul.addr %s544, 1024
          %s546 = scalar_lea.vmem [#allocation12], %s545
          %s548 = ssub.s32 16384, 16384
          %549 = vsyncadd %s543, %s548
          %s550 = smul.addr %s33, 256
          %s551 = smul.addr %s550, 64
          %s552 = scalar_lea.hbm %s10, %s551
          %s553 = sshll.u32 %s546, 4
          %s554 = int_to_ptr.vmem [resolvable:$true] %s553
          %559 = dma.hbm_to_vmem [thread:$0]  %s552, 16384, %s554, %s543, 128, 128, 8
        $region64: #{transformer_forward.1} parent=27 // pred_fallthru
          _
      $region28: #{transformer_forward.1} parent=5 // pred_fallthru
        _
      %p560 = scmp.le.s32.totalorder 1, %s25
      %p561 = scmp.lt.s32.totalorder %s25, 5
      %p562 = pnand %p560, %p561
      %p563 = pneg %p562
      // Predicated region
      $region65: #{transformer_forward.1} parent=5 // pred_check
        _
      $region66: #{transformer_forward.1} parent=5 // pred_check_branch
        %565 = sbr.rel (%p562) target = $region68
      $region67: #{transformer_forward.1} parent=5 // pred_region
        %s566 = ssub.s32 %s25, 1
        %s567 = sand.u32 %s30, 1
        %s568 = scalar_lea.sflag [#allocation3], %s567
        %s569 = sand.u32 %s50, 1
        %s570 = smul.addr %s569, 256
        %s571 = scalar_lea.vmem [#allocation2], %s570
        // Predicated region
        $region69: #{transformer_forward.1} parent=67 // pred_check
          %p572 = pneg %p63
        $region70: #{transformer_forward.1} parent=67 // pred_check_branch
          %574 = sbr.rel (%p572) target = $region72
        $region71: #{transformer_forward.1} parent=67 // pred_region
          %575 = dma.done %s568, 4096
        $region72: #{transformer_forward.1} parent=67 // pred_fallthru
          _
        // Predicated region
        $region73: #{transformer_forward.1} parent=67 // pred_check
          %p576 = pneg %p84
        $region74: #{transformer_forward.1} parent=67 // pred_check_branch
          %578 = sbr.rel (%p576) target = $region76
        $region75: #{transformer_forward.1} parent=67 // pred_region
          %579 = dma.done [#allocation6], 2048
        $region76: #{transformer_forward.1} parent=67 // pred_fallthru
          _
        %s580 = sand.u32 %s30, 1
        %s581 = scalar_lea.sflag [#allocation3], %s580
        %s582 = sand.u32 %s118, 1
        %s583 = smul.addr %s582, 256
        %s584 = scalar_lea.vmem [#allocation7], %s583
        // Predicated region
        $region77: #{transformer_forward.1} parent=67 // pred_check
          %p585 = pneg %p131
        $region78: #{transformer_forward.1} parent=67 // pred_check_branch
          %587 = sbr.rel (%p585) target = $region80
        $region79: #{transformer_forward.1} parent=67 // pred_region
          %588 = dma.done %s581, 4096
        $region80: #{transformer_forward.1} parent=67 // pred_fallthru
          _
        %s589 = sand.u32 %s30, 1
        %s590 = scalar_lea.sflag [#allocation3], %s589
        %s591 = sand.u32 %s144, 1
        %s592 = smul.addr %s591, 256
        %s593 = scalar_lea.vmem [#allocation8], %s592
        // Predicated region
        $region81: #{transformer_forward.1} parent=67 // pred_check
          %p594 = pneg %p157
        $region82: #{transformer_forward.1} parent=67 // pred_check_branch
          %596 = sbr.rel (%p594) target = $region84
        $region83: #{transformer_forward.1} parent=67 // pred_region
          %597 = dma.done %s590, 4096
        $region84: #{transformer_forward.1} parent=67 // pred_fallthru
          _
        %s598 = sand.u32 %s30, 1
        %s599 = scalar_lea.sflag [#allocation3], %s598
        %s600 = sand.u32 %s170, 1
        %s601 = smul.addr %s600, 256
        %s602 = scalar_lea.vmem [#allocation9], %s601
        // Predicated region
        $region85: #{transformer_forward.1} parent=67 // pred_check
          %p603 = pneg %p183
        $region86: #{transformer_forward.1} parent=67 // pred_check_branch
          %605 = sbr.rel (%p603) target = $region88
        $region87: #{transformer_forward.1} parent=67 // pred_region
          %606 = dma.done %s599, 4096
        $region88: #{transformer_forward.1} parent=67 // pred_fallthru
          _
        %s607 = sand.u32 %s30, 1
        %s608 = scalar_lea.sflag [#allocation3], %s607
        %s609 = sand.u32 %s196, 1
        %s610 = smul.addr %s609, 256
        %s611 = scalar_lea.vmem [#allocation10], %s610
        // Predicated region
        $region89: #{transformer_forward.1} parent=67 // pred_check
          %p612 = pneg %p209
        $region90: #{transformer_forward.1} parent=67 // pred_check_branch
          %614 = sbr.rel (%p612) target = $region92
        $region91: #{transformer_forward.1} parent=67 // pred_region
          %615 = dma.done %s608, 4096
        $region92: #{transformer_forward.1} parent=67 // pred_fallthru
          _
        %s616 = sand.u32 %s30, 1
        %s617 = scalar_lea.sflag [#allocation3], %s616
        %s618 = sand.u32 %s274, 1
        %s619 = smul.addr %s618, 1024
        %s620 = scalar_lea.vmem [#allocation11], %s619
        // Predicated region
        $region93: #{transformer_forward.1} parent=67 // pred_check
          %p621 = pneg %p287
        $region94: #{transformer_forward.1} parent=67 // pred_check_branch
          %623 = sbr.rel (%p621) target = $region96
        $region95: #{transformer_forward.1} parent=67 // pred_region
          %624 = dma.done %s617, 16384
        $region96: #{transformer_forward.1} parent=67 // pred_fallthru
          _
        %s625 = sand.u32 %s30, 1
        %s626 = scalar_lea.sflag [#allocation3], %s625
        %s627 = sand.u32 %s300, 1
        %s628 = smul.addr %s627, 1024
        %s629 = scalar_lea.vmem [#allocation12], %s628
        // Predicated region
        $region97: #{transformer_forward.1} parent=67 // pred_check
          %p630 = pneg %p313
        $region98: #{transformer_forward.1} parent=67 // pred_check_branch
          %632 = sbr.rel (%p630) target = $region100
        $region99: #{transformer_forward.1} parent=67 // pred_region
          %633 = dma.done %s626, 16384
        $region100: #{transformer_forward.1} parent=67 // pred_fallthru
          _
        %s634 = sand.u32 %s30, 1
        %s635 = scalar_lea.sflag [#allocation3], %s634
        %s636 = sand.u32 %s50, 1
        %s637 = smul.addr %s636, 256
        %s638 = scalar_lea.vmem [#allocation2], %s637
        %p639 = pneg %p63
        %p640 = pneg %p60
        %p641 = pneg %p84
        %p642 = pneg %p81
        %p643 = pneg %p105
        %p644 = pneg %p102
        %s645 = sand.u32 %s30, 1
        %s646 = scalar_lea.sflag [#allocation3], %s645
        %s647 = sand.u32 %s118, 1
        %s648 = smul.addr %s647, 256
        %s649 = scalar_lea.vmem [#allocation7], %s648
        %p650 = pneg %p131
        %p651 = pneg %p128
        %s652 = sand.u32 %s30, 1
        %s653 = scalar_lea.sflag [#allocation3], %s652
        %s654 = sand.u32 %s144, 1
        %s655 = smul.addr %s654, 256
        %s656 = scalar_lea.vmem [#allocation8], %s655
        %p657 = pneg %p157
        %p658 = pneg %p154
        %s659 = sand.u32 %s30, 1
        %s660 = scalar_lea.sflag [#allocation3], %s659
        %s661 = sand.u32 %s170, 1
        %s662 = smul.addr %s661, 256
        %s663 = scalar_lea.vmem [#allocation9], %s662
        %p664 = pneg %p183
        %p665 = pneg %p180
        %s666 = sand.u32 %s30, 1
        %s667 = scalar_lea.sflag [#allocation3], %s666
        %s668 = sand.u32 %s196, 1
        %s669 = smul.addr %s668, 256
        %s670 = scalar_lea.vmem [#allocation10], %s669
        %p671 = pneg %p209
        %p672 = pneg %p206
        %p673 = scmp.lt.s32.totalorder %s35, 1
        %s674 = scalar_select %p673, %s35, 1
        %s675 = smul.addr %s674, 2
        %s676 = scalar_lea.vmem %s7, %s675
        %p677 = pneg %p235
        %p678 = pneg %p232
        %p679 = scmp.lt.s32.totalorder %s35, 1
        %s680 = scalar_select %p679, %s35, 1
        %s681 = smul.addr %s680, 2
        %s682 = scalar_lea.vmem %s8, %s681
        %p683 = pneg %p261
        %p684 = pneg %p258
        %s685 = sand.u32 %s30, 1
        %s686 = scalar_lea.sflag [#allocation3], %s685
        %s687 = sand.u32 %s274, 1
        %s688 = smul.addr %s687, 1024
        %s689 = scalar_lea.vmem [#allocation11], %s688
        %p690 = pneg %p287
        %p691 = pneg %p284
        %s692 = sand.u32 %s30, 1
        %s693 = scalar_lea.sflag [#allocation3], %s692
        %s694 = sand.u32 %s300, 1
        %s695 = smul.addr %s694, 1024
        %s696 = scalar_lea.vmem [#allocation12], %s695
        %p697 = pneg %p313
        %p698 = pneg %p310
        %p699 = pneg %p334
        %p700 = pneg %p331
        %p701 = pneg %p360
        %p702 = pneg %p357
        %s703 = sand.u32 %s347, 1
        %s704 = scalar_lea.sflag [#allocation4], %s703
        %s705 = sand.u32 %s347, 1
        %s706 = smul.addr %s705, 256
        %s707 = scalar_lea.vmem [#allocation13], %s706
        %s708 = smul.u32 2, %s34
        %p709 = scmp.lt.s32.totalorder %s35, 1
        %s710 = scalar_select %p709, %s35, 1
        %s711 = smul.addr %s710, 2
        %s712 = scalar_lea.vmem %s7, %s711
        %p713 = scmp.lt.s32.totalorder %s35, 1
        %s714 = scalar_select %p713, %s35, 1
        %s715 = smul.addr %s714, 2
        %s716 = scalar_lea.vmem %s8, %s715
        %s717 = smul.u32 2, %s34
        %p719 = scmp.eq.s32.totalorder %s35, 0
        // Predicated region
        $region101: #{transformer_forward.1} parent=67 // pred_check
          %p720 = pneg %p719
        $region102: #{transformer_forward.1} parent=67 // pred_check_branch
          %722 = sbr.rel (%p720) target = $region104
        $region103: #{transformer_forward.1} parent=67 // pred_region
          %v723 = vld [vmem:[%s571] sm:$0xff]
          %v724 = vld [vmem:[%s571 + $0x8] sm:$0xff]
          %v725 = vld [vmem:[%s571 + $0x10] sm:$0xff]
          %v726 = vld [vmem:[%s571 + $0x18] sm:$0xff]
          %v727 = vld [vmem:[%s571 + $0x20] sm:$0xff]
          %v728 = vld [vmem:[%s571 + $0x28] sm:$0xff]
          %v729 = vld [vmem:[%s571 + $0x30] sm:$0xff]
          %v730 = vld [vmem:[%s571 + $0x38] sm:$0xff]
          %v731 = vld [vmem:[%s571 + $0x40] sm:$0xff]
          %v732 = vld [vmem:[%s571 + $0x48] sm:$0xff]
          %v733 = vld [vmem:[%s571 + $0x50] sm:$0xff]
          %v734 = vld [vmem:[%s571 + $0x58] sm:$0xff]
          %v735 = vld [vmem:[%s571 + $0x60] sm:$0xff]
          %v736 = vld [vmem:[%s571 + $0x68] sm:$0xff]
          %v737 = vld [vmem:[%s571 + $0x70] sm:$0xff]
          %v738 = vld [vmem:[%s571 + $0x78] sm:$0xff]
          %v739 = vld [vmem:[%s571 + $0x80] sm:$0xff]
          %v740 = vld [vmem:[%s571 + $0x88] sm:$0xff]
          %v741 = vld [vmem:[%s571 + $0x90] sm:$0xff]
          %v742 = vld [vmem:[%s571 + $0x98] sm:$0xff]
          %v743 = vld [vmem:[%s571 + $0xa0] sm:$0xff]
          %v744 = vld [vmem:[%s571 + $0xa8] sm:$0xff]
          %v745 = vld [vmem:[%s571 + $0xb0] sm:$0xff]
          %v746 = vld [vmem:[%s571 + $0xb8] sm:$0xff]
          %v747 = vld [vmem:[%s571 + $0xc0] sm:$0xff]
          %v748 = vld [vmem:[%s571 + $0xc8] sm:$0xff]
          %v749 = vld [vmem:[%s571 + $0xd0] sm:$0xff]
          %v750 = vld [vmem:[%s571 + $0xd8] sm:$0xff]
          %v751 = vld [vmem:[%s571 + $0xe0] sm:$0xff]
          %v752 = vld [vmem:[%s571 + $0xe8] sm:$0xff]
          %v753 = vld [vmem:[%s571 + $0xf0] sm:$0xff]
          %v754 = vld [vmem:[%s571 + $0xf8] sm:$0xff]
          %v755 = vld [vmem:[#allocation5] sm:$0xff]
          %v756 = vld [vmem:[#allocation5 + $0x8] sm:$0xff]
          %v757 = vld [vmem:[#allocation5 + $0x10] sm:$0xff]
          %v758 = vld [vmem:[#allocation5 + $0x18] sm:$0xff]
          %v759 = vld [vmem:[#allocation5 + $0x20] sm:$0xff]
          %v760 = vld [vmem:[#allocation5 + $0x28] sm:$0xff]
          %v761 = vld [vmem:[#allocation5 + $0x30] sm:$0xff]
          %v762 = vld [vmem:[#allocation5 + $0x38] sm:$0xff]
          %v763 = vld [vmem:[#allocation5 + $0x40] sm:$0xff]
          %v764 = vld [vmem:[#allocation5 + $0x48] sm:$0xff]
          %v765 = vld [vmem:[#allocation5 + $0x50] sm:$0xff]
          %v766 = vld [vmem:[#allocation5 + $0x58] sm:$0xff]
          %v767 = vld [vmem:[#allocation5 + $0x60] sm:$0xff]
          %v768 = vld [vmem:[#allocation5 + $0x68] sm:$0xff]
          %v769 = vld [vmem:[#allocation5 + $0x70] sm:$0xff]
          %v770 = vld [vmem:[#allocation5 + $0x78] sm:$0xff]
          %v771 = vadd.f32 %v723, %v755
          %v772 = vadd.f32 %v724, %v756
          %v773 = vadd.f32 %v725, %v757
          %v774 = vadd.f32 %v726, %v758
          %v775 = vadd.f32 %v727, %v759
          %v776 = vadd.f32 %v728, %v760
          %v777 = vadd.f32 %v729, %v761
          %v778 = vadd.f32 %v730, %v762
          %v779 = vadd.f32 %v731, %v763
          %v780 = vadd.f32 %v732, %v764
          %v781 = vadd.f32 %v733, %v765
          %v782 = vadd.f32 %v734, %v766
          %v783 = vadd.f32 %v735, %v767
          %v784 = vadd.f32 %v736, %v768
          %v785 = vadd.f32 %v737, %v769
          %v786 = vadd.f32 %v738, %v770
          %v787 = vadd.f32 %v739, %v755
          %v788 = vadd.f32 %v740, %v756
          %v789 = vadd.f32 %v741, %v757
          %v790 = vadd.f32 %v742, %v758
          %v791 = vadd.f32 %v743, %v759
          %v792 = vadd.f32 %v744, %v760
          %v793 = vadd.f32 %v745, %v761
          %v794 = vadd.f32 %v746, %v762
          %v795 = vadd.f32 %v747, %v763
          %v796 = vadd.f32 %v748, %v764
          %v797 = vadd.f32 %v749, %v765
          %v798 = vadd.f32 %v750, %v766
          %v799 = vadd.f32 %v751, %v767
          %v800 = vadd.f32 %v752, %v768
          %v801 = vadd.f32 %v753, %v769
          %v802 = vadd.f32 %v754, %v770
          %803 = vst [vmem:[%s707] sm:$0xff] %v771
          %804 = vst [vmem:[%s707 + $0x8] sm:$0xff] %v772
          %805 = vst [vmem:[%s707 + $0x10] sm:$0xff] %v773
          %806 = vst [vmem:[%s707 + $0x18] sm:$0xff] %v774
          %807 = vst [vmem:[%s707 + $0x20] sm:$0xff] %v775
          %808 = vst [vmem:[%s707 + $0x28] sm:$0xff] %v776
          %809 = vst [vmem:[%s707 + $0x30] sm:$0xff] %v777
          %810 = vst [vmem:[%s707 + $0x38] sm:$0xff] %v778
          %811 = vst [vmem:[%s707 + $0x40] sm:$0xff] %v779
          %812 = vst [vmem:[%s707 + $0x48] sm:$0xff] %v780
          %813 = vst [vmem:[%s707 + $0x50] sm:$0xff] %v781
          %814 = vst [vmem:[%s707 + $0x58] sm:$0xff] %v782
          %815 = vst [vmem:[%s707 + $0x60] sm:$0xff] %v783
          %816 = vst [vmem:[%s707 + $0x68] sm:$0xff] %v784
          %817 = vst [vmem:[%s707 + $0x70] sm:$0xff] %v785
          %818 = vst [vmem:[%s707 + $0x78] sm:$0xff] %v786
          %819 = vst [vmem:[%s707 + $0x80] sm:$0xff] %v787
          %820 = vst [vmem:[%s707 + $0x88] sm:$0xff] %v788
          %821 = vst [vmem:[%s707 + $0x90] sm:$0xff] %v789
          %822 = vst [vmem:[%s707 + $0x98] sm:$0xff] %v790
          %823 = vst [vmem:[%s707 + $0xa0] sm:$0xff] %v791
          %824 = vst [vmem:[%s707 + $0xa8] sm:$0xff] %v792
          %825 = vst [vmem:[%s707 + $0xb0] sm:$0xff] %v793
          %826 = vst [vmem:[%s707 + $0xb8] sm:$0xff] %v794
          %827 = vst [vmem:[%s707 + $0xc0] sm:$0xff] %v795
          %828 = vst [vmem:[%s707 + $0xc8] sm:$0xff] %v796
          %829 = vst [vmem:[%s707 + $0xd0] sm:$0xff] %v797
          %830 = vst [vmem:[%s707 + $0xd8] sm:$0xff] %v798
          %831 = vst [vmem:[%s707 + $0xe0] sm:$0xff] %v799
          %832 = vst [vmem:[%s707 + $0xe8] sm:$0xff] %v800
          %833 = vst [vmem:[%s707 + $0xf0] sm:$0xff] %v801
          %834 = vst [vmem:[%s707 + $0xf8] sm:$0xff] %v802
        $region104: #{transformer_forward.1} parent=67 // pred_fallthru
          _
        %v835 = vld [vmem:[%s707] sm:$0xff]
        %v836 = vld [vmem:[%s707 + $0x8] sm:$0xff]
        %v837 = vld [vmem:[%s707 + $0x10] sm:$0xff]
        %v838 = vld [vmem:[%s707 + $0x18] sm:$0xff]
        %v839 = vld [vmem:[%s707 + $0x20] sm:$0xff]
        %v840 = vld [vmem:[%s707 + $0x28] sm:$0xff]
        %v841 = vld [vmem:[%s707 + $0x30] sm:$0xff]
        %v842 = vld [vmem:[%s707 + $0x38] sm:$0xff]
        %v843 = vld [vmem:[%s707 + $0x40] sm:$0xff]
        %v844 = vld [vmem:[%s707 + $0x48] sm:$0xff]
        %v845 = vld [vmem:[%s707 + $0x50] sm:$0xff]
        %v846 = vld [vmem:[%s707 + $0x58] sm:$0xff]
        %v847 = vld [vmem:[%s707 + $0x60] sm:$0xff]
        %v848 = vld [vmem:[%s707 + $0x68] sm:$0xff]
        %v849 = vld [vmem:[%s707 + $0x70] sm:$0xff]
        %v850 = vld [vmem:[%s707 + $0x78] sm:$0xff]
        %v851 = vld [vmem:[%s707 + $0x80] sm:$0xff]
        %v852 = vld [vmem:[%s707 + $0x88] sm:$0xff]
        %v853 = vld [vmem:[%s707 + $0x90] sm:$0xff]
        %v854 = vld [vmem:[%s707 + $0x98] sm:$0xff]
        %v855 = vld [vmem:[%s707 + $0xa0] sm:$0xff]
        %v856 = vld [vmem:[%s707 + $0xa8] sm:$0xff]
        %v857 = vld [vmem:[%s707 + $0xb0] sm:$0xff]
        %v858 = vld [vmem:[%s707 + $0xb8] sm:$0xff]
        %v859 = vld [vmem:[%s707 + $0xc0] sm:$0xff]
        %v860 = vld [vmem:[%s707 + $0xc8] sm:$0xff]
        %v861 = vld [vmem:[%s707 + $0xd0] sm:$0xff]
        %v862 = vld [vmem:[%s707 + $0xd8] sm:$0xff]
        %v863 = vld [vmem:[%s707 + $0xe0] sm:$0xff]
        %v864 = vld [vmem:[%s707 + $0xe8] sm:$0xff]
        %v865 = vld [vmem:[%s707 + $0xf0] sm:$0xff]
        %v866 = vld [vmem:[%s707 + $0xf8] sm:$0xff]
        %v867 = vld [vmem:[%s712] sm:$0x3]
        %v868 = vmul.f32 %v835, %v835
        %v869 = vmul.f32 %v836, %v836
        %v870 = vmul.f32 %v837, %v837
        %v871 = vmul.f32 %v838, %v838
        %v872 = vmul.f32 %v839, %v839
        %v873 = vmul.f32 %v840, %v840
        %v874 = vmul.f32 %v841, %v841
        %v875 = vmul.f32 %v842, %v842
        %v876 = vmul.f32 %v843, %v843
        %v877 = vmul.f32 %v844, %v844
        %v878 = vmul.f32 %v845, %v845
        %v879 = vmul.f32 %v846, %v846
        %v880 = vmul.f32 %v847, %v847
        %v881 = vmul.f32 %v848, %v848
        %v882 = vmul.f32 %v849, %v849
        %v883 = vmul.f32 %v850, %v850
        %v884 = vmul.f32 %v851, %v851
        %v885 = vmul.f32 %v852, %v852
        %v886 = vmul.f32 %v853, %v853
        %v887 = vmul.f32 %v854, %v854
        %v888 = vmul.f32 %v855, %v855
        %v889 = vmul.f32 %v856, %v856
        %v890 = vmul.f32 %v857, %v857
        %v891 = vmul.f32 %v858, %v858
        %v892 = vmul.f32 %v859, %v859
        %v893 = vmul.f32 %v860, %v860
        %v894 = vmul.f32 %v861, %v861
        %v895 = vmul.f32 %v862, %v862
        %v896 = vmul.f32 %v863, %v863
        %v897 = vmul.f32 %v864, %v864
        %v898 = vmul.f32 %v865, %v865
        %v899 = vmul.f32 %v866, %v866
        %v900 = vadd.f32 %v868, %v869
        %901 = vadd.xlane.f32.xlu0 %v900
        %v902 = vpop.xlane.xlu0 %901
        %v903 = vadd.f32 %v870, %v871
        %904 = vadd.xlane.f32.xlu0 %v903
        %v905 = vpop.xlane.xlu0 %904
        %v906 = vadd.f32 %v872, %v873
        %907 = vadd.xlane.f32.xlu0 %v906
        %v908 = vpop.xlane.xlu0 %907
        %v909 = vadd.f32 %v874, %v875
        %910 = vadd.xlane.f32.xlu0 %v909
        %v911 = vpop.xlane.xlu0 %910
        %v912 = vadd.f32 %v876, %v877
        %913 = vadd.xlane.f32.xlu0 %v912
        %v914 = vpop.xlane.xlu0 %913
        %v915 = vadd.f32 %v878, %v879
        %916 = vadd.xlane.f32.xlu0 %v915
        %v917 = vpop.xlane.xlu0 %916
        %v918 = vadd.f32 %v880, %v881
        %919 = vadd.xlane.f32.xlu0 %v918
        %v920 = vpop.xlane.xlu0 %919
        %v921 = vadd.f32 %v882, %v883
        %922 = vadd.xlane.f32.xlu0 %v921
        %v923 = vpop.xlane.xlu0 %922
        %v924 = vadd.f32 %v884, %v885
        %925 = vadd.xlane.f32.xlu0 %v924
        %v926 = vpop.xlane.xlu0 %925
        %v927 = vadd.f32 %v886, %v887
        %928 = vadd.xlane.f32.xlu0 %v927
        %v929 = vpop.xlane.xlu0 %928
        %v930 = vadd.f32 %v888, %v889
        %931 = vadd.xlane.f32.xlu0 %v930
        %v932 = vpop.xlane.xlu0 %931
        %v933 = vadd.f32 %v890, %v891
        %934 = vadd.xlane.f32.xlu0 %v933
        %v935 = vpop.xlane.xlu0 %934
        %v936 = vadd.f32 %v892, %v893
        %937 = vadd.xlane.f32.xlu0 %v936
        %v938 = vpop.xlane.xlu0 %937
        %v939 = vadd.f32 %v894, %v895
        %940 = vadd.xlane.f32.xlu0 %v939
        %v941 = vpop.xlane.xlu0 %940
        %v942 = vadd.f32 %v896, %v897
        %943 = vadd.xlane.f32.xlu0 %v942
        %v944 = vpop.xlane.xlu0 %943
        %v945 = vadd.f32 %v898, %v899
        %946 = vadd.xlane.f32.xlu0 %v945
        %v947 = vpop.xlane.xlu0 %946
        %v948 = vrcp.pop 256.0
        %v949 = vmul.f32 %v902, %v948
        %v950 = vmul.f32 %v905, %v948
        %v951 = vmul.f32 %v908, %v948
        %v952 = vmul.f32 %v911, %v948
        %v953 = vmul.f32 %v914, %v948
        %v954 = vmul.f32 %v917, %v948
        %v955 = vmul.f32 %v920, %v948
        %v956 = vmul.f32 %v923, %v948
        %v957 = vmul.f32 %v926, %v948
        %v958 = vmul.f32 %v929, %v948
        %v959 = vmul.f32 %v932, %v948
        %v960 = vmul.f32 %v935, %v948
        %v961 = vmul.f32 %v938, %v948
        %v962 = vmul.f32 %v941, %v948
        %v963 = vmul.f32 %v944, %v948
        %v964 = vmul.f32 %v947, %v948
        %v965 = vadd.f32 %v949, 1e-05
        %v966 = vadd.f32 %v950, 1e-05
        %v967 = vadd.f32 %v951, 1e-05
        %v968 = vadd.f32 %v952, 1e-05
        %v969 = vadd.f32 %v953, 1e-05
        %v970 = vadd.f32 %v954, 1e-05
        %v971 = vadd.f32 %v955, 1e-05
        %v972 = vadd.f32 %v956, 1e-05
        %v973 = vadd.f32 %v957, 1e-05
        %v974 = vadd.f32 %v958, 1e-05
        %v975 = vadd.f32 %v959, 1e-05
        %v976 = vadd.f32 %v960, 1e-05
        %v977 = vadd.f32 %v961, 1e-05
        %v978 = vadd.f32 %v962, 1e-05
        %v979 = vadd.f32 %v963, 1e-05
        %v980 = vadd.f32 %v964, 1e-05
        %v981 = vrsqrt.pop %v965
        %v982 = vrsqrt.pop %v966
        %v983 = vrsqrt.pop %v967
        %v984 = vrsqrt.pop %v968
        %v985 = vrsqrt.pop %v969
        %v986 = vrsqrt.pop %v970
        %v987 = vrsqrt.pop %v971
        %v988 = vrsqrt.pop %v972
        %v989 = vrsqrt.pop %v973
        %v990 = vrsqrt.pop %v974
        %v991 = vrsqrt.pop %v975
        %v992 = vrsqrt.pop %v976
        %v993 = vrsqrt.pop %v977
        %v994 = vrsqrt.pop %v978
        %v995 = vrsqrt.pop %v979
        %v996 = vrsqrt.pop %v980
        %v997 = vmul.f32 %v835, %v981
        %v998 = vmul.f32 %v836, %v981
        %v999 = vmul.f32 %v837, %v982
        %v1000 = vmul.f32 %v838, %v982
        %v1001 = vmul.f32 %v839, %v983
        %v1002 = vmul.f32 %v840, %v983
        %v1003 = vmul.f32 %v841, %v984
        %v1004 = vmul.f32 %v842, %v984
        %v1005 = vmul.f32 %v843, %v985
        %v1006 = vmul.f32 %v844, %v985
        %v1007 = vmul.f32 %v845, %v986
        %v1008 = vmul.f32 %v846, %v986
        %v1009 = vmul.f32 %v847, %v987
        %v1010 = vmul.f32 %v848, %v987
        %v1011 = vmul.f32 %v849, %v988
        %v1012 = vmul.f32 %v850, %v988
        %v1013 = vmul.f32 %v851, %v989
        %v1014 = vmul.f32 %v852, %v989
        %v1015 = vmul.f32 %v853, %v990
        %v1016 = vmul.f32 %v854, %v990
        %v1017 = vmul.f32 %v855, %v991
        %v1018 = vmul.f32 %v856, %v991
        %v1019 = vmul.f32 %v857, %v992
        %v1020 = vmul.f32 %v858, %v992
        %v1021 = vmul.f32 %v859, %v993
        %v1022 = vmul.f32 %v860, %v993
        %v1023 = vmul.f32 %v861, %v994
        %v1024 = vmul.f32 %v862, %v994
        %v1025 = vmul.f32 %v863, %v995
        %v1026 = vmul.f32 %v864, %v995
        %v1027 = vmul.f32 %v865, %v996
        %v1028 = vmul.f32 %v866, %v996
        %v1030 = vlaneseq
        %v1031 = vshrl.u32 %v1030, 7
        %v1032 = vsub.s32 0, %v1031
        %v1033 = vrot.slane %v867, %v1032
        %v1034 = vlaneseq
        %v1035 = vshrl.u32 %v1034, 7
        %v1036 = vsub.s32 1, %v1035
        %v1037 = vrot.slane %v867, %v1036
        %v1040 = vmul.f32 %v997, %v1033
        %v1041 = vmul.f32 %v998, %v1037
        %v1042 = vmul.f32 %v999, %v1033
        %v1043 = vmul.f32 %v1000, %v1037
        %v1044 = vmul.f32 %v1001, %v1033
        %v1045 = vmul.f32 %v1002, %v1037
        %v1046 = vmul.f32 %v1003, %v1033
        %v1047 = vmul.f32 %v1004, %v1037
        %v1048 = vmul.f32 %v1005, %v1033
        %v1049 = vmul.f32 %v1006, %v1037
        %v1050 = vmul.f32 %v1007, %v1033
        %v1051 = vmul.f32 %v1008, %v1037
        %v1052 = vmul.f32 %v1009, %v1033
        %v1053 = vmul.f32 %v1010, %v1037
        %v1054 = vmul.f32 %v1011, %v1033
        %v1055 = vmul.f32 %v1012, %v1037
        %v1056 = vmul.f32 %v1013, %v1033
        %v1057 = vmul.f32 %v1014, %v1037
        %v1058 = vmul.f32 %v1015, %v1033
        %v1059 = vmul.f32 %v1016, %v1037
        %v1060 = vmul.f32 %v1017, %v1033
        %v1061 = vmul.f32 %v1018, %v1037
        %v1062 = vmul.f32 %v1019, %v1033
        %v1063 = vmul.f32 %v1020, %v1037
        %v1064 = vmul.f32 %v1021, %v1033
        %v1065 = vmul.f32 %v1022, %v1037
        %v1066 = vmul.f32 %v1023, %v1033
        %v1067 = vmul.f32 %v1024, %v1037
        %v1068 = vmul.f32 %v1025, %v1033
        %v1069 = vmul.f32 %v1026, %v1037
        %v1070 = vmul.f32 %v1027, %v1033
        %v1071 = vmul.f32 %v1028, %v1037
        %v1072 = vpack.c.bf16 %v1042, %v1040
        %v1073 = vpack.c.bf16 %v1043, %v1041
        %v1074 = vpack.c.bf16 %v1046, %v1044
        %v1075 = vpack.c.bf16 %v1047, %v1045
        %v1076 = vpack.c.bf16 %v1050, %v1048
        %v1077 = vpack.c.bf16 %v1051, %v1049
        %v1078 = vpack.c.bf16 %v1054, %v1052
        %v1079 = vpack.c.bf16 %v1055, %v1053
        %v1080 = vpack.c.bf16 %v1058, %v1056
        %v1081 = vpack.c.bf16 %v1059, %v1057
        %v1082 = vpack.c.bf16 %v1062, %v1060
        %v1083 = vpack.c.bf16 %v1063, %v1061
        %v1084 = vpack.c.bf16 %v1066, %v1064
        %v1085 = vpack.c.bf16 %v1067, %v1065
        %v1086 = vpack.c.bf16 %v1070, %v1068
        %v1087 = vpack.c.bf16 %v1071, %v1069
        %v1088 = vld [vmem:[%s584] sm:$0xff]
        %v1089 = vld [vmem:[%s584 + $0x8] sm:$0xff]
        %v1090 = vld [vmem:[%s584 + $0x10] sm:$0xff]
        %v1091 = vld [vmem:[%s584 + $0x18] sm:$0xff]
        %v1092 = vld [vmem:[%s584 + $0x20] sm:$0xff]
        %v1093 = vld [vmem:[%s584 + $0x28] sm:$0xff]
        %v1094 = vld [vmem:[%s584 + $0x30] sm:$0xff]
        %v1095 = vld [vmem:[%s584 + $0x38] sm:$0xff]
        %v1096 = vld [vmem:[%s584 + $0x40] sm:$0xff]
        %v1097 = vld [vmem:[%s584 + $0x48] sm:$0xff]
        %v1098 = vld [vmem:[%s584 + $0x50] sm:$0xff]
        %v1099 = vld [vmem:[%s584 + $0x58] sm:$0xff]
        %v1100 = vld [vmem:[%s584 + $0x60] sm:$0xff]
        %v1101 = vld [vmem:[%s584 + $0x68] sm:$0xff]
        %v1102 = vld [vmem:[%s584 + $0x70] sm:$0xff]
        %v1103 = vld [vmem:[%s584 + $0x78] sm:$0xff]
        %v1104 = vld [vmem:[%s584 + $0x80] sm:$0xff]
        %v1105 = vld [vmem:[%s584 + $0x88] sm:$0xff]
        %v1106 = vld [vmem:[%s584 + $0x90] sm:$0xff]
        %v1107 = vld [vmem:[%s584 + $0x98] sm:$0xff]
        %v1108 = vld [vmem:[%s584 + $0xa0] sm:$0xff]
        %v1109 = vld [vmem:[%s584 + $0xa8] sm:$0xff]
        %v1110 = vld [vmem:[%s584 + $0xb0] sm:$0xff]
        %v1111 = vld [vmem:[%s584 + $0xb8] sm:$0xff]
        %v1112 = vld [vmem:[%s584 + $0xc0] sm:$0xff]
        %v1113 = vld [vmem:[%s584 + $0xc8] sm:$0xff]
        %v1114 = vld [vmem:[%s584 + $0xd0] sm:$0xff]
        %v1115 = vld [vmem:[%s584 + $0xd8] sm:$0xff]
        %v1116 = vld [vmem:[%s584 + $0xe0] sm:$0xff]
        %v1117 = vld [vmem:[%s584 + $0xe8] sm:$0xff]
        %v1118 = vld [vmem:[%s584 + $0xf0] sm:$0xff]
        %v1119 = vld [vmem:[%s584 + $0xf8] sm:$0xff]
        %v1152 = vunpack.c.l.b16 %v1088
        %v1153 = vunpack.c.h.b16 %v1088
        %v1154 = vunpack.c.l.b16 %v1089
        %v1155 = vunpack.c.h.b16 %v1089
        %v1156 = vunpack.c.l.b16 %v1090
        %v1157 = vunpack.c.h.b16 %v1090
        %v1158 = vunpack.c.l.b16 %v1091
        %v1159 = vunpack.c.h.b16 %v1091
        %v1160 = vunpack.c.l.b16 %v1092
        %v1161 = vunpack.c.h.b16 %v1092
        %v1162 = vunpack.c.l.b16 %v1093
        %v1163 = vunpack.c.h.b16 %v1093
        %v1164 = vunpack.c.l.b16 %v1094
        %v1165 = vunpack.c.h.b16 %v1094
        %v1166 = vunpack.c.l.b16 %v1095
        %v1167 = vunpack.c.h.b16 %v1095
        %v1168 = vunpack.c.l.b16 %v1096
        %v1169 = vunpack.c.h.b16 %v1096
        %v1170 = vunpack.c.l.b16 %v1097
        %v1171 = vunpack.c.h.b16 %v1097
        %v1172 = vunpack.c.l.b16 %v1098
        %v1173 = vunpack.c.h.b16 %v1098
        %v1174 = vunpack.c.l.b16 %v1099
        %v1175 = vunpack.c.h.b16 %v1099
        %v1176 = vunpack.c.l.b16 %v1100
        %v1177 = vunpack.c.h.b16 %v1100
        %v1178 = vunpack.c.l.b16 %v1101
        %v1179 = vunpack.c.h.b16 %v1101
        %v1180 = vunpack.c.l.b16 %v1102
        %v1181 = vunpack.c.h.b16 %v1102
        %v1182 = vunpack.c.l.b16 %v1103
        %v1183 = vunpack.c.h.b16 %v1103
        %v1184 = vunpack.c.l.b16 %v1104
        %v1185 = vunpack.c.h.b16 %v1104
        %v1186 = vunpack.c.l.b16 %v1105
        %v1187 = vunpack.c.h.b16 %v1105
        %v1188 = vunpack.c.l.b16 %v1106
        %v1189 = vunpack.c.h.b16 %v1106
        %v1190 = vunpack.c.l.b16 %v1107
        %v1191 = vunpack.c.h.b16 %v1107
        %v1192 = vunpack.c.l.b16 %v1108
        %v1193 = vunpack.c.h.b16 %v1108
        %v1194 = vunpack.c.l.b16 %v1109
        %v1195 = vunpack.c.h.b16 %v1109
        %v1196 = vunpack.c.l.b16 %v1110
        %v1197 = vunpack.c.h.b16 %v1110
        %v1198 = vunpack.c.l.b16 %v1111
        %v1199 = vunpack.c.h.b16 %v1111
        %v1200 = vunpack.c.l.b16 %v1112
        %v1201 = vunpack.c.h.b16 %v1112
        %v1202 = vunpack.c.l.b16 %v1113
        %v1203 = vunpack.c.h.b16 %v1113
        %v1204 = vunpack.c.l.b16 %v1114
        %v1205 = vunpack.c.h.b16 %v1114
        %v1206 = vunpack.c.l.b16 %v1115
        %v1207 = vunpack.c.h.b16 %v1115
        %v1208 = vunpack.c.l.b16 %v1116
        %v1209 = vunpack.c.h.b16 %v1116
        %v1210 = vunpack.c.l.b16 %v1117
        %v1211 = vunpack.c.h.b16 %v1117
        %v1212 = vunpack.c.l.b16 %v1118
        %v1213 = vunpack.c.h.b16 %v1118
        %v1214 = vunpack.c.l.b16 %v1119
        %v1215 = vunpack.c.h.b16 %v1119
        %v1216 = vpack.c.b16 %v1154, %v1152
        %v1217 = vpack.c.b16 %v1155, %v1153
        %v1218 = vpack.c.b16 %v1158, %v1156
        %v1219 = vpack.c.b16 %v1159, %v1157
        %v1220 = vpack.c.b16 %v1162, %v1160
        %v1221 = vpack.c.b16 %v1163, %v1161
        %v1222 = vpack.c.b16 %v1166, %v1164
        %v1223 = vpack.c.b16 %v1167, %v1165
        %v1224 = vpack.c.b16 %v1170, %v1168
        %v1225 = vpack.c.b16 %v1171, %v1169
        %v1226 = vpack.c.b16 %v1174, %v1172
        %v1227 = vpack.c.b16 %v1175, %v1173
        %v1228 = vpack.c.b16 %v1178, %v1176
        %v1229 = vpack.c.b16 %v1179, %v1177
        %v1230 = vpack.c.b16 %v1182, %v1180
        %v1231 = vpack.c.b16 %v1183, %v1181
        %v1232 = vpack.c.b16 %v1186, %v1184
        %v1233 = vpack.c.b16 %v1187, %v1185
        %v1234 = vpack.c.b16 %v1190, %v1188
        %v1235 = vpack.c.b16 %v1191, %v1189
        %v1236 = vpack.c.b16 %v1194, %v1192
        %v1237 = vpack.c.b16 %v1195, %v1193
        %v1238 = vpack.c.b16 %v1198, %v1196
        %v1239 = vpack.c.b16 %v1199, %v1197
        %v1240 = vpack.c.b16 %v1202, %v1200
        %v1241 = vpack.c.b16 %v1203, %v1201
        %v1242 = vpack.c.b16 %v1206, %v1204
        %v1243 = vpack.c.b16 %v1207, %v1205
        %v1244 = vpack.c.b16 %v1210, %v1208
        %v1245 = vpack.c.b16 %v1211, %v1209
        %v1246 = vpack.c.b16 %v1214, %v1212
        %v1247 = vpack.c.b16 %v1215, %v1213
        %1280 = vmatprep.subr.bf16.mxu0 %v1231
        %1281 = vmatpush1.bf16.msra.mxu0 %v1230
        %1282 = vmatprep.subr.bf16.mxu0 %v1229
        %1283 = vmatpush1.bf16.msra.mxu0 %v1228
        %1284 = vmatprep.subr.bf16.mxu0 %v1227
        %1285 = vmatpush1.bf16.msra.mxu0 %v1226
        %1286 = vmatprep.subr.bf16.mxu0 %v1225
        %1287 = vmatpush1.bf16.msra.mxu0 %v1224
        %1288 = vmatprep.subr.bf16.mxu0 %v1223
        %1289 = vmatpush1.bf16.msra.mxu0 %v1222
        %1290 = vmatprep.subr.bf16.mxu0 %v1221
        %1291 = vmatpush1.bf16.msra.mxu0 %v1220
        %1292 = vmatprep.subr.bf16.mxu0 %v1219
        %1293 = vmatpush1.bf16.msra.mxu0 %v1218
        %1294 = vmatprep.subr.bf16.mxu0 %v1217
        %1295 = vmatpush1.bf16.msra.mxu0 %v1216
        %1296 = vmatprep.subr.bf16.mxu0 %v1247
        %1297 = vmatpush2.bf16.msra.mxu0 %v1246
        %1298 = vmatprep.subr.bf16.mxu0 %v1245
        %1299 = vmatpush2.bf16.msra.mxu0 %v1244
        %1300 = vmatprep.subr.bf16.mxu0 %v1243
        %1301 = vmatpush2.bf16.msra.mxu0 %v1242
        %1302 = vmatprep.subr.bf16.mxu0 %v1241
        %1303 = vmatpush2.bf16.msra.mxu0 %v1240
        %1304 = vmatprep.subr.bf16.mxu0 %v1239
        %1305 = vmatpush2.bf16.msra.mxu0 %v1238
        %1306 = vmatprep.subr.bf16.mxu0 %v1237
        %1307 = vmatpush2.bf16.msra.mxu0 %v1236
        %1308 = vmatprep.subr.bf16.mxu0 %v1235
        %1309 = vmatpush2.bf16.msra.mxu0 %v1234
        %1310 = vmatprep.subr.bf16.mxu0 %v1233
        %1311 = vmatpush2.bf16.msra.mxu0 %v1232
        %1312 = vmatprep.mubr.bf16.mxu0 %v1073
        %1313 = vmatmul.mubr.bf16.gmra.mxu0 %v1072
        %v1314 = vpop.f32.mrf.mxu0
        %v1315 = vadd.f32 0.0, %v1314
        %v1316 = vpop.f32.mrf.mxu0
        %v1317 = vadd.f32 0.0, %v1316
        %v1318 = vpop.f32.mrf.mxu0
        %v1319 = vadd.f32 0.0, %v1318
        %v1320 = vpop.f32.mrf.mxu0
        %v1321 = vadd.f32 0.0, %v1320
        %1322 = vmatprep.mubr.bf16.mxu0 %v1075
        %1323 = vmatmul.mubr.bf16.gmra.mxu0 %v1074
        %v1324 = vpop.f32.mrf.mxu0
        %v1325 = vadd.f32 0.0, %v1324
        %v1326 = vpop.f32.mrf.mxu0
        %v1327 = vadd.f32 0.0, %v1326
        %v1328 = vpop.f32.mrf.mxu0
        %v1329 = vadd.f32 0.0, %v1328
        %v1330 = vpop.f32.mrf.mxu0
        %v1331 = vadd.f32 0.0, %v1330
        %1332 = vmatprep.mubr.bf16.mxu0 %v1077
        %1333 = vmatmul.mubr.bf16.gmra.mxu0 %v1076
        %v1334 = vpop.f32.mrf.mxu0
        %v1335 = vadd.f32 0.0, %v1334
        %v1336 = vpop.f32.mrf.mxu0
        %v1337 = vadd.f32 0.0, %v1336
        %v1338 = vpop.f32.mrf.mxu0
        %v1339 = vadd.f32 0.0, %v1338
        %v1340 = vpop.f32.mrf.mxu0
        %v1341 = vadd.f32 0.0, %v1340
        %1342 = vmatprep.mubr.bf16.mxu0 %v1079
        %1343 = vmatmul.mubr.bf16.gmra.mxu0 %v1078
        %v1344 = vpop.f32.mrf.mxu0
        %v1345 = vadd.f32 0.0, %v1344
        %v1346 = vpop.f32.mrf.mxu0
        %v1347 = vadd.f32 0.0, %v1346
        %v1348 = vpop.f32.mrf.mxu0
        %v1349 = vadd.f32 0.0, %v1348
        %v1350 = vpop.f32.mrf.mxu0
        %v1351 = vadd.f32 0.0, %v1350
        %1352 = vmatprep.mubr.bf16.mxu0 %v1081
        %1353 = vmatmul.mubr.bf16.gmra.mxu0 %v1080
        %v1354 = vpop.f32.mrf.mxu0
        %v1355 = vadd.f32 0.0, %v1354
        %v1356 = vpop.f32.mrf.mxu0
        %v1357 = vadd.f32 0.0, %v1356
        %v1358 = vpop.f32.mrf.mxu0
        %v1359 = vadd.f32 0.0, %v1358
        %v1360 = vpop.f32.mrf.mxu0
        %v1361 = vadd.f32 0.0, %v1360
        %1362 = vmatprep.mubr.bf16.mxu0 %v1083
        %1363 = vmatmul.mubr.bf16.gmra.mxu0 %v1082
        %v1364 = vpop.f32.mrf.mxu0
        %v1365 = vadd.f32 0.0, %v1364
        %v1366 = vpop.f32.mrf.mxu0
        %v1367 = vadd.f32 0.0, %v1366
        %v1368 = vpop.f32.mrf.mxu0
        %v1369 = vadd.f32 0.0, %v1368
        %v1370 = vpop.f32.mrf.mxu0
        %v1371 = vadd.f32 0.0, %v1370
        %1372 = vmatprep.mubr.bf16.mxu0 %v1085
        %1373 = vmatmul.mubr.bf16.gmra.mxu0 %v1084
        %v1374 = vpop.f32.mrf.mxu0
        %v1375 = vadd.f32 0.0, %v1374
        %v1376 = vpop.f32.mrf.mxu0
        %v1377 = vadd.f32 0.0, %v1376
        %v1378 = vpop.f32.mrf.mxu0
        %v1379 = vadd.f32 0.0, %v1378
        %v1380 = vpop.f32.mrf.mxu0
        %v1381 = vadd.f32 0.0, %v1380
        %1382 = vmatprep.mubr.bf16.mxu0 %v1087
        %1383 = vmatmul.mubr.bf16.gmra.mxu0 %v1086
        %v1384 = vpop.f32.mrf.mxu0
        %v1385 = vadd.f32 0.0, %v1384
        %v1386 = vpop.f32.mrf.mxu0
        %v1387 = vadd.f32 0.0, %v1386
        %v1388 = vpop.f32.mrf.mxu0
        %v1389 = vadd.f32 0.0, %v1388
        %v1390 = vpop.f32.mrf.mxu0
        %v1391 = vadd.f32 0.0, %v1390
        %1392 = vdwg.mxu0
        %v1393 = vld [vmem:[%s593] sm:$0xff]
        %v1394 = vld [vmem:[%s593 + $0x8] sm:$0xff]
        %v1395 = vld [vmem:[%s593 + $0x10] sm:$0xff]
        %v1396 = vld [vmem:[%s593 + $0x18] sm:$0xff]
        %v1397 = vld [vmem:[%s593 + $0x20] sm:$0xff]
        %v1398 = vld [vmem:[%s593 + $0x28] sm:$0xff]
        %v1399 = vld [vmem:[%s593 + $0x30] sm:$0xff]
        %v1400 = vld [vmem:[%s593 + $0x38] sm:$0xff]
        %v1401 = vld [vmem:[%s593 + $0x40] sm:$0xff]
        %v1402 = vld [vmem:[%s593 + $0x48] sm:$0xff]
        %v1403 = vld [vmem:[%s593 + $0x50] sm:$0xff]
        %v1404 = vld [vmem:[%s593 + $0x58] sm:$0xff]
        %v1405 = vld [vmem:[%s593 + $0x60] sm:$0xff]
        %v1406 = vld [vmem:[%s593 + $0x68] sm:$0xff]
        %v1407 = vld [vmem:[%s593 + $0x70] sm:$0xff]
        %v1408 = vld [vmem:[%s593 + $0x78] sm:$0xff]
        %v1409 = vld [vmem:[%s593 + $0x80] sm:$0xff]
        %v1410 = vld [vmem:[%s593 + $0x88] sm:$0xff]
        %v1411 = vld [vmem:[%s593 + $0x90] sm:$0xff]
        %v1412 = vld [vmem:[%s593 + $0x98] sm:$0xff]
        %v1413 = vld [vmem:[%s593 + $0xa0] sm:$0xff]
        %v1414 = vld [vmem:[%s593 + $0xa8] sm:$0xff]
        %v1415 = vld [vmem:[%s593 + $0xb0] sm:$0xff]
        %v1416 = vld [vmem:[%s593 + $0xb8] sm:$0xff]
        %v1417 = vld [vmem:[%s593 + $0xc0] sm:$0xff]
        %v1418 = vld [vmem:[%s593 + $0xc8] sm:$0xff]
        %v1419 = vld [vmem:[%s593 + $0xd0] sm:$0xff]
        %v1420 = vld [vmem:[%s593 + $0xd8] sm:$0xff]
        %v1421 = vld [vmem:[%s593 + $0xe0] sm:$0xff]
        %v1422 = vld [vmem:[%s593 + $0xe8] sm:$0xff]
        %v1423 = vld [vmem:[%s593 + $0xf0] sm:$0xff]
        %v1424 = vld [vmem:[%s593 + $0xf8] sm:$0xff]
        %v1457 = vunpack.c.l.b16 %v1393
        %v1458 = vunpack.c.h.b16 %v1393
        %v1459 = vunpack.c.l.b16 %v1394
        %v1460 = vunpack.c.h.b16 %v1394
        %v1461 = vunpack.c.l.b16 %v1395
        %v1462 = vunpack.c.h.b16 %v1395
        %v1463 = vunpack.c.l.b16 %v1396
        %v1464 = vunpack.c.h.b16 %v1396
        %v1465 = vunpack.c.l.b16 %v1397
        %v1466 = vunpack.c.h.b16 %v1397
        %v1467 = vunpack.c.l.b16 %v1398
        %v1468 = vunpack.c.h.b16 %v1398
        %v1469 = vunpack.c.l.b16 %v1399
        %v1470 = vunpack.c.h.b16 %v1399
        %v1471 = vunpack.c.l.b16 %v1400
        %v1472 = vunpack.c.h.b16 %v1400
        %v1473 = vunpack.c.l.b16 %v1401
        %v1474 = vunpack.c.h.b16 %v1401
        %v1475 = vunpack.c.l.b16 %v1402
        %v1476 = vunpack.c.h.b16 %v1402
        %v1477 = vunpack.c.l.b16 %v1403
        %v1478 = vunpack.c.h.b16 %v1403
        %v1479 = vunpack.c.l.b16 %v1404
        %v1480 = vunpack.c.h.b16 %v1404
        %v1481 = vunpack.c.l.b16 %v1405
        %v1482 = vunpack.c.h.b16 %v1405
        %v1483 = vunpack.c.l.b16 %v1406
        %v1484 = vunpack.c.h.b16 %v1406
        %v1485 = vunpack.c.l.b16 %v1407
        %v1486 = vunpack.c.h.b16 %v1407
        %v1487 = vunpack.c.l.b16 %v1408
        %v1488 = vunpack.c.h.b16 %v1408
        %v1489 = vunpack.c.l.b16 %v1409
        %v1490 = vunpack.c.h.b16 %v1409
        %v1491 = vunpack.c.l.b16 %v1410
        %v1492 = vunpack.c.h.b16 %v1410
        %v1493 = vunpack.c.l.b16 %v1411
        %v1494 = vunpack.c.h.b16 %v1411
        %v1495 = vunpack.c.l.b16 %v1412
        %v1496 = vunpack.c.h.b16 %v1412
        %v1497 = vunpack.c.l.b16 %v1413
        %v1498 = vunpack.c.h.b16 %v1413
        %v1499 = vunpack.c.l.b16 %v1414
        %v1500 = vunpack.c.h.b16 %v1414
        %v1501 = vunpack.c.l.b16 %v1415
        %v1502 = vunpack.c.h.b16 %v1415
        %v1503 = vunpack.c.l.b16 %v1416
        %v1504 = vunpack.c.h.b16 %v1416
        %v1505 = vunpack.c.l.b16 %v1417
        %v1506 = vunpack.c.h.b16 %v1417
        %v1507 = vunpack.c.l.b16 %v1418
        %v1508 = vunpack.c.h.b16 %v1418
        %v1509 = vunpack.c.l.b16 %v1419
        %v1510 = vunpack.c.h.b16 %v1419
        %v1511 = vunpack.c.l.b16 %v1420
        %v1512 = vunpack.c.h.b16 %v1420
        %v1513 = vunpack.c.l.b16 %v1421
        %v1514 = vunpack.c.h.b16 %v1421
        %v1515 = vunpack.c.l.b16 %v1422
        %v1516 = vunpack.c.h.b16 %v1422
        %v1517 = vunpack.c.l.b16 %v1423
        %v1518 = vunpack.c.h.b16 %v1423
        %v1519 = vunpack.c.l.b16 %v1424
        %v1520 = vunpack.c.h.b16 %v1424
        %v1521 = vpack.c.b16 %v1459, %v1457
        %v1522 = vpack.c.b16 %v1460, %v1458
        %v1523 = vpack.c.b16 %v1463, %v1461
        %v1524 = vpack.c.b16 %v1464, %v1462
        %v1525 = vpack.c.b16 %v1467, %v1465
        %v1526 = vpack.c.b16 %v1468, %v1466
        %v1527 = vpack.c.b16 %v1471, %v1469
        %v1528 = vpack.c.b16 %v1472, %v1470
        %v1529 = vpack.c.b16 %v1475, %v1473
        %v1530 = vpack.c.b16 %v1476, %v1474
        %v1531 = vpack.c.b16 %v1479, %v1477
        %v1532 = vpack.c.b16 %v1480, %v1478
        %v1533 = vpack.c.b16 %v1483, %v1481
        %v1534 = vpack.c.b16 %v1484, %v1482
        %v1535 = vpack.c.b16 %v1487, %v1485
        %v1536 = vpack.c.b16 %v1488, %v1486
        %v1537 = vpack.c.b16 %v1491, %v1489
        %v1538 = vpack.c.b16 %v1492, %v1490
        %v1539 = vpack.c.b16 %v1495, %v1493
        %v1540 = vpack.c.b16 %v1496, %v1494
        %v1541 = vpack.c.b16 %v1499, %v1497
        %v1542 = vpack.c.b16 %v1500, %v1498
        %v1543 = vpack.c.b16 %v1503, %v1501
        %v1544 = vpack.c.b16 %v1504, %v1502
        %v1545 = vpack.c.b16 %v1507, %v1505
        %v1546 = vpack.c.b16 %v1508, %v1506
        %v1547 = vpack.c.b16 %v1511, %v1509
        %v1548 = vpack.c.b16 %v1512, %v1510
        %v1549 = vpack.c.b16 %v1515, %v1513
        %v1550 = vpack.c.b16 %v1516, %v1514
        %v1551 = vpack.c.b16 %v1519, %v1517
        %v1552 = vpack.c.b16 %v1520, %v1518
        %1585 = vmatprep.subr.bf16.mxu0 %v1536
        %1586 = vmatpush1.bf16.msra.mxu0 %v1535
        %1587 = vmatprep.subr.bf16.mxu0 %v1534
        %1588 = vmatpush1.bf16.msra.mxu0 %v1533
        %1589 = vmatprep.subr.bf16.mxu0 %v1532
        %1590 = vmatpush1.bf16.msra.mxu0 %v1531
        %1591 = vmatprep.subr.bf16.mxu0 %v1530
        %1592 = vmatpush1.bf16.msra.mxu0 %v1529
        %1593 = vmatprep.subr.bf16.mxu0 %v1528
        %1594 = vmatpush1.bf16.msra.mxu0 %v1527
        %1595 = vmatprep.subr.bf16.mxu0 %v1526
        %1596 = vmatpush1.bf16.msra.mxu0 %v1525
        %1597 = vmatprep.subr.bf16.mxu0 %v1524
        %1598 = vmatpush1.bf16.msra.mxu0 %v1523
        %1599 = vmatprep.subr.bf16.mxu0 %v1522
        %1600 = vmatpush1.bf16.msra.mxu0 %v1521
        %1601 = vmatprep.subr.bf16.mxu0 %v1552
        %1602 = vmatpush2.bf16.msra.mxu0 %v1551
        %1603 = vmatprep.subr.bf16.mxu0 %v1550
        %1604 = vmatpush2.bf16.msra.mxu0 %v1549
        %1605 = vmatprep.subr.bf16.mxu0 %v1548
        %1606 = vmatpush2.bf16.msra.mxu0 %v1547
        %1607 = vmatprep.subr.bf16.mxu0 %v1546
        %1608 = vmatpush2.bf16.msra.mxu0 %v1545
        %1609 = vmatprep.subr.bf16.mxu0 %v1544
        %1610 = vmatpush2.bf16.msra.mxu0 %v1543
        %1611 = vmatprep.subr.bf16.mxu0 %v1542
        %1612 = vmatpush2.bf16.msra.mxu0 %v1541
        %1613 = vmatprep.subr.bf16.mxu0 %v1540
        %1614 = vmatpush2.bf16.msra.mxu0 %v1539
        %1615 = vmatprep.subr.bf16.mxu0 %v1538
        %1616 = vmatpush2.bf16.msra.mxu0 %v1537
        %1617 = vmatprep.mubr.bf16.mxu0 %v1073
        %1618 = vmatmul.mubr.bf16.gmra.mxu0 %v1072
        %v1619 = vpop.f32.mrf.mxu0
        %v1620 = vadd.f32 0.0, %v1619
        %v1621 = vpop.f32.mrf.mxu0
        %v1622 = vadd.f32 0.0, %v1621
        %v1623 = vpop.f32.mrf.mxu0
        %v1624 = vadd.f32 0.0, %v1623
        %v1625 = vpop.f32.mrf.mxu0
        %v1626 = vadd.f32 0.0, %v1625
        %1627 = vmatprep.mubr.bf16.mxu0 %v1075
        %1628 = vmatmul.mubr.bf16.gmra.mxu0 %v1074
        %v1629 = vpop.f32.mrf.mxu0
        %v1630 = vadd.f32 0.0, %v1629
        %v1631 = vpop.f32.mrf.mxu0
        %v1632 = vadd.f32 0.0, %v1631
        %v1633 = vpop.f32.mrf.mxu0
        %v1634 = vadd.f32 0.0, %v1633
        %v1635 = vpop.f32.mrf.mxu0
        %v1636 = vadd.f32 0.0, %v1635
        %1637 = vmatprep.mubr.bf16.mxu0 %v1077
        %1638 = vmatmul.mubr.bf16.gmra.mxu0 %v1076
        %v1639 = vpop.f32.mrf.mxu0
        %v1640 = vadd.f32 0.0, %v1639
        %v1641 = vpop.f32.mrf.mxu0
        %v1642 = vadd.f32 0.0, %v1641
        %v1643 = vpop.f32.mrf.mxu0
        %v1644 = vadd.f32 0.0, %v1643
        %v1645 = vpop.f32.mrf.mxu0
        %v1646 = vadd.f32 0.0, %v1645
        %1647 = vmatprep.mubr.bf16.mxu0 %v1079
        %1648 = vmatmul.mubr.bf16.gmra.mxu0 %v1078
        %v1649 = vpop.f32.mrf.mxu0
        %v1650 = vadd.f32 0.0, %v1649
        %v1651 = vpop.f32.mrf.mxu0
        %v1652 = vadd.f32 0.0, %v1651
        %v1653 = vpop.f32.mrf.mxu0
        %v1654 = vadd.f32 0.0, %v1653
        %v1655 = vpop.f32.mrf.mxu0
        %v1656 = vadd.f32 0.0, %v1655
        %1657 = vmatprep.mubr.bf16.mxu0 %v1081
        %1658 = vmatmul.mubr.bf16.gmra.mxu0 %v1080
        %v1659 = vpop.f32.mrf.mxu0
        %v1660 = vadd.f32 0.0, %v1659
        %v1661 = vpop.f32.mrf.mxu0
        %v1662 = vadd.f32 0.0, %v1661
        %v1663 = vpop.f32.mrf.mxu0
        %v1664 = vadd.f32 0.0, %v1663
        %v1665 = vpop.f32.mrf.mxu0
        %v1666 = vadd.f32 0.0, %v1665
        %1667 = vmatprep.mubr.bf16.mxu0 %v1083
        %1668 = vmatmul.mubr.bf16.gmra.mxu0 %v1082
        %v1669 = vpop.f32.mrf.mxu0
        %v1670 = vadd.f32 0.0, %v1669
        %v1671 = vpop.f32.mrf.mxu0
        %v1672 = vadd.f32 0.0, %v1671
        %v1673 = vpop.f32.mrf.mxu0
        %v1674 = vadd.f32 0.0, %v1673
        %v1675 = vpop.f32.mrf.mxu0
        %v1676 = vadd.f32 0.0, %v1675
        %1677 = vmatprep.mubr.bf16.mxu0 %v1085
        %1678 = vmatmul.mubr.bf16.gmra.mxu0 %v1084
        %v1679 = vpop.f32.mrf.mxu0
        %v1680 = vadd.f32 0.0, %v1679
        %v1681 = vpop.f32.mrf.mxu0
        %v1682 = vadd.f32 0.0, %v1681
        %v1683 = vpop.f32.mrf.mxu0
        %v1684 = vadd.f32 0.0, %v1683
        %v1685 = vpop.f32.mrf.mxu0
        %v1686 = vadd.f32 0.0, %v1685
        %1687 = vmatprep.mubr.bf16.mxu0 %v1087
        %1688 = vmatmul.mubr.bf16.gmra.mxu0 %v1086
        %v1689 = vpop.f32.mrf.mxu0
        %v1690 = vadd.f32 0.0, %v1689
        %v1691 = vpop.f32.mrf.mxu0
        %v1692 = vadd.f32 0.0, %v1691
        %v1693 = vpop.f32.mrf.mxu0
        %v1694 = vadd.f32 0.0, %v1693
        %v1695 = vpop.f32.mrf.mxu0
        %v1696 = vadd.f32 0.0, %v1695
        %1697 = vdwg.mxu0
        %v1698 = vld [vmem:[%s602] sm:$0xff]
        %v1699 = vld [vmem:[%s602 + $0x8] sm:$0xff]
        %v1700 = vld [vmem:[%s602 + $0x10] sm:$0xff]
        %v1701 = vld [vmem:[%s602 + $0x18] sm:$0xff]
        %v1702 = vld [vmem:[%s602 + $0x20] sm:$0xff]
        %v1703 = vld [vmem:[%s602 + $0x28] sm:$0xff]
        %v1704 = vld [vmem:[%s602 + $0x30] sm:$0xff]
        %v1705 = vld [vmem:[%s602 + $0x38] sm:$0xff]
        %v1706 = vld [vmem:[%s602 + $0x40] sm:$0xff]
        %v1707 = vld [vmem:[%s602 + $0x48] sm:$0xff]
        %v1708 = vld [vmem:[%s602 + $0x50] sm:$0xff]
        %v1709 = vld [vmem:[%s602 + $0x58] sm:$0xff]
        %v1710 = vld [vmem:[%s602 + $0x60] sm:$0xff]
        %v1711 = vld [vmem:[%s602 + $0x68] sm:$0xff]
        %v1712 = vld [vmem:[%s602 + $0x70] sm:$0xff]
        %v1713 = vld [vmem:[%s602 + $0x78] sm:$0xff]
        %v1714 = vld [vmem:[%s602 + $0x80] sm:$0xff]
        %v1715 = vld [vmem:[%s602 + $0x88] sm:$0xff]
        %v1716 = vld [vmem:[%s602 + $0x90] sm:$0xff]
        %v1717 = vld [vmem:[%s602 + $0x98] sm:$0xff]
        %v1718 = vld [vmem:[%s602 + $0xa0] sm:$0xff]
        %v1719 = vld [vmem:[%s602 + $0xa8] sm:$0xff]
        %v1720 = vld [vmem:[%s602 + $0xb0] sm:$0xff]
        %v1721 = vld [vmem:[%s602 + $0xb8] sm:$0xff]
        %v1722 = vld [vmem:[%s602 + $0xc0] sm:$0xff]
        %v1723 = vld [vmem:[%s602 + $0xc8] sm:$0xff]
        %v1724 = vld [vmem:[%s602 + $0xd0] sm:$0xff]
        %v1725 = vld [vmem:[%s602 + $0xd8] sm:$0xff]
        %v1726 = vld [vmem:[%s602 + $0xe0] sm:$0xff]
        %v1727 = vld [vmem:[%s602 + $0xe8] sm:$0xff]
        %v1728 = vld [vmem:[%s602 + $0xf0] sm:$0xff]
        %v1729 = vld [vmem:[%s602 + $0xf8] sm:$0xff]
        %v1762 = vunpack.c.l.b16 %v1698
        %v1763 = vunpack.c.h.b16 %v1698
        %v1764 = vunpack.c.l.b16 %v1699
        %v1765 = vunpack.c.h.b16 %v1699
        %v1766 = vunpack.c.l.b16 %v1700
        %v1767 = vunpack.c.h.b16 %v1700
        %v1768 = vunpack.c.l.b16 %v1701
        %v1769 = vunpack.c.h.b16 %v1701
        %v1770 = vunpack.c.l.b16 %v1702
        %v1771 = vunpack.c.h.b16 %v1702
        %v1772 = vunpack.c.l.b16 %v1703
        %v1773 = vunpack.c.h.b16 %v1703
        %v1774 = vunpack.c.l.b16 %v1704
        %v1775 = vunpack.c.h.b16 %v1704
        %v1776 = vunpack.c.l.b16 %v1705
        %v1777 = vunpack.c.h.b16 %v1705
        %v1778 = vunpack.c.l.b16 %v1706
        %v1779 = vunpack.c.h.b16 %v1706
        %v1780 = vunpack.c.l.b16 %v1707
        %v1781 = vunpack.c.h.b16 %v1707
        %v1782 = vunpack.c.l.b16 %v1708
        %v1783 = vunpack.c.h.b16 %v1708
        %v1784 = vunpack.c.l.b16 %v1709
        %v1785 = vunpack.c.h.b16 %v1709
        %v1786 = vunpack.c.l.b16 %v1710
        %v1787 = vunpack.c.h.b16 %v1710
        %v1788 = vunpack.c.l.b16 %v1711
        %v1789 = vunpack.c.h.b16 %v1711
        %v1790 = vunpack.c.l.b16 %v1712
        %v1791 = vunpack.c.h.b16 %v1712
        %v1792 = vunpack.c.l.b16 %v1713
        %v1793 = vunpack.c.h.b16 %v1713
        %v1794 = vunpack.c.l.b16 %v1714
        %v1795 = vunpack.c.h.b16 %v1714
        %v1796 = vunpack.c.l.b16 %v1715
        %v1797 = vunpack.c.h.b16 %v1715
        %v1798 = vunpack.c.l.b16 %v1716
        %v1799 = vunpack.c.h.b16 %v1716
        %v1800 = vunpack.c.l.b16 %v1717
        %v1801 = vunpack.c.h.b16 %v1717
        %v1802 = vunpack.c.l.b16 %v1718
        %v1803 = vunpack.c.h.b16 %v1718
        %v1804 = vunpack.c.l.b16 %v1719
        %v1805 = vunpack.c.h.b16 %v1719
        %v1806 = vunpack.c.l.b16 %v1720
        %v1807 = vunpack.c.h.b16 %v1720
        %v1808 = vunpack.c.l.b16 %v1721
        %v1809 = vunpack.c.h.b16 %v1721
        %v1810 = vunpack.c.l.b16 %v1722
        %v1811 = vunpack.c.h.b16 %v1722
        %v1812 = vunpack.c.l.b16 %v1723
        %v1813 = vunpack.c.h.b16 %v1723
        %v1814 = vunpack.c.l.b16 %v1724
        %v1815 = vunpack.c.h.b16 %v1724
        %v1816 = vunpack.c.l.b16 %v1725
        %v1817 = vunpack.c.h.b16 %v1725
        %v1818 = vunpack.c.l.b16 %v1726
        %v1819 = vunpack.c.h.b16 %v1726
        %v1820 = vunpack.c.l.b16 %v1727
        %v1821 = vunpack.c.h.b16 %v1727
        %v1822 = vunpack.c.l.b16 %v1728
        %v1823 = vunpack.c.h.b16 %v1728
        %v1824 = vunpack.c.l.b16 %v1729
        %v1825 = vunpack.c.h.b16 %v1729
        %v1826 = vpack.c.b16 %v1764, %v1762
        %v1827 = vpack.c.b16 %v1765, %v1763
        %v1828 = vpack.c.b16 %v1768, %v1766
        %v1829 = vpack.c.b16 %v1769, %v1767
        %v1830 = vpack.c.b16 %v1772, %v1770
        %v1831 = vpack.c.b16 %v1773, %v1771
        %v1832 = vpack.c.b16 %v1776, %v1774
        %v1833 = vpack.c.b16 %v1777, %v1775
        %v1834 = vpack.c.b16 %v1780, %v1778
        %v1835 = vpack.c.b16 %v1781, %v1779
        %v1836 = vpack.c.b16 %v1784, %v1782
        %v1837 = vpack.c.b16 %v1785, %v1783
        %v1838 = vpack.c.b16 %v1788, %v1786
        %v1839 = vpack.c.b16 %v1789, %v1787
        %v1840 = vpack.c.b16 %v1792, %v1790
        %v1841 = vpack.c.b16 %v1793, %v1791
        %v1842 = vpack.c.b16 %v1796, %v1794
        %v1843 = vpack.c.b16 %v1797, %v1795
        %v1844 = vpack.c.b16 %v1800, %v1798
        %v1845 = vpack.c.b16 %v1801, %v1799
        %v1846 = vpack.c.b16 %v1804, %v1802
        %v1847 = vpack.c.b16 %v1805, %v1803
        %v1848 = vpack.c.b16 %v1808, %v1806
        %v1849 = vpack.c.b16 %v1809, %v1807
        %v1850 = vpack.c.b16 %v1812, %v1810
        %v1851 = vpack.c.b16 %v1813, %v1811
        %v1852 = vpack.c.b16 %v1816, %v1814
        %v1853 = vpack.c.b16 %v1817, %v1815
        %v1854 = vpack.c.b16 %v1820, %v1818
        %v1855 = vpack.c.b16 %v1821, %v1819
        %v1856 = vpack.c.b16 %v1824, %v1822
        %v1857 = vpack.c.b16 %v1825, %v1823
        %1890 = vmatprep.subr.bf16.mxu0 %v1841
        %1891 = vmatpush1.bf16.msra.mxu0 %v1840
        %1892 = vmatprep.subr.bf16.mxu0 %v1839
        %1893 = vmatpush1.bf16.msra.mxu0 %v1838
        %1894 = vmatprep.subr.bf16.mxu0 %v1837
        %1895 = vmatpush1.bf16.msra.mxu0 %v1836
        %1896 = vmatprep.subr.bf16.mxu0 %v1835
        %1897 = vmatpush1.bf16.msra.mxu0 %v1834
        %1898 = vmatprep.subr.bf16.mxu0 %v1833
        %1899 = vmatpush1.bf16.msra.mxu0 %v1832
        %1900 = vmatprep.subr.bf16.mxu0 %v1831
        %1901 = vmatpush1.bf16.msra.mxu0 %v1830
        %1902 = vmatprep.subr.bf16.mxu0 %v1829
        %1903 = vmatpush1.bf16.msra.mxu0 %v1828
        %1904 = vmatprep.subr.bf16.mxu0 %v1827
        %1905 = vmatpush1.bf16.msra.mxu0 %v1826
        %1906 = vmatprep.subr.bf16.mxu0 %v1857
        %1907 = vmatpush2.bf16.msra.mxu0 %v1856
        %1908 = vmatprep.subr.bf16.mxu0 %v1855
        %1909 = vmatpush2.bf16.msra.mxu0 %v1854
        %1910 = vmatprep.subr.bf16.mxu0 %v1853
        %1911 = vmatpush2.bf16.msra.mxu0 %v1852
        %1912 = vmatprep.subr.bf16.mxu0 %v1851
        %1913 = vmatpush2.bf16.msra.mxu0 %v1850
        %1914 = vmatprep.subr.bf16.mxu0 %v1849
        %1915 = vmatpush2.bf16.msra.mxu0 %v1848
        %1916 = vmatprep.subr.bf16.mxu0 %v1847
        %1917 = vmatpush2.bf16.msra.mxu0 %v1846
        %1918 = vmatprep.subr.bf16.mxu0 %v1845
        %1919 = vmatpush2.bf16.msra.mxu0 %v1844
        %1920 = vmatprep.subr.bf16.mxu0 %v1843
        %1921 = vmatpush2.bf16.msra.mxu0 %v1842
        %1922 = vmatprep.mubr.bf16.mxu0 %v1073
        %1923 = vmatmul.mubr.bf16.gmra.mxu0 %v1072
        %v1924 = vpop.f32.mrf.mxu0
        %v1925 = vadd.f32 0.0, %v1924
        %v1926 = vpop.f32.mrf.mxu0
        %v1927 = vadd.f32 0.0, %v1926
        %v1928 = vpop.f32.mrf.mxu0
        %v1929 = vadd.f32 0.0, %v1928
        %v1930 = vpop.f32.mrf.mxu0
        %v1931 = vadd.f32 0.0, %v1930
        %1932 = vmatprep.mubr.bf16.mxu0 %v1075
        %1933 = vmatmul.mubr.bf16.gmra.mxu0 %v1074
        %v1934 = vpop.f32.mrf.mxu0
        %v1935 = vadd.f32 0.0, %v1934
        %v1936 = vpop.f32.mrf.mxu0
        %v1937 = vadd.f32 0.0, %v1936
        %v1938 = vpop.f32.mrf.mxu0
        %v1939 = vadd.f32 0.0, %v1938
        %v1940 = vpop.f32.mrf.mxu0
        %v1941 = vadd.f32 0.0, %v1940
        %1942 = vmatprep.mubr.bf16.mxu0 %v1077
        %1943 = vmatmul.mubr.bf16.gmra.mxu0 %v1076
        %v1944 = vpop.f32.mrf.mxu0
        %v1945 = vadd.f32 0.0, %v1944
        %v1946 = vpop.f32.mrf.mxu0
        %v1947 = vadd.f32 0.0, %v1946
        %v1948 = vpop.f32.mrf.mxu0
        %v1949 = vadd.f32 0.0, %v1948
        %v1950 = vpop.f32.mrf.mxu0
        %v1951 = vadd.f32 0.0, %v1950
        %1952 = vmatprep.mubr.bf16.mxu0 %v1079
        %1953 = vmatmul.mubr.bf16.gmra.mxu0 %v1078
        %v1954 = vpop.f32.mrf.mxu0
        %v1955 = vadd.f32 0.0, %v1954
        %v1956 = vpop.f32.mrf.mxu0
        %v1957 = vadd.f32 0.0, %v1956
        %v1958 = vpop.f32.mrf.mxu0
        %v1959 = vadd.f32 0.0, %v1958
        %v1960 = vpop.f32.mrf.mxu0
        %v1961 = vadd.f32 0.0, %v1960
        %1962 = vmatprep.mubr.bf16.mxu0 %v1081
        %1963 = vmatmul.mubr.bf16.gmra.mxu0 %v1080
        %v1964 = vpop.f32.mrf.mxu0
        %v1965 = vadd.f32 0.0, %v1964
        %v1966 = vpop.f32.mrf.mxu0
        %v1967 = vadd.f32 0.0, %v1966
        %v1968 = vpop.f32.mrf.mxu0
        %v1969 = vadd.f32 0.0, %v1968
        %v1970 = vpop.f32.mrf.mxu0
        %v1971 = vadd.f32 0.0, %v1970
        %1972 = vmatprep.mubr.bf16.mxu0 %v1083
        %1973 = vmatmul.mubr.bf16.gmra.mxu0 %v1082
        %v1974 = vpop.f32.mrf.mxu0
        %v1975 = vadd.f32 0.0, %v1974
        %v1976 = vpop.f32.mrf.mxu0
        %v1977 = vadd.f32 0.0, %v1976
        %v1978 = vpop.f32.mrf.mxu0
        %v1979 = vadd.f32 0.0, %v1978
        %v1980 = vpop.f32.mrf.mxu0
        %v1981 = vadd.f32 0.0, %v1980
        %1982 = vmatprep.mubr.bf16.mxu0 %v1085
        %1983 = vmatmul.mubr.bf16.gmra.mxu0 %v1084
        %v1984 = vpop.f32.mrf.mxu0
        %v1985 = vadd.f32 0.0, %v1984
        %v1986 = vpop.f32.mrf.mxu0
        %v1987 = vadd.f32 0.0, %v1986
        %v1988 = vpop.f32.mrf.mxu0
        %v1989 = vadd.f32 0.0, %v1988
        %v1990 = vpop.f32.mrf.mxu0
        %v1991 = vadd.f32 0.0, %v1990
        %1992 = vmatprep.mubr.bf16.mxu0 %v1087
        %1993 = vmatmul.mubr.bf16.gmra.mxu0 %v1086
        %v1994 = vpop.f32.mrf.mxu0
        %v1995 = vadd.f32 0.0, %v1994
        %v1996 = vpop.f32.mrf.mxu0
        %v1997 = vadd.f32 0.0, %v1996
        %v1998 = vpop.f32.mrf.mxu0
        %v1999 = vadd.f32 0.0, %v1998
        %v2000 = vpop.f32.mrf.mxu0
        %v2001 = vadd.f32 0.0, %v2000
        %2002 = vdwg.mxu0
        %v2003 = vmul.f32 %v1315, 0.088388346
        %v2004 = vmul.f32 %v1317, 0.088388346
        %v2005 = vmul.f32 %v1319, 0.088388346
        %v2006 = vmul.f32 %v1321, 0.088388346
        %v2007 = vmul.f32 %v1325, 0.088388346
        %v2008 = vmul.f32 %v1327, 0.088388346
        %v2009 = vmul.f32 %v1329, 0.088388346
        %v2010 = vmul.f32 %v1331, 0.088388346
        %v2011 = vmul.f32 %v1335, 0.088388346
        %v2012 = vmul.f32 %v1337, 0.088388346
        %v2013 = vmul.f32 %v1339, 0.088388346
        %v2014 = vmul.f32 %v1341, 0.088388346
        %v2015 = vmul.f32 %v1345, 0.088388346
        %v2016 = vmul.f32 %v1347, 0.088388346
        %v2017 = vmul.f32 %v1349, 0.088388346
        %v2018 = vmul.f32 %v1351, 0.088388346
        %v2019 = vmul.f32 %v1355, 0.088388346
        %v2020 = vmul.f32 %v1357, 0.088388346
        %v2021 = vmul.f32 %v1359, 0.088388346
        %v2022 = vmul.f32 %v1361, 0.088388346
        %v2023 = vmul.f32 %v1365, 0.088388346
        %v2024 = vmul.f32 %v1367, 0.088388346
        %v2025 = vmul.f32 %v1369, 0.088388346
        %v2026 = vmul.f32 %v1371, 0.088388346
        %v2027 = vmul.f32 %v1375, 0.088388346
        %v2028 = vmul.f32 %v1377, 0.088388346
        %v2029 = vmul.f32 %v1379, 0.088388346
        %v2030 = vmul.f32 %v1381, 0.088388346
        %v2031 = vmul.f32 %v1385, 0.088388346
        %v2032 = vmul.f32 %v1387, 0.088388346
        %v2033 = vmul.f32 %v1389, 0.088388346
        %v2034 = vmul.f32 %v1391, 0.088388346
        %v2035 = vpack.c.bf16 %v2005, %v2003
        %v2036 = vpack.c.bf16 %v2006, %v2004
        %v2037 = vpack.c.bf16 %v2009, %v2007
        %v2038 = vpack.c.bf16 %v2010, %v2008
        %v2039 = vpack.c.bf16 %v2013, %v2011
        %v2040 = vpack.c.bf16 %v2014, %v2012
        %v2041 = vpack.c.bf16 %v2017, %v2015
        %v2042 = vpack.c.bf16 %v2018, %v2016
        %v2043 = vpack.c.bf16 %v2021, %v2019
        %v2044 = vpack.c.bf16 %v2022, %v2020
        %v2045 = vpack.c.bf16 %v2025, %v2023
        %v2046 = vpack.c.bf16 %v2026, %v2024
        %v2047 = vpack.c.bf16 %v2029, %v2027
        %v2048 = vpack.c.bf16 %v2030, %v2028
        %v2049 = vpack.c.bf16 %v2033, %v2031
        %v2050 = vpack.c.bf16 %v2034, %v2032
        %v2051 = vpack.c.bf16 %v1624, %v1620
        %v2052 = vpack.c.bf16 %v1626, %v1622
        %v2053 = vpack.c.bf16 %v1634, %v1630
        %v2054 = vpack.c.bf16 %v1636, %v1632
        %v2055 = vpack.c.bf16 %v1644, %v1640
        %v2056 = vpack.c.bf16 %v1646, %v1642
        %v2057 = vpack.c.bf16 %v1654, %v1650
        %v2058 = vpack.c.bf16 %v1656, %v1652
        %v2059 = vpack.c.bf16 %v1664, %v1660
        %v2060 = vpack.c.bf16 %v1666, %v1662
        %v2061 = vpack.c.bf16 %v1674, %v1670
        %v2062 = vpack.c.bf16 %v1676, %v1672
        %v2063 = vpack.c.bf16 %v1684, %v1680
        %v2064 = vpack.c.bf16 %v1686, %v1682
        %v2065 = vpack.c.bf16 %v1694, %v1690
        %v2066 = vpack.c.bf16 %v1696, %v1692
        %v2067 = vpack.c.bf16 %v1929, %v1925
        %v2068 = vpack.c.bf16 %v1931, %v1927
        %v2069 = vpack.c.bf16 %v1939, %v1935
        %v2070 = vpack.c.bf16 %v1941, %v1937
        %v2071 = vpack.c.bf16 %v1949, %v1945
        %v2072 = vpack.c.bf16 %v1951, %v1947
        %v2073 = vpack.c.bf16 %v1959, %v1955
        %v2074 = vpack.c.bf16 %v1961, %v1957
        %v2075 = vpack.c.bf16 %v1969, %v1965
        %v2076 = vpack.c.bf16 %v1971, %v1967
        %v2077 = vpack.c.bf16 %v1979, %v1975
        %v2078 = vpack.c.bf16 %v1981, %v1977
        %v2079 = vpack.c.bf16 %v1989, %v1985
        %v2080 = vpack.c.bf16 %v1991, %v1987
        %v2081 = vpack.c.bf16 %v1999, %v1995
        %v2082 = vpack.c.bf16 %v2001, %v1997
        %v2083 = vld [vmem:[%s2] sm:$0xff]
        %v2084 = vld [vmem:[%s2 + $0x8] sm:$0xff]
        %v2085 = vld [vmem:[%s2 + $0x10] sm:$0xff]
        %v2086 = vld [vmem:[%s2 + $0x18] sm:$0xff]
        %v2087 = vld [vmem:[%s2 + $0x20] sm:$0xff]
        %v2088 = vld [vmem:[%s2 + $0x28] sm:$0xff]
        %v2089 = vld [vmem:[%s2 + $0x30] sm:$0xff]
        %v2090 = vld [vmem:[%s2 + $0x38] sm:$0xff]
        %2091 = vmatprep.subr.bf16.mxu0 0
        %2092 = vmatpush1.bf16.xpose.msra.mxu0 0
        %2093 = vmatprep.subr.bf16.mxu0 0
        %2094 = vmatpush1.bf16.xpose.msra.mxu0 0
        %2095 = vmatprep.subr.bf16.mxu0 0
        %2096 = vmatpush1.bf16.xpose.msra.mxu0 0
        %2097 = vmatprep.subr.bf16.mxu0 0
        %2098 = vmatpush1.bf16.xpose.msra.mxu0 0
        %2099 = vmatprep.subr.bf16.mxu0 0
        %2100 = vmatpush1.bf16.xpose.msra.mxu0 %v2057
        %2101 = vmatprep.subr.bf16.mxu0 0
        %2102 = vmatpush1.bf16.xpose.msra.mxu0 %v2055
        %2103 = vmatprep.subr.bf16.mxu0 0
        %2104 = vmatpush1.bf16.xpose.msra.mxu0 %v2053
        %2105 = vmatprep.subr.bf16.mxu0 0
        %2106 = vmatpush1.bf16.xpose.msra.mxu0 %v2051
        %2107 = vmatprep.subr.bf16.mxu0 0
        %2108 = vmatpush2.bf16.xpose.msra.mxu0 0
        %2109 = vmatprep.subr.bf16.mxu0 0
        %2110 = vmatpush2.bf16.xpose.msra.mxu0 0
        %2111 = vmatprep.subr.bf16.mxu0 0
        %2112 = vmatpush2.bf16.xpose.msra.mxu0 0
        %2113 = vmatprep.subr.bf16.mxu0 0
        %2114 = vmatpush2.bf16.xpose.msra.mxu0 0
        %2115 = vmatprep.subr.bf16.mxu0 0
        %2116 = vmatpush2.bf16.xpose.msra.mxu0 0
        %2117 = vmatprep.subr.bf16.mxu0 0
        %2118 = vmatpush2.bf16.xpose.msra.mxu0 0
        %2119 = vmatprep.subr.bf16.mxu0 0
        %2120 = vmatpush2.bf16.xpose.msra.mxu0 0
        %2121 = vmatprep.subr.bf16.mxu0 0
        %2122 = vmatpush2.bf16.xpose.msra.mxu0 0
        %2123 = vmatprep.mubr.bf16.mxu0 0
        %2124 = vmatmul.mubr.bf16.gmra.mxu0 %v2035
        %v2125 = vpop.f32.mrf.mxu0
        %v2126 = vadd.f32 %v2083, %v2125
        %v2127 = vpop.f32.mrf.mxu0
        %v2128 = vpop.f32.mrf.mxu0
        %v2129 = vadd.f32 %v2084, %v2128
        %v2130 = vpop.f32.mrf.mxu0
        %2131 = vmatprep.mubr.bf16.mxu0 0
        %2132 = vmatmul.mubr.bf16.gmra.mxu0 %v2037
        %v2133 = vpop.f32.mrf.mxu0
        %v2134 = vadd.f32 %v2085, %v2133
        %v2135 = vpop.f32.mrf.mxu0
        %v2136 = vpop.f32.mrf.mxu0
        %v2137 = vadd.f32 %v2086, %v2136
        %v2138 = vpop.f32.mrf.mxu0
        %2139 = vmatprep.mubr.bf16.mxu0 0
        %2140 = vmatmul.mubr.bf16.gmra.mxu0 %v2039
        %v2141 = vpop.f32.mrf.mxu0
        %v2142 = vadd.f32 %v2087, %v2141
        %v2143 = vpop.f32.mrf.mxu0
        %v2144 = vpop.f32.mrf.mxu0
        %v2145 = vadd.f32 %v2088, %v2144
        %v2146 = vpop.f32.mrf.mxu0
        %2147 = vmatprep.mubr.bf16.mxu0 0
        %2148 = vmatmul.mubr.bf16.gmra.mxu0 %v2041
        %v2149 = vpop.f32.mrf.mxu0
        %v2150 = vadd.f32 %v2089, %v2149
        %v2151 = vpop.f32.mrf.mxu0
        %v2152 = vpop.f32.mrf.mxu0
        %v2153 = vadd.f32 %v2090, %v2152
        %v2154 = vpop.f32.mrf.mxu0
        %2155 = vdwg.mxu0
        %2156 = vmatprep.subr.bf16.mxu0 0
        %2157 = vmatpush1.bf16.xpose.msra.mxu0 0
        %2158 = vmatprep.subr.bf16.mxu0 0
        %2159 = vmatpush1.bf16.xpose.msra.mxu0 0
        %2160 = vmatprep.subr.bf16.mxu0 0
        %2161 = vmatpush1.bf16.xpose.msra.mxu0 0
        %2162 = vmatprep.subr.bf16.mxu0 0
        %2163 = vmatpush1.bf16.xpose.msra.mxu0 0
        %2164 = vmatprep.subr.bf16.mxu0 0
        %2165 = vmatpush1.bf16.xpose.msra.mxu0 %v2065
        %2166 = vmatprep.subr.bf16.mxu0 0
        %2167 = vmatpush1.bf16.xpose.msra.mxu0 %v2063
        %2168 = vmatprep.subr.bf16.mxu0 0
        %2169 = vmatpush1.bf16.xpose.msra.mxu0 %v2061
        %2170 = vmatprep.subr.bf16.mxu0 0
        %2171 = vmatpush1.bf16.xpose.msra.mxu0 %v2059
        %2172 = vmatprep.subr.bf16.mxu0 0
        %2173 = vmatpush2.bf16.xpose.msra.mxu0 0
        %2174 = vmatprep.subr.bf16.mxu0 0
        %2175 = vmatpush2.bf16.xpose.msra.mxu0 0
        %2176 = vmatprep.subr.bf16.mxu0 0
        %2177 = vmatpush2.bf16.xpose.msra.mxu0 0
        %2178 = vmatprep.subr.bf16.mxu0 0
        %2179 = vmatpush2.bf16.xpose.msra.mxu0 0
        %2180 = vmatprep.subr.bf16.mxu0 0
        %2181 = vmatpush2.bf16.xpose.msra.mxu0 0
        %2182 = vmatprep.subr.bf16.mxu0 0
        %2183 = vmatpush2.bf16.xpose.msra.mxu0 0
        %2184 = vmatprep.subr.bf16.mxu0 0
        %2185 = vmatpush2.bf16.xpose.msra.mxu0 0
        %2186 = vmatprep.subr.bf16.mxu0 0
        %2187 = vmatpush2.bf16.xpose.msra.mxu0 0
        %2188 = vmatprep.mubr.bf16.mxu0 0
        %2189 = vmatmul.mubr.bf16.gmra.mxu0 %v2043
        %v2190 = vpop.f32.mrf.mxu0
        %v2191 = vadd.f32 %v2083, %v2190
        %v2192 = vpop.f32.mrf.mxu0
        %v2193 = vpop.f32.mrf.mxu0
        %v2194 = vadd.f32 %v2084, %v2193
        %v2195 = vpop.f32.mrf.mxu0
        %2196 = vmatprep.mubr.bf16.mxu0 0
        %2197 = vmatmul.mubr.bf16.gmra.mxu0 %v2045
        %v2198 = vpop.f32.mrf.mxu0
        %v2199 = vadd.f32 %v2085, %v2198
        %v2200 = vpop.f32.mrf.mxu0
        %v2201 = vpop.f32.mrf.mxu0
        %v2202 = vadd.f32 %v2086, %v2201
        %v2203 = vpop.f32.mrf.mxu0
        %2204 = vmatprep.mubr.bf16.mxu0 0
        %2205 = vmatmul.mubr.bf16.gmra.mxu0 %v2047
        %v2206 = vpop.f32.mrf.mxu0
        %v2207 = vadd.f32 %v2087, %v2206
        %v2208 = vpop.f32.mrf.mxu0
        %v2209 = vpop.f32.mrf.mxu0
        %v2210 = vadd.f32 %v2088, %v2209
        %v2211 = vpop.f32.mrf.mxu0
        %2212 = vmatprep.mubr.bf16.mxu0 0
        %2213 = vmatmul.mubr.bf16.gmra.mxu0 %v2049
        %v2214 = vpop.f32.mrf.mxu0
        %v2215 = vadd.f32 %v2089, %v2214
        %v2216 = vpop.f32.mrf.mxu0
        %v2217 = vpop.f32.mrf.mxu0
        %v2218 = vadd.f32 %v2090, %v2217
        %v2219 = vpop.f32.mrf.mxu0
        %2220 = vdwg.mxu0
        %vm2221 = vcmask 523264
        %v2222 = vsel %vm2221, %v2126, -inf
        %2223 = vmax.xlane.f32.xlu0 %v2222
        %v2224 = vpop.xlane.xlu0 %2223
        %v2225 = vsel %vm2221, %v2129, -inf
        %2226 = vmax.xlane.f32.xlu0 %v2225
        %v2227 = vpop.xlane.xlu0 %2226
        %v2228 = vsel %vm2221, %v2134, -inf
        %2229 = vmax.xlane.f32.xlu0 %v2228
        %v2230 = vpop.xlane.xlu0 %2229
        %v2231 = vsel %vm2221, %v2137, -inf
        %2232 = vmax.xlane.f32.xlu0 %v2231
        %v2233 = vpop.xlane.xlu0 %2232
        %v2234 = vsel %vm2221, %v2142, -inf
        %2235 = vmax.xlane.f32.xlu0 %v2234
        %v2236 = vpop.xlane.xlu0 %2235
        %v2237 = vsel %vm2221, %v2145, -inf
        %2238 = vmax.xlane.f32.xlu0 %v2237
        %v2239 = vpop.xlane.xlu0 %2238
        %v2240 = vsel %vm2221, %v2150, -inf
        %2241 = vmax.xlane.f32.xlu0 %v2240
        %v2242 = vpop.xlane.xlu0 %2241
        %v2243 = vsel %vm2221, %v2153, -inf
        %2244 = vmax.xlane.f32.xlu0 %v2243
        %v2245 = vpop.xlane.xlu0 %2244
        %v2246 = vsel %vm2221, %v2191, -inf
        %2247 = vmax.xlane.f32.xlu0 %v2246
        %v2248 = vpop.xlane.xlu0 %2247
        %v2249 = vsel %vm2221, %v2194, -inf
        %2250 = vmax.xlane.f32.xlu0 %v2249
        %v2251 = vpop.xlane.xlu0 %2250
        %v2252 = vsel %vm2221, %v2199, -inf
        %2253 = vmax.xlane.f32.xlu0 %v2252
        %v2254 = vpop.xlane.xlu0 %2253
        %v2255 = vsel %vm2221, %v2202, -inf
        %2256 = vmax.xlane.f32.xlu0 %v2255
        %v2257 = vpop.xlane.xlu0 %2256
        %v2258 = vsel %vm2221, %v2207, -inf
        %2259 = vmax.xlane.f32.xlu0 %v2258
        %v2260 = vpop.xlane.xlu0 %2259
        %v2261 = vsel %vm2221, %v2210, -inf
        %2262 = vmax.xlane.f32.xlu0 %v2261
        %v2263 = vpop.xlane.xlu0 %2262
        %v2264 = vsel %vm2221, %v2215, -inf
        %2265 = vmax.xlane.f32.xlu0 %v2264
        %v2266 = vpop.xlane.xlu0 %2265
        %v2267 = vsel %vm2221, %v2218, -inf
        %2268 = vmax.xlane.f32.xlu0 %v2267
        %v2269 = vpop.xlane.xlu0 %2268
        %v2270 = vsub.f32 %v2126, %v2224
        %v2271 = vsub.f32 %v2129, %v2227
        %v2272 = vsub.f32 %v2134, %v2230
        %v2273 = vsub.f32 %v2137, %v2233
        %v2274 = vsub.f32 %v2142, %v2236
        %v2275 = vsub.f32 %v2145, %v2239
        %v2276 = vsub.f32 %v2150, %v2242
        %v2277 = vsub.f32 %v2153, %v2245
        %v2278 = vsub.f32 %v2191, %v2248
        %v2279 = vsub.f32 %v2194, %v2251
        %v2280 = vsub.f32 %v2199, %v2254
        %v2281 = vsub.f32 %v2202, %v2257
        %v2282 = vsub.f32 %v2207, %v2260
        %v2283 = vsub.f32 %v2210, %v2263
        %v2284 = vsub.f32 %v2215, %v2266
        %v2285 = vsub.f32 %v2218, %v2269
        %v2286 = vmul.f32 %v2270, 1.442695
        %v2287 = vpow.pop %v2286
        %v2288 = vmul.f32 %v2271, 1.442695
        %v2289 = vpow.pop %v2288
        %v2290 = vmul.f32 %v2272, 1.442695
        %v2291 = vpow.pop %v2290
        %v2292 = vmul.f32 %v2273, 1.442695
        %v2293 = vpow.pop %v2292
        %v2294 = vmul.f32 %v2274, 1.442695
        %v2295 = vpow.pop %v2294
        %v2296 = vmul.f32 %v2275, 1.442695
        %v2297 = vpow.pop %v2296
        %v2298 = vmul.f32 %v2276, 1.442695
        %v2299 = vpow.pop %v2298
        %v2300 = vmul.f32 %v2277, 1.442695
        %v2301 = vpow.pop %v2300
        %v2302 = vmul.f32 %v2278, 1.442695
        %v2303 = vpow.pop %v2302
        %v2304 = vmul.f32 %v2279, 1.442695
        %v2305 = vpow.pop %v2304
        %v2306 = vmul.f32 %v2280, 1.442695
        %v2307 = vpow.pop %v2306
        %v2308 = vmul.f32 %v2281, 1.442695
        %v2309 = vpow.pop %v2308
        %v2310 = vmul.f32 %v2282, 1.442695
        %v2311 = vpow.pop %v2310
        %v2312 = vmul.f32 %v2283, 1.442695
        %v2313 = vpow.pop %v2312
        %v2314 = vmul.f32 %v2284, 1.442695
        %v2315 = vpow.pop %v2314
        %v2316 = vmul.f32 %v2285, 1.442695
        %v2317 = vpow.pop %v2316
        %v2318 = vsel %vm2221, %v2287, 0.0
        %2319 = vadd.xlane.f32.xlu0 %v2318
        %v2320 = vpop.xlane.xlu0 %2319
        %v2321 = vsel %vm2221, %v2289, 0.0
        %2322 = vadd.xlane.f32.xlu0 %v2321
        %v2323 = vpop.xlane.xlu0 %2322
        %v2324 = vsel %vm2221, %v2291, 0.0
        %2325 = vadd.xlane.f32.xlu0 %v2324
        %v2326 = vpop.xlane.xlu0 %2325
        %v2327 = vsel %vm2221, %v2293, 0.0
        %2328 = vadd.xlane.f32.xlu0 %v2327
        %v2329 = vpop.xlane.xlu0 %2328
        %v2330 = vsel %vm2221, %v2295, 0.0
        %2331 = vadd.xlane.f32.xlu0 %v2330
        %v2332 = vpop.xlane.xlu0 %2331
        %v2333 = vsel %vm2221, %v2297, 0.0
        %2334 = vadd.xlane.f32.xlu0 %v2333
        %v2335 = vpop.xlane.xlu0 %2334
        %v2336 = vsel %vm2221, %v2299, 0.0
        %2337 = vadd.xlane.f32.xlu0 %v2336
        %v2338 = vpop.xlane.xlu0 %2337
        %v2339 = vsel %vm2221, %v2301, 0.0
        %2340 = vadd.xlane.f32.xlu0 %v2339
        %v2341 = vpop.xlane.xlu0 %2340
        %v2342 = vsel %vm2221, %v2303, 0.0
        %2343 = vadd.xlane.f32.xlu0 %v2342
        %v2344 = vpop.xlane.xlu0 %2343
        %v2345 = vsel %vm2221, %v2305, 0.0
        %2346 = vadd.xlane.f32.xlu0 %v2345
        %v2347 = vpop.xlane.xlu0 %2346
        %v2348 = vsel %vm2221, %v2307, 0.0
        %2349 = vadd.xlane.f32.xlu0 %v2348
        %v2350 = vpop.xlane.xlu0 %2349
        %v2351 = vsel %vm2221, %v2309, 0.0
        %2352 = vadd.xlane.f32.xlu0 %v2351
        %v2353 = vpop.xlane.xlu0 %2352
        %v2354 = vsel %vm2221, %v2311, 0.0
        %2355 = vadd.xlane.f32.xlu0 %v2354
        %v2356 = vpop.xlane.xlu0 %2355
        %v2357 = vsel %vm2221, %v2313, 0.0
        %2358 = vadd.xlane.f32.xlu0 %v2357
        %v2359 = vpop.xlane.xlu0 %2358
        %v2360 = vsel %vm2221, %v2315, 0.0
        %2361 = vadd.xlane.f32.xlu0 %v2360
        %v2362 = vpop.xlane.xlu0 %2361
        %v2363 = vsel %vm2221, %v2317, 0.0
        %2364 = vadd.xlane.f32.xlu0 %v2363
        %v2365 = vpop.xlane.xlu0 %2364
        %v2366 = vrcp.pop %v2320
        %v2367 = vrcp.pop %v2323
        %v2368 = vrcp.pop %v2326
        %v2369 = vrcp.pop %v2329
        %v2370 = vrcp.pop %v2332
        %v2371 = vrcp.pop %v2335
        %v2372 = vrcp.pop %v2338
        %v2373 = vrcp.pop %v2341
        %v2374 = vrcp.pop %v2344
        %v2375 = vrcp.pop %v2347
        %v2376 = vrcp.pop %v2350
        %v2377 = vrcp.pop %v2353
        %v2378 = vrcp.pop %v2356
        %v2379 = vrcp.pop %v2359
        %v2380 = vrcp.pop %v2362
        %v2381 = vrcp.pop %v2365
        %v2382 = vmul.f32 %v2287, %v2366
        %v2383 = vmul.f32 %v2289, %v2367
        %v2384 = vmul.f32 %v2291, %v2368
        %v2385 = vmul.f32 %v2293, %v2369
        %v2386 = vmul.f32 %v2295, %v2370
        %v2387 = vmul.f32 %v2297, %v2371
        %v2388 = vmul.f32 %v2299, %v2372
        %v2389 = vmul.f32 %v2301, %v2373
        %v2390 = vmul.f32 %v2303, %v2374
        %v2391 = vmul.f32 %v2305, %v2375
        %v2392 = vmul.f32 %v2307, %v2376
        %v2393 = vmul.f32 %v2309, %v2377
        %v2394 = vmul.f32 %v2311, %v2378
        %v2395 = vmul.f32 %v2313, %v2379
        %v2396 = vmul.f32 %v2315, %v2380
        %v2397 = vmul.f32 %v2317, %v2381
        %v2398 = vpack.c.bf16 %v2383, %v2382
        %v2399 = vpack.c.bf16 %v2385, %v2384
        %v2400 = vpack.c.bf16 %v2387, %v2386
        %v2401 = vpack.c.bf16 %v2389, %v2388
        %v2402 = vpack.c.bf16 %v2391, %v2390
        %v2403 = vpack.c.bf16 %v2393, %v2392
        %v2404 = vpack.c.bf16 %v2395, %v2394
        %v2405 = vpack.c.bf16 %v2397, %v2396
        %v2407 = vsel %vm2221, %v2398, 0
        %v2410 = vsel %vm2221, %v2399, 0
        %v2413 = vsel %vm2221, %v2400, 0
        %v2416 = vsel %vm2221, %v2401, 0
        %2418 = vmatprep.subr.bf16.mxu0 0
        %2419 = vmatpush1.bf16.msra.mxu0 0
        %2420 = vmatprep.subr.bf16.mxu0 0
        %2421 = vmatpush1.bf16.msra.mxu0 0
        %2422 = vmatprep.subr.bf16.mxu0 0
        %2423 = vmatpush1.bf16.msra.mxu0 0
        %2424 = vmatprep.subr.bf16.mxu0 0
        %2425 = vmatpush1.bf16.msra.mxu0 0
        %2426 = vmatprep.subr.bf16.mxu0 0
        %2427 = vmatpush1.bf16.msra.mxu0 %v2073
        %2428 = vmatprep.subr.bf16.mxu0 0
        %2429 = vmatpush1.bf16.msra.mxu0 %v2071
        %2430 = vmatprep.subr.bf16.mxu0 0
        %2431 = vmatpush1.bf16.msra.mxu0 %v2069
        %2432 = vmatprep.subr.bf16.mxu0 0
        %2433 = vmatpush1.bf16.msra.mxu0 %v2067
        %2434 = vmatprep.subr.bf16.mxu0 0
        %2435 = vmatpush2.bf16.msra.mxu0 0
        %2436 = vmatprep.subr.bf16.mxu0 0
        %2437 = vmatpush2.bf16.msra.mxu0 0
        %2438 = vmatprep.subr.bf16.mxu0 0
        %2439 = vmatpush2.bf16.msra.mxu0 0
        %2440 = vmatprep.subr.bf16.mxu0 0
        %2441 = vmatpush2.bf16.msra.mxu0 0
        %2442 = vmatprep.subr.bf16.mxu0 0
        %2443 = vmatpush2.bf16.msra.mxu0 0
        %2444 = vmatprep.subr.bf16.mxu0 0
        %2445 = vmatpush2.bf16.msra.mxu0 0
        %2446 = vmatprep.subr.bf16.mxu0 0
        %2447 = vmatpush2.bf16.msra.mxu0 0
        %2448 = vmatprep.subr.bf16.mxu0 0
        %2449 = vmatpush2.bf16.msra.mxu0 0
        %2450 = vmatprep.mubr.bf16.mxu0 0
        %2451 = vmatmul.mubr.bf16.gmra.mxu0 %v2407
        %v2452 = vpop.f32.mrf.mxu0
        %v2453 = vadd.f32 0.0, %v2452
        %v2454 = vpop.f32.mrf.mxu0
        %v2455 = vpop.f32.mrf.mxu0
        %v2456 = vadd.f32 0.0, %v2455
        %v2457 = vpop.f32.mrf.mxu0
        %2458 = vmatprep.mubr.bf16.mxu0 0
        %2459 = vmatmul.mubr.bf16.gmra.mxu0 %v2410
        %v2460 = vpop.f32.mrf.mxu0
        %v2461 = vadd.f32 0.0, %v2460
        %v2462 = vpop.f32.mrf.mxu0
        %v2463 = vpop.f32.mrf.mxu0
        %v2464 = vadd.f32 0.0, %v2463
        %v2465 = vpop.f32.mrf.mxu0
        %2466 = vmatprep.mubr.bf16.mxu0 0
        %2467 = vmatmul.mubr.bf16.gmra.mxu0 %v2413
        %v2468 = vpop.f32.mrf.mxu0
        %v2469 = vadd.f32 0.0, %v2468
        %v2470 = vpop.f32.mrf.mxu0
        %v2471 = vpop.f32.mrf.mxu0
        %v2472 = vadd.f32 0.0, %v2471
        %v2473 = vpop.f32.mrf.mxu0
        %2474 = vmatprep.mubr.bf16.mxu0 0
        %2475 = vmatmul.mubr.bf16.gmra.mxu0 %v2416
        %v2476 = vpop.f32.mrf.mxu0
        %v2477 = vadd.f32 0.0, %v2476
        %v2478 = vpop.f32.mrf.mxu0
        %v2479 = vpop.f32.mrf.mxu0
        %v2480 = vadd.f32 0.0, %v2479
        %v2481 = vpop.f32.mrf.mxu0
        %2482 = vdwg.mxu0
        %v2484 = vsel %vm2221, %v2402, 0
        %v2487 = vsel %vm2221, %v2403, 0
        %v2490 = vsel %vm2221, %v2404, 0
        %v2493 = vsel %vm2221, %v2405, 0
        %2495 = vmatprep.subr.bf16.mxu0 0
        %2496 = vmatpush1.bf16.msra.mxu0 0
        %2497 = vmatprep.subr.bf16.mxu0 0
        %2498 = vmatpush1.bf16.msra.mxu0 0
        %2499 = vmatprep.subr.bf16.mxu0 0
        %2500 = vmatpush1.bf16.msra.mxu0 0
        %2501 = vmatprep.subr.bf16.mxu0 0
        %2502 = vmatpush1.bf16.msra.mxu0 0
        %2503 = vmatprep.subr.bf16.mxu0 0
        %2504 = vmatpush1.bf16.msra.mxu0 %v2081
        %2505 = vmatprep.subr.bf16.mxu0 0
        %2506 = vmatpush1.bf16.msra.mxu0 %v2079
        %2507 = vmatprep.subr.bf16.mxu0 0
        %2508 = vmatpush1.bf16.msra.mxu0 %v2077
        %2509 = vmatprep.subr.bf16.mxu0 0
        %2510 = vmatpush1.bf16.msra.mxu0 %v2075
        %2511 = vmatprep.subr.bf16.mxu0 0
        %2512 = vmatpush2.bf16.msra.mxu0 0
        %2513 = vmatprep.subr.bf16.mxu0 0
        %2514 = vmatpush2.bf16.msra.mxu0 0
        %2515 = vmatprep.subr.bf16.mxu0 0
        %2516 = vmatpush2.bf16.msra.mxu0 0
        %2517 = vmatprep.subr.bf16.mxu0 0
        %2518 = vmatpush2.bf16.msra.mxu0 0
        %2519 = vmatprep.subr.bf16.mxu0 0
        %2520 = vmatpush2.bf16.msra.mxu0 0
        %2521 = vmatprep.subr.bf16.mxu0 0
        %2522 = vmatpush2.bf16.msra.mxu0 0
        %2523 = vmatprep.subr.bf16.mxu0 0
        %2524 = vmatpush2.bf16.msra.mxu0 0
        %2525 = vmatprep.subr.bf16.mxu0 0
        %2526 = vmatpush2.bf16.msra.mxu0 0
        %2527 = vmatprep.mubr.bf16.mxu0 0
        %2528 = vmatmul.mubr.bf16.gmra.mxu0 %v2484
        %v2529 = vpop.f32.mrf.mxu0
        %v2530 = vadd.f32 0.0, %v2529
        %v2531 = vpop.f32.mrf.mxu0
        %v2532 = vpop.f32.mrf.mxu0
        %v2533 = vadd.f32 0.0, %v2532
        %v2534 = vpop.f32.mrf.mxu0
        %2535 = vmatprep.mubr.bf16.mxu0 0
        %2536 = vmatmul.mubr.bf16.gmra.mxu0 %v2487
        %v2537 = vpop.f32.mrf.mxu0
        %v2538 = vadd.f32 0.0, %v2537
        %v2539 = vpop.f32.mrf.mxu0
        %v2540 = vpop.f32.mrf.mxu0
        %v2541 = vadd.f32 0.0, %v2540
        %v2542 = vpop.f32.mrf.mxu0
        %2543 = vmatprep.mubr.bf16.mxu0 0
        %2544 = vmatmul.mubr.bf16.gmra.mxu0 %v2490
        %v2545 = vpop.f32.mrf.mxu0
        %v2546 = vadd.f32 0.0, %v2545
        %v2547 = vpop.f32.mrf.mxu0
        %v2548 = vpop.f32.mrf.mxu0
        %v2549 = vadd.f32 0.0, %v2548
        %v2550 = vpop.f32.mrf.mxu0
        %2551 = vmatprep.mubr.bf16.mxu0 0
        %2552 = vmatmul.mubr.bf16.gmra.mxu0 %v2493
        %v2553 = vpop.f32.mrf.mxu0
        %v2554 = vadd.f32 0.0, %v2553
        %v2555 = vpop.f32.mrf.mxu0
        %v2556 = vpop.f32.mrf.mxu0
        %v2557 = vadd.f32 0.0, %v2556
        %v2558 = vpop.f32.mrf.mxu0
        %2559 = vdwg.mxu0
        %2560 = vmatprep.subr.bf16.mxu0 0
        %2561 = vmatpush1.bf16.xpose.msra.mxu0 0
        %2562 = vmatprep.subr.bf16.mxu0 0
        %2563 = vmatpush1.bf16.xpose.msra.mxu0 0
        %2564 = vmatprep.subr.bf16.mxu0 0
        %2565 = vmatpush1.bf16.xpose.msra.mxu0 0
        %2566 = vmatprep.subr.bf16.mxu0 0
        %2567 = vmatpush1.bf16.xpose.msra.mxu0 0
        %2568 = vmatprep.subr.bf16.mxu0 0
        %2569 = vmatpush1.bf16.xpose.msra.mxu0 %v2058
        %2570 = vmatprep.subr.bf16.mxu0 0
        %2571 = vmatpush1.bf16.xpose.msra.mxu0 %v2056
        %2572 = vmatprep.subr.bf16.mxu0 0
        %2573 = vmatpush1.bf16.xpose.msra.mxu0 %v2054
        %2574 = vmatprep.subr.bf16.mxu0 0
        %2575 = vmatpush1.bf16.xpose.msra.mxu0 %v2052
        %2576 = vmatprep.subr.bf16.mxu0 0
        %2577 = vmatpush2.bf16.xpose.msra.mxu0 0
        %2578 = vmatprep.subr.bf16.mxu0 0
        %2579 = vmatpush2.bf16.xpose.msra.mxu0 0
        %2580 = vmatprep.subr.bf16.mxu0 0
        %2581 = vmatpush2.bf16.xpose.msra.mxu0 0
        %2582 = vmatprep.subr.bf16.mxu0 0
        %2583 = vmatpush2.bf16.xpose.msra.mxu0 0
        %2584 = vmatprep.subr.bf16.mxu0 0
        %2585 = vmatpush2.bf16.xpose.msra.mxu0 0
        %2586 = vmatprep.subr.bf16.mxu0 0
        %2587 = vmatpush2.bf16.xpose.msra.mxu0 0
        %2588 = vmatprep.subr.bf16.mxu0 0
        %2589 = vmatpush2.bf16.xpose.msra.mxu0 0
        %2590 = vmatprep.subr.bf16.mxu0 0
        %2591 = vmatpush2.bf16.xpose.msra.mxu0 0
        %2592 = vmatprep.mubr.bf16.mxu0 0
        %2593 = vmatmul.mubr.bf16.gmra.mxu0 %v2036
        %v2594 = vpop.f32.mrf.mxu0
        %v2595 = vadd.f32 %v2083, %v2594
        %v2596 = vpop.f32.mrf.mxu0
        %v2597 = vpop.f32.mrf.mxu0
        %v2598 = vadd.f32 %v2084, %v2597
        %v2599 = vpop.f32.mrf.mxu0
        %2600 = vmatprep.mubr.bf16.mxu0 0
        %2601 = vmatmul.mubr.bf16.gmra.mxu0 %v2038
        %v2602 = vpop.f32.mrf.mxu0
        %v2603 = vadd.f32 %v2085, %v2602
        %v2604 = vpop.f32.mrf.mxu0
        %v2605 = vpop.f32.mrf.mxu0
        %v2606 = vadd.f32 %v2086, %v2605
        %v2607 = vpop.f32.mrf.mxu0
        %2608 = vmatprep.mubr.bf16.mxu0 0
        %2609 = vmatmul.mubr.bf16.gmra.mxu0 %v2040
        %v2610 = vpop.f32.mrf.mxu0
        %v2611 = vadd.f32 %v2087, %v2610
        %v2612 = vpop.f32.mrf.mxu0
        %v2613 = vpop.f32.mrf.mxu0
        %v2614 = vadd.f32 %v2088, %v2613
        %v2615 = vpop.f32.mrf.mxu0
        %2616 = vmatprep.mubr.bf16.mxu0 0
        %2617 = vmatmul.mubr.bf16.gmra.mxu0 %v2042
        %v2618 = vpop.f32.mrf.mxu0
        %v2619 = vadd.f32 %v2089, %v2618
        %v2620 = vpop.f32.mrf.mxu0
        %v2621 = vpop.f32.mrf.mxu0
        %v2622 = vadd.f32 %v2090, %v2621
        %v2623 = vpop.f32.mrf.mxu0
        %2624 = vdwg.mxu0
        %2625 = vmatprep.subr.bf16.mxu0 0
        %2626 = vmatpush1.bf16.xpose.msra.mxu0 0
        %2627 = vmatprep.subr.bf16.mxu0 0
        %2628 = vmatpush1.bf16.xpose.msra.mxu0 0
        %2629 = vmatprep.subr.bf16.mxu0 0
        %2630 = vmatpush1.bf16.xpose.msra.mxu0 0
        %2631 = vmatprep.subr.bf16.mxu0 0
        %2632 = vmatpush1.bf16.xpose.msra.mxu0 0
        %2633 = vmatprep.subr.bf16.mxu0 0
        %2634 = vmatpush1.bf16.xpose.msra.mxu0 %v2066
        %2635 = vmatprep.subr.bf16.mxu0 0
        %2636 = vmatpush1.bf16.xpose.msra.mxu0 %v2064
        %2637 = vmatprep.subr.bf16.mxu0 0
        %2638 = vmatpush1.bf16.xpose.msra.mxu0 %v2062
        %2639 = vmatprep.subr.bf16.mxu0 0
        %2640 = vmatpush1.bf16.xpose.msra.mxu0 %v2060
        %2641 = vmatprep.subr.bf16.mxu0 0
        %2642 = vmatpush2.bf16.xpose.msra.mxu0 0
        %2643 = vmatprep.subr.bf16.mxu0 0
        %2644 = vmatpush2.bf16.xpose.msra.mxu0 0
        %2645 = vmatprep.subr.bf16.mxu0 0
        %2646 = vmatpush2.bf16.xpose.msra.mxu0 0
        %2647 = vmatprep.subr.bf16.mxu0 0
        %2648 = vmatpush2.bf16.xpose.msra.mxu0 0
        %2649 = vmatprep.subr.bf16.mxu0 0
        %2650 = vmatpush2.bf16.xpose.msra.mxu0 0
        %2651 = vmatprep.subr.bf16.mxu0 0
        %2652 = vmatpush2.bf16.xpose.msra.mxu0 0
        %2653 = vmatprep.subr.bf16.mxu0 0
        %2654 = vmatpush2.bf16.xpose.msra.mxu0 0
        %2655 = vmatprep.subr.bf16.mxu0 0
        %2656 = vmatpush2.bf16.xpose.msra.mxu0 0
        %2657 = vmatprep.mubr.bf16.mxu0 0
        %2658 = vmatmul.mubr.bf16.gmra.mxu0 %v2044
        %v2659 = vpop.f32.mrf.mxu0
        %v2660 = vadd.f32 %v2083, %v2659
        %v2661 = vpop.f32.mrf.mxu0
        %v2662 = vpop.f32.mrf.mxu0
        %v2663 = vadd.f32 %v2084, %v2662
        %v2664 = vpop.f32.mrf.mxu0
        %2665 = vmatprep.mubr.bf16.mxu0 0
        %2666 = vmatmul.mubr.bf16.gmra.mxu0 %v2046
        %v2667 = vpop.f32.mrf.mxu0
        %v2668 = vadd.f32 %v2085, %v2667
        %v2669 = vpop.f32.mrf.mxu0
        %v2670 = vpop.f32.mrf.mxu0
        %v2671 = vadd.f32 %v2086, %v2670
        %v2672 = vpop.f32.mrf.mxu0
        %2673 = vmatprep.mubr.bf16.mxu0 0
        %2674 = vmatmul.mubr.bf16.gmra.mxu0 %v2048
        %v2675 = vpop.f32.mrf.mxu0
        %v2676 = vadd.f32 %v2087, %v2675
        %v2677 = vpop.f32.mrf.mxu0
        %v2678 = vpop.f32.mrf.mxu0
        %v2679 = vadd.f32 %v2088, %v2678
        %v2680 = vpop.f32.mrf.mxu0
        %2681 = vmatprep.mubr.bf16.mxu0 0
        %2682 = vmatmul.mubr.bf16.gmra.mxu0 %v2050
        %v2683 = vpop.f32.mrf.mxu0
        %v2684 = vadd.f32 %v2089, %v2683
        %v2685 = vpop.f32.mrf.mxu0
        %v2686 = vpop.f32.mrf.mxu0
        %v2687 = vadd.f32 %v2090, %v2686
        %v2688 = vpop.f32.mrf.mxu0
        %2689 = vdwg.mxu0
        %v2690 = vsel %vm2221, %v2595, -inf
        %2691 = vmax.xlane.f32.xlu0 %v2690
        %v2692 = vpop.xlane.xlu0 %2691
        %v2693 = vsel %vm2221, %v2598, -inf
        %2694 = vmax.xlane.f32.xlu0 %v2693
        %v2695 = vpop.xlane.xlu0 %2694
        %v2696 = vsel %vm2221, %v2603, -inf
        %2697 = vmax.xlane.f32.xlu0 %v2696
        %v2698 = vpop.xlane.xlu0 %2697
        %v2699 = vsel %vm2221, %v2606, -inf
        %2700 = vmax.xlane.f32.xlu0 %v2699
        %v2701 = vpop.xlane.xlu0 %2700
        %v2702 = vsel %vm2221, %v2611, -inf
        %2703 = vmax.xlane.f32.xlu0 %v2702
        %v2704 = vpop.xlane.xlu0 %2703
        %v2705 = vsel %vm2221, %v2614, -inf
        %2706 = vmax.xlane.f32.xlu0 %v2705
        %v2707 = vpop.xlane.xlu0 %2706
        %v2708 = vsel %vm2221, %v2619, -inf
        %2709 = vmax.xlane.f32.xlu0 %v2708
        %v2710 = vpop.xlane.xlu0 %2709
        %v2711 = vsel %vm2221, %v2622, -inf
        %2712 = vmax.xlane.f32.xlu0 %v2711
        %v2713 = vpop.xlane.xlu0 %2712
        %v2714 = vsel %vm2221, %v2660, -inf
        %2715 = vmax.xlane.f32.xlu0 %v2714
        %v2716 = vpop.xlane.xlu0 %2715
        %v2717 = vsel %vm2221, %v2663, -inf
        %2718 = vmax.xlane.f32.xlu0 %v2717
        %v2719 = vpop.xlane.xlu0 %2718
        %v2720 = vsel %vm2221, %v2668, -inf
        %2721 = vmax.xlane.f32.xlu0 %v2720
        %v2722 = vpop.xlane.xlu0 %2721
        %v2723 = vsel %vm2221, %v2671, -inf
        %2724 = vmax.xlane.f32.xlu0 %v2723
        %v2725 = vpop.xlane.xlu0 %2724
        %v2726 = vsel %vm2221, %v2676, -inf
        %2727 = vmax.xlane.f32.xlu0 %v2726
        %v2728 = vpop.xlane.xlu0 %2727
        %v2729 = vsel %vm2221, %v2679, -inf
        %2730 = vmax.xlane.f32.xlu0 %v2729
        %v2731 = vpop.xlane.xlu0 %2730
        %v2732 = vsel %vm2221, %v2684, -inf
        %2733 = vmax.xlane.f32.xlu0 %v2732
        %v2734 = vpop.xlane.xlu0 %2733
        %v2735 = vsel %vm2221, %v2687, -inf
        %2736 = vmax.xlane.f32.xlu0 %v2735
        %v2737 = vpop.xlane.xlu0 %2736
        %v2738 = vsub.f32 %v2595, %v2692
        %v2739 = vsub.f32 %v2598, %v2695
        %v2740 = vsub.f32 %v2603, %v2698
        %v2741 = vsub.f32 %v2606, %v2701
        %v2742 = vsub.f32 %v2611, %v2704
        %v2743 = vsub.f32 %v2614, %v2707
        %v2744 = vsub.f32 %v2619, %v2710
        %v2745 = vsub.f32 %v2622, %v2713
        %v2746 = vsub.f32 %v2660, %v2716
        %v2747 = vsub.f32 %v2663, %v2719
        %v2748 = vsub.f32 %v2668, %v2722
        %v2749 = vsub.f32 %v2671, %v2725
        %v2750 = vsub.f32 %v2676, %v2728
        %v2751 = vsub.f32 %v2679, %v2731
        %v2752 = vsub.f32 %v2684, %v2734
        %v2753 = vsub.f32 %v2687, %v2737
        %v2754 = vmul.f32 %v2738, 1.442695
        %v2755 = vpow.pop %v2754
        %v2756 = vmul.f32 %v2739, 1.442695
        %v2757 = vpow.pop %v2756
        %v2758 = vmul.f32 %v2740, 1.442695
        %v2759 = vpow.pop %v2758
        %v2760 = vmul.f32 %v2741, 1.442695
        %v2761 = vpow.pop %v2760
        %v2762 = vmul.f32 %v2742, 1.442695
        %v2763 = vpow.pop %v2762
        %v2764 = vmul.f32 %v2743, 1.442695
        %v2765 = vpow.pop %v2764
        %v2766 = vmul.f32 %v2744, 1.442695
        %v2767 = vpow.pop %v2766
        %v2768 = vmul.f32 %v2745, 1.442695
        %v2769 = vpow.pop %v2768
        %v2770 = vmul.f32 %v2746, 1.442695
        %v2771 = vpow.pop %v2770
        %v2772 = vmul.f32 %v2747, 1.442695
        %v2773 = vpow.pop %v2772
        %v2774 = vmul.f32 %v2748, 1.442695
        %v2775 = vpow.pop %v2774
        %v2776 = vmul.f32 %v2749, 1.442695
        %v2777 = vpow.pop %v2776
        %v2778 = vmul.f32 %v2750, 1.442695
        %v2779 = vpow.pop %v2778
        %v2780 = vmul.f32 %v2751, 1.442695
        %v2781 = vpow.pop %v2780
        %v2782 = vmul.f32 %v2752, 1.442695
        %v2783 = vpow.pop %v2782
        %v2784 = vmul.f32 %v2753, 1.442695
        %v2785 = vpow.pop %v2784
        %v2786 = vsel %vm2221, %v2755, 0.0
        %2787 = vadd.xlane.f32.xlu0 %v2786
        %v2788 = vpop.xlane.xlu0 %2787
        %v2789 = vsel %vm2221, %v2757, 0.0
        %2790 = vadd.xlane.f32.xlu0 %v2789
        %v2791 = vpop.xlane.xlu0 %2790
        %v2792 = vsel %vm2221, %v2759, 0.0
        %2793 = vadd.xlane.f32.xlu0 %v2792
        %v2794 = vpop.xlane.xlu0 %2793
        %v2795 = vsel %vm2221, %v2761, 0.0
        %2796 = vadd.xlane.f32.xlu0 %v2795
        %v2797 = vpop.xlane.xlu0 %2796
        %v2798 = vsel %vm2221, %v2763, 0.0
        %2799 = vadd.xlane.f32.xlu0 %v2798
        %v2800 = vpop.xlane.xlu0 %2799
        %v2801 = vsel %vm2221, %v2765, 0.0
        %2802 = vadd.xlane.f32.xlu0 %v2801
        %v2803 = vpop.xlane.xlu0 %2802
        %v2804 = vsel %vm2221, %v2767, 0.0
        %2805 = vadd.xlane.f32.xlu0 %v2804
        %v2806 = vpop.xlane.xlu0 %2805
        %v2807 = vsel %vm2221, %v2769, 0.0
        %2808 = vadd.xlane.f32.xlu0 %v2807
        %v2809 = vpop.xlane.xlu0 %2808
        %v2810 = vsel %vm2221, %v2771, 0.0
        %2811 = vadd.xlane.f32.xlu0 %v2810
        %v2812 = vpop.xlane.xlu0 %2811
        %v2813 = vsel %vm2221, %v2773, 0.0
        %2814 = vadd.xlane.f32.xlu0 %v2813
        %v2815 = vpop.xlane.xlu0 %2814
        %v2816 = vsel %vm2221, %v2775, 0.0
        %2817 = vadd.xlane.f32.xlu0 %v2816
        %v2818 = vpop.xlane.xlu0 %2817
        %v2819 = vsel %vm2221, %v2777, 0.0
        %2820 = vadd.xlane.f32.xlu0 %v2819
        %v2821 = vpop.xlane.xlu0 %2820
        %v2822 = vsel %vm2221, %v2779, 0.0
        %2823 = vadd.xlane.f32.xlu0 %v2822
        %v2824 = vpop.xlane.xlu0 %2823
        %v2825 = vsel %vm2221, %v2781, 0.0
        %2826 = vadd.xlane.f32.xlu0 %v2825
        %v2827 = vpop.xlane.xlu0 %2826
        %v2828 = vsel %vm2221, %v2783, 0.0
        %2829 = vadd.xlane.f32.xlu0 %v2828
        %v2830 = vpop.xlane.xlu0 %2829
        %v2831 = vsel %vm2221, %v2785, 0.0
        %2832 = vadd.xlane.f32.xlu0 %v2831
        %v2833 = vpop.xlane.xlu0 %2832
        %v2834 = vrcp.pop %v2788
        %v2835 = vrcp.pop %v2791
        %v2836 = vrcp.pop %v2794
        %v2837 = vrcp.pop %v2797
        %v2838 = vrcp.pop %v2800
        %v2839 = vrcp.pop %v2803
        %v2840 = vrcp.pop %v2806
        %v2841 = vrcp.pop %v2809
        %v2842 = vrcp.pop %v2812
        %v2843 = vrcp.pop %v2815
        %v2844 = vrcp.pop %v2818
        %v2845 = vrcp.pop %v2821
        %v2846 = vrcp.pop %v2824
        %v2847 = vrcp.pop %v2827
        %v2848 = vrcp.pop %v2830
        %v2849 = vrcp.pop %v2833
        %v2850 = vmul.f32 %v2755, %v2834
        %v2851 = vmul.f32 %v2757, %v2835
        %v2852 = vmul.f32 %v2759, %v2836
        %v2853 = vmul.f32 %v2761, %v2837
        %v2854 = vmul.f32 %v2763, %v2838
        %v2855 = vmul.f32 %v2765, %v2839
        %v2856 = vmul.f32 %v2767, %v2840
        %v2857 = vmul.f32 %v2769, %v2841
        %v2858 = vmul.f32 %v2771, %v2842
        %v2859 = vmul.f32 %v2773, %v2843
        %v2860 = vmul.f32 %v2775, %v2844
        %v2861 = vmul.f32 %v2777, %v2845
        %v2862 = vmul.f32 %v2779, %v2846
        %v2863 = vmul.f32 %v2781, %v2847
        %v2864 = vmul.f32 %v2783, %v2848
        %v2865 = vmul.f32 %v2785, %v2849
        %v2866 = vpack.c.bf16 %v2851, %v2850
        %v2867 = vpack.c.bf16 %v2853, %v2852
        %v2868 = vpack.c.bf16 %v2855, %v2854
        %v2869 = vpack.c.bf16 %v2857, %v2856
        %v2870 = vpack.c.bf16 %v2859, %v2858
        %v2871 = vpack.c.bf16 %v2861, %v2860
        %v2872 = vpack.c.bf16 %v2863, %v2862
        %v2873 = vpack.c.bf16 %v2865, %v2864
        %v2875 = vsel %vm2221, %v2866, 0
        %v2878 = vsel %vm2221, %v2867, 0
        %v2881 = vsel %vm2221, %v2868, 0
        %v2884 = vsel %vm2221, %v2869, 0
        %2886 = vmatprep.subr.bf16.mxu0 0
        %2887 = vmatpush1.bf16.msra.mxu0 0
        %2888 = vmatprep.subr.bf16.mxu0 0
        %2889 = vmatpush1.bf16.msra.mxu0 0
        %2890 = vmatprep.subr.bf16.mxu0 0
        %2891 = vmatpush1.bf16.msra.mxu0 0
        %2892 = vmatprep.subr.bf16.mxu0 0
        %2893 = vmatpush1.bf16.msra.mxu0 0
        %2894 = vmatprep.subr.bf16.mxu0 0
        %2895 = vmatpush1.bf16.msra.mxu0 %v2074
        %2896 = vmatprep.subr.bf16.mxu0 0
        %2897 = vmatpush1.bf16.msra.mxu0 %v2072
        %2898 = vmatprep.subr.bf16.mxu0 0
        %2899 = vmatpush1.bf16.msra.mxu0 %v2070
        %2900 = vmatprep.subr.bf16.mxu0 0
        %2901 = vmatpush1.bf16.msra.mxu0 %v2068
        %2902 = vmatprep.subr.bf16.mxu0 0
        %2903 = vmatpush2.bf16.msra.mxu0 0
        %2904 = vmatprep.subr.bf16.mxu0 0
        %2905 = vmatpush2.bf16.msra.mxu0 0
        %2906 = vmatprep.subr.bf16.mxu0 0
        %2907 = vmatpush2.bf16.msra.mxu0 0
        %2908 = vmatprep.subr.bf16.mxu0 0
        %2909 = vmatpush2.bf16.msra.mxu0 0
        %2910 = vmatprep.subr.bf16.mxu0 0
        %2911 = vmatpush2.bf16.msra.mxu0 0
        %2912 = vmatprep.subr.bf16.mxu0 0
        %2913 = vmatpush2.bf16.msra.mxu0 0
        %2914 = vmatprep.subr.bf16.mxu0 0
        %2915 = vmatpush2.bf16.msra.mxu0 0
        %2916 = vmatprep.subr.bf16.mxu0 0
        %2917 = vmatpush2.bf16.msra.mxu0 0
        %2918 = vmatprep.mubr.bf16.mxu0 0
        %2919 = vmatmul.mubr.bf16.gmra.mxu0 %v2875
        %v2920 = vpop.f32.mrf.mxu0
        %v2921 = vadd.f32 0.0, %v2920
        %v2922 = vpop.f32.mrf.mxu0
        %v2923 = vpop.f32.mrf.mxu0
        %v2924 = vadd.f32 0.0, %v2923
        %v2925 = vpop.f32.mrf.mxu0
        %2926 = vmatprep.mubr.bf16.mxu0 0
        %2927 = vmatmul.mubr.bf16.gmra.mxu0 %v2878
        %v2928 = vpop.f32.mrf.mxu0
        %v2929 = vadd.f32 0.0, %v2928
        %v2930 = vpop.f32.mrf.mxu0
        %v2931 = vpop.f32.mrf.mxu0
        %v2932 = vadd.f32 0.0, %v2931
        %v2933 = vpop.f32.mrf.mxu0
        %2934 = vmatprep.mubr.bf16.mxu0 0
        %2935 = vmatmul.mubr.bf16.gmra.mxu0 %v2881
        %v2936 = vpop.f32.mrf.mxu0
        %v2937 = vadd.f32 0.0, %v2936
        %v2938 = vpop.f32.mrf.mxu0
        %v2939 = vpop.f32.mrf.mxu0
        %v2940 = vadd.f32 0.0, %v2939
        %v2941 = vpop.f32.mrf.mxu0
        %2942 = vmatprep.mubr.bf16.mxu0 0
        %2943 = vmatmul.mubr.bf16.gmra.mxu0 %v2884
        %v2944 = vpop.f32.mrf.mxu0
        %v2945 = vadd.f32 0.0, %v2944
        %v2946 = vpop.f32.mrf.mxu0
        %v2947 = vpop.f32.mrf.mxu0
        %v2948 = vadd.f32 0.0, %v2947
        %v2949 = vpop.f32.mrf.mxu0
        %2950 = vdwg.mxu0
        %v2952 = vsel %vm2221, %v2870, 0
        %v2955 = vsel %vm2221, %v2871, 0
        %v2958 = vsel %vm2221, %v2872, 0
        %v2961 = vsel %vm2221, %v2873, 0
        %2963 = vmatprep.subr.bf16.mxu0 0
        %2964 = vmatpush1.bf16.msra.mxu0 0
        %2965 = vmatprep.subr.bf16.mxu0 0
        %2966 = vmatpush1.bf16.msra.mxu0 0
        %2967 = vmatprep.subr.bf16.mxu0 0
        %2968 = vmatpush1.bf16.msra.mxu0 0
        %2969 = vmatprep.subr.bf16.mxu0 0
        %2970 = vmatpush1.bf16.msra.mxu0 0
        %2971 = vmatprep.subr.bf16.mxu0 0
        %2972 = vmatpush1.bf16.msra.mxu0 %v2082
        %2973 = vmatprep.subr.bf16.mxu0 0
        %2974 = vmatpush1.bf16.msra.mxu0 %v2080
        %2975 = vmatprep.subr.bf16.mxu0 0
        %2976 = vmatpush1.bf16.msra.mxu0 %v2078
        %2977 = vmatprep.subr.bf16.mxu0 0
        %2978 = vmatpush1.bf16.msra.mxu0 %v2076
        %2979 = vmatprep.subr.bf16.mxu0 0
        %2980 = vmatpush2.bf16.msra.mxu0 0
        %2981 = vmatprep.subr.bf16.mxu0 0
        %2982 = vmatpush2.bf16.msra.mxu0 0
        %2983 = vmatprep.subr.bf16.mxu0 0
        %2984 = vmatpush2.bf16.msra.mxu0 0
        %2985 = vmatprep.subr.bf16.mxu0 0
        %2986 = vmatpush2.bf16.msra.mxu0 0
        %2987 = vmatprep.subr.bf16.mxu0 0
        %2988 = vmatpush2.bf16.msra.mxu0 0
        %2989 = vmatprep.subr.bf16.mxu0 0
        %2990 = vmatpush2.bf16.msra.mxu0 0
        %2991 = vmatprep.subr.bf16.mxu0 0
        %2992 = vmatpush2.bf16.msra.mxu0 0
        %2993 = vmatprep.subr.bf16.mxu0 0
        %2994 = vmatpush2.bf16.msra.mxu0 0
        %2995 = vmatprep.mubr.bf16.mxu0 0
        %2996 = vmatmul.mubr.bf16.gmra.mxu0 %v2952
        %v2997 = vpop.f32.mrf.mxu0
        %v2998 = vadd.f32 0.0, %v2997
        %v2999 = vpop.f32.mrf.mxu0
        %v3000 = vpop.f32.mrf.mxu0
        %v3001 = vadd.f32 0.0, %v3000
        %v3002 = vpop.f32.mrf.mxu0
        %3003 = vmatprep.mubr.bf16.mxu0 0
        %3004 = vmatmul.mubr.bf16.gmra.mxu0 %v2955
        %v3005 = vpop.f32.mrf.mxu0
        %v3006 = vadd.f32 0.0, %v3005
        %v3007 = vpop.f32.mrf.mxu0
        %v3008 = vpop.f32.mrf.mxu0
        %v3009 = vadd.f32 0.0, %v3008
        %v3010 = vpop.f32.mrf.mxu0
        %3011 = vmatprep.mubr.bf16.mxu0 0
        %3012 = vmatmul.mubr.bf16.gmra.mxu0 %v2958
        %v3013 = vpop.f32.mrf.mxu0
        %v3014 = vadd.f32 0.0, %v3013
        %v3015 = vpop.f32.mrf.mxu0
        %v3016 = vpop.f32.mrf.mxu0
        %v3017 = vadd.f32 0.0, %v3016
        %v3018 = vpop.f32.mrf.mxu0
        %3019 = vmatprep.mubr.bf16.mxu0 0
        %3020 = vmatmul.mubr.bf16.gmra.mxu0 %v2961
        %v3021 = vpop.f32.mrf.mxu0
        %v3022 = vadd.f32 0.0, %v3021
        %v3023 = vpop.f32.mrf.mxu0
        %v3024 = vpop.f32.mrf.mxu0
        %v3025 = vadd.f32 0.0, %v3024
        %v3026 = vpop.f32.mrf.mxu0
        %3027 = vdwg.mxu0
        %v3028 = vpack.c.bf16 %v2456, %v2453
        %v3029 = vpack.c.bf16 %v2924, %v2921
        %v3030 = vpack.c.bf16 %v2464, %v2461
        %v3031 = vpack.c.bf16 %v2932, %v2929
        %v3032 = vpack.c.bf16 %v2472, %v2469
        %v3033 = vpack.c.bf16 %v2940, %v2937
        %v3034 = vpack.c.bf16 %v2480, %v2477
        %v3035 = vpack.c.bf16 %v2948, %v2945
        %v3036 = vpack.c.bf16 %v2533, %v2530
        %v3037 = vpack.c.bf16 %v3001, %v2998
        %v3038 = vpack.c.bf16 %v2541, %v2538
        %v3039 = vpack.c.bf16 %v3009, %v3006
        %v3040 = vpack.c.bf16 %v2549, %v2546
        %v3041 = vpack.c.bf16 %v3017, %v3014
        %v3042 = vpack.c.bf16 %v2557, %v2554
        %v3043 = vpack.c.bf16 %v3025, %v3022
        %v3044 = vld [vmem:[%s611] sm:$0xff]
        %v3045 = vld [vmem:[%s611 + $0x8] sm:$0xff]
        %v3046 = vld [vmem:[%s611 + $0x10] sm:$0xff]
        %v3047 = vld [vmem:[%s611 + $0x18] sm:$0xff]
        %v3048 = vld [vmem:[%s611 + $0x20] sm:$0xff]
        %v3049 = vld [vmem:[%s611 + $0x28] sm:$0xff]
        %v3050 = vld [vmem:[%s611 + $0x30] sm:$0xff]
        %v3051 = vld [vmem:[%s611 + $0x38] sm:$0xff]
        %v3052 = vld [vmem:[%s611 + $0x40] sm:$0xff]
        %v3053 = vld [vmem:[%s611 + $0x48] sm:$0xff]
        %v3054 = vld [vmem:[%s611 + $0x50] sm:$0xff]
        %v3055 = vld [vmem:[%s611 + $0x58] sm:$0xff]
        %v3056 = vld [vmem:[%s611 + $0x60] sm:$0xff]
        %v3057 = vld [vmem:[%s611 + $0x68] sm:$0xff]
        %v3058 = vld [vmem:[%s611 + $0x70] sm:$0xff]
        %v3059 = vld [vmem:[%s611 + $0x78] sm:$0xff]
        %v3060 = vld [vmem:[%s611 + $0x80] sm:$0xff]
        %v3061 = vld [vmem:[%s611 + $0x88] sm:$0xff]
        %v3062 = vld [vmem:[%s611 + $0x90] sm:$0xff]
        %v3063 = vld [vmem:[%s611 + $0x98] sm:$0xff]
        %v3064 = vld [vmem:[%s611 + $0xa0] sm:$0xff]
        %v3065 = vld [vmem:[%s611 + $0xa8] sm:$0xff]
        %v3066 = vld [vmem:[%s611 + $0xb0] sm:$0xff]
        %v3067 = vld [vmem:[%s611 + $0xb8] sm:$0xff]
        %v3068 = vld [vmem:[%s611 + $0xc0] sm:$0xff]
        %v3069 = vld [vmem:[%s611 + $0xc8] sm:$0xff]
        %v3070 = vld [vmem:[%s611 + $0xd0] sm:$0xff]
        %v3071 = vld [vmem:[%s611 + $0xd8] sm:$0xff]
        %v3072 = vld [vmem:[%s611 + $0xe0] sm:$0xff]
        %v3073 = vld [vmem:[%s611 + $0xe8] sm:$0xff]
        %v3074 = vld [vmem:[%s611 + $0xf0] sm:$0xff]
        %v3075 = vld [vmem:[%s611 + $0xf8] sm:$0xff]
        %v3108 = vunpack.c.l.b16 %v3044
        %v3109 = vunpack.c.h.b16 %v3044
        %v3110 = vunpack.c.l.b16 %v3045
        %v3111 = vunpack.c.h.b16 %v3045
        %v3112 = vunpack.c.l.b16 %v3046
        %v3113 = vunpack.c.h.b16 %v3046
        %v3114 = vunpack.c.l.b16 %v3047
        %v3115 = vunpack.c.h.b16 %v3047
        %v3116 = vunpack.c.l.b16 %v3048
        %v3117 = vunpack.c.h.b16 %v3048
        %v3118 = vunpack.c.l.b16 %v3049
        %v3119 = vunpack.c.h.b16 %v3049
        %v3120 = vunpack.c.l.b16 %v3050
        %v3121 = vunpack.c.h.b16 %v3050
        %v3122 = vunpack.c.l.b16 %v3051
        %v3123 = vunpack.c.h.b16 %v3051
        %v3124 = vunpack.c.l.b16 %v3052
        %v3125 = vunpack.c.h.b16 %v3052
        %v3126 = vunpack.c.l.b16 %v3053
        %v3127 = vunpack.c.h.b16 %v3053
        %v3128 = vunpack.c.l.b16 %v3054
        %v3129 = vunpack.c.h.b16 %v3054
        %v3130 = vunpack.c.l.b16 %v3055
        %v3131 = vunpack.c.h.b16 %v3055
        %v3132 = vunpack.c.l.b16 %v3056
        %v3133 = vunpack.c.h.b16 %v3056
        %v3134 = vunpack.c.l.b16 %v3057
        %v3135 = vunpack.c.h.b16 %v3057
        %v3136 = vunpack.c.l.b16 %v3058
        %v3137 = vunpack.c.h.b16 %v3058
        %v3138 = vunpack.c.l.b16 %v3059
        %v3139 = vunpack.c.h.b16 %v3059
        %v3140 = vunpack.c.l.b16 %v3060
        %v3141 = vunpack.c.h.b16 %v3060
        %v3142 = vunpack.c.l.b16 %v3061
        %v3143 = vunpack.c.h.b16 %v3061
        %v3144 = vunpack.c.l.b16 %v3062
        %v3145 = vunpack.c.h.b16 %v3062
        %v3146 = vunpack.c.l.b16 %v3063
        %v3147 = vunpack.c.h.b16 %v3063
        %v3148 = vunpack.c.l.b16 %v3064
        %v3149 = vunpack.c.h.b16 %v3064
        %v3150 = vunpack.c.l.b16 %v3065
        %v3151 = vunpack.c.h.b16 %v3065
        %v3152 = vunpack.c.l.b16 %v3066
        %v3153 = vunpack.c.h.b16 %v3066
        %v3154 = vunpack.c.l.b16 %v3067
        %v3155 = vunpack.c.h.b16 %v3067
        %v3156 = vunpack.c.l.b16 %v3068
        %v3157 = vunpack.c.h.b16 %v3068
        %v3158 = vunpack.c.l.b16 %v3069
        %v3159 = vunpack.c.h.b16 %v3069
        %v3160 = vunpack.c.l.b16 %v3070
        %v3161 = vunpack.c.h.b16 %v3070
        %v3162 = vunpack.c.l.b16 %v3071
        %v3163 = vunpack.c.h.b16 %v3071
        %v3164 = vunpack.c.l.b16 %v3072
        %v3165 = vunpack.c.h.b16 %v3072
        %v3166 = vunpack.c.l.b16 %v3073
        %v3167 = vunpack.c.h.b16 %v3073
        %v3168 = vunpack.c.l.b16 %v3074
        %v3169 = vunpack.c.h.b16 %v3074
        %v3170 = vunpack.c.l.b16 %v3075
        %v3171 = vunpack.c.h.b16 %v3075
        %v3172 = vpack.c.b16 %v3110, %v3108
        %v3173 = vpack.c.b16 %v3111, %v3109
        %v3174 = vpack.c.b16 %v3114, %v3112
        %v3175 = vpack.c.b16 %v3115, %v3113
        %v3176 = vpack.c.b16 %v3118, %v3116
        %v3177 = vpack.c.b16 %v3119, %v3117
        %v3178 = vpack.c.b16 %v3122, %v3120
        %v3179 = vpack.c.b16 %v3123, %v3121
        %v3180 = vpack.c.b16 %v3126, %v3124
        %v3181 = vpack.c.b16 %v3127, %v3125
        %v3182 = vpack.c.b16 %v3130, %v3128
        %v3183 = vpack.c.b16 %v3131, %v3129
        %v3184 = vpack.c.b16 %v3134, %v3132
        %v3185 = vpack.c.b16 %v3135, %v3133
        %v3186 = vpack.c.b16 %v3138, %v3136
        %v3187 = vpack.c.b16 %v3139, %v3137
        %v3188 = vpack.c.b16 %v3142, %v3140
        %v3189 = vpack.c.b16 %v3143, %v3141
        %v3190 = vpack.c.b16 %v3146, %v3144
        %v3191 = vpack.c.b16 %v3147, %v3145
        %v3192 = vpack.c.b16 %v3150, %v3148
        %v3193 = vpack.c.b16 %v3151, %v3149
        %v3194 = vpack.c.b16 %v3154, %v3152
        %v3195 = vpack.c.b16 %v3155, %v3153
        %v3196 = vpack.c.b16 %v3158, %v3156
        %v3197 = vpack.c.b16 %v3159, %v3157
        %v3198 = vpack.c.b16 %v3162, %v3160
        %v3199 = vpack.c.b16 %v3163, %v3161
        %v3200 = vpack.c.b16 %v3166, %v3164
        %v3201 = vpack.c.b16 %v3167, %v3165
        %v3202 = vpack.c.b16 %v3170, %v3168
        %v3203 = vpack.c.b16 %v3171, %v3169
        %3236 = vmatprep.subr.bf16.mxu0 %v3187
        %3237 = vmatpush1.bf16.msra.mxu0 %v3186
        %3238 = vmatprep.subr.bf16.mxu0 %v3185
        %3239 = vmatpush1.bf16.msra.mxu0 %v3184
        %3240 = vmatprep.subr.bf16.mxu0 %v3183
        %3241 = vmatpush1.bf16.msra.mxu0 %v3182
        %3242 = vmatprep.subr.bf16.mxu0 %v3181
        %3243 = vmatpush1.bf16.msra.mxu0 %v3180
        %3244 = vmatprep.subr.bf16.mxu0 %v3179
        %3245 = vmatpush1.bf16.msra.mxu0 %v3178
        %3246 = vmatprep.subr.bf16.mxu0 %v3177
        %3247 = vmatpush1.bf16.msra.mxu0 %v3176
        %3248 = vmatprep.subr.bf16.mxu0 %v3175
        %3249 = vmatpush1.bf16.msra.mxu0 %v3174
        %3250 = vmatprep.subr.bf16.mxu0 %v3173
        %3251 = vmatpush1.bf16.msra.mxu0 %v3172
        %3252 = vmatprep.subr.bf16.mxu0 %v3203
        %3253 = vmatpush2.bf16.msra.mxu0 %v3202
        %3254 = vmatprep.subr.bf16.mxu0 %v3201
        %3255 = vmatpush2.bf16.msra.mxu0 %v3200
        %3256 = vmatprep.subr.bf16.mxu0 %v3199
        %3257 = vmatpush2.bf16.msra.mxu0 %v3198
        %3258 = vmatprep.subr.bf16.mxu0 %v3197
        %3259 = vmatpush2.bf16.msra.mxu0 %v3196
        %3260 = vmatprep.subr.bf16.mxu0 %v3195
        %3261 = vmatpush2.bf16.msra.mxu0 %v3194
        %3262 = vmatprep.subr.bf16.mxu0 %v3193
        %3263 = vmatpush2.bf16.msra.mxu0 %v3192
        %3264 = vmatprep.subr.bf16.mxu0 %v3191
        %3265 = vmatpush2.bf16.msra.mxu0 %v3190
        %3266 = vmatprep.subr.bf16.mxu0 %v3189
        %3267 = vmatpush2.bf16.msra.mxu0 %v3188
        %3268 = vmatprep.mubr.bf16.mxu0 %v3029
        %3269 = vmatmul.mubr.bf16.gmra.mxu0 %v3028
        %v3270 = vpop.f32.mrf.mxu0
        %v3271 = vadd.f32 0.0, %v3270
        %v3272 = vpop.f32.mrf.mxu0
        %v3273 = vadd.f32 0.0, %v3272
        %v3274 = vpop.f32.mrf.mxu0
        %v3275 = vadd.f32 0.0, %v3274
        %v3276 = vpop.f32.mrf.mxu0
        %v3277 = vadd.f32 0.0, %v3276
        %3278 = vmatprep.mubr.bf16.mxu0 %v3031
        %3279 = vmatmul.mubr.bf16.gmra.mxu0 %v3030
        %v3280 = vpop.f32.mrf.mxu0
        %v3281 = vadd.f32 0.0, %v3280
        %v3282 = vpop.f32.mrf.mxu0
        %v3283 = vadd.f32 0.0, %v3282
        %v3284 = vpop.f32.mrf.mxu0
        %v3285 = vadd.f32 0.0, %v3284
        %v3286 = vpop.f32.mrf.mxu0
        %v3287 = vadd.f32 0.0, %v3286
        %3288 = vmatprep.mubr.bf16.mxu0 %v3033
        %3289 = vmatmul.mubr.bf16.gmra.mxu0 %v3032
        %v3290 = vpop.f32.mrf.mxu0
        %v3291 = vadd.f32 0.0, %v3290
        %v3292 = vpop.f32.mrf.mxu0
        %v3293 = vadd.f32 0.0, %v3292
        %v3294 = vpop.f32.mrf.mxu0
        %v3295 = vadd.f32 0.0, %v3294
        %v3296 = vpop.f32.mrf.mxu0
        %v3297 = vadd.f32 0.0, %v3296
        %3298 = vmatprep.mubr.bf16.mxu0 %v3035
        %3299 = vmatmul.mubr.bf16.gmra.mxu0 %v3034
        %v3300 = vpop.f32.mrf.mxu0
        %v3301 = vadd.f32 0.0, %v3300
        %v3302 = vpop.f32.mrf.mxu0
        %v3303 = vadd.f32 0.0, %v3302
        %v3304 = vpop.f32.mrf.mxu0
        %v3305 = vadd.f32 0.0, %v3304
        %v3306 = vpop.f32.mrf.mxu0
        %v3307 = vadd.f32 0.0, %v3306
        %3308 = vmatprep.mubr.bf16.mxu0 %v3037
        %3309 = vmatmul.mubr.bf16.gmra.mxu0 %v3036
        %v3310 = vpop.f32.mrf.mxu0
        %v3311 = vadd.f32 0.0, %v3310
        %v3312 = vpop.f32.mrf.mxu0
        %v3313 = vadd.f32 0.0, %v3312
        %v3314 = vpop.f32.mrf.mxu0
        %v3315 = vadd.f32 0.0, %v3314
        %v3316 = vpop.f32.mrf.mxu0
        %v3317 = vadd.f32 0.0, %v3316
        %3318 = vmatprep.mubr.bf16.mxu0 %v3039
        %3319 = vmatmul.mubr.bf16.gmra.mxu0 %v3038
        %v3320 = vpop.f32.mrf.mxu0
        %v3321 = vadd.f32 0.0, %v3320
        %v3322 = vpop.f32.mrf.mxu0
        %v3323 = vadd.f32 0.0, %v3322
        %v3324 = vpop.f32.mrf.mxu0
        %v3325 = vadd.f32 0.0, %v3324
        %v3326 = vpop.f32.mrf.mxu0
        %v3327 = vadd.f32 0.0, %v3326
        %3328 = vmatprep.mubr.bf16.mxu0 %v3041
        %3329 = vmatmul.mubr.bf16.gmra.mxu0 %v3040
        %v3330 = vpop.f32.mrf.mxu0
        %v3331 = vadd.f32 0.0, %v3330
        %v3332 = vpop.f32.mrf.mxu0
        %v3333 = vadd.f32 0.0, %v3332
        %v3334 = vpop.f32.mrf.mxu0
        %v3335 = vadd.f32 0.0, %v3334
        %v3336 = vpop.f32.mrf.mxu0
        %v3337 = vadd.f32 0.0, %v3336
        %3338 = vmatprep.mubr.bf16.mxu0 %v3043
        %3339 = vmatmul.mubr.bf16.gmra.mxu0 %v3042
        %v3340 = vpop.f32.mrf.mxu0
        %v3341 = vadd.f32 0.0, %v3340
        %v3342 = vpop.f32.mrf.mxu0
        %v3343 = vadd.f32 0.0, %v3342
        %v3344 = vpop.f32.mrf.mxu0
        %v3345 = vadd.f32 0.0, %v3344
        %v3346 = vpop.f32.mrf.mxu0
        %v3347 = vadd.f32 0.0, %v3346
        %3348 = vdwg.mxu0
        %v3349 = vadd.f32 %v835, %v3271
        %v3350 = vadd.f32 %v836, %v3273
        %v3351 = vadd.f32 %v837, %v3275
        %v3352 = vadd.f32 %v838, %v3277
        %v3353 = vadd.f32 %v839, %v3281
        %v3354 = vadd.f32 %v840, %v3283
        %v3355 = vadd.f32 %v841, %v3285
        %v3356 = vadd.f32 %v842, %v3287
        %v3357 = vadd.f32 %v843, %v3291
        %v3358 = vadd.f32 %v844, %v3293
        %v3359 = vadd.f32 %v845, %v3295
        %v3360 = vadd.f32 %v846, %v3297
        %v3361 = vadd.f32 %v847, %v3301
        %v3362 = vadd.f32 %v848, %v3303
        %v3363 = vadd.f32 %v849, %v3305
        %v3364 = vadd.f32 %v850, %v3307
        %v3365 = vadd.f32 %v851, %v3311
        %v3366 = vadd.f32 %v852, %v3313
        %v3367 = vadd.f32 %v853, %v3315
        %v3368 = vadd.f32 %v854, %v3317
        %v3369 = vadd.f32 %v855, %v3321
        %v3370 = vadd.f32 %v856, %v3323
        %v3371 = vadd.f32 %v857, %v3325
        %v3372 = vadd.f32 %v858, %v3327
        %v3373 = vadd.f32 %v859, %v3331
        %v3374 = vadd.f32 %v860, %v3333
        %v3375 = vadd.f32 %v861, %v3335
        %v3376 = vadd.f32 %v862, %v3337
        %v3377 = vadd.f32 %v863, %v3341
        %v3378 = vadd.f32 %v864, %v3343
        %v3379 = vadd.f32 %v865, %v3345
        %v3380 = vadd.f32 %v866, %v3347
        %v3381 = vld [vmem:[%s716] sm:$0x3]
        %v3382 = vmul.f32 %v3349, %v3349
        %v3383 = vmul.f32 %v3350, %v3350
        %v3384 = vmul.f32 %v3351, %v3351
        %v3385 = vmul.f32 %v3352, %v3352
        %v3386 = vmul.f32 %v3353, %v3353
        %v3387 = vmul.f32 %v3354, %v3354
        %v3388 = vmul.f32 %v3355, %v3355
        %v3389 = vmul.f32 %v3356, %v3356
        %v3390 = vmul.f32 %v3357, %v3357
        %v3391 = vmul.f32 %v3358, %v3358
        %v3392 = vmul.f32 %v3359, %v3359
        %v3393 = vmul.f32 %v3360, %v3360
        %v3394 = vmul.f32 %v3361, %v3361
        %v3395 = vmul.f32 %v3362, %v3362
        %v3396 = vmul.f32 %v3363, %v3363
        %v3397 = vmul.f32 %v3364, %v3364
        %v3398 = vmul.f32 %v3365, %v3365
        %v3399 = vmul.f32 %v3366, %v3366
        %v3400 = vmul.f32 %v3367, %v3367
        %v3401 = vmul.f32 %v3368, %v3368
        %v3402 = vmul.f32 %v3369, %v3369
        %v3403 = vmul.f32 %v3370, %v3370
        %v3404 = vmul.f32 %v3371, %v3371
        %v3405 = vmul.f32 %v3372, %v3372
        %v3406 = vmul.f32 %v3373, %v3373
        %v3407 = vmul.f32 %v3374, %v3374
        %v3408 = vmul.f32 %v3375, %v3375
        %v3409 = vmul.f32 %v3376, %v3376
        %v3410 = vmul.f32 %v3377, %v3377
        %v3411 = vmul.f32 %v3378, %v3378
        %v3412 = vmul.f32 %v3379, %v3379
        %v3413 = vmul.f32 %v3380, %v3380
        %v3414 = vadd.f32 %v3382, %v3383
        %3415 = vadd.xlane.f32.xlu0 %v3414
        %v3416 = vpop.xlane.xlu0 %3415
        %v3417 = vadd.f32 %v3384, %v3385
        %3418 = vadd.xlane.f32.xlu0 %v3417
        %v3419 = vpop.xlane.xlu0 %3418
        %v3420 = vadd.f32 %v3386, %v3387
        %3421 = vadd.xlane.f32.xlu0 %v3420
        %v3422 = vpop.xlane.xlu0 %3421
        %v3423 = vadd.f32 %v3388, %v3389
        %3424 = vadd.xlane.f32.xlu0 %v3423
        %v3425 = vpop.xlane.xlu0 %3424
        %v3426 = vadd.f32 %v3390, %v3391
        %3427 = vadd.xlane.f32.xlu0 %v3426
        %v3428 = vpop.xlane.xlu0 %3427
        %v3429 = vadd.f32 %v3392, %v3393
        %3430 = vadd.xlane.f32.xlu0 %v3429
        %v3431 = vpop.xlane.xlu0 %3430
        %v3432 = vadd.f32 %v3394, %v3395
        %3433 = vadd.xlane.f32.xlu0 %v3432
        %v3434 = vpop.xlane.xlu0 %3433
        %v3435 = vadd.f32 %v3396, %v3397
        %3436 = vadd.xlane.f32.xlu0 %v3435
        %v3437 = vpop.xlane.xlu0 %3436
        %v3438 = vadd.f32 %v3398, %v3399
        %3439 = vadd.xlane.f32.xlu0 %v3438
        %v3440 = vpop.xlane.xlu0 %3439
        %v3441 = vadd.f32 %v3400, %v3401
        %3442 = vadd.xlane.f32.xlu0 %v3441
        %v3443 = vpop.xlane.xlu0 %3442
        %v3444 = vadd.f32 %v3402, %v3403
        %3445 = vadd.xlane.f32.xlu0 %v3444
        %v3446 = vpop.xlane.xlu0 %3445
        %v3447 = vadd.f32 %v3404, %v3405
        %3448 = vadd.xlane.f32.xlu0 %v3447
        %v3449 = vpop.xlane.xlu0 %3448
        %v3450 = vadd.f32 %v3406, %v3407
        %3451 = vadd.xlane.f32.xlu0 %v3450
        %v3452 = vpop.xlane.xlu0 %3451
        %v3453 = vadd.f32 %v3408, %v3409
        %3454 = vadd.xlane.f32.xlu0 %v3453
        %v3455 = vpop.xlane.xlu0 %3454
        %v3456 = vadd.f32 %v3410, %v3411
        %3457 = vadd.xlane.f32.xlu0 %v3456
        %v3458 = vpop.xlane.xlu0 %3457
        %v3459 = vadd.f32 %v3412, %v3413
        %3460 = vadd.xlane.f32.xlu0 %v3459
        %v3461 = vpop.xlane.xlu0 %3460
        %v3462 = vmul.f32 %v3416, %v948
        %v3463 = vmul.f32 %v3419, %v948
        %v3464 = vmul.f32 %v3422, %v948
        %v3465 = vmul.f32 %v3425, %v948
        %v3466 = vmul.f32 %v3428, %v948
        %v3467 = vmul.f32 %v3431, %v948
        %v3468 = vmul.f32 %v3434, %v948
        %v3469 = vmul.f32 %v3437, %v948
        %v3470 = vmul.f32 %v3440, %v948
        %v3471 = vmul.f32 %v3443, %v948
        %v3472 = vmul.f32 %v3446, %v948
        %v3473 = vmul.f32 %v3449, %v948
        %v3474 = vmul.f32 %v3452, %v948
        %v3475 = vmul.f32 %v3455, %v948
        %v3476 = vmul.f32 %v3458, %v948
        %v3477 = vmul.f32 %v3461, %v948
        %v3478 = vadd.f32 %v3462, 1e-05
        %v3479 = vadd.f32 %v3463, 1e-05
        %v3480 = vadd.f32 %v3464, 1e-05
        %v3481 = vadd.f32 %v3465, 1e-05
        %v3482 = vadd.f32 %v3466, 1e-05
        %v3483 = vadd.f32 %v3467, 1e-05
        %v3484 = vadd.f32 %v3468, 1e-05
        %v3485 = vadd.f32 %v3469, 1e-05
        %v3486 = vadd.f32 %v3470, 1e-05
        %v3487 = vadd.f32 %v3471, 1e-05
        %v3488 = vadd.f32 %v3472, 1e-05
        %v3489 = vadd.f32 %v3473, 1e-05
        %v3490 = vadd.f32 %v3474, 1e-05
        %v3491 = vadd.f32 %v3475, 1e-05
        %v3492 = vadd.f32 %v3476, 1e-05
        %v3493 = vadd.f32 %v3477, 1e-05
        %v3494 = vrsqrt.pop %v3478
        %v3495 = vrsqrt.pop %v3479
        %v3496 = vrsqrt.pop %v3480
        %v3497 = vrsqrt.pop %v3481
        %v3498 = vrsqrt.pop %v3482
        %v3499 = vrsqrt.pop %v3483
        %v3500 = vrsqrt.pop %v3484
        %v3501 = vrsqrt.pop %v3485
        %v3502 = vrsqrt.pop %v3486
        %v3503 = vrsqrt.pop %v3487
        %v3504 = vrsqrt.pop %v3488
        %v3505 = vrsqrt.pop %v3489
        %v3506 = vrsqrt.pop %v3490
        %v3507 = vrsqrt.pop %v3491
        %v3508 = vrsqrt.pop %v3492
        %v3509 = vrsqrt.pop %v3493
        %v3510 = vmul.f32 %v3349, %v3494
        %v3511 = vmul.f32 %v3350, %v3494
        %v3512 = vmul.f32 %v3351, %v3495
        %v3513 = vmul.f32 %v3352, %v3495
        %v3514 = vmul.f32 %v3353, %v3496
        %v3515 = vmul.f32 %v3354, %v3496
        %v3516 = vmul.f32 %v3355, %v3497
        %v3517 = vmul.f32 %v3356, %v3497
        %v3518 = vmul.f32 %v3357, %v3498
        %v3519 = vmul.f32 %v3358, %v3498
        %v3520 = vmul.f32 %v3359, %v3499
        %v3521 = vmul.f32 %v3360, %v3499
        %v3522 = vmul.f32 %v3361, %v3500
        %v3523 = vmul.f32 %v3362, %v3500
        %v3524 = vmul.f32 %v3363, %v3501
        %v3525 = vmul.f32 %v3364, %v3501
        %v3526 = vmul.f32 %v3365, %v3502
        %v3527 = vmul.f32 %v3366, %v3502
        %v3528 = vmul.f32 %v3367, %v3503
        %v3529 = vmul.f32 %v3368, %v3503
        %v3530 = vmul.f32 %v3369, %v3504
        %v3531 = vmul.f32 %v3370, %v3504
        %v3532 = vmul.f32 %v3371, %v3505
        %v3533 = vmul.f32 %v3372, %v3505
        %v3534 = vmul.f32 %v3373, %v3506
        %v3535 = vmul.f32 %v3374, %v3506
        %v3536 = vmul.f32 %v3375, %v3507
        %v3537 = vmul.f32 %v3376, %v3507
        %v3538 = vmul.f32 %v3377, %v3508
        %v3539 = vmul.f32 %v3378, %v3508
        %v3540 = vmul.f32 %v3379, %v3509
        %v3541 = vmul.f32 %v3380, %v3509
        %v3543 = vlaneseq
        %v3544 = vshrl.u32 %v3543, 7
        %v3545 = vsub.s32 0, %v3544
        %v3546 = vrot.slane %v3381, %v3545
        %v3547 = vlaneseq
        %v3548 = vshrl.u32 %v3547, 7
        %v3549 = vsub.s32 1, %v3548
        %v3550 = vrot.slane %v3381, %v3549
        %v3553 = vmul.f32 %v3510, %v3546
        %v3554 = vmul.f32 %v3511, %v3550
        %v3555 = vmul.f32 %v3512, %v3546
        %v3556 = vmul.f32 %v3513, %v3550
        %v3557 = vmul.f32 %v3514, %v3546
        %v3558 = vmul.f32 %v3515, %v3550
        %v3559 = vmul.f32 %v3516, %v3546
        %v3560 = vmul.f32 %v3517, %v3550
        %v3561 = vmul.f32 %v3518, %v3546
        %v3562 = vmul.f32 %v3519, %v3550
        %v3563 = vmul.f32 %v3520, %v3546
        %v3564 = vmul.f32 %v3521, %v3550
        %v3565 = vmul.f32 %v3522, %v3546
        %v3566 = vmul.f32 %v3523, %v3550
        %v3567 = vmul.f32 %v3524, %v3546
        %v3568 = vmul.f32 %v3525, %v3550
        %v3569 = vmul.f32 %v3526, %v3546
        %v3570 = vmul.f32 %v3527, %v3550
        %v3571 = vmul.f32 %v3528, %v3546
        %v3572 = vmul.f32 %v3529, %v3550
        %v3573 = vmul.f32 %v3530, %v3546
        %v3574 = vmul.f32 %v3531, %v3550
        %v3575 = vmul.f32 %v3532, %v3546
        %v3576 = vmul.f32 %v3533, %v3550
        %v3577 = vmul.f32 %v3534, %v3546
        %v3578 = vmul.f32 %v3535, %v3550
        %v3579 = vmul.f32 %v3536, %v3546
        %v3580 = vmul.f32 %v3537, %v3550
        %v3581 = vmul.f32 %v3538, %v3546
        %v3582 = vmul.f32 %v3539, %v3550
        %v3583 = vmul.f32 %v3540, %v3546
        %v3584 = vmul.f32 %v3541, %v3550
        %v3585 = vpack.c.bf16 %v3555, %v3553
        %v3586 = vpack.c.bf16 %v3556, %v3554
        %v3587 = vpack.c.bf16 %v3559, %v3557
        %v3588 = vpack.c.bf16 %v3560, %v3558
        %v3589 = vpack.c.bf16 %v3563, %v3561
        %v3590 = vpack.c.bf16 %v3564, %v3562
        %v3591 = vpack.c.bf16 %v3567, %v3565
        %v3592 = vpack.c.bf16 %v3568, %v3566
        %v3593 = vpack.c.bf16 %v3571, %v3569
        %v3594 = vpack.c.bf16 %v3572, %v3570
        %v3595 = vpack.c.bf16 %v3575, %v3573
        %v3596 = vpack.c.bf16 %v3576, %v3574
        %v3597 = vpack.c.bf16 %v3579, %v3577
        %v3598 = vpack.c.bf16 %v3580, %v3578
        %v3599 = vpack.c.bf16 %v3583, %v3581
        %v3600 = vpack.c.bf16 %v3584, %v3582
        %v3601 = vld [vmem:[%s620] sm:$0xff]
        %v3602 = vld [vmem:[%s620 + $0x20] sm:$0xff]
        %v3603 = vld [vmem:[%s620 + $0x40] sm:$0xff]
        %v3604 = vld [vmem:[%s620 + $0x60] sm:$0xff]
        %v3605 = vld [vmem:[%s620 + $0x80] sm:$0xff]
        %v3606 = vld [vmem:[%s620 + $0xa0] sm:$0xff]
        %v3607 = vld [vmem:[%s620 + $0xc0] sm:$0xff]
        %v3608 = vld [vmem:[%s620 + $0xe0] sm:$0xff]
        %v3609 = vld [vmem:[%s620 + $0x100] sm:$0xff]
        %v3610 = vld [vmem:[%s620 + $0x120] sm:$0xff]
        %v3611 = vld [vmem:[%s620 + $0x140] sm:$0xff]
        %v3612 = vld [vmem:[%s620 + $0x160] sm:$0xff]
        %v3613 = vld [vmem:[%s620 + $0x180] sm:$0xff]
        %v3614 = vld [vmem:[%s620 + $0x1a0] sm:$0xff]
        %v3615 = vld [vmem:[%s620 + $0x1c0] sm:$0xff]
        %v3616 = vld [vmem:[%s620 + $0x1e0] sm:$0xff]
        %v3617 = vld [vmem:[%s620 + $0x200] sm:$0xff]
        %v3618 = vld [vmem:[%s620 + $0x220] sm:$0xff]
        %v3619 = vld [vmem:[%s620 + $0x240] sm:$0xff]
        %v3620 = vld [vmem:[%s620 + $0x260] sm:$0xff]
        %v3621 = vld [vmem:[%s620 + $0x280] sm:$0xff]
        %v3622 = vld [vmem:[%s620 + $0x2a0] sm:$0xff]
        %v3623 = vld [vmem:[%s620 + $0x2c0] sm:$0xff]
        %v3624 = vld [vmem:[%s620 + $0x2e0] sm:$0xff]
        %v3625 = vld [vmem:[%s620 + $0x300] sm:$0xff]
        %v3626 = vld [vmem:[%s620 + $0x320] sm:$0xff]
        %v3627 = vld [vmem:[%s620 + $0x340] sm:$0xff]
        %v3628 = vld [vmem:[%s620 + $0x360] sm:$0xff]
        %v3629 = vld [vmem:[%s620 + $0x380] sm:$0xff]
        %v3630 = vld [vmem:[%s620 + $0x3a0] sm:$0xff]
        %v3631 = vld [vmem:[%s620 + $0x3c0] sm:$0xff]
        %v3632 = vld [vmem:[%s620 + $0x3e0] sm:$0xff]
        %v3665 = vunpack.c.l.b16 %v3601
        %v3666 = vunpack.c.h.b16 %v3601
        %v3667 = vunpack.c.l.b16 %v3602
        %v3668 = vunpack.c.h.b16 %v3602
        %v3669 = vunpack.c.l.b16 %v3603
        %v3670 = vunpack.c.h.b16 %v3603
        %v3671 = vunpack.c.l.b16 %v3604
        %v3672 = vunpack.c.h.b16 %v3604
        %v3673 = vunpack.c.l.b16 %v3605
        %v3674 = vunpack.c.h.b16 %v3605
        %v3675 = vunpack.c.l.b16 %v3606
        %v3676 = vunpack.c.h.b16 %v3606
        %v3677 = vunpack.c.l.b16 %v3607
        %v3678 = vunpack.c.h.b16 %v3607
        %v3679 = vunpack.c.l.b16 %v3608
        %v3680 = vunpack.c.h.b16 %v3608
        %v3681 = vunpack.c.l.b16 %v3609
        %v3682 = vunpack.c.h.b16 %v3609
        %v3683 = vunpack.c.l.b16 %v3610
        %v3684 = vunpack.c.h.b16 %v3610
        %v3685 = vunpack.c.l.b16 %v3611
        %v3686 = vunpack.c.h.b16 %v3611
        %v3687 = vunpack.c.l.b16 %v3612
        %v3688 = vunpack.c.h.b16 %v3612
        %v3689 = vunpack.c.l.b16 %v3613
        %v3690 = vunpack.c.h.b16 %v3613
        %v3691 = vunpack.c.l.b16 %v3614
        %v3692 = vunpack.c.h.b16 %v3614
        %v3693 = vunpack.c.l.b16 %v3615
        %v3694 = vunpack.c.h.b16 %v3615
        %v3695 = vunpack.c.l.b16 %v3616
        %v3696 = vunpack.c.h.b16 %v3616
        %v3697 = vunpack.c.l.b16 %v3617
        %v3698 = vunpack.c.h.b16 %v3617
        %v3699 = vunpack.c.l.b16 %v3618
        %v3700 = vunpack.c.h.b16 %v3618
        %v3701 = vunpack.c.l.b16 %v3619
        %v3702 = vunpack.c.h.b16 %v3619
        %v3703 = vunpack.c.l.b16 %v3620
        %v3704 = vunpack.c.h.b16 %v3620
        %v3705 = vunpack.c.l.b16 %v3621
        %v3706 = vunpack.c.h.b16 %v3621
        %v3707 = vunpack.c.l.b16 %v3622
        %v3708 = vunpack.c.h.b16 %v3622
        %v3709 = vunpack.c.l.b16 %v3623
        %v3710 = vunpack.c.h.b16 %v3623
        %v3711 = vunpack.c.l.b16 %v3624
        %v3712 = vunpack.c.h.b16 %v3624
        %v3713 = vunpack.c.l.b16 %v3625
        %v3714 = vunpack.c.h.b16 %v3625
        %v3715 = vunpack.c.l.b16 %v3626
        %v3716 = vunpack.c.h.b16 %v3626
        %v3717 = vunpack.c.l.b16 %v3627
        %v3718 = vunpack.c.h.b16 %v3627
        %v3719 = vunpack.c.l.b16 %v3628
        %v3720 = vunpack.c.h.b16 %v3628
        %v3721 = vunpack.c.l.b16 %v3629
        %v3722 = vunpack.c.h.b16 %v3629
        %v3723 = vunpack.c.l.b16 %v3630
        %v3724 = vunpack.c.h.b16 %v3630
        %v3725 = vunpack.c.l.b16 %v3631
        %v3726 = vunpack.c.h.b16 %v3631
        %v3727 = vunpack.c.l.b16 %v3632
        %v3728 = vunpack.c.h.b16 %v3632
        %v3729 = vpack.c.b16 %v3667, %v3665
        %v3730 = vpack.c.b16 %v3668, %v3666
        %v3731 = vpack.c.b16 %v3671, %v3669
        %v3732 = vpack.c.b16 %v3672, %v3670
        %v3733 = vpack.c.b16 %v3675, %v3673
        %v3734 = vpack.c.b16 %v3676, %v3674
        %v3735 = vpack.c.b16 %v3679, %v3677
        %v3736 = vpack.c.b16 %v3680, %v3678
        %v3737 = vpack.c.b16 %v3683, %v3681
        %v3738 = vpack.c.b16 %v3684, %v3682
        %v3739 = vpack.c.b16 %v3687, %v3685
        %v3740 = vpack.c.b16 %v3688, %v3686
        %v3741 = vpack.c.b16 %v3691, %v3689
        %v3742 = vpack.c.b16 %v3692, %v3690
        %v3743 = vpack.c.b16 %v3695, %v3693
        %v3744 = vpack.c.b16 %v3696, %v3694
        %v3745 = vpack.c.b16 %v3699, %v3697
        %v3746 = vpack.c.b16 %v3700, %v3698
        %v3747 = vpack.c.b16 %v3703, %v3701
        %v3748 = vpack.c.b16 %v3704, %v3702
        %v3749 = vpack.c.b16 %v3707, %v3705
        %v3750 = vpack.c.b16 %v3708, %v3706
        %v3751 = vpack.c.b16 %v3711, %v3709
        %v3752 = vpack.c.b16 %v3712, %v3710
        %v3753 = vpack.c.b16 %v3715, %v3713
        %v3754 = vpack.c.b16 %v3716, %v3714
        %v3755 = vpack.c.b16 %v3719, %v3717
        %v3756 = vpack.c.b16 %v3720, %v3718
        %v3757 = vpack.c.b16 %v3723, %v3721
        %v3758 = vpack.c.b16 %v3724, %v3722
        %v3759 = vpack.c.b16 %v3727, %v3725
        %v3760 = vpack.c.b16 %v3728, %v3726
        %3793 = vmatprep.subr.bf16.mxu0 %v3744
        %3794 = vmatpush1.bf16.msra.mxu0 %v3743
        %3795 = vmatprep.subr.bf16.mxu0 %v3742
        %3796 = vmatpush1.bf16.msra.mxu0 %v3741
        %3797 = vmatprep.subr.bf16.mxu0 %v3740
        %3798 = vmatpush1.bf16.msra.mxu0 %v3739
        %3799 = vmatprep.subr.bf16.mxu0 %v3738
        %3800 = vmatpush1.bf16.msra.mxu0 %v3737
        %3801 = vmatprep.subr.bf16.mxu0 %v3736
        %3802 = vmatpush1.bf16.msra.mxu0 %v3735
        %3803 = vmatprep.subr.bf16.mxu0 %v3734
        %3804 = vmatpush1.bf16.msra.mxu0 %v3733
        %3805 = vmatprep.subr.bf16.mxu0 %v3732
        %3806 = vmatpush1.bf16.msra.mxu0 %v3731
        %3807 = vmatprep.subr.bf16.mxu0 %v3730
        %3808 = vmatpush1.bf16.msra.mxu0 %v3729
        %3809 = vmatprep.subr.bf16.mxu0 %v3760
        %3810 = vmatpush2.bf16.msra.mxu0 %v3759
        %3811 = vmatprep.subr.bf16.mxu0 %v3758
        %3812 = vmatpush2.bf16.msra.mxu0 %v3757
        %3813 = vmatprep.subr.bf16.mxu0 %v3756
        %3814 = vmatpush2.bf16.msra.mxu0 %v3755
        %3815 = vmatprep.subr.bf16.mxu0 %v3754
        %3816 = vmatpush2.bf16.msra.mxu0 %v3753
        %3817 = vmatprep.subr.bf16.mxu0 %v3752
        %3818 = vmatpush2.bf16.msra.mxu0 %v3751
        %3819 = vmatprep.subr.bf16.mxu0 %v3750
        %3820 = vmatpush2.bf16.msra.mxu0 %v3749
        %3821 = vmatprep.subr.bf16.mxu0 %v3748
        %3822 = vmatpush2.bf16.msra.mxu0 %v3747
        %3823 = vmatprep.subr.bf16.mxu0 %v3746
        %3824 = vmatpush2.bf16.msra.mxu0 %v3745
        %3825 = vmatprep.mubr.bf16.mxu0 %v3586
        %3826 = vmatmul.mubr.bf16.gmra.mxu0 %v3585
        %v3827 = vpop.f32.mrf.mxu0
        %v3828 = vadd.f32 0.0, %v3827
        %v3829 = vpop.f32.mrf.mxu0
        %v3830 = vadd.f32 0.0, %v3829
        %v3831 = vpop.f32.mrf.mxu0
        %v3832 = vadd.f32 0.0, %v3831
        %v3833 = vpop.f32.mrf.mxu0
        %v3834 = vadd.f32 0.0, %v3833
        %3835 = vmatprep.mubr.bf16.mxu0 %v3588
        %3836 = vmatmul.mubr.bf16.gmra.mxu0 %v3587
        %v3837 = vpop.f32.mrf.mxu0
        %v3838 = vadd.f32 0.0, %v3837
        %v3839 = vpop.f32.mrf.mxu0
        %v3840 = vadd.f32 0.0, %v3839
        %v3841 = vpop.f32.mrf.mxu0
        %v3842 = vadd.f32 0.0, %v3841
        %v3843 = vpop.f32.mrf.mxu0
        %v3844 = vadd.f32 0.0, %v3843
        %3845 = vmatprep.mubr.bf16.mxu0 %v3590
        %3846 = vmatmul.mubr.bf16.gmra.mxu0 %v3589
        %v3847 = vpop.f32.mrf.mxu0
        %v3848 = vadd.f32 0.0, %v3847
        %v3849 = vpop.f32.mrf.mxu0
        %v3850 = vadd.f32 0.0, %v3849
        %v3851 = vpop.f32.mrf.mxu0
        %v3852 = vadd.f32 0.0, %v3851
        %v3853 = vpop.f32.mrf.mxu0
        %v3854 = vadd.f32 0.0, %v3853
        %3855 = vmatprep.mubr.bf16.mxu0 %v3592
        %3856 = vmatmul.mubr.bf16.gmra.mxu0 %v3591
        %v3857 = vpop.f32.mrf.mxu0
        %v3858 = vadd.f32 0.0, %v3857
        %v3859 = vpop.f32.mrf.mxu0
        %v3860 = vadd.f32 0.0, %v3859
        %v3861 = vpop.f32.mrf.mxu0
        %v3862 = vadd.f32 0.0, %v3861
        %v3863 = vpop.f32.mrf.mxu0
        %v3864 = vadd.f32 0.0, %v3863
        %3865 = vmatprep.mubr.bf16.mxu0 %v3594
        %3866 = vmatmul.mubr.bf16.gmra.mxu0 %v3593
        %v3867 = vpop.f32.mrf.mxu0
        %v3868 = vadd.f32 0.0, %v3867
        %v3869 = vpop.f32.mrf.mxu0
        %v3870 = vadd.f32 0.0, %v3869
        %v3871 = vpop.f32.mrf.mxu0
        %v3872 = vadd.f32 0.0, %v3871
        %v3873 = vpop.f32.mrf.mxu0
        %v3874 = vadd.f32 0.0, %v3873
        %3875 = vmatprep.mubr.bf16.mxu0 %v3596
        %3876 = vmatmul.mubr.bf16.gmra.mxu0 %v3595
        %v3877 = vpop.f32.mrf.mxu0
        %v3878 = vadd.f32 0.0, %v3877
        %v3879 = vpop.f32.mrf.mxu0
        %v3880 = vadd.f32 0.0, %v3879
        %v3881 = vpop.f32.mrf.mxu0
        %v3882 = vadd.f32 0.0, %v3881
        %v3883 = vpop.f32.mrf.mxu0
        %v3884 = vadd.f32 0.0, %v3883
        %3885 = vmatprep.mubr.bf16.mxu0 %v3598
        %3886 = vmatmul.mubr.bf16.gmra.mxu0 %v3597
        %v3887 = vpop.f32.mrf.mxu0
        %v3888 = vadd.f32 0.0, %v3887
        %v3889 = vpop.f32.mrf.mxu0
        %v3890 = vadd.f32 0.0, %v3889
        %v3891 = vpop.f32.mrf.mxu0
        %v3892 = vadd.f32 0.0, %v3891
        %v3893 = vpop.f32.mrf.mxu0
        %v3894 = vadd.f32 0.0, %v3893
        %3895 = vmatprep.mubr.bf16.mxu0 %v3600
        %3896 = vmatmul.mubr.bf16.gmra.mxu0 %v3599
        %v3897 = vpop.f32.mrf.mxu0
        %v3898 = vadd.f32 0.0, %v3897
        %v3899 = vpop.f32.mrf.mxu0
        %v3900 = vadd.f32 0.0, %v3899
        %v3901 = vpop.f32.mrf.mxu0
        %v3902 = vadd.f32 0.0, %v3901
        %v3903 = vpop.f32.mrf.mxu0
        %v3904 = vadd.f32 0.0, %v3903
        %3905 = vdwg.mxu0
        %v3906 = vxor.u32 %v3828, 2147483648
        %v3907 = vxor.u32 %v3830, 2147483648
        %v3908 = vxor.u32 %v3832, 2147483648
        %v3909 = vxor.u32 %v3834, 2147483648
        %v3910 = vxor.u32 %v3838, 2147483648
        %v3911 = vxor.u32 %v3840, 2147483648
        %v3912 = vxor.u32 %v3842, 2147483648
        %v3913 = vxor.u32 %v3844, 2147483648
        %v3914 = vxor.u32 %v3848, 2147483648
        %v3915 = vxor.u32 %v3850, 2147483648
        %v3916 = vxor.u32 %v3852, 2147483648
        %v3917 = vxor.u32 %v3854, 2147483648
        %v3918 = vxor.u32 %v3858, 2147483648
        %v3919 = vxor.u32 %v3860, 2147483648
        %v3920 = vxor.u32 %v3862, 2147483648
        %v3921 = vxor.u32 %v3864, 2147483648
        %v3922 = vxor.u32 %v3868, 2147483648
        %v3923 = vxor.u32 %v3870, 2147483648
        %v3924 = vxor.u32 %v3872, 2147483648
        %v3925 = vxor.u32 %v3874, 2147483648
        %v3926 = vxor.u32 %v3878, 2147483648
        %v3927 = vxor.u32 %v3880, 2147483648
        %v3928 = vxor.u32 %v3882, 2147483648
        %v3929 = vxor.u32 %v3884, 2147483648
        %v3930 = vxor.u32 %v3888, 2147483648
        %v3931 = vxor.u32 %v3890, 2147483648
        %v3932 = vxor.u32 %v3892, 2147483648
        %v3933 = vxor.u32 %v3894, 2147483648
        %v3934 = vxor.u32 %v3898, 2147483648
        %v3935 = vxor.u32 %v3900, 2147483648
        %v3936 = vxor.u32 %v3902, 2147483648
        %v3937 = vxor.u32 %v3904, 2147483648
        %v3938 = vmul.f32 %v3906, 1.442695
        %v3939 = vpow.pop %v3938
        %v3940 = vmul.f32 %v3907, 1.442695
        %v3941 = vpow.pop %v3940
        %v3942 = vmul.f32 %v3908, 1.442695
        %v3943 = vpow.pop %v3942
        %v3944 = vmul.f32 %v3909, 1.442695
        %v3945 = vpow.pop %v3944
        %v3946 = vmul.f32 %v3910, 1.442695
        %v3947 = vpow.pop %v3946
        %v3948 = vmul.f32 %v3911, 1.442695
        %v3949 = vpow.pop %v3948
        %v3950 = vmul.f32 %v3912, 1.442695
        %v3951 = vpow.pop %v3950
        %v3952 = vmul.f32 %v3913, 1.442695
        %v3953 = vpow.pop %v3952
        %v3954 = vmul.f32 %v3914, 1.442695
        %v3955 = vpow.pop %v3954
        %v3956 = vmul.f32 %v3915, 1.442695
        %v3957 = vpow.pop %v3956
        %v3958 = vmul.f32 %v3916, 1.442695
        %v3959 = vpow.pop %v3958
        %v3960 = vmul.f32 %v3917, 1.442695
        %v3961 = vpow.pop %v3960
        %v3962 = vmul.f32 %v3918, 1.442695
        %v3963 = vpow.pop %v3962
        %v3964 = vmul.f32 %v3919, 1.442695
        %v3965 = vpow.pop %v3964
        %v3966 = vmul.f32 %v3920, 1.442695
        %v3967 = vpow.pop %v3966
        %v3968 = vmul.f32 %v3921, 1.442695
        %v3969 = vpow.pop %v3968
        %v3970 = vmul.f32 %v3922, 1.442695
        %v3971 = vpow.pop %v3970
        %v3972 = vmul.f32 %v3923, 1.442695
        %v3973 = vpow.pop %v3972
        %v3974 = vmul.f32 %v3924, 1.442695
        %v3975 = vpow.pop %v3974
        %v3976 = vmul.f32 %v3925, 1.442695
        %v3977 = vpow.pop %v3976
        %v3978 = vmul.f32 %v3926, 1.442695
        %v3979 = vpow.pop %v3978
        %v3980 = vmul.f32 %v3927, 1.442695
        %v3981 = vpow.pop %v3980
        %v3982 = vmul.f32 %v3928, 1.442695
        %v3983 = vpow.pop %v3982
        %v3984 = vmul.f32 %v3929, 1.442695
        %v3985 = vpow.pop %v3984
        %v3986 = vmul.f32 %v3930, 1.442695
        %v3987 = vpow.pop %v3986
        %v3988 = vmul.f32 %v3931, 1.442695
        %v3989 = vpow.pop %v3988
        %v3990 = vmul.f32 %v3932, 1.442695
        %v3991 = vpow.pop %v3990
        %v3992 = vmul.f32 %v3933, 1.442695
        %v3993 = vpow.pop %v3992
        %v3994 = vmul.f32 %v3934, 1.442695
        %v3995 = vpow.pop %v3994
        %v3996 = vmul.f32 %v3935, 1.442695
        %v3997 = vpow.pop %v3996
        %v3998 = vmul.f32 %v3936, 1.442695
        %v3999 = vpow.pop %v3998
        %v4000 = vmul.f32 %v3937, 1.442695
        %v4001 = vpow.pop %v4000
        %v4002 = vadd.f32 %v3939, 1.0
        %v4003 = vadd.f32 %v3941, 1.0
        %v4004 = vadd.f32 %v3943, 1.0
        %v4005 = vadd.f32 %v3945, 1.0
        %v4006 = vadd.f32 %v3947, 1.0
        %v4007 = vadd.f32 %v3949, 1.0
        %v4008 = vadd.f32 %v3951, 1.0
        %v4009 = vadd.f32 %v3953, 1.0
        %v4010 = vadd.f32 %v3955, 1.0
        %v4011 = vadd.f32 %v3957, 1.0
        %v4012 = vadd.f32 %v3959, 1.0
        %v4013 = vadd.f32 %v3961, 1.0
        %v4014 = vadd.f32 %v3963, 1.0
        %v4015 = vadd.f32 %v3965, 1.0
        %v4016 = vadd.f32 %v3967, 1.0
        %v4017 = vadd.f32 %v3969, 1.0
        %v4018 = vadd.f32 %v3971, 1.0
        %v4019 = vadd.f32 %v3973, 1.0
        %v4020 = vadd.f32 %v3975, 1.0
        %v4021 = vadd.f32 %v3977, 1.0
        %v4022 = vadd.f32 %v3979, 1.0
        %v4023 = vadd.f32 %v3981, 1.0
        %v4024 = vadd.f32 %v3983, 1.0
        %v4025 = vadd.f32 %v3985, 1.0
        %v4026 = vadd.f32 %v3987, 1.0
        %v4027 = vadd.f32 %v3989, 1.0
        %v4028 = vadd.f32 %v3991, 1.0
        %v4029 = vadd.f32 %v3993, 1.0
        %v4030 = vadd.f32 %v3995, 1.0
        %v4031 = vadd.f32 %v3997, 1.0
        %v4032 = vadd.f32 %v3999, 1.0
        %v4033 = vadd.f32 %v4001, 1.0
        %v4034 = vrcp.pop %v4002
        %v4035 = vmul.f32 1.0, %v4034
        %v4036 = vrcp.pop %v4003
        %v4037 = vmul.f32 1.0, %v4036
        %v4038 = vrcp.pop %v4004
        %v4039 = vmul.f32 1.0, %v4038
        %v4040 = vrcp.pop %v4005
        %v4041 = vmul.f32 1.0, %v4040
        %v4042 = vrcp.pop %v4006
        %v4043 = vmul.f32 1.0, %v4042
        %v4044 = vrcp.pop %v4007
        %v4045 = vmul.f32 1.0, %v4044
        %v4046 = vrcp.pop %v4008
        %v4047 = vmul.f32 1.0, %v4046
        %v4048 = vrcp.pop %v4009
        %v4049 = vmul.f32 1.0, %v4048
        %v4050 = vrcp.pop %v4010
        %v4051 = vmul.f32 1.0, %v4050
        %v4052 = vrcp.pop %v4011
        %v4053 = vmul.f32 1.0, %v4052
        %v4054 = vrcp.pop %v4012
        %v4055 = vmul.f32 1.0, %v4054
        %v4056 = vrcp.pop %v4013
        %v4057 = vmul.f32 1.0, %v4056
        %v4058 = vrcp.pop %v4014
        %v4059 = vmul.f32 1.0, %v4058
        %v4060 = vrcp.pop %v4015
        %v4061 = vmul.f32 1.0, %v4060
        %v4062 = vrcp.pop %v4016
        %v4063 = vmul.f32 1.0, %v4062
        %v4064 = vrcp.pop %v4017
        %v4065 = vmul.f32 1.0, %v4064
        %v4066 = vrcp.pop %v4018
        %v4067 = vmul.f32 1.0, %v4066
        %v4068 = vrcp.pop %v4019
        %v4069 = vmul.f32 1.0, %v4068
        %v4070 = vrcp.pop %v4020
        %v4071 = vmul.f32 1.0, %v4070
        %v4072 = vrcp.pop %v4021
        %v4073 = vmul.f32 1.0, %v4072
        %v4074 = vrcp.pop %v4022
        %v4075 = vmul.f32 1.0, %v4074
        %v4076 = vrcp.pop %v4023
        %v4077 = vmul.f32 1.0, %v4076
        %v4078 = vrcp.pop %v4024
        %v4079 = vmul.f32 1.0, %v4078
        %v4080 = vrcp.pop %v4025
        %v4081 = vmul.f32 1.0, %v4080
        %v4082 = vrcp.pop %v4026
        %v4083 = vmul.f32 1.0, %v4082
        %v4084 = vrcp.pop %v4027
        %v4085 = vmul.f32 1.0, %v4084
        %v4086 = vrcp.pop %v4028
        %v4087 = vmul.f32 1.0, %v4086
        %v4088 = vrcp.pop %v4029
        %v4089 = vmul.f32 1.0, %v4088
        %v4090 = vrcp.pop %v4030
        %v4091 = vmul.f32 1.0, %v4090
        %v4092 = vrcp.pop %v4031
        %v4093 = vmul.f32 1.0, %v4092
        %v4094 = vrcp.pop %v4032
        %v4095 = vmul.f32 1.0, %v4094
        %v4096 = vrcp.pop %v4033
        %v4097 = vmul.f32 1.0, %v4096
        %v4098 = vmul.f32 %v3828, %v4035
        %v4099 = vmul.f32 %v3830, %v4037
        %v4100 = vmul.f32 %v3832, %v4039
        %v4101 = vmul.f32 %v3834, %v4041
        %v4102 = vmul.f32 %v3838, %v4043
        %v4103 = vmul.f32 %v3840, %v4045
        %v4104 = vmul.f32 %v3842, %v4047
        %v4105 = vmul.f32 %v3844, %v4049
        %v4106 = vmul.f32 %v3848, %v4051
        %v4107 = vmul.f32 %v3850, %v4053
        %v4108 = vmul.f32 %v3852, %v4055
        %v4109 = vmul.f32 %v3854, %v4057
        %v4110 = vmul.f32 %v3858, %v4059
        %v4111 = vmul.f32 %v3860, %v4061
        %v4112 = vmul.f32 %v3862, %v4063
        %v4113 = vmul.f32 %v3864, %v4065
        %v4114 = vmul.f32 %v3868, %v4067
        %v4115 = vmul.f32 %v3870, %v4069
        %v4116 = vmul.f32 %v3872, %v4071
        %v4117 = vmul.f32 %v3874, %v4073
        %v4118 = vmul.f32 %v3878, %v4075
        %v4119 = vmul.f32 %v3880, %v4077
        %v4120 = vmul.f32 %v3882, %v4079
        %v4121 = vmul.f32 %v3884, %v4081
        %v4122 = vmul.f32 %v3888, %v4083
        %v4123 = vmul.f32 %v3890, %v4085
        %v4124 = vmul.f32 %v3892, %v4087
        %v4125 = vmul.f32 %v3894, %v4089
        %v4126 = vmul.f32 %v3898, %v4091
        %v4127 = vmul.f32 %v3900, %v4093
        %v4128 = vmul.f32 %v3902, %v4095
        %v4129 = vmul.f32 %v3904, %v4097
        %v4130 = vpack.c.bf16 %v4100, %v4098
        %v4131 = vpack.c.bf16 %v4101, %v4099
        %v4132 = vpack.c.bf16 %v4104, %v4102
        %v4133 = vpack.c.bf16 %v4105, %v4103
        %v4134 = vpack.c.bf16 %v4108, %v4106
        %v4135 = vpack.c.bf16 %v4109, %v4107
        %v4136 = vpack.c.bf16 %v4112, %v4110
        %v4137 = vpack.c.bf16 %v4113, %v4111
        %v4138 = vpack.c.bf16 %v4116, %v4114
        %v4139 = vpack.c.bf16 %v4117, %v4115
        %v4140 = vpack.c.bf16 %v4120, %v4118
        %v4141 = vpack.c.bf16 %v4121, %v4119
        %v4142 = vpack.c.bf16 %v4124, %v4122
        %v4143 = vpack.c.bf16 %v4125, %v4123
        %v4144 = vpack.c.bf16 %v4128, %v4126
        %v4145 = vpack.c.bf16 %v4129, %v4127
        %v4146 = vld [vmem:[%s629] sm:$0xff]
        %v4147 = vld [vmem:[%s629 + $0x8] sm:$0xff]
        %v4148 = vld [vmem:[%s629 + $0x10] sm:$0xff]
        %v4149 = vld [vmem:[%s629 + $0x18] sm:$0xff]
        %v4150 = vld [vmem:[%s629 + $0x20] sm:$0xff]
        %v4151 = vld [vmem:[%s629 + $0x28] sm:$0xff]
        %v4152 = vld [vmem:[%s629 + $0x30] sm:$0xff]
        %v4153 = vld [vmem:[%s629 + $0x38] sm:$0xff]
        %v4154 = vld [vmem:[%s629 + $0x40] sm:$0xff]
        %v4155 = vld [vmem:[%s629 + $0x48] sm:$0xff]
        %v4156 = vld [vmem:[%s629 + $0x50] sm:$0xff]
        %v4157 = vld [vmem:[%s629 + $0x58] sm:$0xff]
        %v4158 = vld [vmem:[%s629 + $0x60] sm:$0xff]
        %v4159 = vld [vmem:[%s629 + $0x68] sm:$0xff]
        %v4160 = vld [vmem:[%s629 + $0x70] sm:$0xff]
        %v4161 = vld [vmem:[%s629 + $0x78] sm:$0xff]
        %v4162 = vld [vmem:[%s629 + $0x80] sm:$0xff]
        %v4163 = vld [vmem:[%s629 + $0x88] sm:$0xff]
        %v4164 = vld [vmem:[%s629 + $0x90] sm:$0xff]
        %v4165 = vld [vmem:[%s629 + $0x98] sm:$0xff]
        %v4166 = vld [vmem:[%s629 + $0xa0] sm:$0xff]
        %v4167 = vld [vmem:[%s629 + $0xa8] sm:$0xff]
        %v4168 = vld [vmem:[%s629 + $0xb0] sm:$0xff]
        %v4169 = vld [vmem:[%s629 + $0xb8] sm:$0xff]
        %v4170 = vld [vmem:[%s629 + $0xc0] sm:$0xff]
        %v4171 = vld [vmem:[%s629 + $0xc8] sm:$0xff]
        %v4172 = vld [vmem:[%s629 + $0xd0] sm:$0xff]
        %v4173 = vld [vmem:[%s629 + $0xd8] sm:$0xff]
        %v4174 = vld [vmem:[%s629 + $0xe0] sm:$0xff]
        %v4175 = vld [vmem:[%s629 + $0xe8] sm:$0xff]
        %v4176 = vld [vmem:[%s629 + $0xf0] sm:$0xff]
        %v4177 = vld [vmem:[%s629 + $0xf8] sm:$0xff]
        %v4178 = vld [vmem:[%s620 + $0x8] sm:$0xff]
        %v4179 = vld [vmem:[%s620 + $0x28] sm:$0xff]
        %v4180 = vld [vmem:[%s620 + $0x48] sm:$0xff]
        %v4181 = vld [vmem:[%s620 + $0x68] sm:$0xff]
        %v4182 = vld [vmem:[%s620 + $0x88] sm:$0xff]
        %v4183 = vld [vmem:[%s620 + $0xa8] sm:$0xff]
        %v4184 = vld [vmem:[%s620 + $0xc8] sm:$0xff]
        %v4185 = vld [vmem:[%s620 + $0xe8] sm:$0xff]
        %v4186 = vld [vmem:[%s620 + $0x108] sm:$0xff]
        %v4187 = vld [vmem:[%s620 + $0x128] sm:$0xff]
        %v4188 = vld [vmem:[%s620 + $0x148] sm:$0xff]
        %v4189 = vld [vmem:[%s620 + $0x168] sm:$0xff]
        %v4190 = vld [vmem:[%s620 + $0x188] sm:$0xff]
        %v4191 = vld [vmem:[%s620 + $0x1a8] sm:$0xff]
        %v4192 = vld [vmem:[%s620 + $0x1c8] sm:$0xff]
        %v4193 = vld [vmem:[%s620 + $0x1e8] sm:$0xff]
        %v4194 = vld [vmem:[%s620 + $0x208] sm:$0xff]
        %v4195 = vld [vmem:[%s620 + $0x228] sm:$0xff]
        %v4196 = vld [vmem:[%s620 + $0x248] sm:$0xff]
        %v4197 = vld [vmem:[%s620 + $0x268] sm:$0xff]
        %v4198 = vld [vmem:[%s620 + $0x288] sm:$0xff]
        %v4199 = vld [vmem:[%s620 + $0x2a8] sm:$0xff]
        %v4200 = vld [vmem:[%s620 + $0x2c8] sm:$0xff]
        %v4201 = vld [vmem:[%s620 + $0x2e8] sm:$0xff]
        %v4202 = vld [vmem:[%s620 + $0x308] sm:$0xff]
        %v4203 = vld [vmem:[%s620 + $0x328] sm:$0xff]
        %v4204 = vld [vmem:[%s620 + $0x348] sm:$0xff]
        %v4205 = vld [vmem:[%s620 + $0x368] sm:$0xff]
        %v4206 = vld [vmem:[%s620 + $0x388] sm:$0xff]
        %v4207 = vld [vmem:[%s620 + $0x3a8] sm:$0xff]
        %v4208 = vld [vmem:[%s620 + $0x3c8] sm:$0xff]
        %v4209 = vld [vmem:[%s620 + $0x3e8] sm:$0xff]
        %v4242 = vunpack.c.l.b16 %v4178
        %v4243 = vunpack.c.h.b16 %v4178
        %v4244 = vunpack.c.l.b16 %v4179
        %v4245 = vunpack.c.h.b16 %v4179
        %v4246 = vunpack.c.l.b16 %v4180
        %v4247 = vunpack.c.h.b16 %v4180
        %v4248 = vunpack.c.l.b16 %v4181
        %v4249 = vunpack.c.h.b16 %v4181
        %v4250 = vunpack.c.l.b16 %v4182
        %v4251 = vunpack.c.h.b16 %v4182
        %v4252 = vunpack.c.l.b16 %v4183
        %v4253 = vunpack.c.h.b16 %v4183
        %v4254 = vunpack.c.l.b16 %v4184
        %v4255 = vunpack.c.h.b16 %v4184
        %v4256 = vunpack.c.l.b16 %v4185
        %v4257 = vunpack.c.h.b16 %v4185
        %v4258 = vunpack.c.l.b16 %v4186
        %v4259 = vunpack.c.h.b16 %v4186
        %v4260 = vunpack.c.l.b16 %v4187
        %v4261 = vunpack.c.h.b16 %v4187
        %v4262 = vunpack.c.l.b16 %v4188
        %v4263 = vunpack.c.h.b16 %v4188
        %v4264 = vunpack.c.l.b16 %v4189
        %v4265 = vunpack.c.h.b16 %v4189
        %v4266 = vunpack.c.l.b16 %v4190
        %v4267 = vunpack.c.h.b16 %v4190
        %v4268 = vunpack.c.l.b16 %v4191
        %v4269 = vunpack.c.h.b16 %v4191
        %v4270 = vunpack.c.l.b16 %v4192
        %v4271 = vunpack.c.h.b16 %v4192
        %v4272 = vunpack.c.l.b16 %v4193
        %v4273 = vunpack.c.h.b16 %v4193
        %v4274 = vunpack.c.l.b16 %v4194
        %v4275 = vunpack.c.h.b16 %v4194
        %v4276 = vunpack.c.l.b16 %v4195
        %v4277 = vunpack.c.h.b16 %v4195
        %v4278 = vunpack.c.l.b16 %v4196
        %v4279 = vunpack.c.h.b16 %v4196
        %v4280 = vunpack.c.l.b16 %v4197
        %v4281 = vunpack.c.h.b16 %v4197
        %v4282 = vunpack.c.l.b16 %v4198
        %v4283 = vunpack.c.h.b16 %v4198
        %v4284 = vunpack.c.l.b16 %v4199
        %v4285 = vunpack.c.h.b16 %v4199
        %v4286 = vunpack.c.l.b16 %v4200
        %v4287 = vunpack.c.h.b16 %v4200
        %v4288 = vunpack.c.l.b16 %v4201
        %v4289 = vunpack.c.h.b16 %v4201
        %v4290 = vunpack.c.l.b16 %v4202
        %v4291 = vunpack.c.h.b16 %v4202
        %v4292 = vunpack.c.l.b16 %v4203
        %v4293 = vunpack.c.h.b16 %v4203
        %v4294 = vunpack.c.l.b16 %v4204
        %v4295 = vunpack.c.h.b16 %v4204
        %v4296 = vunpack.c.l.b16 %v4205
        %v4297 = vunpack.c.h.b16 %v4205
        %v4298 = vunpack.c.l.b16 %v4206
        %v4299 = vunpack.c.h.b16 %v4206
        %v4300 = vunpack.c.l.b16 %v4207
        %v4301 = vunpack.c.h.b16 %v4207
        %v4302 = vunpack.c.l.b16 %v4208
        %v4303 = vunpack.c.h.b16 %v4208
        %v4304 = vunpack.c.l.b16 %v4209
        %v4305 = vunpack.c.h.b16 %v4209
        %v4306 = vpack.c.b16 %v4244, %v4242
        %v4307 = vpack.c.b16 %v4245, %v4243
        %v4308 = vpack.c.b16 %v4248, %v4246
        %v4309 = vpack.c.b16 %v4249, %v4247
        %v4310 = vpack.c.b16 %v4252, %v4250
        %v4311 = vpack.c.b16 %v4253, %v4251
        %v4312 = vpack.c.b16 %v4256, %v4254
        %v4313 = vpack.c.b16 %v4257, %v4255
        %v4314 = vpack.c.b16 %v4260, %v4258
        %v4315 = vpack.c.b16 %v4261, %v4259
        %v4316 = vpack.c.b16 %v4264, %v4262
        %v4317 = vpack.c.b16 %v4265, %v4263
        %v4318 = vpack.c.b16 %v4268, %v4266
        %v4319 = vpack.c.b16 %v4269, %v4267
        %v4320 = vpack.c.b16 %v4272, %v4270
        %v4321 = vpack.c.b16 %v4273, %v4271
        %v4322 = vpack.c.b16 %v4276, %v4274
        %v4323 = vpack.c.b16 %v4277, %v4275
        %v4324 = vpack.c.b16 %v4280, %v4278
        %v4325 = vpack.c.b16 %v4281, %v4279
        %v4326 = vpack.c.b16 %v4284, %v4282
        %v4327 = vpack.c.b16 %v4285, %v4283
        %v4328 = vpack.c.b16 %v4288, %v4286
        %v4329 = vpack.c.b16 %v4289, %v4287
        %v4330 = vpack.c.b16 %v4292, %v4290
        %v4331 = vpack.c.b16 %v4293, %v4291
        %v4332 = vpack.c.b16 %v4296, %v4294
        %v4333 = vpack.c.b16 %v4297, %v4295
        %v4334 = vpack.c.b16 %v4300, %v4298
        %v4335 = vpack.c.b16 %v4301, %v4299
        %v4336 = vpack.c.b16 %v4304, %v4302
        %v4337 = vpack.c.b16 %v4305, %v4303
        %4370 = vmatprep.subr.bf16.mxu0 %v4321
        %4371 = vmatpush1.bf16.msra.mxu0 %v4320
        %4372 = vmatprep.subr.bf16.mxu0 %v4319
        %4373 = vmatpush1.bf16.msra.mxu0 %v4318
        %4374 = vmatprep.subr.bf16.mxu0 %v4317
        %4375 = vmatpush1.bf16.msra.mxu0 %v4316
        %4376 = vmatprep.subr.bf16.mxu0 %v4315
        %4377 = vmatpush1.bf16.msra.mxu0 %v4314
        %4378 = vmatprep.subr.bf16.mxu0 %v4313
        %4379 = vmatpush1.bf16.msra.mxu0 %v4312
        %4380 = vmatprep.subr.bf16.mxu0 %v4311
        %4381 = vmatpush1.bf16.msra.mxu0 %v4310
        %4382 = vmatprep.subr.bf16.mxu0 %v4309
        %4383 = vmatpush1.bf16.msra.mxu0 %v4308
        %4384 = vmatprep.subr.bf16.mxu0 %v4307
        %4385 = vmatpush1.bf16.msra.mxu0 %v4306
        %4386 = vmatprep.subr.bf16.mxu0 %v4337
        %4387 = vmatpush2.bf16.msra.mxu0 %v4336
        %4388 = vmatprep.subr.bf16.mxu0 %v4335
        %4389 = vmatpush2.bf16.msra.mxu0 %v4334
        %4390 = vmatprep.subr.bf16.mxu0 %v4333
        %4391 = vmatpush2.bf16.msra.mxu0 %v4332
        %4392 = vmatprep.subr.bf16.mxu0 %v4331
        %4393 = vmatpush2.bf16.msra.mxu0 %v4330
        %4394 = vmatprep.subr.bf16.mxu0 %v4329
        %4395 = vmatpush2.bf16.msra.mxu0 %v4328
        %4396 = vmatprep.subr.bf16.mxu0 %v4327
        %4397 = vmatpush2.bf16.msra.mxu0 %v4326
        %4398 = vmatprep.subr.bf16.mxu0 %v4325
        %4399 = vmatpush2.bf16.msra.mxu0 %v4324
        %4400 = vmatprep.subr.bf16.mxu0 %v4323
        %4401 = vmatpush2.bf16.msra.mxu0 %v4322
        %4402 = vmatprep.mubr.bf16.mxu0 %v3586
        %4403 = vmatmul.mubr.bf16.gmra.mxu0 %v3585
        %v4404 = vpop.f32.mrf.mxu0
        %v4405 = vadd.f32 0.0, %v4404
        %v4406 = vpop.f32.mrf.mxu0
        %v4407 = vadd.f32 0.0, %v4406
        %v4408 = vpop.f32.mrf.mxu0
        %v4409 = vadd.f32 0.0, %v4408
        %v4410 = vpop.f32.mrf.mxu0
        %v4411 = vadd.f32 0.0, %v4410
        %4412 = vmatprep.mubr.bf16.mxu0 %v3588
        %4413 = vmatmul.mubr.bf16.gmra.mxu0 %v3587
        %v4414 = vpop.f32.mrf.mxu0
        %v4415 = vadd.f32 0.0, %v4414
        %v4416 = vpop.f32.mrf.mxu0
        %v4417 = vadd.f32 0.0, %v4416
        %v4418 = vpop.f32.mrf.mxu0
        %v4419 = vadd.f32 0.0, %v4418
        %v4420 = vpop.f32.mrf.mxu0
        %v4421 = vadd.f32 0.0, %v4420
        %4422 = vmatprep.mubr.bf16.mxu0 %v3590
        %4423 = vmatmul.mubr.bf16.gmra.mxu0 %v3589
        %v4424 = vpop.f32.mrf.mxu0
        %v4425 = vadd.f32 0.0, %v4424
        %v4426 = vpop.f32.mrf.mxu0
        %v4427 = vadd.f32 0.0, %v4426
        %v4428 = vpop.f32.mrf.mxu0
        %v4429 = vadd.f32 0.0, %v4428
        %v4430 = vpop.f32.mrf.mxu0
        %v4431 = vadd.f32 0.0, %v4430
        %4432 = vmatprep.mubr.bf16.mxu0 %v3592
        %4433 = vmatmul.mubr.bf16.gmra.mxu0 %v3591
        %v4434 = vpop.f32.mrf.mxu0
        %v4435 = vadd.f32 0.0, %v4434
        %v4436 = vpop.f32.mrf.mxu0
        %v4437 = vadd.f32 0.0, %v4436
        %v4438 = vpop.f32.mrf.mxu0
        %v4439 = vadd.f32 0.0, %v4438
        %v4440 = vpop.f32.mrf.mxu0
        %v4441 = vadd.f32 0.0, %v4440
        %4442 = vmatprep.mubr.bf16.mxu0 %v3594
        %4443 = vmatmul.mubr.bf16.gmra.mxu0 %v3593
        %v4444 = vpop.f32.mrf.mxu0
        %v4445 = vadd.f32 0.0, %v4444
        %v4446 = vpop.f32.mrf.mxu0
        %v4447 = vadd.f32 0.0, %v4446
        %v4448 = vpop.f32.mrf.mxu0
        %v4449 = vadd.f32 0.0, %v4448
        %v4450 = vpop.f32.mrf.mxu0
        %v4451 = vadd.f32 0.0, %v4450
        %4452 = vmatprep.mubr.bf16.mxu0 %v3596
        %4453 = vmatmul.mubr.bf16.gmra.mxu0 %v3595
        %v4454 = vpop.f32.mrf.mxu0
        %v4455 = vadd.f32 0.0, %v4454
        %v4456 = vpop.f32.mrf.mxu0
        %v4457 = vadd.f32 0.0, %v4456
        %v4458 = vpop.f32.mrf.mxu0
        %v4459 = vadd.f32 0.0, %v4458
        %v4460 = vpop.f32.mrf.mxu0
        %v4461 = vadd.f32 0.0, %v4460
        %4462 = vmatprep.mubr.bf16.mxu0 %v3598
        %4463 = vmatmul.mubr.bf16.gmra.mxu0 %v3597
        %v4464 = vpop.f32.mrf.mxu0
        %v4465 = vadd.f32 0.0, %v4464
        %v4466 = vpop.f32.mrf.mxu0
        %v4467 = vadd.f32 0.0, %v4466
        %v4468 = vpop.f32.mrf.mxu0
        %v4469 = vadd.f32 0.0, %v4468
        %v4470 = vpop.f32.mrf.mxu0
        %v4471 = vadd.f32 0.0, %v4470
        %4472 = vmatprep.mubr.bf16.mxu0 %v3600
        %4473 = vmatmul.mubr.bf16.gmra.mxu0 %v3599
        %v4474 = vpop.f32.mrf.mxu0
        %v4475 = vadd.f32 0.0, %v4474
        %v4476 = vpop.f32.mrf.mxu0
        %v4477 = vadd.f32 0.0, %v4476
        %v4478 = vpop.f32.mrf.mxu0
        %v4479 = vadd.f32 0.0, %v4478
        %v4480 = vpop.f32.mrf.mxu0
        %v4481 = vadd.f32 0.0, %v4480
        %4482 = vdwg.mxu0
        %v4483 = vxor.u32 %v4405, 2147483648
        %v4484 = vxor.u32 %v4407, 2147483648
        %v4485 = vxor.u32 %v4409, 2147483648
        %v4486 = vxor.u32 %v4411, 2147483648
        %v4487 = vxor.u32 %v4415, 2147483648
        %v4488 = vxor.u32 %v4417, 2147483648
        %v4489 = vxor.u32 %v4419, 2147483648
        %v4490 = vxor.u32 %v4421, 2147483648
        %v4491 = vxor.u32 %v4425, 2147483648
        %v4492 = vxor.u32 %v4427, 2147483648
        %v4493 = vxor.u32 %v4429, 2147483648
        %v4494 = vxor.u32 %v4431, 2147483648
        %v4495 = vxor.u32 %v4435, 2147483648
        %v4496 = vxor.u32 %v4437, 2147483648
        %v4497 = vxor.u32 %v4439, 2147483648
        %v4498 = vxor.u32 %v4441, 2147483648
        %v4499 = vxor.u32 %v4445, 2147483648
        %v4500 = vxor.u32 %v4447, 2147483648
        %v4501 = vxor.u32 %v4449, 2147483648
        %v4502 = vxor.u32 %v4451, 2147483648
        %v4503 = vxor.u32 %v4455, 2147483648
        %v4504 = vxor.u32 %v4457, 2147483648
        %v4505 = vxor.u32 %v4459, 2147483648
        %v4506 = vxor.u32 %v4461, 2147483648
        %v4507 = vxor.u32 %v4465, 2147483648
        %v4508 = vxor.u32 %v4467, 2147483648
        %v4509 = vxor.u32 %v4469, 2147483648
        %v4510 = vxor.u32 %v4471, 2147483648
        %v4511 = vxor.u32 %v4475, 2147483648
        %v4512 = vxor.u32 %v4477, 2147483648
        %v4513 = vxor.u32 %v4479, 2147483648
        %v4514 = vxor.u32 %v4481, 2147483648
        %v4515 = vmul.f32 %v4483, 1.442695
        %v4516 = vpow.pop %v4515
        %v4517 = vmul.f32 %v4484, 1.442695
        %v4518 = vpow.pop %v4517
        %v4519 = vmul.f32 %v4485, 1.442695
        %v4520 = vpow.pop %v4519
        %v4521 = vmul.f32 %v4486, 1.442695
        %v4522 = vpow.pop %v4521
        %v4523 = vmul.f32 %v4487, 1.442695
        %v4524 = vpow.pop %v4523
        %v4525 = vmul.f32 %v4488, 1.442695
        %v4526 = vpow.pop %v4525
        %v4527 = vmul.f32 %v4489, 1.442695
        %v4528 = vpow.pop %v4527
        %v4529 = vmul.f32 %v4490, 1.442695
        %v4530 = vpow.pop %v4529
        %v4531 = vmul.f32 %v4491, 1.442695
        %v4532 = vpow.pop %v4531
        %v4533 = vmul.f32 %v4492, 1.442695
        %v4534 = vpow.pop %v4533
        %v4535 = vmul.f32 %v4493, 1.442695
        %v4536 = vpow.pop %v4535
        %v4537 = vmul.f32 %v4494, 1.442695
        %v4538 = vpow.pop %v4537
        %v4539 = vmul.f32 %v4495, 1.442695
        %v4540 = vpow.pop %v4539
        %v4541 = vmul.f32 %v4496, 1.442695
        %v4542 = vpow.pop %v4541
        %v4543 = vmul.f32 %v4497, 1.442695
        %v4544 = vpow.pop %v4543
        %v4545 = vmul.f32 %v4498, 1.442695
        %v4546 = vpow.pop %v4545
        %v4547 = vmul.f32 %v4499, 1.442695
        %v4548 = vpow.pop %v4547
        %v4549 = vmul.f32 %v4500, 1.442695
        %v4550 = vpow.pop %v4549
        %v4551 = vmul.f32 %v4501, 1.442695
        %v4552 = vpow.pop %v4551
        %v4553 = vmul.f32 %v4502, 1.442695
        %v4554 = vpow.pop %v4553
        %v4555 = vmul.f32 %v4503, 1.442695
        %v4556 = vpow.pop %v4555
        %v4557 = vmul.f32 %v4504, 1.442695
        %v4558 = vpow.pop %v4557
        %v4559 = vmul.f32 %v4505, 1.442695
        %v4560 = vpow.pop %v4559
        %v4561 = vmul.f32 %v4506, 1.442695
        %v4562 = vpow.pop %v4561
        %v4563 = vmul.f32 %v4507, 1.442695
        %v4564 = vpow.pop %v4563
        %v4565 = vmul.f32 %v4508, 1.442695
        %v4566 = vpow.pop %v4565
        %v4567 = vmul.f32 %v4509, 1.442695
        %v4568 = vpow.pop %v4567
        %v4569 = vmul.f32 %v4510, 1.442695
        %v4570 = vpow.pop %v4569
        %v4571 = vmul.f32 %v4511, 1.442695
        %v4572 = vpow.pop %v4571
        %v4573 = vmul.f32 %v4512, 1.442695
        %v4574 = vpow.pop %v4573
        %v4575 = vmul.f32 %v4513, 1.442695
        %v4576 = vpow.pop %v4575
        %v4577 = vmul.f32 %v4514, 1.442695
        %v4578 = vpow.pop %v4577
        %v4579 = vadd.f32 %v4516, 1.0
        %v4580 = vadd.f32 %v4518, 1.0
        %v4581 = vadd.f32 %v4520, 1.0
        %v4582 = vadd.f32 %v4522, 1.0
        %v4583 = vadd.f32 %v4524, 1.0
        %v4584 = vadd.f32 %v4526, 1.0
        %v4585 = vadd.f32 %v4528, 1.0
        %v4586 = vadd.f32 %v4530, 1.0
        %v4587 = vadd.f32 %v4532, 1.0
        %v4588 = vadd.f32 %v4534, 1.0
        %v4589 = vadd.f32 %v4536, 1.0
        %v4590 = vadd.f32 %v4538, 1.0
        %v4591 = vadd.f32 %v4540, 1.0
        %v4592 = vadd.f32 %v4542, 1.0
        %v4593 = vadd.f32 %v4544, 1.0
        %v4594 = vadd.f32 %v4546, 1.0
        %v4595 = vadd.f32 %v4548, 1.0
        %v4596 = vadd.f32 %v4550, 1.0
        %v4597 = vadd.f32 %v4552, 1.0
        %v4598 = vadd.f32 %v4554, 1.0
        %v4599 = vadd.f32 %v4556, 1.0
        %v4600 = vadd.f32 %v4558, 1.0
        %v4601 = vadd.f32 %v4560, 1.0
        %v4602 = vadd.f32 %v4562, 1.0
        %v4603 = vadd.f32 %v4564, 1.0
        %v4604 = vadd.f32 %v4566, 1.0
        %v4605 = vadd.f32 %v4568, 1.0
        %v4606 = vadd.f32 %v4570, 1.0
        %v4607 = vadd.f32 %v4572, 1.0
        %v4608 = vadd.f32 %v4574, 1.0
        %v4609 = vadd.f32 %v4576, 1.0
        %v4610 = vadd.f32 %v4578, 1.0
        %v4611 = vrcp.pop %v4579
        %v4612 = vmul.f32 1.0, %v4611
        %v4613 = vrcp.pop %v4580
        %v4614 = vmul.f32 1.0, %v4613
        %v4615 = vrcp.pop %v4581
        %v4616 = vmul.f32 1.0, %v4615
        %v4617 = vrcp.pop %v4582
        %v4618 = vmul.f32 1.0, %v4617
        %v4619 = vrcp.pop %v4583
        %v4620 = vmul.f32 1.0, %v4619
        %v4621 = vrcp.pop %v4584
        %v4622 = vmul.f32 1.0, %v4621
        %v4623 = vrcp.pop %v4585
        %v4624 = vmul.f32 1.0, %v4623
        %v4625 = vrcp.pop %v4586
        %v4626 = vmul.f32 1.0, %v4625
        %v4627 = vrcp.pop %v4587
        %v4628 = vmul.f32 1.0, %v4627
        %v4629 = vrcp.pop %v4588
        %v4630 = vmul.f32 1.0, %v4629
        %v4631 = vrcp.pop %v4589
        %v4632 = vmul.f32 1.0, %v4631
        %v4633 = vrcp.pop %v4590
        %v4634 = vmul.f32 1.0, %v4633
        %v4635 = vrcp.pop %v4591
        %v4636 = vmul.f32 1.0, %v4635
        %v4637 = vrcp.pop %v4592
        %v4638 = vmul.f32 1.0, %v4637
        %v4639 = vrcp.pop %v4593
        %v4640 = vmul.f32 1.0, %v4639
        %v4641 = vrcp.pop %v4594
        %v4642 = vmul.f32 1.0, %v4641
        %v4643 = vrcp.pop %v4595
        %v4644 = vmul.f32 1.0, %v4643
        %v4645 = vrcp.pop %v4596
        %v4646 = vmul.f32 1.0, %v4645
        %v4647 = vrcp.pop %v4597
        %v4648 = vmul.f32 1.0, %v4647
        %v4649 = vrcp.pop %v4598
        %v4650 = vmul.f32 1.0, %v4649
        %v4651 = vrcp.pop %v4599
        %v4652 = vmul.f32 1.0, %v4651
        %v4653 = vrcp.pop %v4600
        %v4654 = vmul.f32 1.0, %v4653
        %v4655 = vrcp.pop %v4601
        %v4656 = vmul.f32 1.0, %v4655
        %v4657 = vrcp.pop %v4602
        %v4658 = vmul.f32 1.0, %v4657
        %v4659 = vrcp.pop %v4603
        %v4660 = vmul.f32 1.0, %v4659
        %v4661 = vrcp.pop %v4604
        %v4662 = vmul.f32 1.0, %v4661
        %v4663 = vrcp.pop %v4605
        %v4664 = vmul.f32 1.0, %v4663
        %v4665 = vrcp.pop %v4606
        %v4666 = vmul.f32 1.0, %v4665
        %v4667 = vrcp.pop %v4607
        %v4668 = vmul.f32 1.0, %v4667
        %v4669 = vrcp.pop %v4608
        %v4670 = vmul.f32 1.0, %v4669
        %v4671 = vrcp.pop %v4609
        %v4672 = vmul.f32 1.0, %v4671
        %v4673 = vrcp.pop %v4610
        %v4674 = vmul.f32 1.0, %v4673
        %v4675 = vmul.f32 %v4405, %v4612
        %v4676 = vmul.f32 %v4407, %v4614
        %v4677 = vmul.f32 %v4409, %v4616
        %v4678 = vmul.f32 %v4411, %v4618
        %v4679 = vmul.f32 %v4415, %v4620
        %v4680 = vmul.f32 %v4417, %v4622
        %v4681 = vmul.f32 %v4419, %v4624
        %v4682 = vmul.f32 %v4421, %v4626
        %v4683 = vmul.f32 %v4425, %v4628
        %v4684 = vmul.f32 %v4427, %v4630
        %v4685 = vmul.f32 %v4429, %v4632
        %v4686 = vmul.f32 %v4431, %v4634
        %v4687 = vmul.f32 %v4435, %v4636
        %v4688 = vmul.f32 %v4437, %v4638
        %v4689 = vmul.f32 %v4439, %v4640
        %v4690 = vmul.f32 %v4441, %v4642
        %v4691 = vmul.f32 %v4445, %v4644
        %v4692 = vmul.f32 %v4447, %v4646
        %v4693 = vmul.f32 %v4449, %v4648
        %v4694 = vmul.f32 %v4451, %v4650
        %v4695 = vmul.f32 %v4455, %v4652
        %v4696 = vmul.f32 %v4457, %v4654
        %v4697 = vmul.f32 %v4459, %v4656
        %v4698 = vmul.f32 %v4461, %v4658
        %v4699 = vmul.f32 %v4465, %v4660
        %v4700 = vmul.f32 %v4467, %v4662
        %v4701 = vmul.f32 %v4469, %v4664
        %v4702 = vmul.f32 %v4471, %v4666
        %v4703 = vmul.f32 %v4475, %v4668
        %v4704 = vmul.f32 %v4477, %v4670
        %v4705 = vmul.f32 %v4479, %v4672
        %v4706 = vmul.f32 %v4481, %v4674
        %v4707 = vpack.c.bf16 %v4677, %v4675
        %v4708 = vpack.c.bf16 %v4678, %v4676
        %v4709 = vpack.c.bf16 %v4681, %v4679
        %v4710 = vpack.c.bf16 %v4682, %v4680
        %v4711 = vpack.c.bf16 %v4685, %v4683
        %v4712 = vpack.c.bf16 %v4686, %v4684
        %v4713 = vpack.c.bf16 %v4689, %v4687
        %v4714 = vpack.c.bf16 %v4690, %v4688
        %v4715 = vpack.c.bf16 %v4693, %v4691
        %v4716 = vpack.c.bf16 %v4694, %v4692
        %v4717 = vpack.c.bf16 %v4697, %v4695
        %v4718 = vpack.c.bf16 %v4698, %v4696
        %v4719 = vpack.c.bf16 %v4701, %v4699
        %v4720 = vpack.c.bf16 %v4702, %v4700
        %v4721 = vpack.c.bf16 %v4705, %v4703
        %v4722 = vpack.c.bf16 %v4706, %v4704
        %v4723 = vld [vmem:[%s629 + $0x100] sm:$0xff]
        %v4724 = vld [vmem:[%s629 + $0x108] sm:$0xff]
        %v4725 = vld [vmem:[%s629 + $0x110] sm:$0xff]
        %v4726 = vld [vmem:[%s629 + $0x118] sm:$0xff]
        %v4727 = vld [vmem:[%s629 + $0x120] sm:$0xff]
        %v4728 = vld [vmem:[%s629 + $0x128] sm:$0xff]
        %v4729 = vld [vmem:[%s629 + $0x130] sm:$0xff]
        %v4730 = vld [vmem:[%s629 + $0x138] sm:$0xff]
        %v4731 = vld [vmem:[%s629 + $0x140] sm:$0xff]
        %v4732 = vld [vmem:[%s629 + $0x148] sm:$0xff]
        %v4733 = vld [vmem:[%s629 + $0x150] sm:$0xff]
        %v4734 = vld [vmem:[%s629 + $0x158] sm:$0xff]
        %v4735 = vld [vmem:[%s629 + $0x160] sm:$0xff]
        %v4736 = vld [vmem:[%s629 + $0x168] sm:$0xff]
        %v4737 = vld [vmem:[%s629 + $0x170] sm:$0xff]
        %v4738 = vld [vmem:[%s629 + $0x178] sm:$0xff]
        %v4739 = vld [vmem:[%s629 + $0x180] sm:$0xff]
        %v4740 = vld [vmem:[%s629 + $0x188] sm:$0xff]
        %v4741 = vld [vmem:[%s629 + $0x190] sm:$0xff]
        %v4742 = vld [vmem:[%s629 + $0x198] sm:$0xff]
        %v4743 = vld [vmem:[%s629 + $0x1a0] sm:$0xff]
        %v4744 = vld [vmem:[%s629 + $0x1a8] sm:$0xff]
        %v4745 = vld [vmem:[%s629 + $0x1b0] sm:$0xff]
        %v4746 = vld [vmem:[%s629 + $0x1b8] sm:$0xff]
        %v4747 = vld [vmem:[%s629 + $0x1c0] sm:$0xff]
        %v4748 = vld [vmem:[%s629 + $0x1c8] sm:$0xff]
        %v4749 = vld [vmem:[%s629 + $0x1d0] sm:$0xff]
        %v4750 = vld [vmem:[%s629 + $0x1d8] sm:$0xff]
        %v4751 = vld [vmem:[%s629 + $0x1e0] sm:$0xff]
        %v4752 = vld [vmem:[%s629 + $0x1e8] sm:$0xff]
        %v4753 = vld [vmem:[%s629 + $0x1f0] sm:$0xff]
        %v4754 = vld [vmem:[%s629 + $0x1f8] sm:$0xff]
        %v4787 = vunpack.c.l.b16 %v4723
        %v4788 = vunpack.c.h.b16 %v4723
        %v4789 = vunpack.c.l.b16 %v4724
        %v4790 = vunpack.c.h.b16 %v4724
        %v4791 = vunpack.c.l.b16 %v4725
        %v4792 = vunpack.c.h.b16 %v4725
        %v4793 = vunpack.c.l.b16 %v4726
        %v4794 = vunpack.c.h.b16 %v4726
        %v4795 = vunpack.c.l.b16 %v4727
        %v4796 = vunpack.c.h.b16 %v4727
        %v4797 = vunpack.c.l.b16 %v4728
        %v4798 = vunpack.c.h.b16 %v4728
        %v4799 = vunpack.c.l.b16 %v4729
        %v4800 = vunpack.c.h.b16 %v4729
        %v4801 = vunpack.c.l.b16 %v4730
        %v4802 = vunpack.c.h.b16 %v4730
        %v4803 = vunpack.c.l.b16 %v4731
        %v4804 = vunpack.c.h.b16 %v4731
        %v4805 = vunpack.c.l.b16 %v4732
        %v4806 = vunpack.c.h.b16 %v4732
        %v4807 = vunpack.c.l.b16 %v4733
        %v4808 = vunpack.c.h.b16 %v4733
        %v4809 = vunpack.c.l.b16 %v4734
        %v4810 = vunpack.c.h.b16 %v4734
        %v4811 = vunpack.c.l.b16 %v4735
        %v4812 = vunpack.c.h.b16 %v4735
        %v4813 = vunpack.c.l.b16 %v4736
        %v4814 = vunpack.c.h.b16 %v4736
        %v4815 = vunpack.c.l.b16 %v4737
        %v4816 = vunpack.c.h.b16 %v4737
        %v4817 = vunpack.c.l.b16 %v4738
        %v4818 = vunpack.c.h.b16 %v4738
        %v4819 = vunpack.c.l.b16 %v4739
        %v4820 = vunpack.c.h.b16 %v4739
        %v4821 = vunpack.c.l.b16 %v4740
        %v4822 = vunpack.c.h.b16 %v4740
        %v4823 = vunpack.c.l.b16 %v4741
        %v4824 = vunpack.c.h.b16 %v4741
        %v4825 = vunpack.c.l.b16 %v4742
        %v4826 = vunpack.c.h.b16 %v4742
        %v4827 = vunpack.c.l.b16 %v4743
        %v4828 = vunpack.c.h.b16 %v4743
        %v4829 = vunpack.c.l.b16 %v4744
        %v4830 = vunpack.c.h.b16 %v4744
        %v4831 = vunpack.c.l.b16 %v4745
        %v4832 = vunpack.c.h.b16 %v4745
        %v4833 = vunpack.c.l.b16 %v4746
        %v4834 = vunpack.c.h.b16 %v4746
        %v4835 = vunpack.c.l.b16 %v4747
        %v4836 = vunpack.c.h.b16 %v4747
        %v4837 = vunpack.c.l.b16 %v4748
        %v4838 = vunpack.c.h.b16 %v4748
        %v4839 = vunpack.c.l.b16 %v4749
        %v4840 = vunpack.c.h.b16 %v4749
        %v4841 = vunpack.c.l.b16 %v4750
        %v4842 = vunpack.c.h.b16 %v4750
        %v4843 = vunpack.c.l.b16 %v4751
        %v4844 = vunpack.c.h.b16 %v4751
        %v4845 = vunpack.c.l.b16 %v4752
        %v4846 = vunpack.c.h.b16 %v4752
        %v4847 = vunpack.c.l.b16 %v4753
        %v4848 = vunpack.c.h.b16 %v4753
        %v4849 = vunpack.c.l.b16 %v4754
        %v4850 = vunpack.c.h.b16 %v4754
        %v4851 = vpack.c.b16 %v4789, %v4787
        %v4852 = vpack.c.b16 %v4790, %v4788
        %v4853 = vpack.c.b16 %v4793, %v4791
        %v4854 = vpack.c.b16 %v4794, %v4792
        %v4855 = vpack.c.b16 %v4797, %v4795
        %v4856 = vpack.c.b16 %v4798, %v4796
        %v4857 = vpack.c.b16 %v4801, %v4799
        %v4858 = vpack.c.b16 %v4802, %v4800
        %v4859 = vpack.c.b16 %v4805, %v4803
        %v4860 = vpack.c.b16 %v4806, %v4804
        %v4861 = vpack.c.b16 %v4809, %v4807
        %v4862 = vpack.c.b16 %v4810, %v4808
        %v4863 = vpack.c.b16 %v4813, %v4811
        %v4864 = vpack.c.b16 %v4814, %v4812
        %v4865 = vpack.c.b16 %v4817, %v4815
        %v4866 = vpack.c.b16 %v4818, %v4816
        %v4867 = vpack.c.b16 %v4821, %v4819
        %v4868 = vpack.c.b16 %v4822, %v4820
        %v4869 = vpack.c.b16 %v4825, %v4823
        %v4870 = vpack.c.b16 %v4826, %v4824
        %v4871 = vpack.c.b16 %v4829, %v4827
        %v4872 = vpack.c.b16 %v4830, %v4828
        %v4873 = vpack.c.b16 %v4833, %v4831
        %v4874 = vpack.c.b16 %v4834, %v4832
        %v4875 = vpack.c.b16 %v4837, %v4835
        %v4876 = vpack.c.b16 %v4838, %v4836
        %v4877 = vpack.c.b16 %v4841, %v4839
        %v4878 = vpack.c.b16 %v4842, %v4840
        %v4879 = vpack.c.b16 %v4845, %v4843
        %v4880 = vpack.c.b16 %v4846, %v4844
        %v4881 = vpack.c.b16 %v4849, %v4847
        %v4882 = vpack.c.b16 %v4850, %v4848
        %4915 = vmatprep.subr.bf16.mxu0 %v4866
        %4916 = vmatpush1.bf16.msra.mxu0 %v4865
        %4917 = vmatprep.subr.bf16.mxu0 %v4864
        %4918 = vmatpush1.bf16.msra.mxu0 %v4863
        %4919 = vmatprep.subr.bf16.mxu0 %v4862
        %4920 = vmatpush1.bf16.msra.mxu0 %v4861
        %4921 = vmatprep.subr.bf16.mxu0 %v4860
        %4922 = vmatpush1.bf16.msra.mxu0 %v4859
        %4923 = vmatprep.subr.bf16.mxu0 %v4858
        %4924 = vmatpush1.bf16.msra.mxu0 %v4857
        %4925 = vmatprep.subr.bf16.mxu0 %v4856
        %4926 = vmatpush1.bf16.msra.mxu0 %v4855
        %4927 = vmatprep.subr.bf16.mxu0 %v4854
        %4928 = vmatpush1.bf16.msra.mxu0 %v4853
        %4929 = vmatprep.subr.bf16.mxu0 %v4852
        %4930 = vmatpush1.bf16.msra.mxu0 %v4851
        %4931 = vmatprep.subr.bf16.mxu0 %v4882
        %4932 = vmatpush2.bf16.msra.mxu0 %v4881
        %4933 = vmatprep.subr.bf16.mxu0 %v4880
        %4934 = vmatpush2.bf16.msra.mxu0 %v4879
        %4935 = vmatprep.subr.bf16.mxu0 %v4878
        %4936 = vmatpush2.bf16.msra.mxu0 %v4877
        %4937 = vmatprep.subr.bf16.mxu0 %v4876
        %4938 = vmatpush2.bf16.msra.mxu0 %v4875
        %4939 = vmatprep.subr.bf16.mxu0 %v4874
        %4940 = vmatpush2.bf16.msra.mxu0 %v4873
        %4941 = vmatprep.subr.bf16.mxu0 %v4872
        %4942 = vmatpush2.bf16.msra.mxu0 %v4871
        %4943 = vmatprep.subr.bf16.mxu0 %v4870
        %4944 = vmatpush2.bf16.msra.mxu0 %v4869
        %4945 = vmatprep.subr.bf16.mxu0 %v4868
        %4946 = vmatpush2.bf16.msra.mxu0 %v4867
        %4947 = vmatprep.mubr.bf16.mxu0 %v4708
        %4948 = vmatmul.mubr.bf16.gmra.mxu0 %v4707
        %v4949 = vpop.f32.mrf.mxu0
        %v4950 = vadd.f32 0.0, %v4949
        %v4951 = vpop.f32.mrf.mxu0
        %v4952 = vadd.f32 0.0, %v4951
        %v4953 = vpop.f32.mrf.mxu0
        %v4954 = vadd.f32 0.0, %v4953
        %v4955 = vpop.f32.mrf.mxu0
        %v4956 = vadd.f32 0.0, %v4955
        %4957 = vmatprep.mubr.bf16.mxu0 %v4710
        %4958 = vmatmul.mubr.bf16.gmra.mxu0 %v4709
        %v4959 = vpop.f32.mrf.mxu0
        %v4960 = vadd.f32 0.0, %v4959
        %v4961 = vpop.f32.mrf.mxu0
        %v4962 = vadd.f32 0.0, %v4961
        %v4963 = vpop.f32.mrf.mxu0
        %v4964 = vadd.f32 0.0, %v4963
        %v4965 = vpop.f32.mrf.mxu0
        %v4966 = vadd.f32 0.0, %v4965
        %4967 = vmatprep.mubr.bf16.mxu0 %v4712
        %4968 = vmatmul.mubr.bf16.gmra.mxu0 %v4711
        %v4969 = vpop.f32.mrf.mxu0
        %v4970 = vadd.f32 0.0, %v4969
        %v4971 = vpop.f32.mrf.mxu0
        %v4972 = vadd.f32 0.0, %v4971
        %v4973 = vpop.f32.mrf.mxu0
        %v4974 = vadd.f32 0.0, %v4973
        %v4975 = vpop.f32.mrf.mxu0
        %v4976 = vadd.f32 0.0, %v4975
        %4977 = vmatprep.mubr.bf16.mxu0 %v4714
        %4978 = vmatmul.mubr.bf16.gmra.mxu0 %v4713
        %v4979 = vpop.f32.mrf.mxu0
        %v4980 = vadd.f32 0.0, %v4979
        %v4981 = vpop.f32.mrf.mxu0
        %v4982 = vadd.f32 0.0, %v4981
        %v4983 = vpop.f32.mrf.mxu0
        %v4984 = vadd.f32 0.0, %v4983
        %v4985 = vpop.f32.mrf.mxu0
        %v4986 = vadd.f32 0.0, %v4985
        %4987 = vmatprep.mubr.bf16.mxu0 %v4716
        %4988 = vmatmul.mubr.bf16.gmra.mxu0 %v4715
        %v4989 = vpop.f32.mrf.mxu0
        %v4990 = vadd.f32 0.0, %v4989
        %v4991 = vpop.f32.mrf.mxu0
        %v4992 = vadd.f32 0.0, %v4991
        %v4993 = vpop.f32.mrf.mxu0
        %v4994 = vadd.f32 0.0, %v4993
        %v4995 = vpop.f32.mrf.mxu0
        %v4996 = vadd.f32 0.0, %v4995
        %4997 = vmatprep.mubr.bf16.mxu0 %v4718
        %4998 = vmatmul.mubr.bf16.gmra.mxu0 %v4717
        %v4999 = vpop.f32.mrf.mxu0
        %v5000 = vadd.f32 0.0, %v4999
        %v5001 = vpop.f32.mrf.mxu0
        %v5002 = vadd.f32 0.0, %v5001
        %v5003 = vpop.f32.mrf.mxu0
        %v5004 = vadd.f32 0.0, %v5003
        %v5005 = vpop.f32.mrf.mxu0
        %v5006 = vadd.f32 0.0, %v5005
        %5007 = vmatprep.mubr.bf16.mxu0 %v4720
        %5008 = vmatmul.mubr.bf16.gmra.mxu0 %v4719
        %v5009 = vpop.f32.mrf.mxu0
        %v5010 = vadd.f32 0.0, %v5009
        %v5011 = vpop.f32.mrf.mxu0
        %v5012 = vadd.f32 0.0, %v5011
        %v5013 = vpop.f32.mrf.mxu0
        %v5014 = vadd.f32 0.0, %v5013
        %v5015 = vpop.f32.mrf.mxu0
        %v5016 = vadd.f32 0.0, %v5015
        %5017 = vmatprep.mubr.bf16.mxu0 %v4722
        %5018 = vmatmul.mubr.bf16.gmra.mxu0 %v4721
        %v5019 = vpop.f32.mrf.mxu0
        %v5020 = vadd.f32 0.0, %v5019
        %v5021 = vpop.f32.mrf.mxu0
        %v5022 = vadd.f32 0.0, %v5021
        %v5023 = vpop.f32.mrf.mxu0
        %v5024 = vadd.f32 0.0, %v5023
        %v5025 = vpop.f32.mrf.mxu0
        %v5026 = vadd.f32 0.0, %v5025
        %5027 = vdwg.mxu0
        %v5060 = vunpack.c.l.b16 %v4146
        %v5061 = vunpack.c.h.b16 %v4146
        %v5062 = vunpack.c.l.b16 %v4147
        %v5063 = vunpack.c.h.b16 %v4147
        %v5064 = vunpack.c.l.b16 %v4148
        %v5065 = vunpack.c.h.b16 %v4148
        %v5066 = vunpack.c.l.b16 %v4149
        %v5067 = vunpack.c.h.b16 %v4149
        %v5068 = vunpack.c.l.b16 %v4150
        %v5069 = vunpack.c.h.b16 %v4150
        %v5070 = vunpack.c.l.b16 %v4151
        %v5071 = vunpack.c.h.b16 %v4151
        %v5072 = vunpack.c.l.b16 %v4152
        %v5073 = vunpack.c.h.b16 %v4152
        %v5074 = vunpack.c.l.b16 %v4153
        %v5075 = vunpack.c.h.b16 %v4153
        %v5076 = vunpack.c.l.b16 %v4154
        %v5077 = vunpack.c.h.b16 %v4154
        %v5078 = vunpack.c.l.b16 %v4155
        %v5079 = vunpack.c.h.b16 %v4155
        %v5080 = vunpack.c.l.b16 %v4156
        %v5081 = vunpack.c.h.b16 %v4156
        %v5082 = vunpack.c.l.b16 %v4157
        %v5083 = vunpack.c.h.b16 %v4157
        %v5084 = vunpack.c.l.b16 %v4158
        %v5085 = vunpack.c.h.b16 %v4158
        %v5086 = vunpack.c.l.b16 %v4159
        %v5087 = vunpack.c.h.b16 %v4159
        %v5088 = vunpack.c.l.b16 %v4160
        %v5089 = vunpack.c.h.b16 %v4160
        %v5090 = vunpack.c.l.b16 %v4161
        %v5091 = vunpack.c.h.b16 %v4161
        %v5092 = vunpack.c.l.b16 %v4162
        %v5093 = vunpack.c.h.b16 %v4162
        %v5094 = vunpack.c.l.b16 %v4163
        %v5095 = vunpack.c.h.b16 %v4163
        %v5096 = vunpack.c.l.b16 %v4164
        %v5097 = vunpack.c.h.b16 %v4164
        %v5098 = vunpack.c.l.b16 %v4165
        %v5099 = vunpack.c.h.b16 %v4165
        %v5100 = vunpack.c.l.b16 %v4166
        %v5101 = vunpack.c.h.b16 %v4166
        %v5102 = vunpack.c.l.b16 %v4167
        %v5103 = vunpack.c.h.b16 %v4167
        %v5104 = vunpack.c.l.b16 %v4168
        %v5105 = vunpack.c.h.b16 %v4168
        %v5106 = vunpack.c.l.b16 %v4169
        %v5107 = vunpack.c.h.b16 %v4169
        %v5108 = vunpack.c.l.b16 %v4170
        %v5109 = vunpack.c.h.b16 %v4170
        %v5110 = vunpack.c.l.b16 %v4171
        %v5111 = vunpack.c.h.b16 %v4171
        %v5112 = vunpack.c.l.b16 %v4172
        %v5113 = vunpack.c.h.b16 %v4172
        %v5114 = vunpack.c.l.b16 %v4173
        %v5115 = vunpack.c.h.b16 %v4173
        %v5116 = vunpack.c.l.b16 %v4174
        %v5117 = vunpack.c.h.b16 %v4174
        %v5118 = vunpack.c.l.b16 %v4175
        %v5119 = vunpack.c.h.b16 %v4175
        %v5120 = vunpack.c.l.b16 %v4176
        %v5121 = vunpack.c.h.b16 %v4176
        %v5122 = vunpack.c.l.b16 %v4177
        %v5123 = vunpack.c.h.b16 %v4177
        %v5124 = vpack.c.b16 %v5062, %v5060
        %v5125 = vpack.c.b16 %v5063, %v5061
        %v5126 = vpack.c.b16 %v5066, %v5064
        %v5127 = vpack.c.b16 %v5067, %v5065
        %v5128 = vpack.c.b16 %v5070, %v5068
        %v5129 = vpack.c.b16 %v5071, %v5069
        %v5130 = vpack.c.b16 %v5074, %v5072
        %v5131 = vpack.c.b16 %v5075, %v5073
        %v5132 = vpack.c.b16 %v5078, %v5076
        %v5133 = vpack.c.b16 %v5079, %v5077
        %v5134 = vpack.c.b16 %v5082, %v5080
        %v5135 = vpack.c.b16 %v5083, %v5081
        %v5136 = vpack.c.b16 %v5086, %v5084
        %v5137 = vpack.c.b16 %v5087, %v5085
        %v5138 = vpack.c.b16 %v5090, %v5088
        %v5139 = vpack.c.b16 %v5091, %v5089
        %v5140 = vpack.c.b16 %v5094, %v5092
        %v5141 = vpack.c.b16 %v5095, %v5093
        %v5142 = vpack.c.b16 %v5098, %v5096
        %v5143 = vpack.c.b16 %v5099, %v5097
        %v5144 = vpack.c.b16 %v5102, %v5100
        %v5145 = vpack.c.b16 %v5103, %v5101
        %v5146 = vpack.c.b16 %v5106, %v5104
        %v5147 = vpack.c.b16 %v5107, %v5105
        %v5148 = vpack.c.b16 %v5110, %v5108
        %v5149 = vpack.c.b16 %v5111, %v5109
        %v5150 = vpack.c.b16 %v5114, %v5112
        %v5151 = vpack.c.b16 %v5115, %v5113
        %v5152 = vpack.c.b16 %v5118, %v5116
        %v5153 = vpack.c.b16 %v5119, %v5117
        %v5154 = vpack.c.b16 %v5122, %v5120
        %v5155 = vpack.c.b16 %v5123, %v5121
        %5188 = vmatprep.subr.bf16.mxu0 %v5139
        %5189 = vmatpush1.bf16.msra.mxu0 %v5138
        %5190 = vmatprep.subr.bf16.mxu0 %v5137
        %5191 = vmatpush1.bf16.msra.mxu0 %v5136
        %5192 = vmatprep.subr.bf16.mxu0 %v5135
        %5193 = vmatpush1.bf16.msra.mxu0 %v5134
        %5194 = vmatprep.subr.bf16.mxu0 %v5133
        %5195 = vmatpush1.bf16.msra.mxu0 %v5132
        %5196 = vmatprep.subr.bf16.mxu0 %v5131
        %5197 = vmatpush1.bf16.msra.mxu0 %v5130
        %5198 = vmatprep.subr.bf16.mxu0 %v5129
        %5199 = vmatpush1.bf16.msra.mxu0 %v5128
        %5200 = vmatprep.subr.bf16.mxu0 %v5127
        %5201 = vmatpush1.bf16.msra.mxu0 %v5126
        %5202 = vmatprep.subr.bf16.mxu0 %v5125
        %5203 = vmatpush1.bf16.msra.mxu0 %v5124
        %5204 = vmatprep.subr.bf16.mxu0 %v5155
        %5205 = vmatpush2.bf16.msra.mxu0 %v5154
        %5206 = vmatprep.subr.bf16.mxu0 %v5153
        %5207 = vmatpush2.bf16.msra.mxu0 %v5152
        %5208 = vmatprep.subr.bf16.mxu0 %v5151
        %5209 = vmatpush2.bf16.msra.mxu0 %v5150
        %5210 = vmatprep.subr.bf16.mxu0 %v5149
        %5211 = vmatpush2.bf16.msra.mxu0 %v5148
        %5212 = vmatprep.subr.bf16.mxu0 %v5147
        %5213 = vmatpush2.bf16.msra.mxu0 %v5146
        %5214 = vmatprep.subr.bf16.mxu0 %v5145
        %5215 = vmatpush2.bf16.msra.mxu0 %v5144
        %5216 = vmatprep.subr.bf16.mxu0 %v5143
        %5217 = vmatpush2.bf16.msra.mxu0 %v5142
        %5218 = vmatprep.subr.bf16.mxu0 %v5141
        %5219 = vmatpush2.bf16.msra.mxu0 %v5140
        %5220 = vmatprep.mubr.bf16.mxu0 %v4131
        %5221 = vmatmul.mubr.bf16.gmra.mxu0 %v4130
        %v5222 = vpop.f32.mrf.mxu0
        %v5223 = vadd.f32 %v4950, %v5222
        %v5224 = vpop.f32.mrf.mxu0
        %v5225 = vadd.f32 %v4952, %v5224
        %v5226 = vpop.f32.mrf.mxu0
        %v5227 = vadd.f32 %v4954, %v5226
        %v5228 = vpop.f32.mrf.mxu0
        %v5229 = vadd.f32 %v4956, %v5228
        %5230 = vmatprep.mubr.bf16.mxu0 %v4133
        %5231 = vmatmul.mubr.bf16.gmra.mxu0 %v4132
        %v5232 = vpop.f32.mrf.mxu0
        %v5233 = vadd.f32 %v4960, %v5232
        %v5234 = vpop.f32.mrf.mxu0
        %v5235 = vadd.f32 %v4962, %v5234
        %v5236 = vpop.f32.mrf.mxu0
        %v5237 = vadd.f32 %v4964, %v5236
        %v5238 = vpop.f32.mrf.mxu0
        %v5239 = vadd.f32 %v4966, %v5238
        %5240 = vmatprep.mubr.bf16.mxu0 %v4135
        %5241 = vmatmul.mubr.bf16.gmra.mxu0 %v4134
        %v5242 = vpop.f32.mrf.mxu0
        %v5243 = vadd.f32 %v4970, %v5242
        %v5244 = vpop.f32.mrf.mxu0
        %v5245 = vadd.f32 %v4972, %v5244
        %v5246 = vpop.f32.mrf.mxu0
        %v5247 = vadd.f32 %v4974, %v5246
        %v5248 = vpop.f32.mrf.mxu0
        %v5249 = vadd.f32 %v4976, %v5248
        %5250 = vmatprep.mubr.bf16.mxu0 %v4137
        %5251 = vmatmul.mubr.bf16.gmra.mxu0 %v4136
        %v5252 = vpop.f32.mrf.mxu0
        %v5253 = vadd.f32 %v4980, %v5252
        %v5254 = vpop.f32.mrf.mxu0
        %v5255 = vadd.f32 %v4982, %v5254
        %v5256 = vpop.f32.mrf.mxu0
        %v5257 = vadd.f32 %v4984, %v5256
        %v5258 = vpop.f32.mrf.mxu0
        %v5259 = vadd.f32 %v4986, %v5258
        %5260 = vmatprep.mubr.bf16.mxu0 %v4139
        %5261 = vmatmul.mubr.bf16.gmra.mxu0 %v4138
        %v5262 = vpop.f32.mrf.mxu0
        %v5263 = vadd.f32 %v4990, %v5262
        %v5264 = vpop.f32.mrf.mxu0
        %v5265 = vadd.f32 %v4992, %v5264
        %v5266 = vpop.f32.mrf.mxu0
        %v5267 = vadd.f32 %v4994, %v5266
        %v5268 = vpop.f32.mrf.mxu0
        %v5269 = vadd.f32 %v4996, %v5268
        %5270 = vmatprep.mubr.bf16.mxu0 %v4141
        %5271 = vmatmul.mubr.bf16.gmra.mxu0 %v4140
        %v5272 = vpop.f32.mrf.mxu0
        %v5273 = vadd.f32 %v5000, %v5272
        %v5274 = vpop.f32.mrf.mxu0
        %v5275 = vadd.f32 %v5002, %v5274
        %v5276 = vpop.f32.mrf.mxu0
        %v5277 = vadd.f32 %v5004, %v5276
        %v5278 = vpop.f32.mrf.mxu0
        %v5279 = vadd.f32 %v5006, %v5278
        %5280 = vmatprep.mubr.bf16.mxu0 %v4143
        %5281 = vmatmul.mubr.bf16.gmra.mxu0 %v4142
        %v5282 = vpop.f32.mrf.mxu0
        %v5283 = vadd.f32 %v5010, %v5282
        %v5284 = vpop.f32.mrf.mxu0
        %v5285 = vadd.f32 %v5012, %v5284
        %v5286 = vpop.f32.mrf.mxu0
        %v5287 = vadd.f32 %v5014, %v5286
        %v5288 = vpop.f32.mrf.mxu0
        %v5289 = vadd.f32 %v5016, %v5288
        %5290 = vmatprep.mubr.bf16.mxu0 %v4145
        %5291 = vmatmul.mubr.bf16.gmra.mxu0 %v4144
        %v5292 = vpop.f32.mrf.mxu0
        %v5293 = vadd.f32 %v5020, %v5292
        %v5294 = vpop.f32.mrf.mxu0
        %v5295 = vadd.f32 %v5022, %v5294
        %v5296 = vpop.f32.mrf.mxu0
        %v5297 = vadd.f32 %v5024, %v5296
        %v5298 = vpop.f32.mrf.mxu0
        %v5299 = vadd.f32 %v5026, %v5298
        %5300 = vdwg.mxu0
        %v5301 = vld [vmem:[%s620 + $0x10] sm:$0xff]
        %v5302 = vld [vmem:[%s620 + $0x30] sm:$0xff]
        %v5303 = vld [vmem:[%s620 + $0x50] sm:$0xff]
        %v5304 = vld [vmem:[%s620 + $0x70] sm:$0xff]
        %v5305 = vld [vmem:[%s620 + $0x90] sm:$0xff]
        %v5306 = vld [vmem:[%s620 + $0xb0] sm:$0xff]
        %v5307 = vld [vmem:[%s620 + $0xd0] sm:$0xff]
        %v5308 = vld [vmem:[%s620 + $0xf0] sm:$0xff]
        %v5309 = vld [vmem:[%s620 + $0x110] sm:$0xff]
        %v5310 = vld [vmem:[%s620 + $0x130] sm:$0xff]
        %v5311 = vld [vmem:[%s620 + $0x150] sm:$0xff]
        %v5312 = vld [vmem:[%s620 + $0x170] sm:$0xff]
        %v5313 = vld [vmem:[%s620 + $0x190] sm:$0xff]
        %v5314 = vld [vmem:[%s620 + $0x1b0] sm:$0xff]
        %v5315 = vld [vmem:[%s620 + $0x1d0] sm:$0xff]
        %v5316 = vld [vmem:[%s620 + $0x1f0] sm:$0xff]
        %v5317 = vld [vmem:[%s620 + $0x210] sm:$0xff]
        %v5318 = vld [vmem:[%s620 + $0x230] sm:$0xff]
        %v5319 = vld [vmem:[%s620 + $0x250] sm:$0xff]
        %v5320 = vld [vmem:[%s620 + $0x270] sm:$0xff]
        %v5321 = vld [vmem:[%s620 + $0x290] sm:$0xff]
        %v5322 = vld [vmem:[%s620 + $0x2b0] sm:$0xff]
        %v5323 = vld [vmem:[%s620 + $0x2d0] sm:$0xff]
        %v5324 = vld [vmem:[%s620 + $0x2f0] sm:$0xff]
        %v5325 = vld [vmem:[%s620 + $0x310] sm:$0xff]
        %v5326 = vld [vmem:[%s620 + $0x330] sm:$0xff]
        %v5327 = vld [vmem:[%s620 + $0x350] sm:$0xff]
        %v5328 = vld [vmem:[%s620 + $0x370] sm:$0xff]
        %v5329 = vld [vmem:[%s620 + $0x390] sm:$0xff]
        %v5330 = vld [vmem:[%s620 + $0x3b0] sm:$0xff]
        %v5331 = vld [vmem:[%s620 + $0x3d0] sm:$0xff]
        %v5332 = vld [vmem:[%s620 + $0x3f0] sm:$0xff]
        %v5365 = vunpack.c.l.b16 %v5301
        %v5366 = vunpack.c.h.b16 %v5301
        %v5367 = vunpack.c.l.b16 %v5302
        %v5368 = vunpack.c.h.b16 %v5302
        %v5369 = vunpack.c.l.b16 %v5303
        %v5370 = vunpack.c.h.b16 %v5303
        %v5371 = vunpack.c.l.b16 %v5304
        %v5372 = vunpack.c.h.b16 %v5304
        %v5373 = vunpack.c.l.b16 %v5305
        %v5374 = vunpack.c.h.b16 %v5305
        %v5375 = vunpack.c.l.b16 %v5306
        %v5376 = vunpack.c.h.b16 %v5306
        %v5377 = vunpack.c.l.b16 %v5307
        %v5378 = vunpack.c.h.b16 %v5307
        %v5379 = vunpack.c.l.b16 %v5308
        %v5380 = vunpack.c.h.b16 %v5308
        %v5381 = vunpack.c.l.b16 %v5309
        %v5382 = vunpack.c.h.b16 %v5309
        %v5383 = vunpack.c.l.b16 %v5310
        %v5384 = vunpack.c.h.b16 %v5310
        %v5385 = vunpack.c.l.b16 %v5311
        %v5386 = vunpack.c.h.b16 %v5311
        %v5387 = vunpack.c.l.b16 %v5312
        %v5388 = vunpack.c.h.b16 %v5312
        %v5389 = vunpack.c.l.b16 %v5313
        %v5390 = vunpack.c.h.b16 %v5313
        %v5391 = vunpack.c.l.b16 %v5314
        %v5392 = vunpack.c.h.b16 %v5314
        %v5393 = vunpack.c.l.b16 %v5315
        %v5394 = vunpack.c.h.b16 %v5315
        %v5395 = vunpack.c.l.b16 %v5316
        %v5396 = vunpack.c.h.b16 %v5316
        %v5397 = vunpack.c.l.b16 %v5317
        %v5398 = vunpack.c.h.b16 %v5317
        %v5399 = vunpack.c.l.b16 %v5318
        %v5400 = vunpack.c.h.b16 %v5318
        %v5401 = vunpack.c.l.b16 %v5319
        %v5402 = vunpack.c.h.b16 %v5319
        %v5403 = vunpack.c.l.b16 %v5320
        %v5404 = vunpack.c.h.b16 %v5320
        %v5405 = vunpack.c.l.b16 %v5321
        %v5406 = vunpack.c.h.b16 %v5321
        %v5407 = vunpack.c.l.b16 %v5322
        %v5408 = vunpack.c.h.b16 %v5322
        %v5409 = vunpack.c.l.b16 %v5323
        %v5410 = vunpack.c.h.b16 %v5323
        %v5411 = vunpack.c.l.b16 %v5324
        %v5412 = vunpack.c.h.b16 %v5324
        %v5413 = vunpack.c.l.b16 %v5325
        %v5414 = vunpack.c.h.b16 %v5325
        %v5415 = vunpack.c.l.b16 %v5326
        %v5416 = vunpack.c.h.b16 %v5326
        %v5417 = vunpack.c.l.b16 %v5327
        %v5418 = vunpack.c.h.b16 %v5327
        %v5419 = vunpack.c.l.b16 %v5328
        %v5420 = vunpack.c.h.b16 %v5328
        %v5421 = vunpack.c.l.b16 %v5329
        %v5422 = vunpack.c.h.b16 %v5329
        %v5423 = vunpack.c.l.b16 %v5330
        %v5424 = vunpack.c.h.b16 %v5330
        %v5425 = vunpack.c.l.b16 %v5331
        %v5426 = vunpack.c.h.b16 %v5331
        %v5427 = vunpack.c.l.b16 %v5332
        %v5428 = vunpack.c.h.b16 %v5332
        %v5429 = vpack.c.b16 %v5367, %v5365
        %v5430 = vpack.c.b16 %v5368, %v5366
        %v5431 = vpack.c.b16 %v5371, %v5369
        %v5432 = vpack.c.b16 %v5372, %v5370
        %v5433 = vpack.c.b16 %v5375, %v5373
        %v5434 = vpack.c.b16 %v5376, %v5374
        %v5435 = vpack.c.b16 %v5379, %v5377
        %v5436 = vpack.c.b16 %v5380, %v5378
        %v5437 = vpack.c.b16 %v5383, %v5381
        %v5438 = vpack.c.b16 %v5384, %v5382
        %v5439 = vpack.c.b16 %v5387, %v5385
        %v5440 = vpack.c.b16 %v5388, %v5386
        %v5441 = vpack.c.b16 %v5391, %v5389
        %v5442 = vpack.c.b16 %v5392, %v5390
        %v5443 = vpack.c.b16 %v5395, %v5393
        %v5444 = vpack.c.b16 %v5396, %v5394
        %v5445 = vpack.c.b16 %v5399, %v5397
        %v5446 = vpack.c.b16 %v5400, %v5398
        %v5447 = vpack.c.b16 %v5403, %v5401
        %v5448 = vpack.c.b16 %v5404, %v5402
        %v5449 = vpack.c.b16 %v5407, %v5405
        %v5450 = vpack.c.b16 %v5408, %v5406
        %v5451 = vpack.c.b16 %v5411, %v5409
        %v5452 = vpack.c.b16 %v5412, %v5410
        %v5453 = vpack.c.b16 %v5415, %v5413
        %v5454 = vpack.c.b16 %v5416, %v5414
        %v5455 = vpack.c.b16 %v5419, %v5417
        %v5456 = vpack.c.b16 %v5420, %v5418
        %v5457 = vpack.c.b16 %v5423, %v5421
        %v5458 = vpack.c.b16 %v5424, %v5422
        %v5459 = vpack.c.b16 %v5427, %v5425
        %v5460 = vpack.c.b16 %v5428, %v5426
        %5493 = vmatprep.subr.bf16.mxu0 %v5444
        %5494 = vmatpush1.bf16.msra.mxu0 %v5443
        %5495 = vmatprep.subr.bf16.mxu0 %v5442
        %5496 = vmatpush1.bf16.msra.mxu0 %v5441
        %5497 = vmatprep.subr.bf16.mxu0 %v5440
        %5498 = vmatpush1.bf16.msra.mxu0 %v5439
        %5499 = vmatprep.subr.bf16.mxu0 %v5438
        %5500 = vmatpush1.bf16.msra.mxu0 %v5437
        %5501 = vmatprep.subr.bf16.mxu0 %v5436
        %5502 = vmatpush1.bf16.msra.mxu0 %v5435
        %5503 = vmatprep.subr.bf16.mxu0 %v5434
        %5504 = vmatpush1.bf16.msra.mxu0 %v5433
        %5505 = vmatprep.subr.bf16.mxu0 %v5432
        %5506 = vmatpush1.bf16.msra.mxu0 %v5431
        %5507 = vmatprep.subr.bf16.mxu0 %v5430
        %5508 = vmatpush1.bf16.msra.mxu0 %v5429
        %5509 = vmatprep.subr.bf16.mxu0 %v5460
        %5510 = vmatpush2.bf16.msra.mxu0 %v5459
        %5511 = vmatprep.subr.bf16.mxu0 %v5458
        %5512 = vmatpush2.bf16.msra.mxu0 %v5457
        %5513 = vmatprep.subr.bf16.mxu0 %v5456
        %5514 = vmatpush2.bf16.msra.mxu0 %v5455
        %5515 = vmatprep.subr.bf16.mxu0 %v5454
        %5516 = vmatpush2.bf16.msra.mxu0 %v5453
        %5517 = vmatprep.subr.bf16.mxu0 %v5452
        %5518 = vmatpush2.bf16.msra.mxu0 %v5451
        %5519 = vmatprep.subr.bf16.mxu0 %v5450
        %5520 = vmatpush2.bf16.msra.mxu0 %v5449
        %5521 = vmatprep.subr.bf16.mxu0 %v5448
        %5522 = vmatpush2.bf16.msra.mxu0 %v5447
        %5523 = vmatprep.subr.bf16.mxu0 %v5446
        %5524 = vmatpush2.bf16.msra.mxu0 %v5445
        %5525 = vmatprep.mubr.bf16.mxu0 %v3586
        %5526 = vmatmul.mubr.bf16.gmra.mxu0 %v3585
        %v5527 = vpop.f32.mrf.mxu0
        %v5528 = vadd.f32 0.0, %v5527
        %v5529 = vpop.f32.mrf.mxu0
        %v5530 = vadd.f32 0.0, %v5529
        %v5531 = vpop.f32.mrf.mxu0
        %v5532 = vadd.f32 0.0, %v5531
        %v5533 = vpop.f32.mrf.mxu0
        %v5534 = vadd.f32 0.0, %v5533
        %5535 = vmatprep.mubr.bf16.mxu0 %v3588
        %5536 = vmatmul.mubr.bf16.gmra.mxu0 %v3587
        %v5537 = vpop.f32.mrf.mxu0
        %v5538 = vadd.f32 0.0, %v5537
        %v5539 = vpop.f32.mrf.mxu0
        %v5540 = vadd.f32 0.0, %v5539
        %v5541 = vpop.f32.mrf.mxu0
        %v5542 = vadd.f32 0.0, %v5541
        %v5543 = vpop.f32.mrf.mxu0
        %v5544 = vadd.f32 0.0, %v5543
        %5545 = vmatprep.mubr.bf16.mxu0 %v3590
        %5546 = vmatmul.mubr.bf16.gmra.mxu0 %v3589
        %v5547 = vpop.f32.mrf.mxu0
        %v5548 = vadd.f32 0.0, %v5547
        %v5549 = vpop.f32.mrf.mxu0
        %v5550 = vadd.f32 0.0, %v5549
        %v5551 = vpop.f32.mrf.mxu0
        %v5552 = vadd.f32 0.0, %v5551
        %v5553 = vpop.f32.mrf.mxu0
        %v5554 = vadd.f32 0.0, %v5553
        %5555 = vmatprep.mubr.bf16.mxu0 %v3592
        %5556 = vmatmul.mubr.bf16.gmra.mxu0 %v3591
        %v5557 = vpop.f32.mrf.mxu0
        %v5558 = vadd.f32 0.0, %v5557
        %v5559 = vpop.f32.mrf.mxu0
        %v5560 = vadd.f32 0.0, %v5559
        %v5561 = vpop.f32.mrf.mxu0
        %v5562 = vadd.f32 0.0, %v5561
        %v5563 = vpop.f32.mrf.mxu0
        %v5564 = vadd.f32 0.0, %v5563
        %5565 = vmatprep.mubr.bf16.mxu0 %v3594
        %5566 = vmatmul.mubr.bf16.gmra.mxu0 %v3593
        %v5567 = vpop.f32.mrf.mxu0
        %v5568 = vadd.f32 0.0, %v5567
        %v5569 = vpop.f32.mrf.mxu0
        %v5570 = vadd.f32 0.0, %v5569
        %v5571 = vpop.f32.mrf.mxu0
        %v5572 = vadd.f32 0.0, %v5571
        %v5573 = vpop.f32.mrf.mxu0
        %v5574 = vadd.f32 0.0, %v5573
        %5575 = vmatprep.mubr.bf16.mxu0 %v3596
        %5576 = vmatmul.mubr.bf16.gmra.mxu0 %v3595
        %v5577 = vpop.f32.mrf.mxu0
        %v5578 = vadd.f32 0.0, %v5577
        %v5579 = vpop.f32.mrf.mxu0
        %v5580 = vadd.f32 0.0, %v5579
        %v5581 = vpop.f32.mrf.mxu0
        %v5582 = vadd.f32 0.0, %v5581
        %v5583 = vpop.f32.mrf.mxu0
        %v5584 = vadd.f32 0.0, %v5583
        %5585 = vmatprep.mubr.bf16.mxu0 %v3598
        %5586 = vmatmul.mubr.bf16.gmra.mxu0 %v3597
        %v5587 = vpop.f32.mrf.mxu0
        %v5588 = vadd.f32 0.0, %v5587
        %v5589 = vpop.f32.mrf.mxu0
        %v5590 = vadd.f32 0.0, %v5589
        %v5591 = vpop.f32.mrf.mxu0
        %v5592 = vadd.f32 0.0, %v5591
        %v5593 = vpop.f32.mrf.mxu0
        %v5594 = vadd.f32 0.0, %v5593
        %5595 = vmatprep.mubr.bf16.mxu0 %v3600
        %5596 = vmatmul.mubr.bf16.gmra.mxu0 %v3599
        %v5597 = vpop.f32.mrf.mxu0
        %v5598 = vadd.f32 0.0, %v5597
        %v5599 = vpop.f32.mrf.mxu0
        %v5600 = vadd.f32 0.0, %v5599
        %v5601 = vpop.f32.mrf.mxu0
        %v5602 = vadd.f32 0.0, %v5601
        %v5603 = vpop.f32.mrf.mxu0
        %v5604 = vadd.f32 0.0, %v5603
        %5605 = vdwg.mxu0
        %v5606 = vxor.u32 %v5528, 2147483648
        %v5607 = vxor.u32 %v5530, 2147483648
        %v5608 = vxor.u32 %v5532, 2147483648
        %v5609 = vxor.u32 %v5534, 2147483648
        %v5610 = vxor.u32 %v5538, 2147483648
        %v5611 = vxor.u32 %v5540, 2147483648
        %v5612 = vxor.u32 %v5542, 2147483648
        %v5613 = vxor.u32 %v5544, 2147483648
        %v5614 = vxor.u32 %v5548, 2147483648
        %v5615 = vxor.u32 %v5550, 2147483648
        %v5616 = vxor.u32 %v5552, 2147483648
        %v5617 = vxor.u32 %v5554, 2147483648
        %v5618 = vxor.u32 %v5558, 2147483648
        %v5619 = vxor.u32 %v5560, 2147483648
        %v5620 = vxor.u32 %v5562, 2147483648
        %v5621 = vxor.u32 %v5564, 2147483648
        %v5622 = vxor.u32 %v5568, 2147483648
        %v5623 = vxor.u32 %v5570, 2147483648
        %v5624 = vxor.u32 %v5572, 2147483648
        %v5625 = vxor.u32 %v5574, 2147483648
        %v5626 = vxor.u32 %v5578, 2147483648
        %v5627 = vxor.u32 %v5580, 2147483648
        %v5628 = vxor.u32 %v5582, 2147483648
        %v5629 = vxor.u32 %v5584, 2147483648
        %v5630 = vxor.u32 %v5588, 2147483648
        %v5631 = vxor.u32 %v5590, 2147483648
        %v5632 = vxor.u32 %v5592, 2147483648
        %v5633 = vxor.u32 %v5594, 2147483648
        %v5634 = vxor.u32 %v5598, 2147483648
        %v5635 = vxor.u32 %v5600, 2147483648
        %v5636 = vxor.u32 %v5602, 2147483648
        %v5637 = vxor.u32 %v5604, 2147483648
        %v5638 = vmul.f32 %v5606, 1.442695
        %v5639 = vpow.pop %v5638
        %v5640 = vmul.f32 %v5607, 1.442695
        %v5641 = vpow.pop %v5640
        %v5642 = vmul.f32 %v5608, 1.442695
        %v5643 = vpow.pop %v5642
        %v5644 = vmul.f32 %v5609, 1.442695
        %v5645 = vpow.pop %v5644
        %v5646 = vmul.f32 %v5610, 1.442695
        %v5647 = vpow.pop %v5646
        %v5648 = vmul.f32 %v5611, 1.442695
        %v5649 = vpow.pop %v5648
        %v5650 = vmul.f32 %v5612, 1.442695
        %v5651 = vpow.pop %v5650
        %v5652 = vmul.f32 %v5613, 1.442695
        %v5653 = vpow.pop %v5652
        %v5654 = vmul.f32 %v5614, 1.442695
        %v5655 = vpow.pop %v5654
        %v5656 = vmul.f32 %v5615, 1.442695
        %v5657 = vpow.pop %v5656
        %v5658 = vmul.f32 %v5616, 1.442695
        %v5659 = vpow.pop %v5658
        %v5660 = vmul.f32 %v5617, 1.442695
        %v5661 = vpow.pop %v5660
        %v5662 = vmul.f32 %v5618, 1.442695
        %v5663 = vpow.pop %v5662
        %v5664 = vmul.f32 %v5619, 1.442695
        %v5665 = vpow.pop %v5664
        %v5666 = vmul.f32 %v5620, 1.442695
        %v5667 = vpow.pop %v5666
        %v5668 = vmul.f32 %v5621, 1.442695
        %v5669 = vpow.pop %v5668
        %v5670 = vmul.f32 %v5622, 1.442695
        %v5671 = vpow.pop %v5670
        %v5672 = vmul.f32 %v5623, 1.442695
        %v5673 = vpow.pop %v5672
        %v5674 = vmul.f32 %v5624, 1.442695
        %v5675 = vpow.pop %v5674
        %v5676 = vmul.f32 %v5625, 1.442695
        %v5677 = vpow.pop %v5676
        %v5678 = vmul.f32 %v5626, 1.442695
        %v5679 = vpow.pop %v5678
        %v5680 = vmul.f32 %v5627, 1.442695
        %v5681 = vpow.pop %v5680
        %v5682 = vmul.f32 %v5628, 1.442695
        %v5683 = vpow.pop %v5682
        %v5684 = vmul.f32 %v5629, 1.442695
        %v5685 = vpow.pop %v5684
        %v5686 = vmul.f32 %v5630, 1.442695
        %v5687 = vpow.pop %v5686
        %v5688 = vmul.f32 %v5631, 1.442695
        %v5689 = vpow.pop %v5688
        %v5690 = vmul.f32 %v5632, 1.442695
        %v5691 = vpow.pop %v5690
        %v5692 = vmul.f32 %v5633, 1.442695
        %v5693 = vpow.pop %v5692
        %v5694 = vmul.f32 %v5634, 1.442695
        %v5695 = vpow.pop %v5694
        %v5696 = vmul.f32 %v5635, 1.442695
        %v5697 = vpow.pop %v5696
        %v5698 = vmul.f32 %v5636, 1.442695
        %v5699 = vpow.pop %v5698
        %v5700 = vmul.f32 %v5637, 1.442695
        %v5701 = vpow.pop %v5700
        %v5702 = vadd.f32 %v5639, 1.0
        %v5703 = vadd.f32 %v5641, 1.0
        %v5704 = vadd.f32 %v5643, 1.0
        %v5705 = vadd.f32 %v5645, 1.0
        %v5706 = vadd.f32 %v5647, 1.0
        %v5707 = vadd.f32 %v5649, 1.0
        %v5708 = vadd.f32 %v5651, 1.0
        %v5709 = vadd.f32 %v5653, 1.0
        %v5710 = vadd.f32 %v5655, 1.0
        %v5711 = vadd.f32 %v5657, 1.0
        %v5712 = vadd.f32 %v5659, 1.0
        %v5713 = vadd.f32 %v5661, 1.0
        %v5714 = vadd.f32 %v5663, 1.0
        %v5715 = vadd.f32 %v5665, 1.0
        %v5716 = vadd.f32 %v5667, 1.0
        %v5717 = vadd.f32 %v5669, 1.0
        %v5718 = vadd.f32 %v5671, 1.0
        %v5719 = vadd.f32 %v5673, 1.0
        %v5720 = vadd.f32 %v5675, 1.0
        %v5721 = vadd.f32 %v5677, 1.0
        %v5722 = vadd.f32 %v5679, 1.0
        %v5723 = vadd.f32 %v5681, 1.0
        %v5724 = vadd.f32 %v5683, 1.0
        %v5725 = vadd.f32 %v5685, 1.0
        %v5726 = vadd.f32 %v5687, 1.0
        %v5727 = vadd.f32 %v5689, 1.0
        %v5728 = vadd.f32 %v5691, 1.0
        %v5729 = vadd.f32 %v5693, 1.0
        %v5730 = vadd.f32 %v5695, 1.0
        %v5731 = vadd.f32 %v5697, 1.0
        %v5732 = vadd.f32 %v5699, 1.0
        %v5733 = vadd.f32 %v5701, 1.0
        %v5734 = vrcp.pop %v5702
        %v5735 = vmul.f32 1.0, %v5734
        %v5736 = vrcp.pop %v5703
        %v5737 = vmul.f32 1.0, %v5736
        %v5738 = vrcp.pop %v5704
        %v5739 = vmul.f32 1.0, %v5738
        %v5740 = vrcp.pop %v5705
        %v5741 = vmul.f32 1.0, %v5740
        %v5742 = vrcp.pop %v5706
        %v5743 = vmul.f32 1.0, %v5742
        %v5744 = vrcp.pop %v5707
        %v5745 = vmul.f32 1.0, %v5744
        %v5746 = vrcp.pop %v5708
        %v5747 = vmul.f32 1.0, %v5746
        %v5748 = vrcp.pop %v5709
        %v5749 = vmul.f32 1.0, %v5748
        %v5750 = vrcp.pop %v5710
        %v5751 = vmul.f32 1.0, %v5750
        %v5752 = vrcp.pop %v5711
        %v5753 = vmul.f32 1.0, %v5752
        %v5754 = vrcp.pop %v5712
        %v5755 = vmul.f32 1.0, %v5754
        %v5756 = vrcp.pop %v5713
        %v5757 = vmul.f32 1.0, %v5756
        %v5758 = vrcp.pop %v5714
        %v5759 = vmul.f32 1.0, %v5758
        %v5760 = vrcp.pop %v5715
        %v5761 = vmul.f32 1.0, %v5760
        %v5762 = vrcp.pop %v5716
        %v5763 = vmul.f32 1.0, %v5762
        %v5764 = vrcp.pop %v5717
        %v5765 = vmul.f32 1.0, %v5764
        %v5766 = vrcp.pop %v5718
        %v5767 = vmul.f32 1.0, %v5766
        %v5768 = vrcp.pop %v5719
        %v5769 = vmul.f32 1.0, %v5768
        %v5770 = vrcp.pop %v5720
        %v5771 = vmul.f32 1.0, %v5770
        %v5772 = vrcp.pop %v5721
        %v5773 = vmul.f32 1.0, %v5772
        %v5774 = vrcp.pop %v5722
        %v5775 = vmul.f32 1.0, %v5774
        %v5776 = vrcp.pop %v5723
        %v5777 = vmul.f32 1.0, %v5776
        %v5778 = vrcp.pop %v5724
        %v5779 = vmul.f32 1.0, %v5778
        %v5780 = vrcp.pop %v5725
        %v5781 = vmul.f32 1.0, %v5780
        %v5782 = vrcp.pop %v5726
        %v5783 = vmul.f32 1.0, %v5782
        %v5784 = vrcp.pop %v5727
        %v5785 = vmul.f32 1.0, %v5784
        %v5786 = vrcp.pop %v5728
        %v5787 = vmul.f32 1.0, %v5786
        %v5788 = vrcp.pop %v5729
        %v5789 = vmul.f32 1.0, %v5788
        %v5790 = vrcp.pop %v5730
        %v5791 = vmul.f32 1.0, %v5790
        %v5792 = vrcp.pop %v5731
        %v5793 = vmul.f32 1.0, %v5792
        %v5794 = vrcp.pop %v5732
        %v5795 = vmul.f32 1.0, %v5794
        %v5796 = vrcp.pop %v5733
        %v5797 = vmul.f32 1.0, %v5796
        %v5798 = vmul.f32 %v5528, %v5735
        %v5799 = vmul.f32 %v5530, %v5737
        %v5800 = vmul.f32 %v5532, %v5739
        %v5801 = vmul.f32 %v5534, %v5741
        %v5802 = vmul.f32 %v5538, %v5743
        %v5803 = vmul.f32 %v5540, %v5745
        %v5804 = vmul.f32 %v5542, %v5747
        %v5805 = vmul.f32 %v5544, %v5749
        %v5806 = vmul.f32 %v5548, %v5751
        %v5807 = vmul.f32 %v5550, %v5753
        %v5808 = vmul.f32 %v5552, %v5755
        %v5809 = vmul.f32 %v5554, %v5757
        %v5810 = vmul.f32 %v5558, %v5759
        %v5811 = vmul.f32 %v5560, %v5761
        %v5812 = vmul.f32 %v5562, %v5763
        %v5813 = vmul.f32 %v5564, %v5765
        %v5814 = vmul.f32 %v5568, %v5767
        %v5815 = vmul.f32 %v5570, %v5769
        %v5816 = vmul.f32 %v5572, %v5771
        %v5817 = vmul.f32 %v5574, %v5773
        %v5818 = vmul.f32 %v5578, %v5775
        %v5819 = vmul.f32 %v5580, %v5777
        %v5820 = vmul.f32 %v5582, %v5779
        %v5821 = vmul.f32 %v5584, %v5781
        %v5822 = vmul.f32 %v5588, %v5783
        %v5823 = vmul.f32 %v5590, %v5785
        %v5824 = vmul.f32 %v5592, %v5787
        %v5825 = vmul.f32 %v5594, %v5789
        %v5826 = vmul.f32 %v5598, %v5791
        %v5827 = vmul.f32 %v5600, %v5793
        %v5828 = vmul.f32 %v5602, %v5795
        %v5829 = vmul.f32 %v5604, %v5797
        %v5830 = vpack.c.bf16 %v5800, %v5798
        %v5831 = vpack.c.bf16 %v5801, %v5799
        %v5832 = vpack.c.bf16 %v5804, %v5802
        %v5833 = vpack.c.bf16 %v5805, %v5803
        %v5834 = vpack.c.bf16 %v5808, %v5806
        %v5835 = vpack.c.bf16 %v5809, %v5807
        %v5836 = vpack.c.bf16 %v5812, %v5810
        %v5837 = vpack.c.bf16 %v5813, %v5811
        %v5838 = vpack.c.bf16 %v5816, %v5814
        %v5839 = vpack.c.bf16 %v5817, %v5815
        %v5840 = vpack.c.bf16 %v5820, %v5818
        %v5841 = vpack.c.bf16 %v5821, %v5819
        %v5842 = vpack.c.bf16 %v5824, %v5822
        %v5843 = vpack.c.bf16 %v5825, %v5823
        %v5844 = vpack.c.bf16 %v5828, %v5826
        %v5845 = vpack.c.bf16 %v5829, %v5827
        %v5846 = vld [vmem:[%s629 + $0x200] sm:$0xff]
        %v5847 = vld [vmem:[%s629 + $0x208] sm:$0xff]
        %v5848 = vld [vmem:[%s629 + $0x210] sm:$0xff]
        %v5849 = vld [vmem:[%s629 + $0x218] sm:$0xff]
        %v5850 = vld [vmem:[%s629 + $0x220] sm:$0xff]
        %v5851 = vld [vmem:[%s629 + $0x228] sm:$0xff]
        %v5852 = vld [vmem:[%s629 + $0x230] sm:$0xff]
        %v5853 = vld [vmem:[%s629 + $0x238] sm:$0xff]
        %v5854 = vld [vmem:[%s629 + $0x240] sm:$0xff]
        %v5855 = vld [vmem:[%s629 + $0x248] sm:$0xff]
        %v5856 = vld [vmem:[%s629 + $0x250] sm:$0xff]
        %v5857 = vld [vmem:[%s629 + $0x258] sm:$0xff]
        %v5858 = vld [vmem:[%s629 + $0x260] sm:$0xff]
        %v5859 = vld [vmem:[%s629 + $0x268] sm:$0xff]
        %v5860 = vld [vmem:[%s629 + $0x270] sm:$0xff]
        %v5861 = vld [vmem:[%s629 + $0x278] sm:$0xff]
        %v5862 = vld [vmem:[%s629 + $0x280] sm:$0xff]
        %v5863 = vld [vmem:[%s629 + $0x288] sm:$0xff]
        %v5864 = vld [vmem:[%s629 + $0x290] sm:$0xff]
        %v5865 = vld [vmem:[%s629 + $0x298] sm:$0xff]
        %v5866 = vld [vmem:[%s629 + $0x2a0] sm:$0xff]
        %v5867 = vld [vmem:[%s629 + $0x2a8] sm:$0xff]
        %v5868 = vld [vmem:[%s629 + $0x2b0] sm:$0xff]
        %v5869 = vld [vmem:[%s629 + $0x2b8] sm:$0xff]
        %v5870 = vld [vmem:[%s629 + $0x2c0] sm:$0xff]
        %v5871 = vld [vmem:[%s629 + $0x2c8] sm:$0xff]
        %v5872 = vld [vmem:[%s629 + $0x2d0] sm:$0xff]
        %v5873 = vld [vmem:[%s629 + $0x2d8] sm:$0xff]
        %v5874 = vld [vmem:[%s629 + $0x2e0] sm:$0xff]
        %v5875 = vld [vmem:[%s629 + $0x2e8] sm:$0xff]
        %v5876 = vld [vmem:[%s629 + $0x2f0] sm:$0xff]
        %v5877 = vld [vmem:[%s629 + $0x2f8] sm:$0xff]
        %v5910 = vunpack.c.l.b16 %v5846
        %v5911 = vunpack.c.h.b16 %v5846
        %v5912 = vunpack.c.l.b16 %v5847
        %v5913 = vunpack.c.h.b16 %v5847
        %v5914 = vunpack.c.l.b16 %v5848
        %v5915 = vunpack.c.h.b16 %v5848
        %v5916 = vunpack.c.l.b16 %v5849
        %v5917 = vunpack.c.h.b16 %v5849
        %v5918 = vunpack.c.l.b16 %v5850
        %v5919 = vunpack.c.h.b16 %v5850
        %v5920 = vunpack.c.l.b16 %v5851
        %v5921 = vunpack.c.h.b16 %v5851
        %v5922 = vunpack.c.l.b16 %v5852
        %v5923 = vunpack.c.h.b16 %v5852
        %v5924 = vunpack.c.l.b16 %v5853
        %v5925 = vunpack.c.h.b16 %v5853
        %v5926 = vunpack.c.l.b16 %v5854
        %v5927 = vunpack.c.h.b16 %v5854
        %v5928 = vunpack.c.l.b16 %v5855
        %v5929 = vunpack.c.h.b16 %v5855
        %v5930 = vunpack.c.l.b16 %v5856
        %v5931 = vunpack.c.h.b16 %v5856
        %v5932 = vunpack.c.l.b16 %v5857
        %v5933 = vunpack.c.h.b16 %v5857
        %v5934 = vunpack.c.l.b16 %v5858
        %v5935 = vunpack.c.h.b16 %v5858
        %v5936 = vunpack.c.l.b16 %v5859
        %v5937 = vunpack.c.h.b16 %v5859
        %v5938 = vunpack.c.l.b16 %v5860
        %v5939 = vunpack.c.h.b16 %v5860
        %v5940 = vunpack.c.l.b16 %v5861
        %v5941 = vunpack.c.h.b16 %v5861
        %v5942 = vunpack.c.l.b16 %v5862
        %v5943 = vunpack.c.h.b16 %v5862
        %v5944 = vunpack.c.l.b16 %v5863
        %v5945 = vunpack.c.h.b16 %v5863
        %v5946 = vunpack.c.l.b16 %v5864
        %v5947 = vunpack.c.h.b16 %v5864
        %v5948 = vunpack.c.l.b16 %v5865
        %v5949 = vunpack.c.h.b16 %v5865
        %v5950 = vunpack.c.l.b16 %v5866
        %v5951 = vunpack.c.h.b16 %v5866
        %v5952 = vunpack.c.l.b16 %v5867
        %v5953 = vunpack.c.h.b16 %v5867
        %v5954 = vunpack.c.l.b16 %v5868
        %v5955 = vunpack.c.h.b16 %v5868
        %v5956 = vunpack.c.l.b16 %v5869
        %v5957 = vunpack.c.h.b16 %v5869
        %v5958 = vunpack.c.l.b16 %v5870
        %v5959 = vunpack.c.h.b16 %v5870
        %v5960 = vunpack.c.l.b16 %v5871
        %v5961 = vunpack.c.h.b16 %v5871
        %v5962 = vunpack.c.l.b16 %v5872
        %v5963 = vunpack.c.h.b16 %v5872
        %v5964 = vunpack.c.l.b16 %v5873
        %v5965 = vunpack.c.h.b16 %v5873
        %v5966 = vunpack.c.l.b16 %v5874
        %v5967 = vunpack.c.h.b16 %v5874
        %v5968 = vunpack.c.l.b16 %v5875
        %v5969 = vunpack.c.h.b16 %v5875
        %v5970 = vunpack.c.l.b16 %v5876
        %v5971 = vunpack.c.h.b16 %v5876
        %v5972 = vunpack.c.l.b16 %v5877
        %v5973 = vunpack.c.h.b16 %v5877
        %v5974 = vpack.c.b16 %v5912, %v5910
        %v5975 = vpack.c.b16 %v5913, %v5911
        %v5976 = vpack.c.b16 %v5916, %v5914
        %v5977 = vpack.c.b16 %v5917, %v5915
        %v5978 = vpack.c.b16 %v5920, %v5918
        %v5979 = vpack.c.b16 %v5921, %v5919
        %v5980 = vpack.c.b16 %v5924, %v5922
        %v5981 = vpack.c.b16 %v5925, %v5923
        %v5982 = vpack.c.b16 %v5928, %v5926
        %v5983 = vpack.c.b16 %v5929, %v5927
        %v5984 = vpack.c.b16 %v5932, %v5930
        %v5985 = vpack.c.b16 %v5933, %v5931
        %v5986 = vpack.c.b16 %v5936, %v5934
        %v5987 = vpack.c.b16 %v5937, %v5935
        %v5988 = vpack.c.b16 %v5940, %v5938
        %v5989 = vpack.c.b16 %v5941, %v5939
        %v5990 = vpack.c.b16 %v5944, %v5942
        %v5991 = vpack.c.b16 %v5945, %v5943
        %v5992 = vpack.c.b16 %v5948, %v5946
        %v5993 = vpack.c.b16 %v5949, %v5947
        %v5994 = vpack.c.b16 %v5952, %v5950
        %v5995 = vpack.c.b16 %v5953, %v5951
        %v5996 = vpack.c.b16 %v5956, %v5954
        %v5997 = vpack.c.b16 %v5957, %v5955
        %v5998 = vpack.c.b16 %v5960, %v5958
        %v5999 = vpack.c.b16 %v5961, %v5959
        %v6000 = vpack.c.b16 %v5964, %v5962
        %v6001 = vpack.c.b16 %v5965, %v5963
        %v6002 = vpack.c.b16 %v5968, %v5966
        %v6003 = vpack.c.b16 %v5969, %v5967
        %v6004 = vpack.c.b16 %v5972, %v5970
        %v6005 = vpack.c.b16 %v5973, %v5971
        %6038 = vmatprep.subr.bf16.mxu0 %v5989
        %6039 = vmatpush1.bf16.msra.mxu0 %v5988
        %6040 = vmatprep.subr.bf16.mxu0 %v5987
        %6041 = vmatpush1.bf16.msra.mxu0 %v5986
        %6042 = vmatprep.subr.bf16.mxu0 %v5985
        %6043 = vmatpush1.bf16.msra.mxu0 %v5984
        %6044 = vmatprep.subr.bf16.mxu0 %v5983
        %6045 = vmatpush1.bf16.msra.mxu0 %v5982
        %6046 = vmatprep.subr.bf16.mxu0 %v5981
        %6047 = vmatpush1.bf16.msra.mxu0 %v5980
        %6048 = vmatprep.subr.bf16.mxu0 %v5979
        %6049 = vmatpush1.bf16.msra.mxu0 %v5978
        %6050 = vmatprep.subr.bf16.mxu0 %v5977
        %6051 = vmatpush1.bf16.msra.mxu0 %v5976
        %6052 = vmatprep.subr.bf16.mxu0 %v5975
        %6053 = vmatpush1.bf16.msra.mxu0 %v5974
        %6054 = vmatprep.subr.bf16.mxu0 %v6005
        %6055 = vmatpush2.bf16.msra.mxu0 %v6004
        %6056 = vmatprep.subr.bf16.mxu0 %v6003
        %6057 = vmatpush2.bf16.msra.mxu0 %v6002
        %6058 = vmatprep.subr.bf16.mxu0 %v6001
        %6059 = vmatpush2.bf16.msra.mxu0 %v6000
        %6060 = vmatprep.subr.bf16.mxu0 %v5999
        %6061 = vmatpush2.bf16.msra.mxu0 %v5998
        %6062 = vmatprep.subr.bf16.mxu0 %v5997
        %6063 = vmatpush2.bf16.msra.mxu0 %v5996
        %6064 = vmatprep.subr.bf16.mxu0 %v5995
        %6065 = vmatpush2.bf16.msra.mxu0 %v5994
        %6066 = vmatprep.subr.bf16.mxu0 %v5993
        %6067 = vmatpush2.bf16.msra.mxu0 %v5992
        %6068 = vmatprep.subr.bf16.mxu0 %v5991
        %6069 = vmatpush2.bf16.msra.mxu0 %v5990
        %6070 = vmatprep.mubr.bf16.mxu0 %v5831
        %6071 = vmatmul.mubr.bf16.gmra.mxu0 %v5830
        %v6072 = vpop.f32.mrf.mxu0
        %v6073 = vadd.f32 0.0, %v6072
        %v6074 = vpop.f32.mrf.mxu0
        %v6075 = vadd.f32 0.0, %v6074
        %v6076 = vpop.f32.mrf.mxu0
        %v6077 = vadd.f32 0.0, %v6076
        %v6078 = vpop.f32.mrf.mxu0
        %v6079 = vadd.f32 0.0, %v6078
        %6080 = vmatprep.mubr.bf16.mxu0 %v5833
        %6081 = vmatmul.mubr.bf16.gmra.mxu0 %v5832
        %v6082 = vpop.f32.mrf.mxu0
        %v6083 = vadd.f32 0.0, %v6082
        %v6084 = vpop.f32.mrf.mxu0
        %v6085 = vadd.f32 0.0, %v6084
        %v6086 = vpop.f32.mrf.mxu0
        %v6087 = vadd.f32 0.0, %v6086
        %v6088 = vpop.f32.mrf.mxu0
        %v6089 = vadd.f32 0.0, %v6088
        %6090 = vmatprep.mubr.bf16.mxu0 %v5835
        %6091 = vmatmul.mubr.bf16.gmra.mxu0 %v5834
        %v6092 = vpop.f32.mrf.mxu0
        %v6093 = vadd.f32 0.0, %v6092
        %v6094 = vpop.f32.mrf.mxu0
        %v6095 = vadd.f32 0.0, %v6094
        %v6096 = vpop.f32.mrf.mxu0
        %v6097 = vadd.f32 0.0, %v6096
        %v6098 = vpop.f32.mrf.mxu0
        %v6099 = vadd.f32 0.0, %v6098
        %6100 = vmatprep.mubr.bf16.mxu0 %v5837
        %6101 = vmatmul.mubr.bf16.gmra.mxu0 %v5836
        %v6102 = vpop.f32.mrf.mxu0
        %v6103 = vadd.f32 0.0, %v6102
        %v6104 = vpop.f32.mrf.mxu0
        %v6105 = vadd.f32 0.0, %v6104
        %v6106 = vpop.f32.mrf.mxu0
        %v6107 = vadd.f32 0.0, %v6106
        %v6108 = vpop.f32.mrf.mxu0
        %v6109 = vadd.f32 0.0, %v6108
        %6110 = vmatprep.mubr.bf16.mxu0 %v5839
        %6111 = vmatmul.mubr.bf16.gmra.mxu0 %v5838
        %v6112 = vpop.f32.mrf.mxu0
        %v6113 = vadd.f32 0.0, %v6112
        %v6114 = vpop.f32.mrf.mxu0
        %v6115 = vadd.f32 0.0, %v6114
        %v6116 = vpop.f32.mrf.mxu0
        %v6117 = vadd.f32 0.0, %v6116
        %v6118 = vpop.f32.mrf.mxu0
        %v6119 = vadd.f32 0.0, %v6118
        %6120 = vmatprep.mubr.bf16.mxu0 %v5841
        %6121 = vmatmul.mubr.bf16.gmra.mxu0 %v5840
        %v6122 = vpop.f32.mrf.mxu0
        %v6123 = vadd.f32 0.0, %v6122
        %v6124 = vpop.f32.mrf.mxu0
        %v6125 = vadd.f32 0.0, %v6124
        %v6126 = vpop.f32.mrf.mxu0
        %v6127 = vadd.f32 0.0, %v6126
        %v6128 = vpop.f32.mrf.mxu0
        %v6129 = vadd.f32 0.0, %v6128
        %6130 = vmatprep.mubr.bf16.mxu0 %v5843
        %6131 = vmatmul.mubr.bf16.gmra.mxu0 %v5842
        %v6132 = vpop.f32.mrf.mxu0
        %v6133 = vadd.f32 0.0, %v6132
        %v6134 = vpop.f32.mrf.mxu0
        %v6135 = vadd.f32 0.0, %v6134
        %v6136 = vpop.f32.mrf.mxu0
        %v6137 = vadd.f32 0.0, %v6136
        %v6138 = vpop.f32.mrf.mxu0
        %v6139 = vadd.f32 0.0, %v6138
        %6140 = vmatprep.mubr.bf16.mxu0 %v5845
        %6141 = vmatmul.mubr.bf16.gmra.mxu0 %v5844
        %v6142 = vpop.f32.mrf.mxu0
        %v6143 = vadd.f32 0.0, %v6142
        %v6144 = vpop.f32.mrf.mxu0
        %v6145 = vadd.f32 0.0, %v6144
        %v6146 = vpop.f32.mrf.mxu0
        %v6147 = vadd.f32 0.0, %v6146
        %v6148 = vpop.f32.mrf.mxu0
        %v6149 = vadd.f32 0.0, %v6148
        %6150 = vdwg.mxu0
        %v6151 = vadd.f32 %v5223, %v6073
        %v6152 = vadd.f32 %v5225, %v6075
        %v6153 = vadd.f32 %v5227, %v6077
        %v6154 = vadd.f32 %v5229, %v6079
        %v6155 = vadd.f32 %v5233, %v6083
        %v6156 = vadd.f32 %v5235, %v6085
        %v6157 = vadd.f32 %v5237, %v6087
        %v6158 = vadd.f32 %v5239, %v6089
        %v6159 = vadd.f32 %v5243, %v6093
        %v6160 = vadd.f32 %v5245, %v6095
        %v6161 = vadd.f32 %v5247, %v6097
        %v6162 = vadd.f32 %v5249, %v6099
        %v6163 = vadd.f32 %v5253, %v6103
        %v6164 = vadd.f32 %v5255, %v6105
        %v6165 = vadd.f32 %v5257, %v6107
        %v6166 = vadd.f32 %v5259, %v6109
        %v6167 = vadd.f32 %v5263, %v6113
        %v6168 = vadd.f32 %v5265, %v6115
        %v6169 = vadd.f32 %v5267, %v6117
        %v6170 = vadd.f32 %v5269, %v6119
        %v6171 = vadd.f32 %v5273, %v6123
        %v6172 = vadd.f32 %v5275, %v6125
        %v6173 = vadd.f32 %v5277, %v6127
        %v6174 = vadd.f32 %v5279, %v6129
        %v6175 = vadd.f32 %v5283, %v6133
        %v6176 = vadd.f32 %v5285, %v6135
        %v6177 = vadd.f32 %v5287, %v6137
        %v6178 = vadd.f32 %v5289, %v6139
        %v6179 = vadd.f32 %v5293, %v6143
        %v6180 = vadd.f32 %v5295, %v6145
        %v6181 = vadd.f32 %v5297, %v6147
        %v6182 = vadd.f32 %v5299, %v6149
        %v6183 = vld [vmem:[%s620 + $0x18] sm:$0xff]
        %v6184 = vld [vmem:[%s620 + $0x38] sm:$0xff]
        %v6185 = vld [vmem:[%s620 + $0x58] sm:$0xff]
        %v6186 = vld [vmem:[%s620 + $0x78] sm:$0xff]
        %v6187 = vld [vmem:[%s620 + $0x98] sm:$0xff]
        %v6188 = vld [vmem:[%s620 + $0xb8] sm:$0xff]
        %v6189 = vld [vmem:[%s620 + $0xd8] sm:$0xff]
        %v6190 = vld [vmem:[%s620 + $0xf8] sm:$0xff]
        %v6191 = vld [vmem:[%s620 + $0x118] sm:$0xff]
        %v6192 = vld [vmem:[%s620 + $0x138] sm:$0xff]
        %v6193 = vld [vmem:[%s620 + $0x158] sm:$0xff]
        %v6194 = vld [vmem:[%s620 + $0x178] sm:$0xff]
        %v6195 = vld [vmem:[%s620 + $0x198] sm:$0xff]
        %v6196 = vld [vmem:[%s620 + $0x1b8] sm:$0xff]
        %v6197 = vld [vmem:[%s620 + $0x1d8] sm:$0xff]
        %v6198 = vld [vmem:[%s620 + $0x1f8] sm:$0xff]
        %v6199 = vld [vmem:[%s620 + $0x218] sm:$0xff]
        %v6200 = vld [vmem:[%s620 + $0x238] sm:$0xff]
        %v6201 = vld [vmem:[%s620 + $0x258] sm:$0xff]
        %v6202 = vld [vmem:[%s620 + $0x278] sm:$0xff]
        %v6203 = vld [vmem:[%s620 + $0x298] sm:$0xff]
        %v6204 = vld [vmem:[%s620 + $0x2b8] sm:$0xff]
        %v6205 = vld [vmem:[%s620 + $0x2d8] sm:$0xff]
        %v6206 = vld [vmem:[%s620 + $0x2f8] sm:$0xff]
        %v6207 = vld [vmem:[%s620 + $0x318] sm:$0xff]
        %v6208 = vld [vmem:[%s620 + $0x338] sm:$0xff]
        %v6209 = vld [vmem:[%s620 + $0x358] sm:$0xff]
        %v6210 = vld [vmem:[%s620 + $0x378] sm:$0xff]
        %v6211 = vld [vmem:[%s620 + $0x398] sm:$0xff]
        %v6212 = vld [vmem:[%s620 + $0x3b8] sm:$0xff]
        %v6213 = vld [vmem:[%s620 + $0x3d8] sm:$0xff]
        %v6214 = vld [vmem:[%s620 + $0x3f8] sm:$0xff]
        %v6247 = vunpack.c.l.b16 %v6183
        %v6248 = vunpack.c.h.b16 %v6183
        %v6249 = vunpack.c.l.b16 %v6184
        %v6250 = vunpack.c.h.b16 %v6184
        %v6251 = vunpack.c.l.b16 %v6185
        %v6252 = vunpack.c.h.b16 %v6185
        %v6253 = vunpack.c.l.b16 %v6186
        %v6254 = vunpack.c.h.b16 %v6186
        %v6255 = vunpack.c.l.b16 %v6187
        %v6256 = vunpack.c.h.b16 %v6187
        %v6257 = vunpack.c.l.b16 %v6188
        %v6258 = vunpack.c.h.b16 %v6188
        %v6259 = vunpack.c.l.b16 %v6189
        %v6260 = vunpack.c.h.b16 %v6189
        %v6261 = vunpack.c.l.b16 %v6190
        %v6262 = vunpack.c.h.b16 %v6190
        %v6263 = vunpack.c.l.b16 %v6191
        %v6264 = vunpack.c.h.b16 %v6191
        %v6265 = vunpack.c.l.b16 %v6192
        %v6266 = vunpack.c.h.b16 %v6192
        %v6267 = vunpack.c.l.b16 %v6193
        %v6268 = vunpack.c.h.b16 %v6193
        %v6269 = vunpack.c.l.b16 %v6194
        %v6270 = vunpack.c.h.b16 %v6194
        %v6271 = vunpack.c.l.b16 %v6195
        %v6272 = vunpack.c.h.b16 %v6195
        %v6273 = vunpack.c.l.b16 %v6196
        %v6274 = vunpack.c.h.b16 %v6196
        %v6275 = vunpack.c.l.b16 %v6197
        %v6276 = vunpack.c.h.b16 %v6197
        %v6277 = vunpack.c.l.b16 %v6198
        %v6278 = vunpack.c.h.b16 %v6198
        %v6279 = vunpack.c.l.b16 %v6199
        %v6280 = vunpack.c.h.b16 %v6199
        %v6281 = vunpack.c.l.b16 %v6200
        %v6282 = vunpack.c.h.b16 %v6200
        %v6283 = vunpack.c.l.b16 %v6201
        %v6284 = vunpack.c.h.b16 %v6201
        %v6285 = vunpack.c.l.b16 %v6202
        %v6286 = vunpack.c.h.b16 %v6202
        %v6287 = vunpack.c.l.b16 %v6203
        %v6288 = vunpack.c.h.b16 %v6203
        %v6289 = vunpack.c.l.b16 %v6204
        %v6290 = vunpack.c.h.b16 %v6204
        %v6291 = vunpack.c.l.b16 %v6205
        %v6292 = vunpack.c.h.b16 %v6205
        %v6293 = vunpack.c.l.b16 %v6206
        %v6294 = vunpack.c.h.b16 %v6206
        %v6295 = vunpack.c.l.b16 %v6207
        %v6296 = vunpack.c.h.b16 %v6207
        %v6297 = vunpack.c.l.b16 %v6208
        %v6298 = vunpack.c.h.b16 %v6208
        %v6299 = vunpack.c.l.b16 %v6209
        %v6300 = vunpack.c.h.b16 %v6209
        %v6301 = vunpack.c.l.b16 %v6210
        %v6302 = vunpack.c.h.b16 %v6210
        %v6303 = vunpack.c.l.b16 %v6211
        %v6304 = vunpack.c.h.b16 %v6211
        %v6305 = vunpack.c.l.b16 %v6212
        %v6306 = vunpack.c.h.b16 %v6212
        %v6307 = vunpack.c.l.b16 %v6213
        %v6308 = vunpack.c.h.b16 %v6213
        %v6309 = vunpack.c.l.b16 %v6214
        %v6310 = vunpack.c.h.b16 %v6214
        %v6311 = vpack.c.b16 %v6249, %v6247
        %v6312 = vpack.c.b16 %v6250, %v6248
        %v6313 = vpack.c.b16 %v6253, %v6251
        %v6314 = vpack.c.b16 %v6254, %v6252
        %v6315 = vpack.c.b16 %v6257, %v6255
        %v6316 = vpack.c.b16 %v6258, %v6256
        %v6317 = vpack.c.b16 %v6261, %v6259
        %v6318 = vpack.c.b16 %v6262, %v6260
        %v6319 = vpack.c.b16 %v6265, %v6263
        %v6320 = vpack.c.b16 %v6266, %v6264
        %v6321 = vpack.c.b16 %v6269, %v6267
        %v6322 = vpack.c.b16 %v6270, %v6268
        %v6323 = vpack.c.b16 %v6273, %v6271
        %v6324 = vpack.c.b16 %v6274, %v6272
        %v6325 = vpack.c.b16 %v6277, %v6275
        %v6326 = vpack.c.b16 %v6278, %v6276
        %v6327 = vpack.c.b16 %v6281, %v6279
        %v6328 = vpack.c.b16 %v6282, %v6280
        %v6329 = vpack.c.b16 %v6285, %v6283
        %v6330 = vpack.c.b16 %v6286, %v6284
        %v6331 = vpack.c.b16 %v6289, %v6287
        %v6332 = vpack.c.b16 %v6290, %v6288
        %v6333 = vpack.c.b16 %v6293, %v6291
        %v6334 = vpack.c.b16 %v6294, %v6292
        %v6335 = vpack.c.b16 %v6297, %v6295
        %v6336 = vpack.c.b16 %v6298, %v6296
        %v6337 = vpack.c.b16 %v6301, %v6299
        %v6338 = vpack.c.b16 %v6302, %v6300
        %v6339 = vpack.c.b16 %v6305, %v6303
        %v6340 = vpack.c.b16 %v6306, %v6304
        %v6341 = vpack.c.b16 %v6309, %v6307
        %v6342 = vpack.c.b16 %v6310, %v6308
        %6375 = vmatprep.subr.bf16.mxu0 %v6326
        %6376 = vmatpush1.bf16.msra.mxu0 %v6325
        %6377 = vmatprep.subr.bf16.mxu0 %v6324
        %6378 = vmatpush1.bf16.msra.mxu0 %v6323
        %6379 = vmatprep.subr.bf16.mxu0 %v6322
        %6380 = vmatpush1.bf16.msra.mxu0 %v6321
        %6381 = vmatprep.subr.bf16.mxu0 %v6320
        %6382 = vmatpush1.bf16.msra.mxu0 %v6319
        %6383 = vmatprep.subr.bf16.mxu0 %v6318
        %6384 = vmatpush1.bf16.msra.mxu0 %v6317
        %6385 = vmatprep.subr.bf16.mxu0 %v6316
        %6386 = vmatpush1.bf16.msra.mxu0 %v6315
        %6387 = vmatprep.subr.bf16.mxu0 %v6314
        %6388 = vmatpush1.bf16.msra.mxu0 %v6313
        %6389 = vmatprep.subr.bf16.mxu0 %v6312
        %6390 = vmatpush1.bf16.msra.mxu0 %v6311
        %6391 = vmatprep.subr.bf16.mxu0 %v6342
        %6392 = vmatpush2.bf16.msra.mxu0 %v6341
        %6393 = vmatprep.subr.bf16.mxu0 %v6340
        %6394 = vmatpush2.bf16.msra.mxu0 %v6339
        %6395 = vmatprep.subr.bf16.mxu0 %v6338
        %6396 = vmatpush2.bf16.msra.mxu0 %v6337
        %6397 = vmatprep.subr.bf16.mxu0 %v6336
        %6398 = vmatpush2.bf16.msra.mxu0 %v6335
        %6399 = vmatprep.subr.bf16.mxu0 %v6334
        %6400 = vmatpush2.bf16.msra.mxu0 %v6333
        %6401 = vmatprep.subr.bf16.mxu0 %v6332
        %6402 = vmatpush2.bf16.msra.mxu0 %v6331
        %6403 = vmatprep.subr.bf16.mxu0 %v6330
        %6404 = vmatpush2.bf16.msra.mxu0 %v6329
        %6405 = vmatprep.subr.bf16.mxu0 %v6328
        %6406 = vmatpush2.bf16.msra.mxu0 %v6327
        %6407 = vmatprep.mubr.bf16.mxu0 %v3586
        %6408 = vmatmul.mubr.bf16.gmra.mxu0 %v3585
        %v6409 = vpop.f32.mrf.mxu0
        %v6410 = vadd.f32 0.0, %v6409
        %v6411 = vpop.f32.mrf.mxu0
        %v6412 = vadd.f32 0.0, %v6411
        %v6413 = vpop.f32.mrf.mxu0
        %v6414 = vadd.f32 0.0, %v6413
        %v6415 = vpop.f32.mrf.mxu0
        %v6416 = vadd.f32 0.0, %v6415
        %6417 = vmatprep.mubr.bf16.mxu0 %v3588
        %6418 = vmatmul.mubr.bf16.gmra.mxu0 %v3587
        %v6419 = vpop.f32.mrf.mxu0
        %v6420 = vadd.f32 0.0, %v6419
        %v6421 = vpop.f32.mrf.mxu0
        %v6422 = vadd.f32 0.0, %v6421
        %v6423 = vpop.f32.mrf.mxu0
        %v6424 = vadd.f32 0.0, %v6423
        %v6425 = vpop.f32.mrf.mxu0
        %v6426 = vadd.f32 0.0, %v6425
        %6427 = vmatprep.mubr.bf16.mxu0 %v3590
        %6428 = vmatmul.mubr.bf16.gmra.mxu0 %v3589
        %v6429 = vpop.f32.mrf.mxu0
        %v6430 = vadd.f32 0.0, %v6429
        %v6431 = vpop.f32.mrf.mxu0
        %v6432 = vadd.f32 0.0, %v6431
        %v6433 = vpop.f32.mrf.mxu0
        %v6434 = vadd.f32 0.0, %v6433
        %v6435 = vpop.f32.mrf.mxu0
        %v6436 = vadd.f32 0.0, %v6435
        %6437 = vmatprep.mubr.bf16.mxu0 %v3592
        %6438 = vmatmul.mubr.bf16.gmra.mxu0 %v3591
        %v6439 = vpop.f32.mrf.mxu0
        %v6440 = vadd.f32 0.0, %v6439
        %v6441 = vpop.f32.mrf.mxu0
        %v6442 = vadd.f32 0.0, %v6441
        %v6443 = vpop.f32.mrf.mxu0
        %v6444 = vadd.f32 0.0, %v6443
        %v6445 = vpop.f32.mrf.mxu0
        %v6446 = vadd.f32 0.0, %v6445
        %6447 = vmatprep.mubr.bf16.mxu0 %v3594
        %6448 = vmatmul.mubr.bf16.gmra.mxu0 %v3593
        %v6449 = vpop.f32.mrf.mxu0
        %v6450 = vadd.f32 0.0, %v6449
        %v6451 = vpop.f32.mrf.mxu0
        %v6452 = vadd.f32 0.0, %v6451
        %v6453 = vpop.f32.mrf.mxu0
        %v6454 = vadd.f32 0.0, %v6453
        %v6455 = vpop.f32.mrf.mxu0
        %v6456 = vadd.f32 0.0, %v6455
        %6457 = vmatprep.mubr.bf16.mxu0 %v3596
        %6458 = vmatmul.mubr.bf16.gmra.mxu0 %v3595
        %v6459 = vpop.f32.mrf.mxu0
        %v6460 = vadd.f32 0.0, %v6459
        %v6461 = vpop.f32.mrf.mxu0
        %v6462 = vadd.f32 0.0, %v6461
        %v6463 = vpop.f32.mrf.mxu0
        %v6464 = vadd.f32 0.0, %v6463
        %v6465 = vpop.f32.mrf.mxu0
        %v6466 = vadd.f32 0.0, %v6465
        %6467 = vmatprep.mubr.bf16.mxu0 %v3598
        %6468 = vmatmul.mubr.bf16.gmra.mxu0 %v3597
        %v6469 = vpop.f32.mrf.mxu0
        %v6470 = vadd.f32 0.0, %v6469
        %v6471 = vpop.f32.mrf.mxu0
        %v6472 = vadd.f32 0.0, %v6471
        %v6473 = vpop.f32.mrf.mxu0
        %v6474 = vadd.f32 0.0, %v6473
        %v6475 = vpop.f32.mrf.mxu0
        %v6476 = vadd.f32 0.0, %v6475
        %6477 = vmatprep.mubr.bf16.mxu0 %v3600
        %6478 = vmatmul.mubr.bf16.gmra.mxu0 %v3599
        %v6479 = vpop.f32.mrf.mxu0
        %v6480 = vadd.f32 0.0, %v6479
        %v6481 = vpop.f32.mrf.mxu0
        %v6482 = vadd.f32 0.0, %v6481
        %v6483 = vpop.f32.mrf.mxu0
        %v6484 = vadd.f32 0.0, %v6483
        %v6485 = vpop.f32.mrf.mxu0
        %v6486 = vadd.f32 0.0, %v6485
        %6487 = vdwg.mxu0
        %v6488 = vxor.u32 %v6410, 2147483648
        %v6489 = vxor.u32 %v6412, 2147483648
        %v6490 = vxor.u32 %v6414, 2147483648
        %v6491 = vxor.u32 %v6416, 2147483648
        %v6492 = vxor.u32 %v6420, 2147483648
        %v6493 = vxor.u32 %v6422, 2147483648
        %v6494 = vxor.u32 %v6424, 2147483648
        %v6495 = vxor.u32 %v6426, 2147483648
        %v6496 = vxor.u32 %v6430, 2147483648
        %v6497 = vxor.u32 %v6432, 2147483648
        %v6498 = vxor.u32 %v6434, 2147483648
        %v6499 = vxor.u32 %v6436, 2147483648
        %v6500 = vxor.u32 %v6440, 2147483648
        %v6501 = vxor.u32 %v6442, 2147483648
        %v6502 = vxor.u32 %v6444, 2147483648
        %v6503 = vxor.u32 %v6446, 2147483648
        %v6504 = vxor.u32 %v6450, 2147483648
        %v6505 = vxor.u32 %v6452, 2147483648
        %v6506 = vxor.u32 %v6454, 2147483648
        %v6507 = vxor.u32 %v6456, 2147483648
        %v6508 = vxor.u32 %v6460, 2147483648
        %v6509 = vxor.u32 %v6462, 2147483648
        %v6510 = vxor.u32 %v6464, 2147483648
        %v6511 = vxor.u32 %v6466, 2147483648
        %v6512 = vxor.u32 %v6470, 2147483648
        %v6513 = vxor.u32 %v6472, 2147483648
        %v6514 = vxor.u32 %v6474, 2147483648
        %v6515 = vxor.u32 %v6476, 2147483648
        %v6516 = vxor.u32 %v6480, 2147483648
        %v6517 = vxor.u32 %v6482, 2147483648
        %v6518 = vxor.u32 %v6484, 2147483648
        %v6519 = vxor.u32 %v6486, 2147483648
        %v6520 = vmul.f32 %v6488, 1.442695
        %v6521 = vpow.pop %v6520
        %v6522 = vmul.f32 %v6489, 1.442695
        %v6523 = vpow.pop %v6522
        %v6524 = vmul.f32 %v6490, 1.442695
        %v6525 = vpow.pop %v6524
        %v6526 = vmul.f32 %v6491, 1.442695
        %v6527 = vpow.pop %v6526
        %v6528 = vmul.f32 %v6492, 1.442695
        %v6529 = vpow.pop %v6528
        %v6530 = vmul.f32 %v6493, 1.442695
        %v6531 = vpow.pop %v6530
        %v6532 = vmul.f32 %v6494, 1.442695
        %v6533 = vpow.pop %v6532
        %v6534 = vmul.f32 %v6495, 1.442695
        %v6535 = vpow.pop %v6534
        %v6536 = vmul.f32 %v6496, 1.442695
        %v6537 = vpow.pop %v6536
        %v6538 = vmul.f32 %v6497, 1.442695
        %v6539 = vpow.pop %v6538
        %v6540 = vmul.f32 %v6498, 1.442695
        %v6541 = vpow.pop %v6540
        %v6542 = vmul.f32 %v6499, 1.442695
        %v6543 = vpow.pop %v6542
        %v6544 = vmul.f32 %v6500, 1.442695
        %v6545 = vpow.pop %v6544
        %v6546 = vmul.f32 %v6501, 1.442695
        %v6547 = vpow.pop %v6546
        %v6548 = vmul.f32 %v6502, 1.442695
        %v6549 = vpow.pop %v6548
        %v6550 = vmul.f32 %v6503, 1.442695
        %v6551 = vpow.pop %v6550
        %v6552 = vmul.f32 %v6504, 1.442695
        %v6553 = vpow.pop %v6552
        %v6554 = vmul.f32 %v6505, 1.442695
        %v6555 = vpow.pop %v6554
        %v6556 = vmul.f32 %v6506, 1.442695
        %v6557 = vpow.pop %v6556
        %v6558 = vmul.f32 %v6507, 1.442695
        %v6559 = vpow.pop %v6558
        %v6560 = vmul.f32 %v6508, 1.442695
        %v6561 = vpow.pop %v6560
        %v6562 = vmul.f32 %v6509, 1.442695
        %v6563 = vpow.pop %v6562
        %v6564 = vmul.f32 %v6510, 1.442695
        %v6565 = vpow.pop %v6564
        %v6566 = vmul.f32 %v6511, 1.442695
        %v6567 = vpow.pop %v6566
        %v6568 = vmul.f32 %v6512, 1.442695
        %v6569 = vpow.pop %v6568
        %v6570 = vmul.f32 %v6513, 1.442695
        %v6571 = vpow.pop %v6570
        %v6572 = vmul.f32 %v6514, 1.442695
        %v6573 = vpow.pop %v6572
        %v6574 = vmul.f32 %v6515, 1.442695
        %v6575 = vpow.pop %v6574
        %v6576 = vmul.f32 %v6516, 1.442695
        %v6577 = vpow.pop %v6576
        %v6578 = vmul.f32 %v6517, 1.442695
        %v6579 = vpow.pop %v6578
        %v6580 = vmul.f32 %v6518, 1.442695
        %v6581 = vpow.pop %v6580
        %v6582 = vmul.f32 %v6519, 1.442695
        %v6583 = vpow.pop %v6582
        %v6584 = vadd.f32 %v6521, 1.0
        %v6585 = vadd.f32 %v6523, 1.0
        %v6586 = vadd.f32 %v6525, 1.0
        %v6587 = vadd.f32 %v6527, 1.0
        %v6588 = vadd.f32 %v6529, 1.0
        %v6589 = vadd.f32 %v6531, 1.0
        %v6590 = vadd.f32 %v6533, 1.0
        %v6591 = vadd.f32 %v6535, 1.0
        %v6592 = vadd.f32 %v6537, 1.0
        %v6593 = vadd.f32 %v6539, 1.0
        %v6594 = vadd.f32 %v6541, 1.0
        %v6595 = vadd.f32 %v6543, 1.0
        %v6596 = vadd.f32 %v6545, 1.0
        %v6597 = vadd.f32 %v6547, 1.0
        %v6598 = vadd.f32 %v6549, 1.0
        %v6599 = vadd.f32 %v6551, 1.0
        %v6600 = vadd.f32 %v6553, 1.0
        %v6601 = vadd.f32 %v6555, 1.0
        %v6602 = vadd.f32 %v6557, 1.0
        %v6603 = vadd.f32 %v6559, 1.0
        %v6604 = vadd.f32 %v6561, 1.0
        %v6605 = vadd.f32 %v6563, 1.0
        %v6606 = vadd.f32 %v6565, 1.0
        %v6607 = vadd.f32 %v6567, 1.0
        %v6608 = vadd.f32 %v6569, 1.0
        %v6609 = vadd.f32 %v6571, 1.0
        %v6610 = vadd.f32 %v6573, 1.0
        %v6611 = vadd.f32 %v6575, 1.0
        %v6612 = vadd.f32 %v6577, 1.0
        %v6613 = vadd.f32 %v6579, 1.0
        %v6614 = vadd.f32 %v6581, 1.0
        %v6615 = vadd.f32 %v6583, 1.0
        %v6616 = vrcp.pop %v6584
        %v6617 = vmul.f32 1.0, %v6616
        %v6618 = vrcp.pop %v6585
        %v6619 = vmul.f32 1.0, %v6618
        %v6620 = vrcp.pop %v6586
        %v6621 = vmul.f32 1.0, %v6620
        %v6622 = vrcp.pop %v6587
        %v6623 = vmul.f32 1.0, %v6622
        %v6624 = vrcp.pop %v6588
        %v6625 = vmul.f32 1.0, %v6624
        %v6626 = vrcp.pop %v6589
        %v6627 = vmul.f32 1.0, %v6626
        %v6628 = vrcp.pop %v6590
        %v6629 = vmul.f32 1.0, %v6628
        %v6630 = vrcp.pop %v6591
        %v6631 = vmul.f32 1.0, %v6630
        %v6632 = vrcp.pop %v6592
        %v6633 = vmul.f32 1.0, %v6632
        %v6634 = vrcp.pop %v6593
        %v6635 = vmul.f32 1.0, %v6634
        %v6636 = vrcp.pop %v6594
        %v6637 = vmul.f32 1.0, %v6636
        %v6638 = vrcp.pop %v6595
        %v6639 = vmul.f32 1.0, %v6638
        %v6640 = vrcp.pop %v6596
        %v6641 = vmul.f32 1.0, %v6640
        %v6642 = vrcp.pop %v6597
        %v6643 = vmul.f32 1.0, %v6642
        %v6644 = vrcp.pop %v6598
        %v6645 = vmul.f32 1.0, %v6644
        %v6646 = vrcp.pop %v6599
        %v6647 = vmul.f32 1.0, %v6646
        %v6648 = vrcp.pop %v6600
        %v6649 = vmul.f32 1.0, %v6648
        %v6650 = vrcp.pop %v6601
        %v6651 = vmul.f32 1.0, %v6650
        %v6652 = vrcp.pop %v6602
        %v6653 = vmul.f32 1.0, %v6652
        %v6654 = vrcp.pop %v6603
        %v6655 = vmul.f32 1.0, %v6654
        %v6656 = vrcp.pop %v6604
        %v6657 = vmul.f32 1.0, %v6656
        %v6658 = vrcp.pop %v6605
        %v6659 = vmul.f32 1.0, %v6658
        %v6660 = vrcp.pop %v6606
        %v6661 = vmul.f32 1.0, %v6660
        %v6662 = vrcp.pop %v6607
        %v6663 = vmul.f32 1.0, %v6662
        %v6664 = vrcp.pop %v6608
        %v6665 = vmul.f32 1.0, %v6664
        %v6666 = vrcp.pop %v6609
        %v6667 = vmul.f32 1.0, %v6666
        %v6668 = vrcp.pop %v6610
        %v6669 = vmul.f32 1.0, %v6668
        %v6670 = vrcp.pop %v6611
        %v6671 = vmul.f32 1.0, %v6670
        %v6672 = vrcp.pop %v6612
        %v6673 = vmul.f32 1.0, %v6672
        %v6674 = vrcp.pop %v6613
        %v6675 = vmul.f32 1.0, %v6674
        %v6676 = vrcp.pop %v6614
        %v6677 = vmul.f32 1.0, %v6676
        %v6678 = vrcp.pop %v6615
        %v6679 = vmul.f32 1.0, %v6678
        %v6680 = vmul.f32 %v6410, %v6617
        %v6681 = vmul.f32 %v6412, %v6619
        %v6682 = vmul.f32 %v6414, %v6621
        %v6683 = vmul.f32 %v6416, %v6623
        %v6684 = vmul.f32 %v6420, %v6625
        %v6685 = vmul.f32 %v6422, %v6627
        %v6686 = vmul.f32 %v6424, %v6629
        %v6687 = vmul.f32 %v6426, %v6631
        %v6688 = vmul.f32 %v6430, %v6633
        %v6689 = vmul.f32 %v6432, %v6635
        %v6690 = vmul.f32 %v6434, %v6637
        %v6691 = vmul.f32 %v6436, %v6639
        %v6692 = vmul.f32 %v6440, %v6641
        %v6693 = vmul.f32 %v6442, %v6643
        %v6694 = vmul.f32 %v6444, %v6645
        %v6695 = vmul.f32 %v6446, %v6647
        %v6696 = vmul.f32 %v6450, %v6649
        %v6697 = vmul.f32 %v6452, %v6651
        %v6698 = vmul.f32 %v6454, %v6653
        %v6699 = vmul.f32 %v6456, %v6655
        %v6700 = vmul.f32 %v6460, %v6657
        %v6701 = vmul.f32 %v6462, %v6659
        %v6702 = vmul.f32 %v6464, %v6661
        %v6703 = vmul.f32 %v6466, %v6663
        %v6704 = vmul.f32 %v6470, %v6665
        %v6705 = vmul.f32 %v6472, %v6667
        %v6706 = vmul.f32 %v6474, %v6669
        %v6707 = vmul.f32 %v6476, %v6671
        %v6708 = vmul.f32 %v6480, %v6673
        %v6709 = vmul.f32 %v6482, %v6675
        %v6710 = vmul.f32 %v6484, %v6677
        %v6711 = vmul.f32 %v6486, %v6679
        %v6712 = vpack.c.bf16 %v6682, %v6680
        %v6713 = vpack.c.bf16 %v6683, %v6681
        %v6714 = vpack.c.bf16 %v6686, %v6684
        %v6715 = vpack.c.bf16 %v6687, %v6685
        %v6716 = vpack.c.bf16 %v6690, %v6688
        %v6717 = vpack.c.bf16 %v6691, %v6689
        %v6718 = vpack.c.bf16 %v6694, %v6692
        %v6719 = vpack.c.bf16 %v6695, %v6693
        %v6720 = vpack.c.bf16 %v6698, %v6696
        %v6721 = vpack.c.bf16 %v6699, %v6697
        %v6722 = vpack.c.bf16 %v6702, %v6700
        %v6723 = vpack.c.bf16 %v6703, %v6701
        %v6724 = vpack.c.bf16 %v6706, %v6704
        %v6725 = vpack.c.bf16 %v6707, %v6705
        %v6726 = vpack.c.bf16 %v6710, %v6708
        %v6727 = vpack.c.bf16 %v6711, %v6709
        %v6728 = vld [vmem:[%s629 + $0x300] sm:$0xff]
        %v6729 = vld [vmem:[%s629 + $0x308] sm:$0xff]
        %v6730 = vld [vmem:[%s629 + $0x310] sm:$0xff]
        %v6731 = vld [vmem:[%s629 + $0x318] sm:$0xff]
        %v6732 = vld [vmem:[%s629 + $0x320] sm:$0xff]
        %v6733 = vld [vmem:[%s629 + $0x328] sm:$0xff]
        %v6734 = vld [vmem:[%s629 + $0x330] sm:$0xff]
        %v6735 = vld [vmem:[%s629 + $0x338] sm:$0xff]
        %v6736 = vld [vmem:[%s629 + $0x340] sm:$0xff]
        %v6737 = vld [vmem:[%s629 + $0x348] sm:$0xff]
        %v6738 = vld [vmem:[%s629 + $0x350] sm:$0xff]
        %v6739 = vld [vmem:[%s629 + $0x358] sm:$0xff]
        %v6740 = vld [vmem:[%s629 + $0x360] sm:$0xff]
        %v6741 = vld [vmem:[%s629 + $0x368] sm:$0xff]
        %v6742 = vld [vmem:[%s629 + $0x370] sm:$0xff]
        %v6743 = vld [vmem:[%s629 + $0x378] sm:$0xff]
        %v6744 = vld [vmem:[%s629 + $0x380] sm:$0xff]
        %v6745 = vld [vmem:[%s629 + $0x388] sm:$0xff]
        %v6746 = vld [vmem:[%s629 + $0x390] sm:$0xff]
        %v6747 = vld [vmem:[%s629 + $0x398] sm:$0xff]
        %v6748 = vld [vmem:[%s629 + $0x3a0] sm:$0xff]
        %v6749 = vld [vmem:[%s629 + $0x3a8] sm:$0xff]
        %v6750 = vld [vmem:[%s629 + $0x3b0] sm:$0xff]
        %v6751 = vld [vmem:[%s629 + $0x3b8] sm:$0xff]
        %v6752 = vld [vmem:[%s629 + $0x3c0] sm:$0xff]
        %v6753 = vld [vmem:[%s629 + $0x3c8] sm:$0xff]
        %v6754 = vld [vmem:[%s629 + $0x3d0] sm:$0xff]
        %v6755 = vld [vmem:[%s629 + $0x3d8] sm:$0xff]
        %v6756 = vld [vmem:[%s629 + $0x3e0] sm:$0xff]
        %v6757 = vld [vmem:[%s629 + $0x3e8] sm:$0xff]
        %v6758 = vld [vmem:[%s629 + $0x3f0] sm:$0xff]
        %v6759 = vld [vmem:[%s629 + $0x3f8] sm:$0xff]
        %v6792 = vunpack.c.l.b16 %v6728
        %v6793 = vunpack.c.h.b16 %v6728
        %v6794 = vunpack.c.l.b16 %v6729
        %v6795 = vunpack.c.h.b16 %v6729
        %v6796 = vunpack.c.l.b16 %v6730
        %v6797 = vunpack.c.h.b16 %v6730
        %v6798 = vunpack.c.l.b16 %v6731
        %v6799 = vunpack.c.h.b16 %v6731
        %v6800 = vunpack.c.l.b16 %v6732
        %v6801 = vunpack.c.h.b16 %v6732
        %v6802 = vunpack.c.l.b16 %v6733
        %v6803 = vunpack.c.h.b16 %v6733
        %v6804 = vunpack.c.l.b16 %v6734
        %v6805 = vunpack.c.h.b16 %v6734
        %v6806 = vunpack.c.l.b16 %v6735
        %v6807 = vunpack.c.h.b16 %v6735
        %v6808 = vunpack.c.l.b16 %v6736
        %v6809 = vunpack.c.h.b16 %v6736
        %v6810 = vunpack.c.l.b16 %v6737
        %v6811 = vunpack.c.h.b16 %v6737
        %v6812 = vunpack.c.l.b16 %v6738
        %v6813 = vunpack.c.h.b16 %v6738
        %v6814 = vunpack.c.l.b16 %v6739
        %v6815 = vunpack.c.h.b16 %v6739
        %v6816 = vunpack.c.l.b16 %v6740
        %v6817 = vunpack.c.h.b16 %v6740
        %v6818 = vunpack.c.l.b16 %v6741
        %v6819 = vunpack.c.h.b16 %v6741
        %v6820 = vunpack.c.l.b16 %v6742
        %v6821 = vunpack.c.h.b16 %v6742
        %v6822 = vunpack.c.l.b16 %v6743
        %v6823 = vunpack.c.h.b16 %v6743
        %v6824 = vunpack.c.l.b16 %v6744
        %v6825 = vunpack.c.h.b16 %v6744
        %v6826 = vunpack.c.l.b16 %v6745
        %v6827 = vunpack.c.h.b16 %v6745
        %v6828 = vunpack.c.l.b16 %v6746
        %v6829 = vunpack.c.h.b16 %v6746
        %v6830 = vunpack.c.l.b16 %v6747
        %v6831 = vunpack.c.h.b16 %v6747
        %v6832 = vunpack.c.l.b16 %v6748
        %v6833 = vunpack.c.h.b16 %v6748
        %v6834 = vunpack.c.l.b16 %v6749
        %v6835 = vunpack.c.h.b16 %v6749
        %v6836 = vunpack.c.l.b16 %v6750
        %v6837 = vunpack.c.h.b16 %v6750
        %v6838 = vunpack.c.l.b16 %v6751
        %v6839 = vunpack.c.h.b16 %v6751
        %v6840 = vunpack.c.l.b16 %v6752
        %v6841 = vunpack.c.h.b16 %v6752
        %v6842 = vunpack.c.l.b16 %v6753
        %v6843 = vunpack.c.h.b16 %v6753
        %v6844 = vunpack.c.l.b16 %v6754
        %v6845 = vunpack.c.h.b16 %v6754
        %v6846 = vunpack.c.l.b16 %v6755
        %v6847 = vunpack.c.h.b16 %v6755
        %v6848 = vunpack.c.l.b16 %v6756
        %v6849 = vunpack.c.h.b16 %v6756
        %v6850 = vunpack.c.l.b16 %v6757
        %v6851 = vunpack.c.h.b16 %v6757
        %v6852 = vunpack.c.l.b16 %v6758
        %v6853 = vunpack.c.h.b16 %v6758
        %v6854 = vunpack.c.l.b16 %v6759
        %v6855 = vunpack.c.h.b16 %v6759
        %v6856 = vpack.c.b16 %v6794, %v6792
        %v6857 = vpack.c.b16 %v6795, %v6793
        %v6858 = vpack.c.b16 %v6798, %v6796
        %v6859 = vpack.c.b16 %v6799, %v6797
        %v6860 = vpack.c.b16 %v6802, %v6800
        %v6861 = vpack.c.b16 %v6803, %v6801
        %v6862 = vpack.c.b16 %v6806, %v6804
        %v6863 = vpack.c.b16 %v6807, %v6805
        %v6864 = vpack.c.b16 %v6810, %v6808
        %v6865 = vpack.c.b16 %v6811, %v6809
        %v6866 = vpack.c.b16 %v6814, %v6812
        %v6867 = vpack.c.b16 %v6815, %v6813
        %v6868 = vpack.c.b16 %v6818, %v6816
        %v6869 = vpack.c.b16 %v6819, %v6817
        %v6870 = vpack.c.b16 %v6822, %v6820
        %v6871 = vpack.c.b16 %v6823, %v6821
        %v6872 = vpack.c.b16 %v6826, %v6824
        %v6873 = vpack.c.b16 %v6827, %v6825
        %v6874 = vpack.c.b16 %v6830, %v6828
        %v6875 = vpack.c.b16 %v6831, %v6829
        %v6876 = vpack.c.b16 %v6834, %v6832
        %v6877 = vpack.c.b16 %v6835, %v6833
        %v6878 = vpack.c.b16 %v6838, %v6836
        %v6879 = vpack.c.b16 %v6839, %v6837
        %v6880 = vpack.c.b16 %v6842, %v6840
        %v6881 = vpack.c.b16 %v6843, %v6841
        %v6882 = vpack.c.b16 %v6846, %v6844
        %v6883 = vpack.c.b16 %v6847, %v6845
        %v6884 = vpack.c.b16 %v6850, %v6848
        %v6885 = vpack.c.b16 %v6851, %v6849
        %v6886 = vpack.c.b16 %v6854, %v6852
        %v6887 = vpack.c.b16 %v6855, %v6853
        %6920 = vmatprep.subr.bf16.mxu0 %v6871
        %6921 = vmatpush1.bf16.msra.mxu0 %v6870
        %6922 = vmatprep.subr.bf16.mxu0 %v6869
        %6923 = vmatpush1.bf16.msra.mxu0 %v6868
        %6924 = vmatprep.subr.bf16.mxu0 %v6867
        %6925 = vmatpush1.bf16.msra.mxu0 %v6866
        %6926 = vmatprep.subr.bf16.mxu0 %v6865
        %6927 = vmatpush1.bf16.msra.mxu0 %v6864
        %6928 = vmatprep.subr.bf16.mxu0 %v6863
        %6929 = vmatpush1.bf16.msra.mxu0 %v6862
        %6930 = vmatprep.subr.bf16.mxu0 %v6861
        %6931 = vmatpush1.bf16.msra.mxu0 %v6860
        %6932 = vmatprep.subr.bf16.mxu0 %v6859
        %6933 = vmatpush1.bf16.msra.mxu0 %v6858
        %6934 = vmatprep.subr.bf16.mxu0 %v6857
        %6935 = vmatpush1.bf16.msra.mxu0 %v6856
        %6936 = vmatprep.subr.bf16.mxu0 %v6887
        %6937 = vmatpush2.bf16.msra.mxu0 %v6886
        %6938 = vmatprep.subr.bf16.mxu0 %v6885
        %6939 = vmatpush2.bf16.msra.mxu0 %v6884
        %6940 = vmatprep.subr.bf16.mxu0 %v6883
        %6941 = vmatpush2.bf16.msra.mxu0 %v6882
        %6942 = vmatprep.subr.bf16.mxu0 %v6881
        %6943 = vmatpush2.bf16.msra.mxu0 %v6880
        %6944 = vmatprep.subr.bf16.mxu0 %v6879
        %6945 = vmatpush2.bf16.msra.mxu0 %v6878
        %6946 = vmatprep.subr.bf16.mxu0 %v6877
        %6947 = vmatpush2.bf16.msra.mxu0 %v6876
        %6948 = vmatprep.subr.bf16.mxu0 %v6875
        %6949 = vmatpush2.bf16.msra.mxu0 %v6874
        %6950 = vmatprep.subr.bf16.mxu0 %v6873
        %6951 = vmatpush2.bf16.msra.mxu0 %v6872
        %6952 = vmatprep.mubr.bf16.mxu0 %v6713
        %6953 = vmatmul.mubr.bf16.gmra.mxu0 %v6712
        %v6954 = vpop.f32.mrf.mxu0
        %v6955 = vadd.f32 0.0, %v6954
        %v6956 = vpop.f32.mrf.mxu0
        %v6957 = vadd.f32 0.0, %v6956
        %v6958 = vpop.f32.mrf.mxu0
        %v6959 = vadd.f32 0.0, %v6958
        %v6960 = vpop.f32.mrf.mxu0
        %v6961 = vadd.f32 0.0, %v6960
        %6962 = vmatprep.mubr.bf16.mxu0 %v6715
        %6963 = vmatmul.mubr.bf16.gmra.mxu0 %v6714
        %v6964 = vpop.f32.mrf.mxu0
        %v6965 = vadd.f32 0.0, %v6964
        %v6966 = vpop.f32.mrf.mxu0
        %v6967 = vadd.f32 0.0, %v6966
        %v6968 = vpop.f32.mrf.mxu0
        %v6969 = vadd.f32 0.0, %v6968
        %v6970 = vpop.f32.mrf.mxu0
        %v6971 = vadd.f32 0.0, %v6970
        %6972 = vmatprep.mubr.bf16.mxu0 %v6717
        %6973 = vmatmul.mubr.bf16.gmra.mxu0 %v6716
        %v6974 = vpop.f32.mrf.mxu0
        %v6975 = vadd.f32 0.0, %v6974
        %v6976 = vpop.f32.mrf.mxu0
        %v6977 = vadd.f32 0.0, %v6976
        %v6978 = vpop.f32.mrf.mxu0
        %v6979 = vadd.f32 0.0, %v6978
        %v6980 = vpop.f32.mrf.mxu0
        %v6981 = vadd.f32 0.0, %v6980
        %6982 = vmatprep.mubr.bf16.mxu0 %v6719
        %6983 = vmatmul.mubr.bf16.gmra.mxu0 %v6718
        %v6984 = vpop.f32.mrf.mxu0
        %v6985 = vadd.f32 0.0, %v6984
        %v6986 = vpop.f32.mrf.mxu0
        %v6987 = vadd.f32 0.0, %v6986
        %v6988 = vpop.f32.mrf.mxu0
        %v6989 = vadd.f32 0.0, %v6988
        %v6990 = vpop.f32.mrf.mxu0
        %v6991 = vadd.f32 0.0, %v6990
        %6992 = vmatprep.mubr.bf16.mxu0 %v6721
        %6993 = vmatmul.mubr.bf16.gmra.mxu0 %v6720
        %v6994 = vpop.f32.mrf.mxu0
        %v6995 = vadd.f32 0.0, %v6994
        %v6996 = vpop.f32.mrf.mxu0
        %v6997 = vadd.f32 0.0, %v6996
        %v6998 = vpop.f32.mrf.mxu0
        %v6999 = vadd.f32 0.0, %v6998
        %v7000 = vpop.f32.mrf.mxu0
        %v7001 = vadd.f32 0.0, %v7000
        %7002 = vmatprep.mubr.bf16.mxu0 %v6723
        %7003 = vmatmul.mubr.bf16.gmra.mxu0 %v6722
        %v7004 = vpop.f32.mrf.mxu0
        %v7005 = vadd.f32 0.0, %v7004
        %v7006 = vpop.f32.mrf.mxu0
        %v7007 = vadd.f32 0.0, %v7006
        %v7008 = vpop.f32.mrf.mxu0
        %v7009 = vadd.f32 0.0, %v7008
        %v7010 = vpop.f32.mrf.mxu0
        %v7011 = vadd.f32 0.0, %v7010
        %7012 = vmatprep.mubr.bf16.mxu0 %v6725
        %7013 = vmatmul.mubr.bf16.gmra.mxu0 %v6724
        %v7014 = vpop.f32.mrf.mxu0
        %v7015 = vadd.f32 0.0, %v7014
        %v7016 = vpop.f32.mrf.mxu0
        %v7017 = vadd.f32 0.0, %v7016
        %v7018 = vpop.f32.mrf.mxu0
        %v7019 = vadd.f32 0.0, %v7018
        %v7020 = vpop.f32.mrf.mxu0
        %v7021 = vadd.f32 0.0, %v7020
        %7022 = vmatprep.mubr.bf16.mxu0 %v6727
        %7023 = vmatmul.mubr.bf16.gmra.mxu0 %v6726
        %v7024 = vpop.f32.mrf.mxu0
        %v7025 = vadd.f32 0.0, %v7024
        %v7026 = vpop.f32.mrf.mxu0
        %v7027 = vadd.f32 0.0, %v7026
        %v7028 = vpop.f32.mrf.mxu0
        %v7029 = vadd.f32 0.0, %v7028
        %v7030 = vpop.f32.mrf.mxu0
        %v7031 = vadd.f32 0.0, %v7030
        %7032 = vdwg.mxu0
        %v7033 = vadd.f32 %v6151, %v6955
        %v7034 = vadd.f32 %v6152, %v6957
        %v7035 = vadd.f32 %v6153, %v6959
        %v7036 = vadd.f32 %v6154, %v6961
        %v7037 = vadd.f32 %v6155, %v6965
        %v7038 = vadd.f32 %v6156, %v6967
        %v7039 = vadd.f32 %v6157, %v6969
        %v7040 = vadd.f32 %v6158, %v6971
        %v7041 = vadd.f32 %v6159, %v6975
        %v7042 = vadd.f32 %v6160, %v6977
        %v7043 = vadd.f32 %v6161, %v6979
        %v7044 = vadd.f32 %v6162, %v6981
        %v7045 = vadd.f32 %v6163, %v6985
        %v7046 = vadd.f32 %v6164, %v6987
        %v7047 = vadd.f32 %v6165, %v6989
        %v7048 = vadd.f32 %v6166, %v6991
        %v7049 = vadd.f32 %v6167, %v6995
        %v7050 = vadd.f32 %v6168, %v6997
        %v7051 = vadd.f32 %v6169, %v6999
        %v7052 = vadd.f32 %v6170, %v7001
        %v7053 = vadd.f32 %v6171, %v7005
        %v7054 = vadd.f32 %v6172, %v7007
        %v7055 = vadd.f32 %v6173, %v7009
        %v7056 = vadd.f32 %v6174, %v7011
        %v7057 = vadd.f32 %v6175, %v7015
        %v7058 = vadd.f32 %v6176, %v7017
        %v7059 = vadd.f32 %v6177, %v7019
        %v7060 = vadd.f32 %v6178, %v7021
        %v7061 = vadd.f32 %v6179, %v7025
        %v7062 = vadd.f32 %v6180, %v7027
        %v7063 = vadd.f32 %v6181, %v7029
        %v7064 = vadd.f32 %v6182, %v7031
        %v7065 = vadd.f32 %v3349, %v7033
        %v7066 = vadd.f32 %v3350, %v7034
        %v7067 = vadd.f32 %v3351, %v7035
        %v7068 = vadd.f32 %v3352, %v7036
        %v7069 = vadd.f32 %v3353, %v7037
        %v7070 = vadd.f32 %v3354, %v7038
        %v7071 = vadd.f32 %v3355, %v7039
        %v7072 = vadd.f32 %v3356, %v7040
        %v7073 = vadd.f32 %v3357, %v7041
        %v7074 = vadd.f32 %v3358, %v7042
        %v7075 = vadd.f32 %v3359, %v7043
        %v7076 = vadd.f32 %v3360, %v7044
        %v7077 = vadd.f32 %v3361, %v7045
        %v7078 = vadd.f32 %v3362, %v7046
        %v7079 = vadd.f32 %v3363, %v7047
        %v7080 = vadd.f32 %v3364, %v7048
        %v7081 = vadd.f32 %v3365, %v7049
        %v7082 = vadd.f32 %v3366, %v7050
        %v7083 = vadd.f32 %v3367, %v7051
        %v7084 = vadd.f32 %v3368, %v7052
        %v7085 = vadd.f32 %v3369, %v7053
        %v7086 = vadd.f32 %v3370, %v7054
        %v7087 = vadd.f32 %v3371, %v7055
        %v7088 = vadd.f32 %v3372, %v7056
        %v7089 = vadd.f32 %v3373, %v7057
        %v7090 = vadd.f32 %v3374, %v7058
        %v7091 = vadd.f32 %v3375, %v7059
        %v7092 = vadd.f32 %v3376, %v7060
        %v7093 = vadd.f32 %v3377, %v7061
        %v7094 = vadd.f32 %v3378, %v7062
        %v7095 = vadd.f32 %v3379, %v7063
        %v7096 = vadd.f32 %v3380, %v7064
        %p7097 = scmp.eq.s32.totalorder %s35, 1
        // Predicated region
        $region105: #{transformer_forward.1} parent=67 // pred_check
          %p7098 = pneg %p7097
        $region106: #{transformer_forward.1} parent=67 // pred_check_branch
          %7100 = sbr.rel (%p7098) target = $region108
        $region107: #{transformer_forward.1} parent=67 // pred_region
          %v7101 = vld [vmem:[%s11] sm:$0x3]
          %v7102 = vmul.f32 %v7065, %v7065
          %v7103 = vmul.f32 %v7066, %v7066
          %v7104 = vmul.f32 %v7067, %v7067
          %v7105 = vmul.f32 %v7068, %v7068
          %v7106 = vmul.f32 %v7069, %v7069
          %v7107 = vmul.f32 %v7070, %v7070
          %v7108 = vmul.f32 %v7071, %v7071
          %v7109 = vmul.f32 %v7072, %v7072
          %v7110 = vmul.f32 %v7073, %v7073
          %v7111 = vmul.f32 %v7074, %v7074
          %v7112 = vmul.f32 %v7075, %v7075
          %v7113 = vmul.f32 %v7076, %v7076
          %v7114 = vmul.f32 %v7077, %v7077
          %v7115 = vmul.f32 %v7078, %v7078
          %v7116 = vmul.f32 %v7079, %v7079
          %v7117 = vmul.f32 %v7080, %v7080
          %v7118 = vmul.f32 %v7081, %v7081
          %v7119 = vmul.f32 %v7082, %v7082
          %v7120 = vmul.f32 %v7083, %v7083
          %v7121 = vmul.f32 %v7084, %v7084
          %v7122 = vmul.f32 %v7085, %v7085
          %v7123 = vmul.f32 %v7086, %v7086
          %v7124 = vmul.f32 %v7087, %v7087
          %v7125 = vmul.f32 %v7088, %v7088
          %v7126 = vmul.f32 %v7089, %v7089
          %v7127 = vmul.f32 %v7090, %v7090
          %v7128 = vmul.f32 %v7091, %v7091
          %v7129 = vmul.f32 %v7092, %v7092
          %v7130 = vmul.f32 %v7093, %v7093
          %v7131 = vmul.f32 %v7094, %v7094
          %v7132 = vmul.f32 %v7095, %v7095
          %v7133 = vmul.f32 %v7096, %v7096
          %v7134 = vadd.f32 %v7102, %v7103
          %7135 = vadd.xlane.f32.xlu0 %v7134
          %v7136 = vpop.xlane.xlu0 %7135
          %v7137 = vadd.f32 %v7104, %v7105
          %7138 = vadd.xlane.f32.xlu0 %v7137
          %v7139 = vpop.xlane.xlu0 %7138
          %v7140 = vadd.f32 %v7106, %v7107
          %7141 = vadd.xlane.f32.xlu0 %v7140
          %v7142 = vpop.xlane.xlu0 %7141
          %v7143 = vadd.f32 %v7108, %v7109
          %7144 = vadd.xlane.f32.xlu0 %v7143
          %v7145 = vpop.xlane.xlu0 %7144
          %v7146 = vadd.f32 %v7110, %v7111
          %7147 = vadd.xlane.f32.xlu0 %v7146
          %v7148 = vpop.xlane.xlu0 %7147
          %v7149 = vadd.f32 %v7112, %v7113
          %7150 = vadd.xlane.f32.xlu0 %v7149
          %v7151 = vpop.xlane.xlu0 %7150
          %v7152 = vadd.f32 %v7114, %v7115
          %7153 = vadd.xlane.f32.xlu0 %v7152
          %v7154 = vpop.xlane.xlu0 %7153
          %v7155 = vadd.f32 %v7116, %v7117
          %7156 = vadd.xlane.f32.xlu0 %v7155
          %v7157 = vpop.xlane.xlu0 %7156
          %v7158 = vadd.f32 %v7118, %v7119
          %7159 = vadd.xlane.f32.xlu0 %v7158
          %v7160 = vpop.xlane.xlu0 %7159
          %v7161 = vadd.f32 %v7120, %v7121
          %7162 = vadd.xlane.f32.xlu0 %v7161
          %v7163 = vpop.xlane.xlu0 %7162
          %v7164 = vadd.f32 %v7122, %v7123
          %7165 = vadd.xlane.f32.xlu0 %v7164
          %v7166 = vpop.xlane.xlu0 %7165
          %v7167 = vadd.f32 %v7124, %v7125
          %7168 = vadd.xlane.f32.xlu0 %v7167
          %v7169 = vpop.xlane.xlu0 %7168
          %v7170 = vadd.f32 %v7126, %v7127
          %7171 = vadd.xlane.f32.xlu0 %v7170
          %v7172 = vpop.xlane.xlu0 %7171
          %v7173 = vadd.f32 %v7128, %v7129
          %7174 = vadd.xlane.f32.xlu0 %v7173
          %v7175 = vpop.xlane.xlu0 %7174
          %v7176 = vadd.f32 %v7130, %v7131
          %7177 = vadd.xlane.f32.xlu0 %v7176
          %v7178 = vpop.xlane.xlu0 %7177
          %v7179 = vadd.f32 %v7132, %v7133
          %7180 = vadd.xlane.f32.xlu0 %v7179
          %v7181 = vpop.xlane.xlu0 %7180
          %v7182 = vmul.f32 %v7136, %v948
          %v7183 = vmul.f32 %v7139, %v948
          %v7184 = vmul.f32 %v7142, %v948
          %v7185 = vmul.f32 %v7145, %v948
          %v7186 = vmul.f32 %v7148, %v948
          %v7187 = vmul.f32 %v7151, %v948
          %v7188 = vmul.f32 %v7154, %v948
          %v7189 = vmul.f32 %v7157, %v948
          %v7190 = vmul.f32 %v7160, %v948
          %v7191 = vmul.f32 %v7163, %v948
          %v7192 = vmul.f32 %v7166, %v948
          %v7193 = vmul.f32 %v7169, %v948
          %v7194 = vmul.f32 %v7172, %v948
          %v7195 = vmul.f32 %v7175, %v948
          %v7196 = vmul.f32 %v7178, %v948
          %v7197 = vmul.f32 %v7181, %v948
          %v7198 = vadd.f32 %v7182, 1e-05
          %v7199 = vadd.f32 %v7183, 1e-05
          %v7200 = vadd.f32 %v7184, 1e-05
          %v7201 = vadd.f32 %v7185, 1e-05
          %v7202 = vadd.f32 %v7186, 1e-05
          %v7203 = vadd.f32 %v7187, 1e-05
          %v7204 = vadd.f32 %v7188, 1e-05
          %v7205 = vadd.f32 %v7189, 1e-05
          %v7206 = vadd.f32 %v7190, 1e-05
          %v7207 = vadd.f32 %v7191, 1e-05
          %v7208 = vadd.f32 %v7192, 1e-05
          %v7209 = vadd.f32 %v7193, 1e-05
          %v7210 = vadd.f32 %v7194, 1e-05
          %v7211 = vadd.f32 %v7195, 1e-05
          %v7212 = vadd.f32 %v7196, 1e-05
          %v7213 = vadd.f32 %v7197, 1e-05
          %v7214 = vrsqrt.pop %v7198
          %v7215 = vrsqrt.pop %v7199
          %v7216 = vrsqrt.pop %v7200
          %v7217 = vrsqrt.pop %v7201
          %v7218 = vrsqrt.pop %v7202
          %v7219 = vrsqrt.pop %v7203
          %v7220 = vrsqrt.pop %v7204
          %v7221 = vrsqrt.pop %v7205
          %v7222 = vrsqrt.pop %v7206
          %v7223 = vrsqrt.pop %v7207
          %v7224 = vrsqrt.pop %v7208
          %v7225 = vrsqrt.pop %v7209
          %v7226 = vrsqrt.pop %v7210
          %v7227 = vrsqrt.pop %v7211
          %v7228 = vrsqrt.pop %v7212
          %v7229 = vrsqrt.pop %v7213
          %v7230 = vmul.f32 %v7065, %v7214
          %v7231 = vmul.f32 %v7066, %v7214
          %v7232 = vmul.f32 %v7067, %v7215
          %v7233 = vmul.f32 %v7068, %v7215
          %v7234 = vmul.f32 %v7069, %v7216
          %v7235 = vmul.f32 %v7070, %v7216
          %v7236 = vmul.f32 %v7071, %v7217
          %v7237 = vmul.f32 %v7072, %v7217
          %v7238 = vmul.f32 %v7073, %v7218
          %v7239 = vmul.f32 %v7074, %v7218
          %v7240 = vmul.f32 %v7075, %v7219
          %v7241 = vmul.f32 %v7076, %v7219
          %v7242 = vmul.f32 %v7077, %v7220
          %v7243 = vmul.f32 %v7078, %v7220
          %v7244 = vmul.f32 %v7079, %v7221
          %v7245 = vmul.f32 %v7080, %v7221
          %v7246 = vmul.f32 %v7081, %v7222
          %v7247 = vmul.f32 %v7082, %v7222
          %v7248 = vmul.f32 %v7083, %v7223
          %v7249 = vmul.f32 %v7084, %v7223
          %v7250 = vmul.f32 %v7085, %v7224
          %v7251 = vmul.f32 %v7086, %v7224
          %v7252 = vmul.f32 %v7087, %v7225
          %v7253 = vmul.f32 %v7088, %v7225
          %v7254 = vmul.f32 %v7089, %v7226
          %v7255 = vmul.f32 %v7090, %v7226
          %v7256 = vmul.f32 %v7091, %v7227
          %v7257 = vmul.f32 %v7092, %v7227
          %v7258 = vmul.f32 %v7093, %v7228
          %v7259 = vmul.f32 %v7094, %v7228
          %v7260 = vmul.f32 %v7095, %v7229
          %v7261 = vmul.f32 %v7096, %v7229
          %v7263 = vlaneseq
          %v7264 = vshrl.u32 %v7263, 7
          %v7265 = vsub.s32 0, %v7264
          %v7266 = vrot.slane %v7101, %v7265
          %v7267 = vlaneseq
          %v7268 = vshrl.u32 %v7267, 7
          %v7269 = vsub.s32 1, %v7268
          %v7270 = vrot.slane %v7101, %v7269
          %v7273 = vmul.f32 %v7230, %v7266
          %v7274 = vmul.f32 %v7231, %v7270
          %v7275 = vmul.f32 %v7232, %v7266
          %v7276 = vmul.f32 %v7233, %v7270
          %v7277 = vmul.f32 %v7234, %v7266
          %v7278 = vmul.f32 %v7235, %v7270
          %v7279 = vmul.f32 %v7236, %v7266
          %v7280 = vmul.f32 %v7237, %v7270
          %v7281 = vmul.f32 %v7238, %v7266
          %v7282 = vmul.f32 %v7239, %v7270
          %v7283 = vmul.f32 %v7240, %v7266
          %v7284 = vmul.f32 %v7241, %v7270
          %v7285 = vmul.f32 %v7242, %v7266
          %v7286 = vmul.f32 %v7243, %v7270
          %v7287 = vmul.f32 %v7244, %v7266
          %v7288 = vmul.f32 %v7245, %v7270
          %v7289 = vmul.f32 %v7246, %v7266
          %v7290 = vmul.f32 %v7247, %v7270
          %v7291 = vmul.f32 %v7248, %v7266
          %v7292 = vmul.f32 %v7249, %v7270
          %v7293 = vmul.f32 %v7250, %v7266
          %v7294 = vmul.f32 %v7251, %v7270
          %v7295 = vmul.f32 %v7252, %v7266
          %v7296 = vmul.f32 %v7253, %v7270
          %v7297 = vmul.f32 %v7254, %v7266
          %v7298 = vmul.f32 %v7255, %v7270
          %v7299 = vmul.f32 %v7256, %v7266
          %v7300 = vmul.f32 %v7257, %v7270
          %v7301 = vmul.f32 %v7258, %v7266
          %v7302 = vmul.f32 %v7259, %v7270
          %v7303 = vmul.f32 %v7260, %v7266
          %v7304 = vmul.f32 %v7261, %v7270
          %7305 = vst [vmem:[%s707] sm:$0xff] %v7273
          %7306 = vst [vmem:[%s707 + $0x8] sm:$0xff] %v7274
          %7307 = vst [vmem:[%s707 + $0x10] sm:$0xff] %v7275
          %7308 = vst [vmem:[%s707 + $0x18] sm:$0xff] %v7276
          %7309 = vst [vmem:[%s707 + $0x20] sm:$0xff] %v7277
          %7310 = vst [vmem:[%s707 + $0x28] sm:$0xff] %v7278
          %7311 = vst [vmem:[%s707 + $0x30] sm:$0xff] %v7279
          %7312 = vst [vmem:[%s707 + $0x38] sm:$0xff] %v7280
          %7313 = vst [vmem:[%s707 + $0x40] sm:$0xff] %v7281
          %7314 = vst [vmem:[%s707 + $0x48] sm:$0xff] %v7282
          %7315 = vst [vmem:[%s707 + $0x50] sm:$0xff] %v7283
          %7316 = vst [vmem:[%s707 + $0x58] sm:$0xff] %v7284
          %7317 = vst [vmem:[%s707 + $0x60] sm:$0xff] %v7285
          %7318 = vst [vmem:[%s707 + $0x68] sm:$0xff] %v7286
          %7319 = vst [vmem:[%s707 + $0x70] sm:$0xff] %v7287
          %7320 = vst [vmem:[%s707 + $0x78] sm:$0xff] %v7288
          %7321 = vst [vmem:[%s707 + $0x80] sm:$0xff] %v7289
          %7322 = vst [vmem:[%s707 + $0x88] sm:$0xff] %v7290
          %7323 = vst [vmem:[%s707 + $0x90] sm:$0xff] %v7291
          %7324 = vst [vmem:[%s707 + $0x98] sm:$0xff] %v7292
          %7325 = vst [vmem:[%s707 + $0xa0] sm:$0xff] %v7293
          %7326 = vst [vmem:[%s707 + $0xa8] sm:$0xff] %v7294
          %7327 = vst [vmem:[%s707 + $0xb0] sm:$0xff] %v7295
          %7328 = vst [vmem:[%s707 + $0xb8] sm:$0xff] %v7296
          %7329 = vst [vmem:[%s707 + $0xc0] sm:$0xff] %v7297
          %7330 = vst [vmem:[%s707 + $0xc8] sm:$0xff] %v7298
          %7331 = vst [vmem:[%s707 + $0xd0] sm:$0xff] %v7299
          %7332 = vst [vmem:[%s707 + $0xd8] sm:$0xff] %v7300
          %7333 = vst [vmem:[%s707 + $0xe0] sm:$0xff] %v7301
          %7334 = vst [vmem:[%s707 + $0xe8] sm:$0xff] %v7302
          %7335 = vst [vmem:[%s707 + $0xf0] sm:$0xff] %v7303
          %7336 = vst [vmem:[%s707 + $0xf8] sm:$0xff] %v7304
        $region108: #{transformer_forward.1} parent=67 // pred_fallthru
          _
        %p7337 = scmp.ne.s32.totalorder %s35, 1
        // Predicated region
        $region109: #{transformer_forward.1} parent=67 // pred_check
          %p7338 = pneg %p7337
        $region110: #{transformer_forward.1} parent=67 // pred_check_branch
          %7340 = sbr.rel (%p7338) target = $region112
        $region111: #{transformer_forward.1} parent=67 // pred_region
          %7341 = vst [vmem:[%s707] sm:$0xff] %v7065
          %7342 = vst [vmem:[%s707 + $0x8] sm:$0xff] %v7066
          %7343 = vst [vmem:[%s707 + $0x10] sm:$0xff] %v7067
          %7344 = vst [vmem:[%s707 + $0x18] sm:$0xff] %v7068
          %7345 = vst [vmem:[%s707 + $0x20] sm:$0xff] %v7069
          %7346 = vst [vmem:[%s707 + $0x28] sm:$0xff] %v7070
          %7347 = vst [vmem:[%s707 + $0x30] sm:$0xff] %v7071
          %7348 = vst [vmem:[%s707 + $0x38] sm:$0xff] %v7072
          %7349 = vst [vmem:[%s707 + $0x40] sm:$0xff] %v7073
          %7350 = vst [vmem:[%s707 + $0x48] sm:$0xff] %v7074
          %7351 = vst [vmem:[%s707 + $0x50] sm:$0xff] %v7075
          %7352 = vst [vmem:[%s707 + $0x58] sm:$0xff] %v7076
          %7353 = vst [vmem:[%s707 + $0x60] sm:$0xff] %v7077
          %7354 = vst [vmem:[%s707 + $0x68] sm:$0xff] %v7078
          %7355 = vst [vmem:[%s707 + $0x70] sm:$0xff] %v7079
          %7356 = vst [vmem:[%s707 + $0x78] sm:$0xff] %v7080
          %7357 = vst [vmem:[%s707 + $0x80] sm:$0xff] %v7081
          %7358 = vst [vmem:[%s707 + $0x88] sm:$0xff] %v7082
          %7359 = vst [vmem:[%s707 + $0x90] sm:$0xff] %v7083
          %7360 = vst [vmem:[%s707 + $0x98] sm:$0xff] %v7084
          %7361 = vst [vmem:[%s707 + $0xa0] sm:$0xff] %v7085
          %7362 = vst [vmem:[%s707 + $0xa8] sm:$0xff] %v7086
          %7363 = vst [vmem:[%s707 + $0xb0] sm:$0xff] %v7087
          %7364 = vst [vmem:[%s707 + $0xb8] sm:$0xff] %v7088
          %7365 = vst [vmem:[%s707 + $0xc0] sm:$0xff] %v7089
          %7366 = vst [vmem:[%s707 + $0xc8] sm:$0xff] %v7090
          %7367 = vst [vmem:[%s707 + $0xd0] sm:$0xff] %v7091
          %7368 = vst [vmem:[%s707 + $0xd8] sm:$0xff] %v7092
          %7369 = vst [vmem:[%s707 + $0xe0] sm:$0xff] %v7093
          %7370 = vst [vmem:[%s707 + $0xe8] sm:$0xff] %v7094
          %7371 = vst [vmem:[%s707 + $0xf0] sm:$0xff] %v7095
          %7372 = vst [vmem:[%s707 + $0xf8] sm:$0xff] %v7096
        $region112: #{transformer_forward.1} parent=67 // pred_fallthru
          _
        %s7373 = sand.u32 %s347, 1
        %s7374 = scalar_lea.sflag [#allocation4], %s7373
        %s7375 = sand.u32 %s347, 1
        %s7376 = smul.addr %s7375, 256
        %s7377 = scalar_lea.vmem [#allocation13], %s7376
        // Predicated region
        $region113: #{transformer_forward.1} parent=67 // pred_check
          %p7378 = pneg %p357
        $region114: #{transformer_forward.1} parent=67 // pred_check_branch
          %7380 = sbr.rel (%p7378) target = $region116
        $region115: #{transformer_forward.1} parent=67 // pred_region
          %s7381 = smul.u32 2, %s34
          %s7383 = ssub.s32 4096, 4096
          %7384 = vsyncadd %s7374, %s7383
          %s7385 = smul.addr %s7381, 16
          %s7386 = smul.addr %s7385, 128
          %s7387 = scalar_lea.hbm %s12, %s7386
          %s7388 = sshll.u32 %s7377, 4
          %s7389 = int_to_ptr.vmem [resolvable:$true] %s7388
          %7394 = dma.vmem_to_hbm [thread:$0]  %s7389, 4096, %s7387, %s7374, 256, 256, 16
        $region116: #{transformer_forward.1} parent=67 // pred_fallthru
          _
      $region68: #{transformer_forward.1} parent=5 // pred_fallthru
        _
      %p7395 = scmp.le.s32.totalorder 2, %s25
      // Predicated region
      $region117: #{transformer_forward.1} parent=5 // pred_check
        %p7396 = pneg %p7395
      $region118: #{transformer_forward.1} parent=5 // pred_check_branch
        %7398 = sbr.rel (%p7396) target = $region120
      $region119: #{transformer_forward.1} parent=5 // pred_region
        %s7399 = ssub.s32 %s25, 2
        // Predicated region
        $region121: #{transformer_forward.1} parent=119 // pred_check
          %p7400 = pneg %p363
        $region122: #{transformer_forward.1} parent=119 // pred_check_branch
          %7402 = sbr.rel (%p7400) target = $region124
        $region123: #{transformer_forward.1} parent=119 // pred_region
          %s7403 = sand.u32 %s348, 1
          %s7404 = scalar_lea.sflag [#allocation4], %s7403
          %s7405 = sand.u32 %s348, 1
          %s7406 = smul.addr %s7405, 256
          %s7407 = scalar_lea.vmem [#allocation13], %s7406
          %7408 = dma.done %s7404, 4096
        $region124: #{transformer_forward.1} parent=119 // pred_fallthru
          _
      $region120: #{transformer_forward.1} parent=5 // pred_fallthru
        _
    $region6: #{transformer_forward.1} parent=1 // loop_footer
      %s29 = sadd.s32 1, %s25
    $region7: #{transformer_forward.1} parent=1 // loop_footer_branch
      %24 = sbr.rel target = $region3
    $region8: #{transformer_forward.1} parent=1 // loop_exit
      _
    %7409 = vsyncpa [#allocation3], 1
    %s7410 = scalar_lea.sflag [#allocation3], 1
    %7411 = vsyncpa %s7410, 1
    %7412 = vsyncpa [#allocation6], 1
    %7413 = vsyncpa [#allocation4], 1
    %s7414 = scalar_lea.sflag [#allocation4], 1
    %7415 = vsyncpa %s7414, 1

</llo_original>
